<compile_context>
chip_gen: v7x
topology: tpu7x:2x2x1
jax: 0.10.0
libtpu: 0.0.40
codegen_flags: <defaults>
</compile_context>

<pallas_src>
import functools
import math

import jax
import jax.numpy as jnp
from jax.experimental import pallas as pl
from jax.experimental.pallas import tpu as pltpu


# ------------------------- small config (stand-in sizes) ----------------------
B = 2                 # batch
IMG_C, IMG_H, IMG_W = 3, 16, 16
PATCH = 4             # patch conv kernel=stride (stand-in for resnet trunk stride)
N_TOK = (IMG_H // PATCH) * (IMG_W // PATCH)   # 16 visual tokens
C_FEAT = 32           # num_ftrs stand-in (real: 1024)
D_MODEL = 32          # d_model stand-in (real: 256)
N_HEADS = 4           # config['H']
N_LAYERS = 2          # config['N']
D_FF = 64             # decoder FFN dim (real: 1024)
TEXT_DIM = 64         # BERT CLS dim stand-in (real: 768)
NUM_Q = 8             # number of disease queries (real: 75)
NUM_ANA = 16          # anatomy book entries
N_ANA_PER_Q = 8       # anatomy entries gathered per (batch, disease)
ATTR_SIZE = 2         # config['attribute_set_size']
EPS = 1e-5
OUT_LANES = 128       # lane-dense packed head-output slab width


# ------------------------------ kernel helpers --------------------------------
def _dot(a, w):
    """bf16-operand MXU matmul with f32 accumulation."""
    return jnp.dot(a.astype(jnp.bfloat16), w.astype(jnp.bfloat16),
                   preferred_element_type=jnp.float32)


def _layernorm(x, g, b, eps=EPS):
    # x: (L, D) f32; g, b: (1, D) f32
    mu = jnp.mean(x, axis=-1, keepdims=True)
    xc = x - mu
    var = jnp.mean(xc * xc, axis=-1, keepdims=True)
    return xc * jax.lax.rsqrt(var + eps) * g + b


def _mha(xq, xkv, in_w, in_b, out_w, out_b, nheads, self_attn):
    """Head-batched multi-head attention on (Lq, D) / (Lk, D) f32 tensors.

    Fused QKV (self) / Q + fused KV (cross) projections; heads are batched in
    a single dot_general per score / PV contraction (no per-head loop, no
    concat); softmax stays in f32 with an EUP reciprocal.
    """
    d = xq.shape[-1]
    hd = d // nheads
    if self_attn:
        qkv = _dot(xq, in_w) + in_b
        q, k, v = qkv[:, 0:d], qkv[:, d:2 * d], qkv[:, 2 * d:3 * d]
    else:
        q = _dot(xq, in_w[:, 0:d]) + in_b[:, 0:d]
        kv = _dot(xkv, in_w[:, d:3 * d]) + in_b[:, d:3 * d]
        k, v = kv[:, 0:d], kv[:, d:2 * d]

    q = q * (1.0 / math.sqrt(hd))                       # scale applied once, full width
    lq, lk = q.shape[0], k.shape[0]
    qh = q.reshape(lq, nheads, hd).astype(jnp.bfloat16)
    kh = k.reshape(lk, nheads, hd).astype(jnp.bfloat16)
    vh = v.reshape(lk, nheads, hd).astype(jnp.bfloat16)

    scores = jnp.einsum('qhd,khd->hqk', qh, kh,
                        preferred_element_type=jnp.float32)        # (H, Lq, Lk) f32
    m = jnp.max(scores, axis=-1, keepdims=True)
    e = jnp.exp(scores - m)
    attn = e * pl.reciprocal(jnp.sum(e, axis=-1, keepdims=True), approx=True)

    oh = jnp.einsum('hqk,khd->qhd', attn.astype(jnp.bfloat16), vh,
                    preferred_element_type=jnp.float32)            # (Lq, H, hd) f32
    o = oh.reshape(lq, d)
    return _dot(o, out_w) + out_b


# ------------------------------ fused kernel -----------------------------------
def fused_medklip_kernel(nheads,
                         # data
                         patches_ref, anat_ref, dis_book_ref,
                         # image stem + query embedding
                         patch_w_ref, patch_b_ref, l1_w_ref, l1_b_ref,
                         l2_w_ref, l2_b_ref, emb_w_ref, emb_b_ref,
                         # streamed per-layer decoder weights (block (1, ...))
                         sa_in_w_ref, sa_in_b_ref, sa_out_w_ref, sa_out_b_ref,
                         ca_in_w_ref, ca_in_b_ref, ca_out_w_ref, ca_out_b_ref,
                         ln_w_ref, ln_b_ref,
                         ff_w1_ref, ff_b1_ref, ff_w2_ref, ff_b2_ref,
                         # head
                         dn_w_ref, dn_b_ref, cls_w_ref, cls_b_ref,
                         clf_w_ref, clf_b_ref,
                         # output (lane-dense packed slab, one batch element)
                         out_ref,
                         # VMEM scratch (persist across the layer grid axis)
                         mem_sc, tgt_sc):
    layer = pl.program_id(1)
    n_layers = pl.num_programs(1)

    # ---- layer 0: visual stem + disease-query embedding into scratch ----
    @pl.when(layer == 0)
    def _stem():
        feat = _dot(patches_ref[0], patch_w_ref[...]) + patch_b_ref[...]
        h = jnp.maximum(_dot(feat, l1_w_ref[...]) + l1_b_ref[...], 0.0)
        mem_sc[...] = _dot(h, l2_w_ref[...]) + l2_b_ref[...]            # (N_TOK, D)
        tgt_sc[...] = _dot(dis_book_ref[...], emb_w_ref[...]) + emb_b_ref[...]  # (Q, D)

    mem = mem_sc[...]
    tgt = tgt_sc[...]
    lw = ln_w_ref[0]      # (3, D)
    lb = ln_b_ref[0]

    # ---- one pre-norm DETR-style decoder layer per grid step (pos = None) ----
    # self attention
    t2 = _layernorm(tgt, lw[0:1], lb[0:1])
    tgt = tgt + _mha(t2, t2, sa_in_w_ref[0], sa_in_b_ref[0],
                     sa_out_w_ref[0], sa_out_b_ref[0], nheads, True)
    # cross attention (query = tgt, key/value = visual memory)
    t2 = _layernorm(tgt, lw[1:2], lb[1:2])
    tgt = tgt + _mha(t2, mem, ca_in_w_ref[0], ca_in_b_ref[0],
                     ca_out_w_ref[0], ca_out_b_ref[0], nheads, False)
    # FFN
    t2 = _layernorm(tgt, lw[2:3], lb[2:3])
    hff = jnp.maximum(_dot(t2, ff_w1_ref[0]) + ff_b1_ref[0], 0.0)
    tgt = tgt + _dot(hff, ff_w2_ref[0]) + ff_b2_ref[0]
    tgt_sc[...] = tgt

    # ---- last layer: final LayerNorm, classifier, cl_fc + anatomy reduce ----
    @pl.when(layer == n_layers - 1)
    def _head():
        x = _layernorm(tgt, dn_w_ref[...], dn_b_ref[...])               # (Q, D)
        logits = _dot(x, cls_w_ref[...]) + cls_b_ref[...]               # (Q, A)
        cl = _dot(x, clf_w_ref[...]) + clf_b_ref[...]                   # (Q, T)
        anat = anat_ref[0]                                              # (Q, 8, T)
        # bmm(anatomy_query, cl.unsqueeze(-1)).squeeze(): VPU multiply +
        # lane reduce (avoids tiny N=8 MXU matmuls / MRF drains on v5e/v6e).
        ll = jnp.sum(anat * cl[:, None, :], axis=-1)                    # (Q, 8)
        pad_cols = out_ref.shape[-1] - logits.shape[-1] - ll.shape[-1]
        pad = jnp.zeros((x.shape[0], pad_cols), jnp.float32)
        out_ref[0] = jnp.concatenate([logits, ll, pad], axis=-1)        # (Q, 128)


# ------------------------------ pallas wrapper ----------------------------------
def _rep_spec(shape):
    n = len(shape)
    return pl.BlockSpec(shape, lambda b, l, _n=n: (0,) * _n)


def _batch_spec(shape):
    n = len(shape) - 1
    return pl.BlockSpec((1,) + tuple(shape[1:]),
                        lambda b, l, _n=n: (b,) + (0,) * _n)


def _layer_spec(shape):
    n = len(shape) - 1
    return pl.BlockSpec((1,) + tuple(shape[1:]),
                        lambda b, l, _n=n: (l,) + (0,) * _n)


def _cost_estimate(batch, args_nbytes, out_nbytes):
    d, dff = D_MODEL, D_FF
    stem = N_TOK * (IMG_C * PATCH * PATCH * C_FEAT + C_FEAT * C_FEAT + C_FEAT * d)
    emb = NUM_Q * TEXT_DIM * d
    attn_self = NUM_Q * d * 3 * d + 2 * NUM_Q * NUM_Q * d + NUM_Q * d * d
    attn_cross = (NUM_Q * d * d + N_TOK * d * 2 * d
                  + 2 * NUM_Q * N_TOK * d + NUM_Q * d * d)
    ffn = 2 * NUM_Q * d * dff
    head = NUM_Q * d * (ATTR_SIZE + TEXT_DIM) + NUM_Q * N_ANA_PER_Q * TEXT_DIM
    flops = 2 * batch * (stem + emb + N_LAYERS * (attn_self + attn_cross + ffn) + head)
    transc = batch * N_LAYERS * N_HEADS * NUM_Q * (NUM_Q + N_TOK)
    return pl.CostEstimate(flops=int(flops), transcendentals=int(transc),
                           bytes_accessed=int(args_nbytes + out_nbytes))


def medklip_fused_call(patches, anatomy, params):
    batch = patches.shape[0]

    arg_specs = [
        (patches, 'b'), (anatomy, 'b'), (params['disease_book'], 'r'),
        (params['patch_w'], 'r'), (params['patch_b'], 'r'),
        (params['res_l1_w'], 'r'), (params['res_l1_b'], 'r'),
        (params['res_l2_w'], 'r'), (params['res_l2_b'], 'r'),
        (params['dis_emb_w'], 'r'), (params['dis_emb_b'], 'r'),
        (params['sa_in_w'], 'l'), (params['sa_in_b'], 'l'),
        (params['sa_out_w'], 'l'), (params['sa_out_b'], 'l'),
        (params['ca_in_w'], 'l'), (params['ca_in_b'], 'l'),
        (params['ca_out_w'], 'l'), (params['ca_out_b'], 'l'),
        (params['ln_w'], 'l'), (params['ln_b'], 'l'),
        (params['ff_w1'], 'l'), (params['ff_b1'], 'l'),
        (params['ff_w2'], 'l'), (params['ff_b2'], 'l'),
        (params['dec_norm_w'], 'r'), (params['dec_norm_b'], 'r'),
        (params['cls_w'], 'r'), (params['cls_b'], 'r'),
        (params['cl_fc_w'], 'r'), (params['cl_fc_b'], 'r'),
    ]
    args = [a for a, _ in arg_specs]
    kind_fn = {'b': _batch_spec, 'l': _layer_spec, 'r': _rep_spec}
    in_specs = [kind_fn[k](a.shape) for a, k in arg_specs]

    out_shape = jax.ShapeDtypeStruct((batch, NUM_Q, OUT_LANES), jnp.float32)
    args_nbytes = sum(int(a.size) * a.dtype.itemsize for a in args)
    out_nbytes = batch * NUM_Q * OUT_LANES * 4

    return pl.pallas_call(
        functools.partial(fused_medklip_kernel, N_HEADS),
        out_shape=out_shape,
        grid=(batch, N_LAYERS),
        in_specs=in_specs,
        out_specs=pl.BlockSpec((1, NUM_Q, OUT_LANES), lambda b, l: (b, 0, 0)),
        scratch_shapes=[pltpu.VMEM((N_TOK, D_MODEL), jnp.float32),
                        pltpu.VMEM((NUM_Q, D_MODEL), jnp.float32)],
        compiler_params=pltpu.CompilerParams(
            dimension_semantics=("parallel", "arbitrary"),
            vmem_limit_bytes=32 * 1024 * 1024),
        cost_estimate=_cost_estimate(batch, args_nbytes, out_nbytes),
    )(*args)


# ------------------------------ parameters --------------------------------------
def init_params(key):
    ks = iter(jax.random.split(key, 64))
    std = 0.02

    def w(shape):
        # matmul weights stored in bf16 (MXU operands; halves VMEM residency)
        return (std * jax.random.normal(next(ks), shape, jnp.float32)).astype(jnp.bfloat16)

    def zeros(shape):
        return jnp.zeros(shape, jnp.float32)

    L = N_LAYERS
    return {
        # precomputed BERT CLS embeddings (stand-ins)
        'ana_book': jax.random.normal(next(ks), (NUM_ANA, TEXT_DIM), jnp.float32),
        'disease_book': jax.random.normal(next(ks), (NUM_Q, TEXT_DIM), jnp.float32),
        # disease_embedding_layer: Linear(768 -> 256)
        'dis_emb_w': w((TEXT_DIM, D_MODEL)), 'dis_emb_b': zeros((1, D_MODEL)),
        # visual stem (res_features stand-in) + res_l1 / res_l2
        'patch_w': w((IMG_C * PATCH * PATCH, C_FEAT)), 'patch_b': zeros((1, C_FEAT)),
        'res_l1_w': w((C_FEAT, C_FEAT)), 'res_l1_b': zeros((1, C_FEAT)),
        'res_l2_w': w((C_FEAT, D_MODEL)), 'res_l2_b': zeros((1, D_MODEL)),
        # decoder final norm
        'dec_norm_w': jnp.ones((1, D_MODEL), jnp.float32),
        'dec_norm_b': zeros((1, D_MODEL)),
        # classifier: Linear(d_model -> attribute_set_size)
        'cls_w': w((D_MODEL, ATTR_SIZE)), 'cls_b': zeros((1, ATTR_SIZE)),
        # cl_fc: Linear(256 -> 768)
        'cl_fc_w': w((D_MODEL, TEXT_DIM)), 'cl_fc_b': zeros((1, TEXT_DIM)),
        # decoder layer weights stacked along a leading layer axis (streamed)
        'sa_in_w': w((L, D_MODEL, 3 * D_MODEL)), 'sa_in_b': zeros((L, 1, 3 * D_MODEL)),
        'sa_out_w': w((L, D_MODEL, D_MODEL)), 'sa_out_b': zeros((L, 1, D_MODEL)),
        'ca_in_w': w((L, D_MODEL, 3 * D_MODEL)), 'ca_in_b': zeros((L, 1, 3 * D_MODEL)),
        'ca_out_w': w((L, D_MODEL, D_MODEL)), 'ca_out_b': zeros((L, 1, D_MODEL)),
        'ln_w': jnp.ones((L, 3, D_MODEL), jnp.float32),
        'ln_b': zeros((L, 3, D_MODEL)),
        'ff_w1': w((L, D_MODEL, D_FF)), 'ff_b1': zeros((L, 1, D_FF)),
        'ff_w2': w((L, D_FF, D_MODEL)), 'ff_b2': zeros((L, 1, D_MODEL)),
    }


# ------------------------------ forward ------------------------------------------
@jax.jit
def medklip_forward(params, images, labels, sample_index):
    """MedKLIP.forward with is_train=True, no_cl=False, exclude_class=False."""
    batch = images.shape[0]

    # ---- im2col patchify (glue; matmuls run inside the fused Pallas kernel) ----
    n1, n2 = IMG_H // PATCH, IMG_W // PATCH
    patches = images.reshape(batch, IMG_C, n1, PATCH, n2, PATCH)
    patches = patches.transpose(0, 2, 4, 1, 3, 5).reshape(
        batch, n1 * n2, IMG_C * PATCH * PATCH)

    # ---- anatomy gather (glue) ----
    anatomy = params['ana_book'][sample_index]          # (B, Q, 8, TEXT_DIM)

    # ---- one fused Pallas kernel for the whole forward ----
    slab = medklip_fused_call(patches, anatomy, params)  # (B, Q, 128)
    logits = slab[:, :, :ATTR_SIZE].reshape(-1, ATTR_SIZE)                  # (B*Q, A)
    ll = slab[:, :, ATTR_SIZE:ATTR_SIZE + N_ANA_PER_Q].reshape(-1, N_ANA_PER_Q)

    # ---- masked cross-entropy losses (glue reductions) ----
    labels_flat = labels.reshape(-1)                    # (B*Q,)
    mask = ((labels_flat != -1) & (labels_flat != 2)).astype(jnp.float32)
    cl_mask = (labels_flat == 1).astype(jnp.float32)

    lbl = jnp.clip(labels_flat, 0, ATTR_SIZE - 1)
    logp = jax.nn.log_softmax(logits, axis=-1)
    ce = -jnp.take_along_axis(logp, lbl[:, None], axis=-1)[:, 0]
    loss_ce = jnp.sum(ce * mask) / jnp.maximum(jnp.sum(mask), 1.0)

    logp_cl = jax.nn.log_softmax(ll, axis=-1)
    ce_cl = -logp_cl[:, 0]                              # cl_labels are all zeros
    loss_cl = jnp.sum(ce_cl * cl_mask) / jnp.maximum(jnp.sum(cl_mask), 1.0)

    loss = loss_ce + loss_cl
    return loss, loss_ce, loss_cl


# ------------------------------ main ----------------------------------------------
if __name__ == "__main__":
    key = jax.random.PRNGKey(0)
    kp, ki, kl, ks = jax.random.split(key, 4)

    params = init_params(kp)
    images = jax.random.normal(ki, (B, IMG_C, IMG_H, IMG_W), jnp.float32)   # NCHW
    labels = jax.random.randint(kl, (B, NUM_Q), -1, 3)                      # {-1,0,1,2}
    sample_index = jax.random.randint(ks, (B, NUM_Q, N_ANA_PER_Q), 0, NUM_ANA)

    out = medklip_forward(params, images, labels, sample_index)
    out = jax.block_until_ready(out)
    loss, loss_ce, loss_cl = out
    assert jnp.isfinite(loss), "non-finite loss"
    print("KERNEL_OK")
</pallas_src>

<mosaic_0001>
module attributes {stable_mosaic.version = 11 : i64} {
  func.func @fused_medklip_kernel(%arg0: i32, %arg1: i32, %arg2: memref<1x16x48xf32, #tpu.memory_space<vmem>>, %arg3: memref<1x8x8x64xf32, #tpu.memory_space<vmem>>, %arg4: memref<8x64xf32, #tpu.memory_space<vmem>>, %arg5: memref<48x32xbf16, #tpu.memory_space<vmem>>, %arg6: memref<1x32xf32, #tpu.memory_space<vmem>>, %arg7: memref<32x32xbf16, #tpu.memory_space<vmem>>, %arg8: memref<1x32xf32, #tpu.memory_space<vmem>>, %arg9: memref<32x32xbf16, #tpu.memory_space<vmem>>, %arg10: memref<1x32xf32, #tpu.memory_space<vmem>>, %arg11: memref<64x32xbf16, #tpu.memory_space<vmem>>, %arg12: memref<1x32xf32, #tpu.memory_space<vmem>>, %arg13: memref<1x32x96xbf16, #tpu.memory_space<vmem>>, %arg14: memref<1x1x96xf32, #tpu.memory_space<vmem>>, %arg15: memref<1x32x32xbf16, #tpu.memory_space<vmem>>, %arg16: memref<1x1x32xf32, #tpu.memory_space<vmem>>, %arg17: memref<1x32x96xbf16, #tpu.memory_space<vmem>>, %arg18: memref<1x1x96xf32, #tpu.memory_space<vmem>>, %arg19: memref<1x32x32xbf16, #tpu.memory_space<vmem>>, %arg20: memref<1x1x32xf32, #tpu.memory_space<vmem>>, %arg21: memref<1x3x32xf32, #tpu.memory_space<vmem>>, %arg22: memref<1x3x32xf32, #tpu.memory_space<vmem>>, %arg23: memref<1x32x64xbf16, #tpu.memory_space<vmem>>, %arg24: memref<1x1x64xf32, #tpu.memory_space<vmem>>, %arg25: memref<1x64x32xbf16, #tpu.memory_space<vmem>>, %arg26: memref<1x1x32xf32, #tpu.memory_space<vmem>>, %arg27: memref<1x32xf32, #tpu.memory_space<vmem>>, %arg28: memref<1x32xf32, #tpu.memory_space<vmem>>, %arg29: memref<32x2xbf16, #tpu.memory_space<vmem>>, %arg30: memref<1x2xf32, #tpu.memory_space<vmem>>, %arg31: memref<32x64xbf16, #tpu.memory_space<vmem>>, %arg32: memref<1x64xf32, #tpu.memory_space<vmem>>, %arg33: memref<1x8x128xf32, #tpu.memory_space<vmem>>, %arg34: memref<16x32xf32, #tpu.memory_space<vmem>>, %arg35: memref<8x32xf32, #tpu.memory_space<vmem>>) attributes {dimension_semantics = [#tpu.dimension_semantics<parallel>, #tpu.dimension_semantics<arbitrary>], iteration_bounds = array<i64: 2, 2>, scalar_prefetch = 0 : i64, scratch_operands = 2 : i64, tpu.core_type = #tpu.core_type<tc>, window_params = [{transform_indices = @transform_0, window_bounds = array<i64: 1, 16, 48>}, {transform_indices = @transform_1, window_bounds = array<i64: 1, 8, 8, 64>}, {pipeline_mode = #tpu.pipeline_mode<synchronous>, transform_indices = @transform_2, window_bounds = array<i64: 8, 64>}, {pipeline_mode = #tpu.pipeline_mode<synchronous>, transform_indices = @transform_3, window_bounds = array<i64: 48, 32>}, {pipeline_mode = #tpu.pipeline_mode<synchronous>, transform_indices = @transform_4, window_bounds = array<i64: 1, 32>}, {pipeline_mode = #tpu.pipeline_mode<synchronous>, transform_indices = @transform_5, window_bounds = array<i64: 32, 32>}, {pipeline_mode = #tpu.pipeline_mode<synchronous>, transform_indices = @transform_6, window_bounds = array<i64: 1, 32>}, {pipeline_mode = #tpu.pipeline_mode<synchronous>, transform_indices = @transform_7, window_bounds = array<i64: 32, 32>}, {pipeline_mode = #tpu.pipeline_mode<synchronous>, transform_indices = @transform_8, window_bounds = array<i64: 1, 32>}, {pipeline_mode = #tpu.pipeline_mode<synchronous>, transform_indices = @transform_9, window_bounds = array<i64: 64, 32>}, {pipeline_mode = #tpu.pipeline_mode<synchronous>, transform_indices = @transform_10, window_bounds = array<i64: 1, 32>}, {transform_indices = @transform_11, window_bounds = array<i64: 1, 32, 96>}, {transform_indices = @transform_12, window_bounds = array<i64: 1, 1, 96>}, {transform_indices = @transform_13, window_bounds = array<i64: 1, 32, 32>}, {transform_indices = @transform_14, window_bounds = array<i64: 1, 1, 32>}, {transform_indices = @transform_15, window_bounds = array<i64: 1, 32, 96>}, {transform_indices = @transform_16, window_bounds = array<i64: 1, 1, 96>}, {transform_indices = @transform_17, window_bounds = array<i64: 1, 32, 32>}, {transform_indices = @transform_18, window_bounds = array<i64: 1, 1, 32>}, {transform_indices = @transform_19, window_bounds = array<i64: 1, 3, 32>}, {transform_indices = @transform_20, window_bounds = array<i64: 1, 3, 32>}, {transform_indices = @transform_21, window_bounds = array<i64: 1, 32, 64>}, {transform_indices = @transform_22, window_bounds = array<i64: 1, 1, 64>}, {transform_indices = @transform_23, window_bounds = array<i64: 1, 64, 32>}, {transform_indices = @transform_24, window_bounds = array<i64: 1, 1, 32>}, {pipeline_mode = #tpu.pipeline_mode<synchronous>, transform_indices = @transform_25, window_bounds = array<i64: 1, 32>}, {pipeline_mode = #tpu.pipeline_mode<synchronous>, transform_indices = @transform_26, window_bounds = array<i64: 1, 32>}, {pipeline_mode = #tpu.pipeline_mode<synchronous>, transform_indices = @transform_27, window_bounds = array<i64: 32, 2>}, {pipeline_mode = #tpu.pipeline_mode<synchronous>, transform_indices = @transform_28, window_bounds = array<i64: 1, 2>}, {pipeline_mode = #tpu.pipeline_mode<synchronous>, transform_indices = @transform_29, window_bounds = array<i64: 32, 64>}, {pipeline_mode = #tpu.pipeline_mode<synchronous>, transform_indices = @transform_30, window_bounds = array<i64: 1, 64>}, {transform_indices = @transform_31, window_bounds = array<i64: 1, 8, 128>}]} {
    %c0_i32 = arith.constant 0 : i32
    %0 = arith.cmpi eq, %arg1, %c0_i32 : i32
    %1 = arith.extui %0 : i1 to i32
    %c0_i32_0 = arith.constant 0 : i32
    %2 = arith.cmpi ne, %1, %c0_i32_0 : i32
    scf.if %2 {
      %c0_81 = arith.constant 0 : index
      %c0_82 = arith.constant 0 : index
      %c0_83 = arith.constant 0 : index
      %191 = vector.load %arg2[%c0_81, %c0_82, %c0_83] : memref<1x16x48xf32, #tpu.memory_space<vmem>>, vector<1x16x48xf32>
      %192 = vector.shape_cast %191 : vector<1x16x48xf32> to vector<16x48xf32>
      %c0_84 = arith.constant 0 : index
      %c0_85 = arith.constant 0 : index
      %193 = vector.load %arg5[%c0_84, %c0_85] : memref<48x32xbf16, #tpu.memory_space<vmem>>, vector<48x32xbf16>
      %194 = arith.truncf %192 : vector<16x48xf32> to vector<16x48xbf16>
      %cst_86 = arith.constant dense<0.000000e+00> : vector<16x32xf32>
      %195 = tpu.matmul %194, %193, %cst_86 {dimension_numbers = #tpu.dot_dimension_numbers<[1], [0], [0], [1], [0, 0, 1, 1], [], []>} : vector<16x48xbf16>, vector<48x32xbf16>, vector<16x32xf32> -> vector<16x32xf32>
      %c0_87 = arith.constant 0 : index
      %c0_88 = arith.constant 0 : index
      %196 = vector.load %arg6[%c0_87, %c0_88] : memref<1x32xf32, #tpu.memory_space<vmem>>, vector<1x32xf32>
      %197 = vector.broadcast %196 : vector<1x32xf32> to vector<16x32xf32>
      %198 = arith.addf %195, %197 : vector<16x32xf32>
      %c0_89 = arith.constant 0 : index
      %c0_90 = arith.constant 0 : index
      %199 = vector.load %arg7[%c0_89, %c0_90] : memref<32x32xbf16, #tpu.memory_space<vmem>>, vector<32x32xbf16>
      %200 = arith.truncf %198 : vector<16x32xf32> to vector<16x32xbf16>
      %cst_91 = arith.constant dense<0.000000e+00> : vector<16x32xf32>
      %201 = tpu.matmul %200, %199, %cst_91 {dimension_numbers = #tpu.dot_dimension_numbers<[1], [0], [0], [1], [0, 0, 1, 1], [], []>} : vector<16x32xbf16>, vector<32x32xbf16>, vector<16x32xf32> -> vector<16x32xf32>
      %c0_92 = arith.constant 0 : index
      %c0_93 = arith.constant 0 : index
      %202 = vector.load %arg8[%c0_92, %c0_93] : memref<1x32xf32, #tpu.memory_space<vmem>>, vector<1x32xf32>
      %203 = vector.broadcast %202 : vector<1x32xf32> to vector<16x32xf32>
      %204 = arith.addf %201, %203 : vector<16x32xf32>
      %cst_94 = arith.constant 0.000000e+00 : f32
      %205 = vector.broadcast %cst_94 : f32 to vector<16x32xf32>
      %206 = arith.maximumf %204, %205 : vector<16x32xf32>
      %c0_95 = arith.constant 0 : index
      %c0_96 = arith.constant 0 : index
      %207 = vector.load %arg9[%c0_95, %c0_96] : memref<32x32xbf16, #tpu.memory_space<vmem>>, vector<32x32xbf16>
      %208 = arith.truncf %206 : vector<16x32xf32> to vector<16x32xbf16>
      %cst_97 = arith.constant dense<0.000000e+00> : vector<16x32xf32>
      %209 = tpu.matmul %208, %207, %cst_97 {dimension_numbers = #tpu.dot_dimension_numbers<[1], [0], [0], [1], [0, 0, 1, 1], [], []>} : vector<16x32xbf16>, vector<32x32xbf16>, vector<16x32xf32> -> vector<16x32xf32>
      %c0_98 = arith.constant 0 : index
      %c0_99 = arith.constant 0 : index
      %210 = vector.load %arg10[%c0_98, %c0_99] : memref<1x32xf32, #tpu.memory_space<vmem>>, vector<1x32xf32>
      %211 = vector.broadcast %210 : vector<1x32xf32> to vector<16x32xf32>
      %212 = arith.addf %209, %211 : vector<16x32xf32>
      %c0_100 = arith.constant 0 : index
      %c0_101 = arith.constant 0 : index
      %213 = vector.load %arg34[%c0_100, %c0_101] : memref<16x32xf32, #tpu.memory_space<vmem>>, vector<16x32xf32>
      tpu.vector_store %arg34[%c0_100, %c0_101], %212 {strides = array<i32>} : memref<16x32xf32, #tpu.memory_space<vmem>>, vector<16x32xf32>,
      %c0_102 = arith.constant 0 : index
      %c0_103 = arith.constant 0 : index
      %214 = vector.load %arg4[%c0_102, %c0_103] : memref<8x64xf32, #tpu.memory_space<vmem>>, vector<8x64xf32>
      %c0_104 = arith.constant 0 : index
      %c0_105 = arith.constant 0 : index
      %215 = vector.load %arg11[%c0_104, %c0_105] : memref<64x32xbf16, #tpu.memory_space<vmem>>, vector<64x32xbf16>
      %216 = arith.truncf %214 : vector<8x64xf32> to vector<8x64xbf16>
      %cst_106 = arith.constant dense<0.000000e+00> : vector<8x32xf32>
      %217 = tpu.matmul %216, %215, %cst_106 {dimension_numbers = #tpu.dot_dimension_numbers<[1], [0], [0], [1], [0, 0, 1, 1], [], []>} : vector<8x64xbf16>, vector<64x32xbf16>, vector<8x32xf32> -> vector<8x32xf32>
      %c0_107 = arith.constant 0 : index
      %c0_108 = arith.constant 0 : index
      %218 = vector.load %arg12[%c0_107, %c0_108] : memref<1x32xf32, #tpu.memory_space<vmem>>, vector<1x32xf32>
      %219 = vector.broadcast %218 : vector<1x32xf32> to vector<8x32xf32>
      %220 = arith.addf %217, %219 : vector<8x32xf32>
      %c0_109 = arith.constant 0 : index
      %c0_110 = arith.constant 0 : index
      %221 = vector.load %arg35[%c0_109, %c0_110] : memref<8x32xf32, #tpu.memory_space<vmem>>, vector<8x32xf32>
      tpu.vector_store %arg35[%c0_109, %c0_110], %220 {strides = array<i32>} : memref<8x32xf32, #tpu.memory_space<vmem>>, vector<8x32xf32>,
    } else {
    }
    %c0 = arith.constant 0 : index
    %c0_1 = arith.constant 0 : index
    %3 = vector.load %arg34[%c0, %c0_1] : memref<16x32xf32, #tpu.memory_space<vmem>>, vector<16x32xf32>
    %c0_2 = arith.constant 0 : index
    %c0_3 = arith.constant 0 : index
    %4 = vector.load %arg35[%c0_2, %c0_3] : memref<8x32xf32, #tpu.memory_space<vmem>>, vector<8x32xf32>
    %c0_4 = arith.constant 0 : index
    %c0_5 = arith.constant 0 : index
    %c0_6 = arith.constant 0 : index
    %5 = vector.load %arg21[%c0_4, %c0_5, %c0_6] : memref<1x3x32xf32, #tpu.memory_space<vmem>>, vector<1x3x32xf32>
    %6 = vector.shape_cast %5 : vector<1x3x32xf32> to vector<3x32xf32>
    %c0_7 = arith.constant 0 : index
    %c0_8 = arith.constant 0 : index
    %c0_9 = arith.constant 0 : index
    %7 = vector.load %arg22[%c0_7, %c0_8, %c0_9] : memref<1x3x32xf32, #tpu.memory_space<vmem>>, vector<1x3x32xf32>
    %8 = vector.shape_cast %7 : vector<1x3x32xf32> to vector<3x32xf32>
    %9 = vector.extract_strided_slice %6 {offsets = [0, 0], sizes = [1, 32], strides = [1, 1]} : vector<3x32xf32> to vector<1x32xf32>
    %10 = vector.extract_strided_slice %8 {offsets = [0, 0], sizes = [1, 32], strides = [1, 1]} : vector<3x32xf32> to vector<1x32xf32>
    %cst = arith.constant dense<0.000000e+00> : vector<8xf32>
    %11 = vector.multi_reduction <add>, %4, %cst [1] : vector<8x32xf32> to vector<8xf32>
    %12 = vector.shape_cast %11 : vector<8xf32> to vector<8x1xf32>
    %cst_10 = arith.constant 3.200000e+01 : f32
    %13 = vector.broadcast %cst_10 : f32 to vector<8x1xf32>
    %14 = arith.divf %12, %13 : vector<8x1xf32>
    %15 = vector.broadcast %14 : vector<8x1xf32> to vector<8x32xf32>
    %16 = arith.subf %4, %15 : vector<8x32xf32>
    %17 = arith.mulf %16, %16 : vector<8x32xf32>
    %cst_11 = arith.constant dense<0.000000e+00> : vector<8xf32>
    %18 = vector.multi_reduction <add>, %17, %cst_11 [1] : vector<8x32xf32> to vector<8xf32>
    %19 = vector.shape_cast %18 : vector<8xf32> to vector<8x1xf32>
    %cst_12 = arith.constant 3.200000e+01 : f32
    %20 = vector.broadcast %cst_12 : f32 to vector<8x1xf32>
    %21 = arith.divf %19, %20 : vector<8x1xf32>
    %cst_13 = arith.constant 9.99999974E-6 : f32
    %22 = vector.broadcast %cst_13 : f32 to vector<8x1xf32>
    %23 = arith.addf %21, %22 : vector<8x1xf32>
    %24 = math.rsqrt %23 : vector<8x1xf32>
    %25 = vector.broadcast %24 : vector<8x1xf32> to vector<8x32xf32>
    %26 = arith.mulf %16, %25 : vector<8x32xf32>
    %27 = vector.broadcast %9 : vector<1x32xf32> to vector<8x32xf32>
    %28 = arith.mulf %26, %27 : vector<8x32xf32>
    %29 = vector.broadcast %10 : vector<1x32xf32> to vector<8x32xf32>
    %30 = arith.addf %28, %29 : vector<8x32xf32>
    %c0_14 = arith.constant 0 : index
    %c0_15 = arith.constant 0 : index
    %c0_16 = arith.constant 0 : index
    %31 = vector.load %arg13[%c0_14, %c0_15, %c0_16] : memref<1x32x96xbf16, #tpu.memory_space<vmem>>, vector<1x32x96xbf16>
    %32 = vector.shape_cast %31 : vector<1x32x96xbf16> to vector<32x96xbf16>
    %c0_17 = arith.constant 0 : index
    %c0_18 = arith.constant 0 : index
    %c0_19 = arith.constant 0 : index
    %33 = vector.load %arg14[%c0_17, %c0_18, %c0_19] : memref<1x1x96xf32, #tpu.memory_space<vmem>>, vector<1x1x96xf32>
    %34 = vector.shape_cast %33 : vector<1x1x96xf32> to vector<1x96xf32>
    %c0_20 = arith.constant 0 : index
    %c0_21 = arith.constant 0 : index
    %c0_22 = arith.constant 0 : index
    %35 = vector.load %arg15[%c0_20, %c0_21, %c0_22] : memref<1x32x32xbf16, #tpu.memory_space<vmem>>, vector<1x32x32xbf16>
    %36 = vector.shape_cast %35 : vector<1x32x32xbf16> to vector<32x32xbf16>
    %c0_23 = arith.constant 0 : index
    %c0_24 = arith.constant 0 : index
    %c0_25 = arith.constant 0 : index
    %37 = vector.load %arg16[%c0_23, %c0_24, %c0_25] : memref<1x1x32xf32, #tpu.memory_space<vmem>>, vector<1x1x32xf32>
    %38 = vector.shape_cast %37 : vector<1x1x32xf32> to vector<1x32xf32>
    %39 = arith.truncf %30 : vector<8x32xf32> to vector<8x32xbf16>
    %cst_26 = arith.constant dense<0.000000e+00> : vector<8x96xf32>
    %40 = tpu.matmul %39, %32, %cst_26 {dimension_numbers = #tpu.dot_dimension_numbers<[1], [0], [0], [1], [0, 0, 1, 1], [], []>} : vector<8x32xbf16>, vector<32x96xbf16>, vector<8x96xf32> -> vector<8x96xf32>
    %41 = vector.broadcast %34 : vector<1x96xf32> to vector<8x96xf32>
    %42 = arith.addf %40, %41 : vector<8x96xf32>
    %43 = vector.extract_strided_slice %42 {offsets = [0, 0], sizes = [8, 32], strides = [1, 1]} : vector<8x96xf32> to vector<8x32xf32>
    %44 = vector.extract_strided_slice %42 {offsets = [0, 32], sizes = [8, 32], strides = [1, 1]} : vector<8x96xf32> to vector<8x32xf32>
    %45 = vector.extract_strided_slice %42 {offsets = [0, 64], sizes = [8, 32], strides = [1, 1]} : vector<8x96xf32> to vector<8x32xf32>
    %cst_27 = arith.constant 0.353553385 : f32
    %46 = vector.broadcast %cst_27 : f32 to vector<8x32xf32>
    %47 = arith.mulf %43, %46 : vector<8x32xf32>
    %48 = vector.shape_cast %47 : vector<8x32xf32> to vector<8x4x8xf32>
    %49 = arith.truncf %48 : vector<8x4x8xf32> to vector<8x4x8xbf16>
    %50 = vector.shape_cast %44 : vector<8x32xf32> to vector<8x4x8xf32>
    %51 = arith.truncf %50 : vector<8x4x8xf32> to vector<8x4x8xbf16>
    %52 = vector.shape_cast %45 : vector<8x32xf32> to vector<8x4x8xf32>
    %53 = arith.truncf %52 : vector<8x4x8xf32> to vector<8x4x8xbf16>
    "tpu.trace_start"() <{level = 10 : i32, message = "qhd,khd->hqk"}> : () -> ()
    %cst_28 = arith.constant dense<0.000000e+00> : vector<4x8x8xf32>
    %54 = tpu.matmul %49, %51, %cst_28 {dimension_numbers = #tpu.dot_dimension_numbers<[2], [2], [0], [0], [0, 1, 0, 0, 1, 0], [1], [1]>} : vector<8x4x8xbf16>, vector<8x4x8xbf16>, vector<4x8x8xf32> -> vector<4x8x8xf32>
    "tpu.trace_stop"() : () -> ()
    %cst_29 = arith.constant dense<0xFF800000> : vector<4x8xf32>
    %55 = vector.multi_reduction <maximumf>, %54, %cst_29 [2] : vector<4x8x8xf32> to vector<4x8xf32>
    %56 = vector.shape_cast %55 : vector<4x8xf32> to vector<4x8x1xf32>
    %57 = vector.broadcast %56 : vector<4x8x1xf32> to vector<4x8x8xf32>
    %58 = arith.subf %54, %57 : vector<4x8x8xf32>
    %59 = math.exp %58 : vector<4x8x8xf32>
    %cst_30 = arith.constant dense<0.000000e+00> : vector<4x8xf32>
    %60 = vector.multi_reduction <add>, %59, %cst_30 [2] : vector<4x8x8xf32> to vector<4x8xf32>
    %61 = vector.shape_cast %60 : vector<4x8xf32> to vector<4x8x1xf32>
    %62 = tpu.reciprocal %61 {approx = true} : vector<4x8x1xf32> -> vector<4x8x1xf32>
    %63 = vector.broadcast %62 : vector<4x8x1xf32> to vector<4x8x8xf32>
    %64 = arith.mulf %59, %63 : vector<4x8x8xf32>
    %65 = arith.truncf %64 : vector<4x8x8xf32> to vector<4x8x8xbf16>
    "tpu.trace_start"() <{level = 10 : i32, message = "hqk,khd->qhd"}> : () -> ()
    %cst_31 = arith.constant dense<0.000000e+00> : vector<4x8x8xf32>
    %66 = tpu.matmul %53, %65, %cst_31 {dimension_numbers = #tpu.dot_dimension_numbers<[0], [2], [2], [1], [0, 1, 0, 2, 1, 1], [1], [0]>} : vector<8x4x8xbf16>, vector<4x8x8xbf16>, vector<4x8x8xf32> -> vector<4x8x8xf32>
    %67 = tpu.transpose %66, [2, 0, 1] : vector<4x8x8xf32> -> vector<8x4x8xf32>
    "tpu.trace_stop"() : () -> ()
    %68 = vector.shape_cast %67 : vector<8x4x8xf32> to vector<8x32xf32>
    %69 = arith.truncf %68 : vector<8x32xf32> to vector<8x32xbf16>
    %cst_32 = arith.constant dense<0.000000e+00> : vector<8x32xf32>
    %70 = tpu.matmul %69, %36, %cst_32 {dimension_numbers = #tpu.dot_dimension_numbers<[1], [0], [0], [1], [0, 0, 1, 1], [], []>} : vector<8x32xbf16>, vector<32x32xbf16>, vector<8x32xf32> -> vector<8x32xf32>
    %71 = vector.broadcast %38 : vector<1x32xf32> to vector<8x32xf32>
    %72 = arith.addf %70, %71 : vector<8x32xf32>
    %73 = arith.addf %4, %72 : vector<8x32xf32>
    %74 = vector.extract_strided_slice %6 {offsets = [1, 0], sizes = [1, 32], strides = [1, 1]} : vector<3x32xf32> to vector<1x32xf32>
    %75 = vector.extract_strided_slice %8 {offsets = [1, 0], sizes = [1, 32], strides = [1, 1]} : vector<3x32xf32> to vector<1x32xf32>
    %cst_33 = arith.constant dense<0.000000e+00> : vector<8xf32>
    %76 = vector.multi_reduction <add>, %73, %cst_33 [1] : vector<8x32xf32> to vector<8xf32>
    %77 = vector.shape_cast %76 : vector<8xf32> to vector<8x1xf32>
    %cst_34 = arith.constant 3.200000e+01 : f32
    %78 = vector.broadcast %cst_34 : f32 to vector<8x1xf32>
    %79 = arith.divf %77, %78 : vector<8x1xf32>
    %80 = vector.broadcast %79 : vector<8x1xf32> to vector<8x32xf32>
    %81 = arith.subf %73, %80 : vector<8x32xf32>
    %82 = arith.mulf %81, %81 : vector<8x32xf32>
    %cst_35 = arith.constant dense<0.000000e+00> : vector<8xf32>
    %83 = vector.multi_reduction <add>, %82, %cst_35 [1] : vector<8x32xf32> to vector<8xf32>
    %84 = vector.shape_cast %83 : vector<8xf32> to vector<8x1xf32>
    %cst_36 = arith.constant 3.200000e+01 : f32
    %85 = vector.broadcast %cst_36 : f32 to vector<8x1xf32>
    %86 = arith.divf %84, %85 : vector<8x1xf32>
    %cst_37 = arith.constant 9.99999974E-6 : f32
    %87 = vector.broadcast %cst_37 : f32 to vector<8x1xf32>
    %88 = arith.addf %86, %87 : vector<8x1xf32>
    %89 = math.rsqrt %88 : vector<8x1xf32>
    %90 = vector.broadcast %89 : vector<8x1xf32> to vector<8x32xf32>
    %91 = arith.mulf %81, %90 : vector<8x32xf32>
    %92 = vector.broadcast %74 : vector<1x32xf32> to vector<8x32xf32>
    %93 = arith.mulf %91, %92 : vector<8x32xf32>
    %94 = vector.broadcast %75 : vector<1x32xf32> to vector<8x32xf32>
    %95 = arith.addf %93, %94 : vector<8x32xf32>
    %c0_38 = arith.constant 0 : index
    %c0_39 = arith.constant 0 : index
    %c0_40 = arith.constant 0 : index
    %96 = vector.load %arg17[%c0_38, %c0_39, %c0_40] : memref<1x32x96xbf16, #tpu.memory_space<vmem>>, vector<1x32x96xbf16>
    %97 = vector.shape_cast %96 : vector<1x32x96xbf16> to vector<32x96xbf16>
    %c0_41 = arith.constant 0 : index
    %c0_42 = arith.constant 0 : index
    %c0_43 = arith.constant 0 : index
    %98 = vector.load %arg18[%c0_41, %c0_42, %c0_43] : memref<1x1x96xf32, #tpu.memory_space<vmem>>, vector<1x1x96xf32>
    %99 = vector.shape_cast %98 : vector<1x1x96xf32> to vector<1x96xf32>
    %c0_44 = arith.constant 0 : index
    %c0_45 = arith.constant 0 : index
    %c0_46 = arith.constant 0 : index
    %100 = vector.load %arg19[%c0_44, %c0_45, %c0_46] : memref<1x32x32xbf16, #tpu.memory_space<vmem>>, vector<1x32x32xbf16>
    %101 = vector.shape_cast %100 : vector<1x32x32xbf16> to vector<32x32xbf16>
    %c0_47 = arith.constant 0 : index
    %c0_48 = arith.constant 0 : index
    %c0_49 = arith.constant 0 : index
    %102 = vector.load %arg20[%c0_47, %c0_48, %c0_49] : memref<1x1x32xf32, #tpu.memory_space<vmem>>, vector<1x1x32xf32>
    %103 = vector.shape_cast %102 : vector<1x1x32xf32> to vector<1x32xf32>
    %104 = vector.extract_strided_slice %97 {offsets = [0, 0], sizes = [32, 32], strides = [1, 1]} : vector<32x96xbf16> to vector<32x32xbf16>
    %105 = arith.truncf %95 : vector<8x32xf32> to vector<8x32xbf16>
    %cst_50 = arith.constant dense<0.000000e+00> : vector<8x32xf32>
    %106 = tpu.matmul %105, %104, %cst_50 {dimension_numbers = #tpu.dot_dimension_numbers<[1], [0], [0], [1], [0, 0, 1, 1], [], []>} : vector<8x32xbf16>, vector<32x32xbf16>, vector<8x32xf32> -> vector<8x32xf32>
    %107 = vector.extract_strided_slice %99 {offsets = [0, 0], sizes = [1, 32], strides = [1, 1]} : vector<1x96xf32> to vector<1x32xf32>
    %108 = vector.broadcast %107 : vector<1x32xf32> to vector<8x32xf32>
    %109 = arith.addf %106, %108 : vector<8x32xf32>
    %110 = vector.extract_strided_slice %97 {offsets = [0, 32], sizes = [32, 64], strides = [1, 1]} : vector<32x96xbf16> to vector<32x64xbf16>
    %111 = arith.truncf %3 : vector<16x32xf32> to vector<16x32xbf16>
    %cst_51 = arith.constant dense<0.000000e+00> : vector<16x64xf32>
    %112 = tpu.matmul %111, %110, %cst_51 {dimension_numbers = #tpu.dot_dimension_numbers<[1], [0], [0], [1], [0, 0, 1, 1], [], []>} : vector<16x32xbf16>, vector<32x64xbf16>, vector<16x64xf32> -> vector<16x64xf32>
    %113 = vector.extract_strided_slice %99 {offsets = [0, 32], sizes = [1, 64], strides = [1, 1]} : vector<1x96xf32> to vector<1x64xf32>
    %114 = vector.broadcast %113 : vector<1x64xf32> to vector<16x64xf32>
    %115 = arith.addf %112, %114 : vector<16x64xf32>
    %116 = vector.extract_strided_slice %115 {offsets = [0, 0], sizes = [16, 32], strides = [1, 1]} : vector<16x64xf32> to vector<16x32xf32>
    %117 = vector.extract_strided_slice %115 {offsets = [0, 32], sizes = [16, 32], strides = [1, 1]} : vector<16x64xf32> to vector<16x32xf32>
    %cst_52 = arith.constant 0.353553385 : f32
    %118 = vector.broadcast %cst_52 : f32 to vector<8x32xf32>
    %119 = arith.mulf %109, %118 : vector<8x32xf32>
    %120 = vector.shape_cast %119 : vector<8x32xf32> to vector<8x4x8xf32>
    %121 = arith.truncf %120 : vector<8x4x8xf32> to vector<8x4x8xbf16>
    %122 = vector.shape_cast %116 : vector<16x32xf32> to vector<16x4x8xf32>
    %123 = arith.truncf %122 : vector<16x4x8xf32> to vector<16x4x8xbf16>
    %124 = vector.shape_cast %117 : vector<16x32xf32> to vector<16x4x8xf32>
    %125 = arith.truncf %124 : vector<16x4x8xf32> to vector<16x4x8xbf16>
    "tpu.trace_start"() <{level = 10 : i32, message = "qhd,khd->hqk"}> : () -> ()
    %cst_53 = arith.constant dense<0.000000e+00> : vector<4x8x16xf32>
    %126 = tpu.matmul %121, %123, %cst_53 {dimension_numbers = #tpu.dot_dimension_numbers<[2], [2], [0], [0], [0, 1, 0, 0, 1, 0], [1], [1]>} : vector<8x4x8xbf16>, vector<16x4x8xbf16>, vector<4x8x16xf32> -> vector<4x8x16xf32>
    "tpu.trace_stop"() : () -> ()
    %cst_54 = arith.constant dense<0xFF800000> : vector<4x8xf32>
    %127 = vector.multi_reduction <maximumf>, %126, %cst_54 [2] : vector<4x8x16xf32> to vector<4x8xf32>
    %128 = vector.shape_cast %127 : vector<4x8xf32> to vector<4x8x1xf32>
    %129 = vector.broadcast %128 : vector<4x8x1xf32> to vector<4x8x16xf32>
    %130 = arith.subf %126, %129 : vector<4x8x16xf32>
    %131 = math.exp %130 : vector<4x8x16xf32>
    %cst_55 = arith.constant dense<0.000000e+00> : vector<4x8xf32>
    %132 = vector.multi_reduction <add>, %131, %cst_55 [2] : vector<4x8x16xf32> to vector<4x8xf32>
    %133 = vector.shape_cast %132 : vector<4x8xf32> to vector<4x8x1xf32>
    %134 = tpu.reciprocal %133 {approx = true} : vector<4x8x1xf32> -> vector<4x8x1xf32>
    %135 = vector.broadcast %134 : vector<4x8x1xf32> to vector<4x8x16xf32>
    %136 = arith.mulf %131, %135 : vector<4x8x16xf32>
    %137 = arith.truncf %136 : vector<4x8x16xf32> to vector<4x8x16xbf16>
    "tpu.trace_start"() <{level = 10 : i32, message = "hqk,khd->qhd"}> : () -> ()
    %cst_56 = arith.constant dense<0.000000e+00> : vector<4x8x8xf32>
    %138 = tpu.matmul %125, %137, %cst_56 {dimension_numbers = #tpu.dot_dimension_numbers<[0], [2], [2], [1], [0, 1, 0, 2, 1, 1], [1], [0]>} : vector<16x4x8xbf16>, vector<4x8x16xbf16>, vector<4x8x8xf32> -> vector<4x8x8xf32>
    %139 = tpu.transpose %138, [2, 0, 1] : vector<4x8x8xf32> -> vector<8x4x8xf32>
    "tpu.trace_stop"() : () -> ()
    %140 = vector.shape_cast %139 : vector<8x4x8xf32> to vector<8x32xf32>
    %141 = arith.truncf %140 : vector<8x32xf32> to vector<8x32xbf16>
    %cst_57 = arith.constant dense<0.000000e+00> : vector<8x32xf32>
    %142 = tpu.matmul %141, %101, %cst_57 {dimension_numbers = #tpu.dot_dimension_numbers<[1], [0], [0], [1], [0, 0, 1, 1], [], []>} : vector<8x32xbf16>, vector<32x32xbf16>, vector<8x32xf32> -> vector<8x32xf32>
    %143 = vector.broadcast %103 : vector<1x32xf32> to vector<8x32xf32>
    %144 = arith.addf %142, %143 : vector<8x32xf32>
    %145 = arith.addf %73, %144 : vector<8x32xf32>
    %146 = vector.extract_strided_slice %6 {offsets = [2, 0], sizes = [1, 32], strides = [1, 1]} : vector<3x32xf32> to vector<1x32xf32>
    %147 = vector.extract_strided_slice %8 {offsets = [2, 0], sizes = [1, 32], strides = [1, 1]} : vector<3x32xf32> to vector<1x32xf32>
    %cst_58 = arith.constant dense<0.000000e+00> : vector<8xf32>
    %148 = vector.multi_reduction <add>, %145, %cst_58 [1] : vector<8x32xf32> to vector<8xf32>
    %149 = vector.shape_cast %148 : vector<8xf32> to vector<8x1xf32>
    %cst_59 = arith.constant 3.200000e+01 : f32
    %150 = vector.broadcast %cst_59 : f32 to vector<8x1xf32>
    %151 = arith.divf %149, %150 : vector<8x1xf32>
    %152 = vector.broadcast %151 : vector<8x1xf32> to vector<8x32xf32>
    %153 = arith.subf %145, %152 : vector<8x32xf32>
    %154 = arith.mulf %153, %153 : vector<8x32xf32>
    %cst_60 = arith.constant dense<0.000000e+00> : vector<8xf32>
    %155 = vector.multi_reduction <add>, %154, %cst_60 [1] : vector<8x32xf32> to vector<8xf32>
    %156 = vector.shape_cast %155 : vector<8xf32> to vector<8x1xf32>
    %cst_61 = arith.constant 3.200000e+01 : f32
    %157 = vector.broadcast %cst_61 : f32 to vector<8x1xf32>
    %158 = arith.divf %156, %157 : vector<8x1xf32>
    %cst_62 = arith.constant 9.99999974E-6 : f32
    %159 = vector.broadcast %cst_62 : f32 to vector<8x1xf32>
    %160 = arith.addf %158, %159 : vector<8x1xf32>
    %161 = math.rsqrt %160 : vector<8x1xf32>
    %162 = vector.broadcast %161 : vector<8x1xf32> to vector<8x32xf32>
    %163 = arith.mulf %153, %162 : vector<8x32xf32>
    %164 = vector.broadcast %146 : vector<1x32xf32> to vector<8x32xf32>
    %165 = arith.mulf %163, %164 : vector<8x32xf32>
    %166 = vector.broadcast %147 : vector<1x32xf32> to vector<8x32xf32>
    %167 = arith.addf %165, %166 : vector<8x32xf32>
    %c0_63 = arith.constant 0 : index
    %c0_64 = arith.constant 0 : index
    %c0_65 = arith.constant 0 : index
    %168 = vector.load %arg23[%c0_63, %c0_64, %c0_65] : memref<1x32x64xbf16, #tpu.memory_space<vmem>>, vector<1x32x64xbf16>
    %169 = vector.shape_cast %168 : vector<1x32x64xbf16> to vector<32x64xbf16>
    %170 = arith.truncf %167 : vector<8x32xf32> to vector<8x32xbf16>
    %cst_66 = arith.constant dense<0.000000e+00> : vector<8x64xf32>
    %171 = tpu.matmul %170, %169, %cst_66 {dimension_numbers = #tpu.dot_dimension_numbers<[1], [0], [0], [1], [0, 0, 1, 1], [], []>} : vector<8x32xbf16>, vector<32x64xbf16>, vector<8x64xf32> -> vector<8x64xf32>
    %c0_67 = arith.constant 0 : index
    %c0_68 = arith.constant 0 : index
    %c0_69 = arith.constant 0 : index
    %172 = vector.load %arg24[%c0_67, %c0_68, %c0_69] : memref<1x1x64xf32, #tpu.memory_space<vmem>>, vector<1x1x64xf32>
    %173 = vector.shape_cast %172 : vector<1x1x64xf32> to vector<1x64xf32>
    %174 = vector.broadcast %173 : vector<1x64xf32> to vector<8x64xf32>
    %175 = arith.addf %171, %174 : vector<8x64xf32>
    %cst_70 = arith.constant 0.000000e+00 : f32
    %176 = vector.broadcast %cst_70 : f32 to vector<8x64xf32>
    %177 = arith.maximumf %175, %176 : vector<8x64xf32>
    %c0_71 = arith.constant 0 : index
    %c0_72 = arith.constant 0 : index
    %c0_73 = arith.constant 0 : index
    %178 = vector.load %arg25[%c0_71, %c0_72, %c0_73] : memref<1x64x32xbf16, #tpu.memory_space<vmem>>, vector<1x64x32xbf16>
    %179 = vector.shape_cast %178 : vector<1x64x32xbf16> to vector<64x32xbf16>
    %180 = arith.truncf %177 : vector<8x64xf32> to vector<8x64xbf16>
    %cst_74 = arith.constant dense<0.000000e+00> : vector<8x32xf32>
    %181 = tpu.matmul %180, %179, %cst_74 {dimension_numbers = #tpu.dot_dimension_numbers<[1], [0], [0], [1], [0, 0, 1, 1], [], []>} : vector<8x64xbf16>, vector<64x32xbf16>, vector<8x32xf32> -> vector<8x32xf32>
    %182 = arith.addf %145, %181 : vector<8x32xf32>
    %c0_75 = arith.constant 0 : index
    %c0_76 = arith.constant 0 : index
    %c0_77 = arith.constant 0 : index
    %183 = vector.load %arg26[%c0_75, %c0_76, %c0_77] : memref<1x1x32xf32, #tpu.memory_space<vmem>>, vector<1x1x32xf32>
    %184 = vector.shape_cast %183 : vector<1x1x32xf32> to vector<1x32xf32>
    %185 = vector.broadcast %184 : vector<1x32xf32> to vector<8x32xf32>
    %186 = arith.addf %182, %185 : vector<8x32xf32>
    %c0_78 = arith.constant 0 : index
    %c0_79 = arith.constant 0 : index
    %187 = vector.load %arg35[%c0_78, %c0_79] : memref<8x32xf32, #tpu.memory_space<vmem>>, vector<8x32xf32>
    tpu.vector_store %arg35[%c0_78, %c0_79], %186 {strides = array<i32>} : memref<8x32xf32, #tpu.memory_space<vmem>>, vector<8x32xf32>,
    %c1_i32 = arith.constant 1 : i32
    %188 = arith.cmpi eq, %arg1, %c1_i32 : i32
    %189 = arith.extui %188 : i1 to i32
    %c0_i32_80 = arith.constant 0 : i32
    %190 = arith.cmpi ne, %189, %c0_i32_80 : i32
    scf.if %190 {
      %c0_81 = arith.constant 0 : index
      %c0_82 = arith.constant 0 : index
      %191 = vector.load %arg27[%c0_81, %c0_82] : memref<1x32xf32, #tpu.memory_space<vmem>>, vector<1x32xf32>
      %c0_83 = arith.constant 0 : index
      %c0_84 = arith.constant 0 : index
      %192 = vector.load %arg28[%c0_83, %c0_84] : memref<1x32xf32, #tpu.memory_space<vmem>>, vector<1x32xf32>
      %cst_85 = arith.constant dense<0.000000e+00> : vector<8xf32>
      %193 = vector.multi_reduction <add>, %186, %cst_85 [1] : vector<8x32xf32> to vector<8xf32>
      %194 = vector.shape_cast %193 : vector<8xf32> to vector<8x1xf32>
      %cst_86 = arith.constant 3.200000e+01 : f32
      %195 = vector.broadcast %cst_86 : f32 to vector<8x1xf32>
      %196 = arith.divf %194, %195 : vector<8x1xf32>
      %197 = vector.broadcast %196 : vector<8x1xf32> to vector<8x32xf32>
      %198 = arith.subf %186, %197 : vector<8x32xf32>
      %199 = arith.mulf %198, %198 : vector<8x32xf32>
      %cst_87 = arith.constant dense<0.000000e+00> : vector<8xf32>
      %200 = vector.multi_reduction <add>, %199, %cst_87 [1] : vector<8x32xf32> to vector<8xf32>
      %201 = vector.shape_cast %200 : vector<8xf32> to vector<8x1xf32>
      %cst_88 = arith.constant 3.200000e+01 : f32
      %202 = vector.broadcast %cst_88 : f32 to vector<8x1xf32>
      %203 = arith.divf %201, %202 : vector<8x1xf32>
      %cst_89 = arith.constant 9.99999974E-6 : f32
      %204 = vector.broadcast %cst_89 : f32 to vector<8x1xf32>
      %205 = arith.addf %203, %204 : vector<8x1xf32>
      %206 = math.rsqrt %205 : vector<8x1xf32>
      %207 = vector.broadcast %206 : vector<8x1xf32> to vector<8x32xf32>
      %208 = arith.mulf %198, %207 : vector<8x32xf32>
      %209 = vector.broadcast %191 : vector<1x32xf32> to vector<8x32xf32>
      %210 = arith.mulf %208, %209 : vector<8x32xf32>
      %211 = vector.broadcast %192 : vector<1x32xf32> to vector<8x32xf32>
      %212 = arith.addf %210, %211 : vector<8x32xf32>
      %c0_90 = arith.constant 0 : index
      %c0_91 = arith.constant 0 : index
      %213 = vector.load %arg29[%c0_90, %c0_91] : memref<32x2xbf16, #tpu.memory_space<vmem>>, vector<32x2xbf16>
      %214 = arith.truncf %212 : vector<8x32xf32> to vector<8x32xbf16>
      %cst_92 = arith.constant dense<0.000000e+00> : vector<8x2xf32>
      %215 = tpu.matmul %214, %213, %cst_92 {dimension_numbers = #tpu.dot_dimension_numbers<[1], [0], [0], [1], [0, 0, 1, 1], [], []>} : vector<8x32xbf16>, vector<32x2xbf16>, vector<8x2xf32> -> vector<8x2xf32>
      %c0_93 = arith.constant 0 : index
      %c0_94 = arith.constant 0 : index
      %216 = vector.load %arg30[%c0_93, %c0_94] : memref<1x2xf32, #tpu.memory_space<vmem>>, vector<1x2xf32>
      %217 = vector.broadcast %216 : vector<1x2xf32> to vector<8x2xf32>
      %218 = arith.addf %215, %217 : vector<8x2xf32>
      %c0_95 = arith.constant 0 : index
      %c0_96 = arith.constant 0 : index
      %219 = vector.load %arg31[%c0_95, %c0_96] : memref<32x64xbf16, #tpu.memory_space<vmem>>, vector<32x64xbf16>
      %220 = arith.truncf %212 : vector<8x32xf32> to vector<8x32xbf16>
      %cst_97 = arith.constant dense<0.000000e+00> : vector<8x64xf32>
      %221 = tpu.matmul %220, %219, %cst_97 {dimension_numbers = #tpu.dot_dimension_numbers<[1], [0], [0], [1], [0, 0, 1, 1], [], []>} : vector<8x32xbf16>, vector<32x64xbf16>, vector<8x64xf32> -> vector<8x64xf32>
      %c0_98 = arith.constant 0 : index
      %c0_99 = arith.constant 0 : index
      %222 = vector.load %arg32[%c0_98, %c0_99] : memref<1x64xf32, #tpu.memory_space<vmem>>, vector<1x64xf32>
      %223 = vector.broadcast %222 : vector<1x64xf32> to vector<8x64xf32>
      %224 = arith.addf %221, %223 : vector<8x64xf32>
      %c0_100 = arith.constant 0 : index
      %c0_101 = arith.constant 0 : index
      %c0_102 = arith.constant 0 : index
      %c0_103 = arith.constant 0 : index
      %225 = vector.load %arg3[%c0_100, %c0_101, %c0_102, %c0_103] : memref<1x8x8x64xf32, #tpu.memory_space<vmem>>, vector<1x8x8x64xf32>
      %226 = vector.shape_cast %225 : vector<1x8x8x64xf32> to vector<8x8x64xf32>
      %227 = vector.shape_cast %224 : vector<8x64xf32> to vector<8x1x64xf32>
      %228 = vector.broadcast %227 : vector<8x1x64xf32> to vector<8x8x64xf32>
      %229 = arith.mulf %226, %228 : vector<8x8x64xf32>
      %cst_104 = arith.constant dense<0.000000e+00> : vector<8x8xf32>
      %230 = vector.multi_reduction <add>, %229, %cst_104 [2] : vector<8x8x64xf32> to vector<8x8xf32>
      %cst_105 = arith.constant 0.000000e+00 : f32
      %231 = vector.broadcast %cst_105 : f32 to vector<8x118xf32>
      %232 = tpu.concatenate %218, %230, %231 in 1 : vector<8x2xf32>, vector<8x8xf32>, vector<8x118xf32> -> vector<8x128xf32>
      %c0_106 = arith.constant 0 : index
      %c0_107 = arith.constant 0 : index
      %c0_108 = arith.constant 0 : index
      %233 = vector.load %arg33[%c0_106, %c0_107, %c0_108] : memref<1x8x128xf32, #tpu.memory_space<vmem>>, vector<1x8x128xf32>
      %234 = vector.shape_cast %233 : vector<1x8x128xf32> to vector<8x128xf32>
      %235 = vector.shape_cast %232 : vector<8x128xf32> to vector<1x8x128xf32>
      tpu.vector_store %arg33[%c0_106, %c0_107, %c0_108], %235 {strides = array<i32>} : memref<1x8x128xf32, #tpu.memory_space<vmem>>, vector<1x8x128xf32>,
    } else {
    }
    return
  }
  func.func @transform_0(%arg0: i32, %arg1: i32) -> (i32, i32, i32) {
    %c0_i32 = arith.constant 0 : i32
    %c0_i32_0 = arith.constant 0 : i32
    %c0_i32_1 = arith.constant 0 : i32
    return %arg0, %c0_i32, %c0_i32_0 : i32, i32, i32
  }
  func.func @transform_1(%arg0: i32, %arg1: i32) -> (i32, i32, i32, i32) {
    %c0_i32 = arith.constant 0 : i32
    %c0_i32_0 = arith.constant 0 : i32
    %c0_i32_1 = arith.constant 0 : i32
    %c0_i32_2 = arith.constant 0 : i32
    return %arg0, %c0_i32, %c0_i32_0, %c0_i32_1 : i32, i32, i32, i32
  }
  func.func @transform_2(%arg0: i32, %arg1: i32) -> (i32, i32) {
    %c0_i32 = arith.constant 0 : i32
    %c0_i32_0 = arith.constant 0 : i32
    %c0_i32_1 = arith.constant 0 : i32
    return %c0_i32, %c0_i32_0 : i32, i32
  }
  func.func @transform_3(%arg0: i32, %arg1: i32) -> (i32, i32) {
    %c0_i32 = arith.constant 0 : i32
    %c0_i32_0 = arith.constant 0 : i32
    %c0_i32_1 = arith.constant 0 : i32
    return %c0_i32, %c0_i32_0 : i32, i32
  }
  func.func @transform_4(%arg0: i32, %arg1: i32) -> (i32, i32) {
    %c0_i32 = arith.constant 0 : i32
    %c0_i32_0 = arith.constant 0 : i32
    %c0_i32_1 = arith.constant 0 : i32
    return %c0_i32, %c0_i32_0 : i32, i32
  }
  func.func @transform_5(%arg0: i32, %arg1: i32) -> (i32, i32) {
    %c0_i32 = arith.constant 0 : i32
    %c0_i32_0 = arith.constant 0 : i32
    %c0_i32_1 = arith.constant 0 : i32
    return %c0_i32, %c0_i32_0 : i32, i32
  }
  func.func @transform_6(%arg0: i32, %arg1: i32) -> (i32, i32) {
    %c0_i32 = arith.constant 0 : i32
    %c0_i32_0 = arith.constant 0 : i32
    %c0_i32_1 = arith.constant 0 : i32
    return %c0_i32, %c0_i32_0 : i32, i32
  }
  func.func @transform_7(%arg0: i32, %arg1: i32) -> (i32, i32) {
    %c0_i32 = arith.constant 0 : i32
    %c0_i32_0 = arith.constant 0 : i32
    %c0_i32_1 = arith.constant 0 : i32
    return %c0_i32, %c0_i32_0 : i32, i32
  }
  func.func @transform_8(%arg0: i32, %arg1: i32) -> (i32, i32) {
    %c0_i32 = arith.constant 0 : i32
    %c0_i32_0 = arith.constant 0 : i32
    %c0_i32_1 = arith.constant 0 : i32
    return %c0_i32, %c0_i32_0 : i32, i32
  }
  func.func @transform_9(%arg0: i32, %arg1: i32) -> (i32, i32) {
    %c0_i32 = arith.constant 0 : i32
    %c0_i32_0 = arith.constant 0 : i32
    %c0_i32_1 = arith.constant 0 : i32
    return %c0_i32, %c0_i32_0 : i32, i32
  }
  func.func @transform_10(%arg0: i32, %arg1: i32) -> (i32, i32) {
    %c0_i32 = arith.constant 0 : i32
    %c0_i32_0 = arith.constant 0 : i32
    %c0_i32_1 = arith.constant 0 : i32
    return %c0_i32, %c0_i32_0 : i32, i32
  }
  func.func @transform_11(%arg0: i32, %arg1: i32) -> (i32, i32, i32) {
    %c0_i32 = arith.constant 0 : i32
    %c0_i32_0 = arith.constant 0 : i32
    %c0_i32_1 = arith.constant 0 : i32
    return %arg1, %c0_i32, %c0_i32_0 : i32, i32, i32
  }
  func.func @transform_12(%arg0: i32, %arg1: i32) -> (i32, i32, i32) {
    %c0_i32 = arith.constant 0 : i32
    %c0_i32_0 = arith.constant 0 : i32
    %c0_i32_1 = arith.constant 0 : i32
    return %arg1, %c0_i32, %c0_i32_0 : i32, i32, i32
  }
  func.func @transform_13(%arg0: i32, %arg1: i32) -> (i32, i32, i32) {
    %c0_i32 = arith.constant 0 : i32
    %c0_i32_0 = arith.constant 0 : i32
    %c0_i32_1 = arith.constant 0 : i32
    return %arg1, %c0_i32, %c0_i32_0 : i32, i32, i32
  }
  func.func @transform_14(%arg0: i32, %arg1: i32) -> (i32, i32, i32) {
    %c0_i32 = arith.constant 0 : i32
    %c0_i32_0 = arith.constant 0 : i32
    %c0_i32_1 = arith.constant 0 : i32
    return %arg1, %c0_i32, %c0_i32_0 : i32, i32, i32
  }
  func.func @transform_15(%arg0: i32, %arg1: i32) -> (i32, i32, i32) {
    %c0_i32 = arith.constant 0 : i32
    %c0_i32_0 = arith.constant 0 : i32
    %c0_i32_1 = arith.constant 0 : i32
    return %arg1, %c0_i32, %c0_i32_0 : i32, i32, i32
  }
  func.func @transform_16(%arg0: i32, %arg1: i32) -> (i32, i32, i32) {
    %c0_i32 = arith.constant 0 : i32
    %c0_i32_0 = arith.constant 0 : i32
    %c0_i32_1 = arith.constant 0 : i32
    return %arg1, %c0_i32, %c0_i32_0 : i32, i32, i32
  }
  func.func @transform_17(%arg0: i32, %arg1: i32) -> (i32, i32, i32) {
    %c0_i32 = arith.constant 0 : i32
    %c0_i32_0 = arith.constant 0 : i32
    %c0_i32_1 = arith.constant 0 : i32
    return %arg1, %c0_i32, %c0_i32_0 : i32, i32, i32
  }
  func.func @transform_18(%arg0: i32, %arg1: i32) -> (i32, i32, i32) {
    %c0_i32 = arith.constant 0 : i32
    %c0_i32_0 = arith.constant 0 : i32
    %c0_i32_1 = arith.constant 0 : i32
    return %arg1, %c0_i32, %c0_i32_0 : i32, i32, i32
  }
  func.func @transform_19(%arg0: i32, %arg1: i32) -> (i32, i32, i32) {
    %c0_i32 = arith.constant 0 : i32
    %c0_i32_0 = arith.constant 0 : i32
    %c0_i32_1 = arith.constant 0 : i32
    return %arg1, %c0_i32, %c0_i32_0 : i32, i32, i32
  }
  func.func @transform_20(%arg0: i32, %arg1: i32) -> (i32, i32, i32) {
    %c0_i32 = arith.constant 0 : i32
    %c0_i32_0 = arith.constant 0 : i32
    %c0_i32_1 = arith.constant 0 : i32
    return %arg1, %c0_i32, %c0_i32_0 : i32, i32, i32
  }
  func.func @transform_21(%arg0: i32, %arg1: i32) -> (i32, i32, i32) {
    %c0_i32 = arith.constant 0 : i32
    %c0_i32_0 = arith.constant 0 : i32
    %c0_i32_1 = arith.constant 0 : i32
    return %arg1, %c0_i32, %c0_i32_0 : i32, i32, i32
  }
  func.func @transform_22(%arg0: i32, %arg1: i32) -> (i32, i32, i32) {
    %c0_i32 = arith.constant 0 : i32
    %c0_i32_0 = arith.constant 0 : i32
    %c0_i32_1 = arith.constant 0 : i32
    return %arg1, %c0_i32, %c0_i32_0 : i32, i32, i32
  }
  func.func @transform_23(%arg0: i32, %arg1: i32) -> (i32, i32, i32) {
    %c0_i32 = arith.constant 0 : i32
    %c0_i32_0 = arith.constant 0 : i32
    %c0_i32_1 = arith.constant 0 : i32
    return %arg1, %c0_i32, %c0_i32_0 : i32, i32, i32
  }
  func.func @transform_24(%arg0: i32, %arg1: i32) -> (i32, i32, i32) {
    %c0_i32 = arith.constant 0 : i32
    %c0_i32_0 = arith.constant 0 : i32
    %c0_i32_1 = arith.constant 0 : i32
    return %arg1, %c0_i32, %c0_i32_0 : i32, i32, i32
  }
  func.func @transform_25(%arg0: i32, %arg1: i32) -> (i32, i32) {
    %c0_i32 = arith.constant 0 : i32
    %c0_i32_0 = arith.constant 0 : i32
    %c0_i32_1 = arith.constant 0 : i32
    return %c0_i32, %c0_i32_0 : i32, i32
  }
  func.func @transform_26(%arg0: i32, %arg1: i32) -> (i32, i32) {
    %c0_i32 = arith.constant 0 : i32
    %c0_i32_0 = arith.constant 0 : i32
    %c0_i32_1 = arith.constant 0 : i32
    return %c0_i32, %c0_i32_0 : i32, i32
  }
  func.func @transform_27(%arg0: i32, %arg1: i32) -> (i32, i32) {
    %c0_i32 = arith.constant 0 : i32
    %c0_i32_0 = arith.constant 0 : i32
    %c0_i32_1 = arith.constant 0 : i32
    return %c0_i32, %c0_i32_0 : i32, i32
  }
  func.func @transform_28(%arg0: i32, %arg1: i32) -> (i32, i32) {
    %c0_i32 = arith.constant 0 : i32
    %c0_i32_0 = arith.constant 0 : i32
    %c0_i32_1 = arith.constant 0 : i32
    return %c0_i32, %c0_i32_0 : i32, i32
  }
  func.func @transform_29(%arg0: i32, %arg1: i32) -> (i32, i32) {
    %c0_i32 = arith.constant 0 : i32
    %c0_i32_0 = arith.constant 0 : i32
    %c0_i32_1 = arith.constant 0 : i32
    return %c0_i32, %c0_i32_0 : i32, i32
  }
  func.func @transform_30(%arg0: i32, %arg1: i32) -> (i32, i32) {
    %c0_i32 = arith.constant 0 : i32
    %c0_i32_0 = arith.constant 0 : i32
    %c0_i32_1 = arith.constant 0 : i32
    return %c0_i32, %c0_i32_0 : i32, i32
  }
  func.func @transform_31(%arg0: i32, %arg1: i32) -> (i32, i32, i32) {
    %c0_i32 = arith.constant 0 : i32
    %c0_i32_0 = arith.constant 0 : i32
    %c0_i32_1 = arith.constant 0 : i32
    return %arg0, %c0_i32, %c0_i32_0 : i32, i32, i32
  }
}

</mosaic_0001>

<llo_original>
// kernel: medklip_forward.1
$region0: #{medklip_forward.1}
  #allocation0 [shape = 'u32[]', space=smem, size = 0x4, offset = 0x4, fixed_abs, tag = 'smem constant byte address 0x4 - core index']
  #allocation1 [shape = 'u32[144,128]{1,0:T(1,128)}', space=vmem, size = 0x12000, scoped, tag = 'internal scratch']
  #allocation2 [shape = 'f32[16,32]{1,0:T(8,128)}', space=vmem, size = 0x2000, scoped, tag = 'scratch operand']
  #allocation3 [shape = 'f32[8,32]{1,0:T(8,128)}', space=vmem, size = 0x1000, scoped, tag = 'scratch operand']
  %s0 = inlined_call_operand.smem [shape: u32[32], index: -1, kind: input, shape index: {}]
  %s1 = sld [smem:[%s0]]
  %s2 = scalar_lea.smem %s0, 1
  %s3 = sld [smem:[%s2]]
  %s4 = scalar_lea.smem %s0, 2
  %s5 = sld [smem:[%s4]]
  %s6 = scalar_lea.smem %s0, 3
  %s7 = sld [smem:[%s6]]
  %s8 = scalar_lea.smem %s0, 4
  %s9 = sld [smem:[%s8]]
  %s10 = scalar_lea.smem %s0, 5
  %s11 = sld [smem:[%s10]]
  %s12 = scalar_lea.smem %s0, 6
  %s13 = sld [smem:[%s12]]
  %s14 = scalar_lea.smem %s0, 7
  %s15 = sld [smem:[%s14]]
  %s16 = scalar_lea.smem %s0, 8
  %s17 = sld [smem:[%s16]]
  %s18 = scalar_lea.smem %s0, 9
  %s19 = sld [smem:[%s18]]
  %s20 = scalar_lea.smem %s0, 10
  %s21 = sld [smem:[%s20]]
  %s22 = scalar_lea.smem %s0, 11
  %s23 = sld [smem:[%s22]]
  %s24 = scalar_lea.smem %s0, 12
  %s25 = sld [smem:[%s24]]
  %s26 = scalar_lea.smem %s0, 13
  %s27 = sld [smem:[%s26]]
  %s28 = scalar_lea.smem %s0, 14
  %s29 = sld [smem:[%s28]]
  %s30 = scalar_lea.smem %s0, 15
  %s31 = sld [smem:[%s30]]
  %s32 = scalar_lea.smem %s0, 16
  %s33 = sld [smem:[%s32]]
  %s34 = scalar_lea.smem %s0, 17
  %s35 = sld [smem:[%s34]]
  %s36 = scalar_lea.smem %s0, 18
  %s37 = sld [smem:[%s36]]
  %s38 = scalar_lea.smem %s0, 19
  %s39 = sld [smem:[%s38]]
  %s40 = scalar_lea.smem %s0, 20
  %s41 = sld [smem:[%s40]]
  %s42 = scalar_lea.smem %s0, 21
  %s43 = sld [smem:[%s42]]
  %s44 = scalar_lea.smem %s0, 22
  %s45 = sld [smem:[%s44]]
  %s46 = scalar_lea.smem %s0, 23
  %s47 = sld [smem:[%s46]]
  %s48 = scalar_lea.smem %s0, 24
  %s49 = sld [smem:[%s48]]
  %s50 = scalar_lea.smem %s0, 25
  %s51 = sld [smem:[%s50]]
  %s52 = scalar_lea.smem %s0, 26
  %s53 = sld [smem:[%s52]]
  %s54 = scalar_lea.smem %s0, 27
  %s55 = sld [smem:[%s54]]
  %s56 = scalar_lea.smem %s0, 28
  %s57 = sld [smem:[%s56]]
  %s58 = scalar_lea.smem %s0, 29
  %s59 = sld [smem:[%s58]]
  %s60 = scalar_lea.smem %s0, 30
  %s61 = sld [smem:[%s60]]
  %s62 = scalar_lea.smem %s0, 31
  %s63 = sld [smem:[%s62]]
  %s64 = sld [smem:[#allocation0]]
  $region165: #{medklip_forward.1} parent=0
    _
  %s66 = ssub.s32 1, %s64
  %s67 = scalar_select 0, %s66, %s64
  loop: start=0, step=1, limit=6
  $region2: #{medklip_forward.1} parent=0 // loop_pre_header
    _
  $region3: #{medklip_forward.1} parent=0 // loop_header
    %s69 = sphi 0, %s73
    %p70 = scmp.ge.s32.totalorder %s69, 6
    %s76 = sphi 0, %s88
    %s77 = sphi 0, %s84
    %s78 = sphi 0, %s76
    %s79 = sphi 0, %s77
    %s80 = sphi 0, %s78
    %s81 = sphi 0, %s79
    %s91 = sphi 0, %s93
    %s94 = sphi 0, %s91
    %s95 = sphi 0, %s94
    %s111 = sphi 0, %s95
    %s117 = sphi 0, %s119
    %s120 = sphi 0, %s117
    %s121 = sphi 0, %s120
    %s137 = sphi 0, %s121
    %s141 = sphi 0, %s141
    %s143 = sphi 0, %s141
    %s144 = sphi 0, %s143
    %s158 = sphi 0, %s144
    %s162 = sphi 0, %s162
    %s164 = sphi 0, %s162
    %s165 = sphi 0, %s164
    %s179 = sphi 0, %s165
    %s183 = sphi 0, %s183
    %s185 = sphi 0, %s183
    %s186 = sphi 0, %s185
    %s200 = sphi 0, %s186
    %s204 = sphi 0, %s204
    %s206 = sphi 0, %s204
    %s207 = sphi 0, %s206
    %s221 = sphi 0, %s207
    %s225 = sphi 0, %s225
    %s227 = sphi 0, %s225
    %s228 = sphi 0, %s227
    %s242 = sphi 0, %s228
    %s246 = sphi 0, %s246
    %s248 = sphi 0, %s246
    %s249 = sphi 0, %s248
    %s263 = sphi 0, %s249
    %s267 = sphi 0, %s267
    %s269 = sphi 0, %s267
    %s270 = sphi 0, %s269
    %s284 = sphi 0, %s270
    %s288 = sphi 0, %s288
    %s290 = sphi 0, %s288
    %s291 = sphi 0, %s290
    %s305 = sphi 0, %s291
    %s309 = sphi 0, %s309
    %s311 = sphi 0, %s309
    %s312 = sphi 0, %s311
    %s326 = sphi 0, %s312
    %s332 = sphi 0, %s334
    %s335 = sphi 0, %s332
    %s336 = sphi 0, %s335
    %s352 = sphi 0, %s336
    %s358 = sphi 0, %s360
    %s361 = sphi 0, %s358
    %s362 = sphi 0, %s361
    %s378 = sphi 0, %s362
    %s384 = sphi 0, %s386
    %s387 = sphi 0, %s384
    %s388 = sphi 0, %s387
    %s404 = sphi 0, %s388
    %s410 = sphi 0, %s412
    %s413 = sphi 0, %s410
    %s414 = sphi 0, %s413
    %s430 = sphi 0, %s414
    %s436 = sphi 0, %s438
    %s439 = sphi 0, %s436
    %s440 = sphi 0, %s439
    %s456 = sphi 0, %s440
    %s462 = sphi 0, %s464
    %s465 = sphi 0, %s462
    %s466 = sphi 0, %s465
    %s482 = sphi 0, %s466
    %s488 = sphi 0, %s490
    %s491 = sphi 0, %s488
    %s492 = sphi 0, %s491
    %s508 = sphi 0, %s492
    %s514 = sphi 0, %s516
    %s517 = sphi 0, %s514
    %s518 = sphi 0, %s517
    %s534 = sphi 0, %s518
    %s540 = sphi 0, %s542
    %s543 = sphi 0, %s540
    %s544 = sphi 0, %s543
    %s560 = sphi 0, %s544
    %s566 = sphi 0, %s568
    %s569 = sphi 0, %s566
    %s570 = sphi 0, %s569
    %s586 = sphi 0, %s570
    %s592 = sphi 0, %s594
    %s595 = sphi 0, %s592
    %s596 = sphi 0, %s595
    %s612 = sphi 0, %s596
    %s618 = sphi 0, %s620
    %s621 = sphi 0, %s618
    %s622 = sphi 0, %s621
    %s638 = sphi 0, %s622
    %s644 = sphi 0, %s646
    %s647 = sphi 0, %s644
    %s648 = sphi 0, %s647
    %s664 = sphi 0, %s648
    %s670 = sphi 0, %s672
    %s673 = sphi 0, %s670
    %s674 = sphi 0, %s673
    %s690 = sphi 0, %s674
    %s694 = sphi 0, %s694
    %s696 = sphi 0, %s694
    %s697 = sphi 0, %s696
    %s711 = sphi 0, %s697
    %s715 = sphi 0, %s715
    %s717 = sphi 0, %s715
    %s718 = sphi 0, %s717
    %s732 = sphi 0, %s718
    %s736 = sphi 0, %s736
    %s738 = sphi 0, %s736
    %s739 = sphi 0, %s738
    %s753 = sphi 0, %s739
    %s757 = sphi 0, %s757
    %s759 = sphi 0, %s757
    %s760 = sphi 0, %s759
    %s774 = sphi 0, %s760
    %s778 = sphi 0, %s778
    %s780 = sphi 0, %s778
    %s781 = sphi 0, %s780
    %s795 = sphi 0, %s781
    %s799 = sphi 0, %s799
    %s801 = sphi 0, %s799
    %s802 = sphi 0, %s801
    %s816 = sphi 0, %s802
    %s822 = sphi 0, %s824
    %s825 = sphi 0, %s822
    %s826 = sphi 0, %s825
    %s842 = sphi 0, %s826
  $region4: #{medklip_forward.1} parent=0 // loop_header_branch
    %72 = sbr.rel (%p70) target = $region8
  $region5: #{medklip_forward.1} parent=0 // loop_body
    %s74 = ssub.s32 %s69, 1
    %s75 = ssub.s32 %s69, 2
    %s82 = sadd.s32 1, %s77
    %p83 = scmp.ge.s32.totalorder %s82, 2
    %s84 = scalar_select %p83, 0, %s82
    %s85 = sadd.s32 1, %s76
    %s86 = scalar_select %p83, %s85, %s76
    %p87 = scmp.ge.s32.totalorder %s86, 2
    %s88 = scalar_select %p87, 0, %s86
    %s89 = ssub.s32 %s76, %s88
    %p90 = scmp.eq.s32.totalorder %s89, 0
    %s92 = sadd.s32 %s91, 1
    %s93 = scalar_select %p90, %s91, %s92
    %p96 = pneg %p90
    %p97 = scmp.eq.s32.totalorder %s69, 3
    %p98 = por %p96, %p97
    %p99 = scmp.ne.s32.totalorder %s91, %s94
    %p100 = scmp.eq.s32.totalorder %s69, 0
    %p101 = por %p99, %p100
    %p102 = scmp.ne.s32.totalorder %s91, %s94
    %p103 = scmp.eq.s32.totalorder %s74, 3
    %p104 = por %p102, %p103
    %p105 = scmp.ne.s32.totalorder %s94, %s95
    %p106 = scmp.eq.s32.totalorder %s74, 0
    %p107 = por %p105, %p106
    %p108 = scmp.ne.s32.totalorder %s94, %s95
    %p109 = scmp.eq.s32.totalorder %s75, 3
    %p110 = por %p108, %p109
    %p112 = scmp.ne.s32.totalorder %s95, %s111
    %p113 = scmp.eq.s32.totalorder %s75, 0
    %p114 = por %p112, %p113
    %s115 = ssub.s32 %s76, %s88
    %p116 = scmp.eq.s32.totalorder %s115, 0
    %s118 = sadd.s32 %s117, 1
    %s119 = scalar_select %p116, %s117, %s118
    %p122 = pneg %p116
    %p123 = scmp.eq.s32.totalorder %s69, 3
    %p124 = por %p122, %p123
    %p125 = scmp.ne.s32.totalorder %s117, %s120
    %p126 = scmp.eq.s32.totalorder %s69, 0
    %p127 = por %p125, %p126
    %p128 = scmp.ne.s32.totalorder %s117, %s120
    %p129 = scmp.eq.s32.totalorder %s74, 3
    %p130 = por %p128, %p129
    %p131 = scmp.ne.s32.totalorder %s120, %s121
    %p132 = scmp.eq.s32.totalorder %s74, 0
    %p133 = por %p131, %p132
    %p134 = scmp.ne.s32.totalorder %s120, %s121
    %p135 = scmp.eq.s32.totalorder %s75, 3
    %p136 = por %p134, %p135
    %p138 = scmp.ne.s32.totalorder %s121, %s137
    %p139 = scmp.eq.s32.totalorder %s75, 0
    %p140 = por %p138, %p139
    %s142 = sadd.s32 %s141, 1
    %p145 = scmp.eq.s32.totalorder %s69, 3
    %p146 = scmp.ne.s32.totalorder %s141, %s143
    %p147 = scmp.eq.s32.totalorder %s69, 0
    %p148 = por %p146, %p147
    %p149 = scmp.ne.s32.totalorder %s141, %s143
    %p150 = scmp.eq.s32.totalorder %s74, 3
    %p151 = por %p149, %p150
    %p152 = scmp.ne.s32.totalorder %s143, %s144
    %p153 = scmp.eq.s32.totalorder %s74, 0
    %p154 = por %p152, %p153
    %p155 = scmp.ne.s32.totalorder %s143, %s144
    %p156 = scmp.eq.s32.totalorder %s75, 3
    %p157 = por %p155, %p156
    %p159 = scmp.ne.s32.totalorder %s144, %s158
    %p160 = scmp.eq.s32.totalorder %s75, 0
    %p161 = por %p159, %p160
    %s163 = sadd.s32 %s162, 1
    %p166 = scmp.eq.s32.totalorder %s69, 3
    %p167 = scmp.ne.s32.totalorder %s162, %s164
    %p168 = scmp.eq.s32.totalorder %s69, 0
    %p169 = por %p167, %p168
    %p170 = scmp.ne.s32.totalorder %s162, %s164
    %p171 = scmp.eq.s32.totalorder %s74, 3
    %p172 = por %p170, %p171
    %p173 = scmp.ne.s32.totalorder %s164, %s165
    %p174 = scmp.eq.s32.totalorder %s74, 0
    %p175 = por %p173, %p174
    %p176 = scmp.ne.s32.totalorder %s164, %s165
    %p177 = scmp.eq.s32.totalorder %s75, 3
    %p178 = por %p176, %p177
    %p180 = scmp.ne.s32.totalorder %s165, %s179
    %p181 = scmp.eq.s32.totalorder %s75, 0
    %p182 = por %p180, %p181
    %s184 = sadd.s32 %s183, 1
    %p187 = scmp.eq.s32.totalorder %s69, 3
    %p188 = scmp.ne.s32.totalorder %s183, %s185
    %p189 = scmp.eq.s32.totalorder %s69, 0
    %p190 = por %p188, %p189
    %p191 = scmp.ne.s32.totalorder %s183, %s185
    %p192 = scmp.eq.s32.totalorder %s74, 3
    %p193 = por %p191, %p192
    %p194 = scmp.ne.s32.totalorder %s185, %s186
    %p195 = scmp.eq.s32.totalorder %s74, 0
    %p196 = por %p194, %p195
    %p197 = scmp.ne.s32.totalorder %s185, %s186
    %p198 = scmp.eq.s32.totalorder %s75, 3
    %p199 = por %p197, %p198
    %p201 = scmp.ne.s32.totalorder %s186, %s200
    %p202 = scmp.eq.s32.totalorder %s75, 0
    %p203 = por %p201, %p202
    %s205 = sadd.s32 %s204, 1
    %p208 = scmp.eq.s32.totalorder %s69, 3
    %p209 = scmp.ne.s32.totalorder %s204, %s206
    %p210 = scmp.eq.s32.totalorder %s69, 0
    %p211 = por %p209, %p210
    %p212 = scmp.ne.s32.totalorder %s204, %s206
    %p213 = scmp.eq.s32.totalorder %s74, 3
    %p214 = por %p212, %p213
    %p215 = scmp.ne.s32.totalorder %s206, %s207
    %p216 = scmp.eq.s32.totalorder %s74, 0
    %p217 = por %p215, %p216
    %p218 = scmp.ne.s32.totalorder %s206, %s207
    %p219 = scmp.eq.s32.totalorder %s75, 3
    %p220 = por %p218, %p219
    %p222 = scmp.ne.s32.totalorder %s207, %s221
    %p223 = scmp.eq.s32.totalorder %s75, 0
    %p224 = por %p222, %p223
    %s226 = sadd.s32 %s225, 1
    %p229 = scmp.eq.s32.totalorder %s69, 3
    %p230 = scmp.ne.s32.totalorder %s225, %s227
    %p231 = scmp.eq.s32.totalorder %s69, 0
    %p232 = por %p230, %p231
    %p233 = scmp.ne.s32.totalorder %s225, %s227
    %p234 = scmp.eq.s32.totalorder %s74, 3
    %p235 = por %p233, %p234
    %p236 = scmp.ne.s32.totalorder %s227, %s228
    %p237 = scmp.eq.s32.totalorder %s74, 0
    %p238 = por %p236, %p237
    %p239 = scmp.ne.s32.totalorder %s227, %s228
    %p240 = scmp.eq.s32.totalorder %s75, 3
    %p241 = por %p239, %p240
    %p243 = scmp.ne.s32.totalorder %s228, %s242
    %p244 = scmp.eq.s32.totalorder %s75, 0
    %p245 = por %p243, %p244
    %s247 = sadd.s32 %s246, 1
    %p250 = scmp.eq.s32.totalorder %s69, 3
    %p251 = scmp.ne.s32.totalorder %s246, %s248
    %p252 = scmp.eq.s32.totalorder %s69, 0
    %p253 = por %p251, %p252
    %p254 = scmp.ne.s32.totalorder %s246, %s248
    %p255 = scmp.eq.s32.totalorder %s74, 3
    %p256 = por %p254, %p255
    %p257 = scmp.ne.s32.totalorder %s248, %s249
    %p258 = scmp.eq.s32.totalorder %s74, 0
    %p259 = por %p257, %p258
    %p260 = scmp.ne.s32.totalorder %s248, %s249
    %p261 = scmp.eq.s32.totalorder %s75, 3
    %p262 = por %p260, %p261
    %p264 = scmp.ne.s32.totalorder %s249, %s263
    %p265 = scmp.eq.s32.totalorder %s75, 0
    %p266 = por %p264, %p265
    %s268 = sadd.s32 %s267, 1
    %p271 = scmp.eq.s32.totalorder %s69, 3
    %p272 = scmp.ne.s32.totalorder %s267, %s269
    %p273 = scmp.eq.s32.totalorder %s69, 0
    %p274 = por %p272, %p273
    %p275 = scmp.ne.s32.totalorder %s267, %s269
    %p276 = scmp.eq.s32.totalorder %s74, 3
    %p277 = por %p275, %p276
    %p278 = scmp.ne.s32.totalorder %s269, %s270
    %p279 = scmp.eq.s32.totalorder %s74, 0
    %p280 = por %p278, %p279
    %p281 = scmp.ne.s32.totalorder %s269, %s270
    %p282 = scmp.eq.s32.totalorder %s75, 3
    %p283 = por %p281, %p282
    %p285 = scmp.ne.s32.totalorder %s270, %s284
    %p286 = scmp.eq.s32.totalorder %s75, 0
    %p287 = por %p285, %p286
    %s289 = sadd.s32 %s288, 1
    %p292 = scmp.eq.s32.totalorder %s69, 3
    %p293 = scmp.ne.s32.totalorder %s288, %s290
    %p294 = scmp.eq.s32.totalorder %s69, 0
    %p295 = por %p293, %p294
    %p296 = scmp.ne.s32.totalorder %s288, %s290
    %p297 = scmp.eq.s32.totalorder %s74, 3
    %p298 = por %p296, %p297
    %p299 = scmp.ne.s32.totalorder %s290, %s291
    %p300 = scmp.eq.s32.totalorder %s74, 0
    %p301 = por %p299, %p300
    %p302 = scmp.ne.s32.totalorder %s290, %s291
    %p303 = scmp.eq.s32.totalorder %s75, 3
    %p304 = por %p302, %p303
    %p306 = scmp.ne.s32.totalorder %s291, %s305
    %p307 = scmp.eq.s32.totalorder %s75, 0
    %p308 = por %p306, %p307
    %s310 = sadd.s32 %s309, 1
    %p313 = scmp.eq.s32.totalorder %s69, 3
    %p314 = scmp.ne.s32.totalorder %s309, %s311
    %p315 = scmp.eq.s32.totalorder %s69, 0
    %p316 = por %p314, %p315
    %p317 = scmp.ne.s32.totalorder %s309, %s311
    %p318 = scmp.eq.s32.totalorder %s74, 3
    %p319 = por %p317, %p318
    %p320 = scmp.ne.s32.totalorder %s311, %s312
    %p321 = scmp.eq.s32.totalorder %s74, 0
    %p322 = por %p320, %p321
    %p323 = scmp.ne.s32.totalorder %s311, %s312
    %p324 = scmp.eq.s32.totalorder %s75, 3
    %p325 = por %p323, %p324
    %p327 = scmp.ne.s32.totalorder %s312, %s326
    %p328 = scmp.eq.s32.totalorder %s75, 0
    %p329 = por %p327, %p328
    %s330 = ssub.s32 %s77, %s84
    %p331 = scmp.eq.s32.totalorder %s330, 0
    %s333 = sadd.s32 %s332, 1
    %s334 = scalar_select %p331, %s332, %s333
    %p337 = pneg %p331
    %p338 = scmp.eq.s32.totalorder %s69, 3
    %p339 = por %p337, %p338
    %p340 = scmp.ne.s32.totalorder %s332, %s335
    %p341 = scmp.eq.s32.totalorder %s69, 0
    %p342 = por %p340, %p341
    %p343 = scmp.ne.s32.totalorder %s332, %s335
    %p344 = scmp.eq.s32.totalorder %s74, 3
    %p345 = por %p343, %p344
    %p346 = scmp.ne.s32.totalorder %s335, %s336
    %p347 = scmp.eq.s32.totalorder %s74, 0
    %p348 = por %p346, %p347
    %p349 = scmp.ne.s32.totalorder %s335, %s336
    %p350 = scmp.eq.s32.totalorder %s75, 3
    %p351 = por %p349, %p350
    %p353 = scmp.ne.s32.totalorder %s336, %s352
    %p354 = scmp.eq.s32.totalorder %s75, 0
    %p355 = por %p353, %p354
    %s356 = ssub.s32 %s77, %s84
    %p357 = scmp.eq.s32.totalorder %s356, 0
    %s359 = sadd.s32 %s358, 1
    %s360 = scalar_select %p357, %s358, %s359
    %p363 = pneg %p357
    %p364 = scmp.eq.s32.totalorder %s69, 3
    %p365 = por %p363, %p364
    %p366 = scmp.ne.s32.totalorder %s358, %s361
    %p367 = scmp.eq.s32.totalorder %s69, 0
    %p368 = por %p366, %p367
    %p369 = scmp.ne.s32.totalorder %s358, %s361
    %p370 = scmp.eq.s32.totalorder %s74, 3
    %p371 = por %p369, %p370
    %p372 = scmp.ne.s32.totalorder %s361, %s362
    %p373 = scmp.eq.s32.totalorder %s74, 0
    %p374 = por %p372, %p373
    %p375 = scmp.ne.s32.totalorder %s361, %s362
    %p376 = scmp.eq.s32.totalorder %s75, 3
    %p377 = por %p375, %p376
    %p379 = scmp.ne.s32.totalorder %s362, %s378
    %p380 = scmp.eq.s32.totalorder %s75, 0
    %p381 = por %p379, %p380
    %s382 = ssub.s32 %s77, %s84
    %p383 = scmp.eq.s32.totalorder %s382, 0
    %s385 = sadd.s32 %s384, 1
    %s386 = scalar_select %p383, %s384, %s385
    %p389 = pneg %p383
    %p390 = scmp.eq.s32.totalorder %s69, 3
    %p391 = por %p389, %p390
    %p392 = scmp.ne.s32.totalorder %s384, %s387
    %p393 = scmp.eq.s32.totalorder %s69, 0
    %p394 = por %p392, %p393
    %p395 = scmp.ne.s32.totalorder %s384, %s387
    %p396 = scmp.eq.s32.totalorder %s74, 3
    %p397 = por %p395, %p396
    %p398 = scmp.ne.s32.totalorder %s387, %s388
    %p399 = scmp.eq.s32.totalorder %s74, 0
    %p400 = por %p398, %p399
    %p401 = scmp.ne.s32.totalorder %s387, %s388
    %p402 = scmp.eq.s32.totalorder %s75, 3
    %p403 = por %p401, %p402
    %p405 = scmp.ne.s32.totalorder %s388, %s404
    %p406 = scmp.eq.s32.totalorder %s75, 0
    %p407 = por %p405, %p406
    %s408 = ssub.s32 %s77, %s84
    %p409 = scmp.eq.s32.totalorder %s408, 0
    %s411 = sadd.s32 %s410, 1
    %s412 = scalar_select %p409, %s410, %s411
    %p415 = pneg %p409
    %p416 = scmp.eq.s32.totalorder %s69, 3
    %p417 = por %p415, %p416
    %p418 = scmp.ne.s32.totalorder %s410, %s413
    %p419 = scmp.eq.s32.totalorder %s69, 0
    %p420 = por %p418, %p419
    %p421 = scmp.ne.s32.totalorder %s410, %s413
    %p422 = scmp.eq.s32.totalorder %s74, 3
    %p423 = por %p421, %p422
    %p424 = scmp.ne.s32.totalorder %s413, %s414
    %p425 = scmp.eq.s32.totalorder %s74, 0
    %p426 = por %p424, %p425
    %p427 = scmp.ne.s32.totalorder %s413, %s414
    %p428 = scmp.eq.s32.totalorder %s75, 3
    %p429 = por %p427, %p428
    %p431 = scmp.ne.s32.totalorder %s414, %s430
    %p432 = scmp.eq.s32.totalorder %s75, 0
    %p433 = por %p431, %p432
    %s434 = ssub.s32 %s77, %s84
    %p435 = scmp.eq.s32.totalorder %s434, 0
    %s437 = sadd.s32 %s436, 1
    %s438 = scalar_select %p435, %s436, %s437
    %p441 = pneg %p435
    %p442 = scmp.eq.s32.totalorder %s69, 3
    %p443 = por %p441, %p442
    %p444 = scmp.ne.s32.totalorder %s436, %s439
    %p445 = scmp.eq.s32.totalorder %s69, 0
    %p446 = por %p444, %p445
    %p447 = scmp.ne.s32.totalorder %s436, %s439
    %p448 = scmp.eq.s32.totalorder %s74, 3
    %p449 = por %p447, %p448
    %p450 = scmp.ne.s32.totalorder %s439, %s440
    %p451 = scmp.eq.s32.totalorder %s74, 0
    %p452 = por %p450, %p451
    %p453 = scmp.ne.s32.totalorder %s439, %s440
    %p454 = scmp.eq.s32.totalorder %s75, 3
    %p455 = por %p453, %p454
    %p457 = scmp.ne.s32.totalorder %s440, %s456
    %p458 = scmp.eq.s32.totalorder %s75, 0
    %p459 = por %p457, %p458
    %s460 = ssub.s32 %s77, %s84
    %p461 = scmp.eq.s32.totalorder %s460, 0
    %s463 = sadd.s32 %s462, 1
    %s464 = scalar_select %p461, %s462, %s463
    %p467 = pneg %p461
    %p468 = scmp.eq.s32.totalorder %s69, 3
    %p469 = por %p467, %p468
    %p470 = scmp.ne.s32.totalorder %s462, %s465
    %p471 = scmp.eq.s32.totalorder %s69, 0
    %p472 = por %p470, %p471
    %p473 = scmp.ne.s32.totalorder %s462, %s465
    %p474 = scmp.eq.s32.totalorder %s74, 3
    %p475 = por %p473, %p474
    %p476 = scmp.ne.s32.totalorder %s465, %s466
    %p477 = scmp.eq.s32.totalorder %s74, 0
    %p478 = por %p476, %p477
    %p479 = scmp.ne.s32.totalorder %s465, %s466
    %p480 = scmp.eq.s32.totalorder %s75, 3
    %p481 = por %p479, %p480
    %p483 = scmp.ne.s32.totalorder %s466, %s482
    %p484 = scmp.eq.s32.totalorder %s75, 0
    %p485 = por %p483, %p484
    %s486 = ssub.s32 %s77, %s84
    %p487 = scmp.eq.s32.totalorder %s486, 0
    %s489 = sadd.s32 %s488, 1
    %s490 = scalar_select %p487, %s488, %s489
    %p493 = pneg %p487
    %p494 = scmp.eq.s32.totalorder %s69, 3
    %p495 = por %p493, %p494
    %p496 = scmp.ne.s32.totalorder %s488, %s491
    %p497 = scmp.eq.s32.totalorder %s69, 0
    %p498 = por %p496, %p497
    %p499 = scmp.ne.s32.totalorder %s488, %s491
    %p500 = scmp.eq.s32.totalorder %s74, 3
    %p501 = por %p499, %p500
    %p502 = scmp.ne.s32.totalorder %s491, %s492
    %p503 = scmp.eq.s32.totalorder %s74, 0
    %p504 = por %p502, %p503
    %p505 = scmp.ne.s32.totalorder %s491, %s492
    %p506 = scmp.eq.s32.totalorder %s75, 3
    %p507 = por %p505, %p506
    %p509 = scmp.ne.s32.totalorder %s492, %s508
    %p510 = scmp.eq.s32.totalorder %s75, 0
    %p511 = por %p509, %p510
    %s512 = ssub.s32 %s77, %s84
    %p513 = scmp.eq.s32.totalorder %s512, 0
    %s515 = sadd.s32 %s514, 1
    %s516 = scalar_select %p513, %s514, %s515
    %p519 = pneg %p513
    %p520 = scmp.eq.s32.totalorder %s69, 3
    %p521 = por %p519, %p520
    %p522 = scmp.ne.s32.totalorder %s514, %s517
    %p523 = scmp.eq.s32.totalorder %s69, 0
    %p524 = por %p522, %p523
    %p525 = scmp.ne.s32.totalorder %s514, %s517
    %p526 = scmp.eq.s32.totalorder %s74, 3
    %p527 = por %p525, %p526
    %p528 = scmp.ne.s32.totalorder %s517, %s518
    %p529 = scmp.eq.s32.totalorder %s74, 0
    %p530 = por %p528, %p529
    %p531 = scmp.ne.s32.totalorder %s517, %s518
    %p532 = scmp.eq.s32.totalorder %s75, 3
    %p533 = por %p531, %p532
    %p535 = scmp.ne.s32.totalorder %s518, %s534
    %p536 = scmp.eq.s32.totalorder %s75, 0
    %p537 = por %p535, %p536
    %s538 = ssub.s32 %s77, %s84
    %p539 = scmp.eq.s32.totalorder %s538, 0
    %s541 = sadd.s32 %s540, 1
    %s542 = scalar_select %p539, %s540, %s541
    %p545 = pneg %p539
    %p546 = scmp.eq.s32.totalorder %s69, 3
    %p547 = por %p545, %p546
    %p548 = scmp.ne.s32.totalorder %s540, %s543
    %p549 = scmp.eq.s32.totalorder %s69, 0
    %p550 = por %p548, %p549
    %p551 = scmp.ne.s32.totalorder %s540, %s543
    %p552 = scmp.eq.s32.totalorder %s74, 3
    %p553 = por %p551, %p552
    %p554 = scmp.ne.s32.totalorder %s543, %s544
    %p555 = scmp.eq.s32.totalorder %s74, 0
    %p556 = por %p554, %p555
    %p557 = scmp.ne.s32.totalorder %s543, %s544
    %p558 = scmp.eq.s32.totalorder %s75, 3
    %p559 = por %p557, %p558
    %p561 = scmp.ne.s32.totalorder %s544, %s560
    %p562 = scmp.eq.s32.totalorder %s75, 0
    %p563 = por %p561, %p562
    %s564 = ssub.s32 %s77, %s84
    %p565 = scmp.eq.s32.totalorder %s564, 0
    %s567 = sadd.s32 %s566, 1
    %s568 = scalar_select %p565, %s566, %s567
    %p571 = pneg %p565
    %p572 = scmp.eq.s32.totalorder %s69, 3
    %p573 = por %p571, %p572
    %p574 = scmp.ne.s32.totalorder %s566, %s569
    %p575 = scmp.eq.s32.totalorder %s69, 0
    %p576 = por %p574, %p575
    %p577 = scmp.ne.s32.totalorder %s566, %s569
    %p578 = scmp.eq.s32.totalorder %s74, 3
    %p579 = por %p577, %p578
    %p580 = scmp.ne.s32.totalorder %s569, %s570
    %p581 = scmp.eq.s32.totalorder %s74, 0
    %p582 = por %p580, %p581
    %p583 = scmp.ne.s32.totalorder %s569, %s570
    %p584 = scmp.eq.s32.totalorder %s75, 3
    %p585 = por %p583, %p584
    %p587 = scmp.ne.s32.totalorder %s570, %s586
    %p588 = scmp.eq.s32.totalorder %s75, 0
    %p589 = por %p587, %p588
    %s590 = ssub.s32 %s77, %s84
    %p591 = scmp.eq.s32.totalorder %s590, 0
    %s593 = sadd.s32 %s592, 1
    %s594 = scalar_select %p591, %s592, %s593
    %p597 = pneg %p591
    %p598 = scmp.eq.s32.totalorder %s69, 3
    %p599 = por %p597, %p598
    %p600 = scmp.ne.s32.totalorder %s592, %s595
    %p601 = scmp.eq.s32.totalorder %s69, 0
    %p602 = por %p600, %p601
    %p603 = scmp.ne.s32.totalorder %s592, %s595
    %p604 = scmp.eq.s32.totalorder %s74, 3
    %p605 = por %p603, %p604
    %p606 = scmp.ne.s32.totalorder %s595, %s596
    %p607 = scmp.eq.s32.totalorder %s74, 0
    %p608 = por %p606, %p607
    %p609 = scmp.ne.s32.totalorder %s595, %s596
    %p610 = scmp.eq.s32.totalorder %s75, 3
    %p611 = por %p609, %p610
    %p613 = scmp.ne.s32.totalorder %s596, %s612
    %p614 = scmp.eq.s32.totalorder %s75, 0
    %p615 = por %p613, %p614
    %s616 = ssub.s32 %s77, %s84
    %p617 = scmp.eq.s32.totalorder %s616, 0
    %s619 = sadd.s32 %s618, 1
    %s620 = scalar_select %p617, %s618, %s619
    %p623 = pneg %p617
    %p624 = scmp.eq.s32.totalorder %s69, 3
    %p625 = por %p623, %p624
    %p626 = scmp.ne.s32.totalorder %s618, %s621
    %p627 = scmp.eq.s32.totalorder %s69, 0
    %p628 = por %p626, %p627
    %p629 = scmp.ne.s32.totalorder %s618, %s621
    %p630 = scmp.eq.s32.totalorder %s74, 3
    %p631 = por %p629, %p630
    %p632 = scmp.ne.s32.totalorder %s621, %s622
    %p633 = scmp.eq.s32.totalorder %s74, 0
    %p634 = por %p632, %p633
    %p635 = scmp.ne.s32.totalorder %s621, %s622
    %p636 = scmp.eq.s32.totalorder %s75, 3
    %p637 = por %p635, %p636
    %p639 = scmp.ne.s32.totalorder %s622, %s638
    %p640 = scmp.eq.s32.totalorder %s75, 0
    %p641 = por %p639, %p640
    %s642 = ssub.s32 %s77, %s84
    %p643 = scmp.eq.s32.totalorder %s642, 0
    %s645 = sadd.s32 %s644, 1
    %s646 = scalar_select %p643, %s644, %s645
    %p649 = pneg %p643
    %p650 = scmp.eq.s32.totalorder %s69, 3
    %p651 = por %p649, %p650
    %p652 = scmp.ne.s32.totalorder %s644, %s647
    %p653 = scmp.eq.s32.totalorder %s69, 0
    %p654 = por %p652, %p653
    %p655 = scmp.ne.s32.totalorder %s644, %s647
    %p656 = scmp.eq.s32.totalorder %s74, 3
    %p657 = por %p655, %p656
    %p658 = scmp.ne.s32.totalorder %s647, %s648
    %p659 = scmp.eq.s32.totalorder %s74, 0
    %p660 = por %p658, %p659
    %p661 = scmp.ne.s32.totalorder %s647, %s648
    %p662 = scmp.eq.s32.totalorder %s75, 3
    %p663 = por %p661, %p662
    %p665 = scmp.ne.s32.totalorder %s648, %s664
    %p666 = scmp.eq.s32.totalorder %s75, 0
    %p667 = por %p665, %p666
    %s668 = ssub.s32 %s77, %s84
    %p669 = scmp.eq.s32.totalorder %s668, 0
    %s671 = sadd.s32 %s670, 1
    %s672 = scalar_select %p669, %s670, %s671
    %p675 = pneg %p669
    %p676 = scmp.eq.s32.totalorder %s69, 3
    %p677 = por %p675, %p676
    %p678 = scmp.ne.s32.totalorder %s670, %s673
    %p679 = scmp.eq.s32.totalorder %s69, 0
    %p680 = por %p678, %p679
    %p681 = scmp.ne.s32.totalorder %s670, %s673
    %p682 = scmp.eq.s32.totalorder %s74, 3
    %p683 = por %p681, %p682
    %p684 = scmp.ne.s32.totalorder %s673, %s674
    %p685 = scmp.eq.s32.totalorder %s74, 0
    %p686 = por %p684, %p685
    %p687 = scmp.ne.s32.totalorder %s673, %s674
    %p688 = scmp.eq.s32.totalorder %s75, 3
    %p689 = por %p687, %p688
    %p691 = scmp.ne.s32.totalorder %s674, %s690
    %p692 = scmp.eq.s32.totalorder %s75, 0
    %p693 = por %p691, %p692
    %s695 = sadd.s32 %s694, 1
    %p698 = scmp.eq.s32.totalorder %s69, 3
    %p699 = scmp.ne.s32.totalorder %s694, %s696
    %p700 = scmp.eq.s32.totalorder %s69, 0
    %p701 = por %p699, %p700
    %p702 = scmp.ne.s32.totalorder %s694, %s696
    %p703 = scmp.eq.s32.totalorder %s74, 3
    %p704 = por %p702, %p703
    %p705 = scmp.ne.s32.totalorder %s696, %s697
    %p706 = scmp.eq.s32.totalorder %s74, 0
    %p707 = por %p705, %p706
    %p708 = scmp.ne.s32.totalorder %s696, %s697
    %p709 = scmp.eq.s32.totalorder %s75, 3
    %p710 = por %p708, %p709
    %p712 = scmp.ne.s32.totalorder %s697, %s711
    %p713 = scmp.eq.s32.totalorder %s75, 0
    %p714 = por %p712, %p713
    %s716 = sadd.s32 %s715, 1
    %p719 = scmp.eq.s32.totalorder %s69, 3
    %p720 = scmp.ne.s32.totalorder %s715, %s717
    %p721 = scmp.eq.s32.totalorder %s69, 0
    %p722 = por %p720, %p721
    %p723 = scmp.ne.s32.totalorder %s715, %s717
    %p724 = scmp.eq.s32.totalorder %s74, 3
    %p725 = por %p723, %p724
    %p726 = scmp.ne.s32.totalorder %s717, %s718
    %p727 = scmp.eq.s32.totalorder %s74, 0
    %p728 = por %p726, %p727
    %p729 = scmp.ne.s32.totalorder %s717, %s718
    %p730 = scmp.eq.s32.totalorder %s75, 3
    %p731 = por %p729, %p730
    %p733 = scmp.ne.s32.totalorder %s718, %s732
    %p734 = scmp.eq.s32.totalorder %s75, 0
    %p735 = por %p733, %p734
    %s737 = sadd.s32 %s736, 1
    %p740 = scmp.eq.s32.totalorder %s69, 3
    %p741 = scmp.ne.s32.totalorder %s736, %s738
    %p742 = scmp.eq.s32.totalorder %s69, 0
    %p743 = por %p741, %p742
    %p744 = scmp.ne.s32.totalorder %s736, %s738
    %p745 = scmp.eq.s32.totalorder %s74, 3
    %p746 = por %p744, %p745
    %p747 = scmp.ne.s32.totalorder %s738, %s739
    %p748 = scmp.eq.s32.totalorder %s74, 0
    %p749 = por %p747, %p748
    %p750 = scmp.ne.s32.totalorder %s738, %s739
    %p751 = scmp.eq.s32.totalorder %s75, 3
    %p752 = por %p750, %p751
    %p754 = scmp.ne.s32.totalorder %s739, %s753
    %p755 = scmp.eq.s32.totalorder %s75, 0
    %p756 = por %p754, %p755
    %s758 = sadd.s32 %s757, 1
    %p761 = scmp.eq.s32.totalorder %s69, 3
    %p762 = scmp.ne.s32.totalorder %s757, %s759
    %p763 = scmp.eq.s32.totalorder %s69, 0
    %p764 = por %p762, %p763
    %p765 = scmp.ne.s32.totalorder %s757, %s759
    %p766 = scmp.eq.s32.totalorder %s74, 3
    %p767 = por %p765, %p766
    %p768 = scmp.ne.s32.totalorder %s759, %s760
    %p769 = scmp.eq.s32.totalorder %s74, 0
    %p770 = por %p768, %p769
    %p771 = scmp.ne.s32.totalorder %s759, %s760
    %p772 = scmp.eq.s32.totalorder %s75, 3
    %p773 = por %p771, %p772
    %p775 = scmp.ne.s32.totalorder %s760, %s774
    %p776 = scmp.eq.s32.totalorder %s75, 0
    %p777 = por %p775, %p776
    %s779 = sadd.s32 %s778, 1
    %p782 = scmp.eq.s32.totalorder %s69, 3
    %p783 = scmp.ne.s32.totalorder %s778, %s780
    %p784 = scmp.eq.s32.totalorder %s69, 0
    %p785 = por %p783, %p784
    %p786 = scmp.ne.s32.totalorder %s778, %s780
    %p787 = scmp.eq.s32.totalorder %s74, 3
    %p788 = por %p786, %p787
    %p789 = scmp.ne.s32.totalorder %s780, %s781
    %p790 = scmp.eq.s32.totalorder %s74, 0
    %p791 = por %p789, %p790
    %p792 = scmp.ne.s32.totalorder %s780, %s781
    %p793 = scmp.eq.s32.totalorder %s75, 3
    %p794 = por %p792, %p793
    %p796 = scmp.ne.s32.totalorder %s781, %s795
    %p797 = scmp.eq.s32.totalorder %s75, 0
    %p798 = por %p796, %p797
    %s800 = sadd.s32 %s799, 1
    %p803 = scmp.eq.s32.totalorder %s69, 3
    %p804 = scmp.ne.s32.totalorder %s799, %s801
    %p805 = scmp.eq.s32.totalorder %s69, 0
    %p806 = por %p804, %p805
    %p807 = scmp.ne.s32.totalorder %s799, %s801
    %p808 = scmp.eq.s32.totalorder %s74, 3
    %p809 = por %p807, %p808
    %p810 = scmp.ne.s32.totalorder %s801, %s802
    %p811 = scmp.eq.s32.totalorder %s74, 0
    %p812 = por %p810, %p811
    %p813 = scmp.ne.s32.totalorder %s801, %s802
    %p814 = scmp.eq.s32.totalorder %s75, 3
    %p815 = por %p813, %p814
    %p817 = scmp.ne.s32.totalorder %s802, %s816
    %p818 = scmp.eq.s32.totalorder %s75, 0
    %p819 = por %p817, %p818
    %s820 = ssub.s32 %s76, %s88
    %p821 = scmp.eq.s32.totalorder %s820, 0
    %s823 = sadd.s32 %s822, 1
    %s824 = scalar_select %p821, %s822, %s823
    %p827 = pneg %p821
    %p828 = scmp.eq.s32.totalorder %s69, 3
    %p829 = por %p827, %p828
    %p830 = scmp.ne.s32.totalorder %s822, %s825
    %p831 = scmp.eq.s32.totalorder %s69, 0
    %p832 = por %p830, %p831
    %p833 = scmp.ne.s32.totalorder %s822, %s825
    %p834 = scmp.eq.s32.totalorder %s74, 3
    %p835 = por %p833, %p834
    %p836 = scmp.ne.s32.totalorder %s825, %s826
    %p837 = scmp.eq.s32.totalorder %s74, 0
    %p838 = por %p836, %p837
    %p839 = scmp.ne.s32.totalorder %s825, %s826
    %p840 = scmp.eq.s32.totalorder %s75, 3
    %p841 = por %p839, %p840
    %p843 = scmp.ne.s32.totalorder %s826, %s842
    %p844 = scmp.eq.s32.totalorder %s75, 0
    %p845 = por %p843, %p844
    %p846 = scmp.le.s32.totalorder 1, %s69
    %p847 = scmp.lt.s32.totalorder %s69, 5
    %p848 = pnand %p846, %p847
    %p849 = pneg %p848
    // Predicated region
    $region9: #{medklip_forward.1} parent=5 // pred_check
      _
    $region10: #{medklip_forward.1} parent=5 // pred_check_branch
      %851 = sbr.rel (%p848) target = $region12
    $region11: #{medklip_forward.1} parent=5 // pred_region
      %s852 = ssub.s32 %s69, 1
      // Predicated region
      $region13: #{medklip_forward.1} parent=11 // pred_check
        %p853 = pneg %p154
      $region14: #{medklip_forward.1} parent=11 // pred_check_branch
        %855 = sbr.rel (%p853) target = $region16
      $region15: #{medklip_forward.1} parent=11 // pred_region
        _
      $region16: #{medklip_forward.1} parent=11 // pred_fallthru
        _
      // Predicated region
      $region17: #{medklip_forward.1} parent=11 // pred_check
        %p856 = pneg %p175
      $region18: #{medklip_forward.1} parent=11 // pred_check_branch
        %858 = sbr.rel (%p856) target = $region20
      $region19: #{medklip_forward.1} parent=11 // pred_region
        _
      $region20: #{medklip_forward.1} parent=11 // pred_fallthru
        _
      // Predicated region
      $region21: #{medklip_forward.1} parent=11 // pred_check
        %p859 = pneg %p196
      $region22: #{medklip_forward.1} parent=11 // pred_check_branch
        %861 = sbr.rel (%p859) target = $region24
      $region23: #{medklip_forward.1} parent=11 // pred_region
        _
      $region24: #{medklip_forward.1} parent=11 // pred_fallthru
        _
      // Predicated region
      $region25: #{medklip_forward.1} parent=11 // pred_check
        %p862 = pneg %p217
      $region26: #{medklip_forward.1} parent=11 // pred_check_branch
        %864 = sbr.rel (%p862) target = $region28
      $region27: #{medklip_forward.1} parent=11 // pred_region
        _
      $region28: #{medklip_forward.1} parent=11 // pred_fallthru
        _
      // Predicated region
      $region29: #{medklip_forward.1} parent=11 // pred_check
        %p865 = pneg %p238
      $region30: #{medklip_forward.1} parent=11 // pred_check_branch
        %867 = sbr.rel (%p865) target = $region32
      $region31: #{medklip_forward.1} parent=11 // pred_region
        _
      $region32: #{medklip_forward.1} parent=11 // pred_fallthru
        _
      // Predicated region
      $region33: #{medklip_forward.1} parent=11 // pred_check
        %p868 = pneg %p259
      $region34: #{medklip_forward.1} parent=11 // pred_check_branch
        %870 = sbr.rel (%p868) target = $region36
      $region35: #{medklip_forward.1} parent=11 // pred_region
        _
      $region36: #{medklip_forward.1} parent=11 // pred_fallthru
        _
      // Predicated region
      $region37: #{medklip_forward.1} parent=11 // pred_check
        %p871 = pneg %p280
      $region38: #{medklip_forward.1} parent=11 // pred_check_branch
        %873 = sbr.rel (%p871) target = $region40
      $region39: #{medklip_forward.1} parent=11 // pred_region
        _
      $region40: #{medklip_forward.1} parent=11 // pred_fallthru
        _
      // Predicated region
      $region41: #{medklip_forward.1} parent=11 // pred_check
        %p874 = pneg %p301
      $region42: #{medklip_forward.1} parent=11 // pred_check_branch
        %876 = sbr.rel (%p874) target = $region44
      $region43: #{medklip_forward.1} parent=11 // pred_region
        _
      $region44: #{medklip_forward.1} parent=11 // pred_fallthru
        _
      // Predicated region
      $region45: #{medklip_forward.1} parent=11 // pred_check
        %p877 = pneg %p322
      $region46: #{medklip_forward.1} parent=11 // pred_check_branch
        %879 = sbr.rel (%p877) target = $region48
      $region47: #{medklip_forward.1} parent=11 // pred_region
        _
      $region48: #{medklip_forward.1} parent=11 // pred_fallthru
        _
      // Predicated region
      $region49: #{medklip_forward.1} parent=11 // pred_check
        %p880 = pneg %p707
      $region50: #{medklip_forward.1} parent=11 // pred_check_branch
        %882 = sbr.rel (%p880) target = $region52
      $region51: #{medklip_forward.1} parent=11 // pred_region
        _
      $region52: #{medklip_forward.1} parent=11 // pred_fallthru
        _
      // Predicated region
      $region53: #{medklip_forward.1} parent=11 // pred_check
        %p883 = pneg %p728
      $region54: #{medklip_forward.1} parent=11 // pred_check_branch
        %885 = sbr.rel (%p883) target = $region56
      $region55: #{medklip_forward.1} parent=11 // pred_region
        _
      $region56: #{medklip_forward.1} parent=11 // pred_fallthru
        _
      // Predicated region
      $region57: #{medklip_forward.1} parent=11 // pred_check
        %p886 = pneg %p749
      $region58: #{medklip_forward.1} parent=11 // pred_check_branch
        %888 = sbr.rel (%p886) target = $region60
      $region59: #{medklip_forward.1} parent=11 // pred_region
        _
      $region60: #{medklip_forward.1} parent=11 // pred_fallthru
        _
      // Predicated region
      $region61: #{medklip_forward.1} parent=11 // pred_check
        %p889 = pneg %p770
      $region62: #{medklip_forward.1} parent=11 // pred_check_branch
        %891 = sbr.rel (%p889) target = $region64
      $region63: #{medklip_forward.1} parent=11 // pred_region
        _
      $region64: #{medklip_forward.1} parent=11 // pred_fallthru
        _
      // Predicated region
      $region65: #{medklip_forward.1} parent=11 // pred_check
        %p892 = pneg %p791
      $region66: #{medklip_forward.1} parent=11 // pred_check_branch
        %894 = sbr.rel (%p892) target = $region68
      $region67: #{medklip_forward.1} parent=11 // pred_region
        _
      $region68: #{medklip_forward.1} parent=11 // pred_fallthru
        _
      // Predicated region
      $region69: #{medklip_forward.1} parent=11 // pred_check
        %p895 = pneg %p812
      $region70: #{medklip_forward.1} parent=11 // pred_check_branch
        %897 = sbr.rel (%p895) target = $region72
      $region71: #{medklip_forward.1} parent=11 // pred_region
        _
      $region72: #{medklip_forward.1} parent=11 // pred_fallthru
        _
    $region12: #{medklip_forward.1} parent=5 // pred_fallthru
      _
    %p898 = scmp.lt.s32.totalorder %s69, 4
    // Predicated region
    $region73: #{medklip_forward.1} parent=5 // pred_check
      %p899 = pneg %p898
    $region74: #{medklip_forward.1} parent=5 // pred_check_branch
      %901 = sbr.rel (%p899) target = $region76
    $region75: #{medklip_forward.1} parent=5 // pred_region
      // Predicated region
      $region77: #{medklip_forward.1} parent=75 // pred_check
        %p902 = pneg %p101
      $region78: #{medklip_forward.1} parent=75 // pred_check_branch
        %904 = sbr.rel (%p902) target = $region80
      $region79: #{medklip_forward.1} parent=75 // pred_region
        %p905 = scmp.lt.s32.totalorder %s76, 1
        %s906 = scalar_select %p905, %s76, 1
        %s907 = smul.addr %s906, 2
        %s908 = smul.addr %s907, 8
        %s909 = scalar_lea.vmem %s1, %s908
      $region80: #{medklip_forward.1} parent=75 // pred_fallthru
        _
      // Predicated region
      $region81: #{medklip_forward.1} parent=75 // pred_check
        %p910 = pneg %p127
      $region82: #{medklip_forward.1} parent=75 // pred_check_branch
        %912 = sbr.rel (%p910) target = $region84
      $region83: #{medklip_forward.1} parent=75 // pred_region
        %p913 = scmp.lt.s32.totalorder %s76, 1
        %s914 = scalar_select %p913, %s76, 1
        %s915 = smul.addr %s914, 8
        %s916 = smul.addr %s915, 8
        %s917 = scalar_lea.vmem %s3, %s916
      $region84: #{medklip_forward.1} parent=75 // pred_fallthru
        _
      // Predicated region
      $region85: #{medklip_forward.1} parent=75 // pred_check
        %p918 = pneg %p342
      $region86: #{medklip_forward.1} parent=75 // pred_check_branch
        %920 = sbr.rel (%p918) target = $region88
      $region87: #{medklip_forward.1} parent=75 // pred_region
        %p921 = scmp.lt.s32.totalorder %s77, 1
        %s922 = scalar_select %p921, %s77, 1
        %s923 = smul.addr %s922, 4
        %s924 = smul.addr %s923, 4
        %s925 = scalar_lea.vmem %s23, %s924
      $region88: #{medklip_forward.1} parent=75 // pred_fallthru
        _
      // Predicated region
      $region89: #{medklip_forward.1} parent=75 // pred_check
        %p926 = pneg %p368
      $region90: #{medklip_forward.1} parent=75 // pred_check_branch
        %928 = sbr.rel (%p926) target = $region92
      $region91: #{medklip_forward.1} parent=75 // pred_region
        %p929 = scmp.lt.s32.totalorder %s77, 1
        %s930 = scalar_select %p929, %s77, 1
        %s931 = scalar_lea.vmem %s25, %s930
      $region92: #{medklip_forward.1} parent=75 // pred_fallthru
        _
      // Predicated region
      $region93: #{medklip_forward.1} parent=75 // pred_check
        %p932 = pneg %p394
      $region94: #{medklip_forward.1} parent=75 // pred_check_branch
        %934 = sbr.rel (%p932) target = $region96
      $region95: #{medklip_forward.1} parent=75 // pred_region
        %p935 = scmp.lt.s32.totalorder %s77, 1
        %s936 = scalar_select %p935, %s77, 1
        %s937 = smul.addr %s936, 4
        %s938 = smul.addr %s937, 4
        %s939 = scalar_lea.vmem %s27, %s938
      $region96: #{medklip_forward.1} parent=75 // pred_fallthru
        _
      // Predicated region
      $region97: #{medklip_forward.1} parent=75 // pred_check
        %p940 = pneg %p420
      $region98: #{medklip_forward.1} parent=75 // pred_check_branch
        %942 = sbr.rel (%p940) target = $region100
      $region99: #{medklip_forward.1} parent=75 // pred_region
        %p943 = scmp.lt.s32.totalorder %s77, 1
        %s944 = scalar_select %p943, %s77, 1
        %s945 = scalar_lea.vmem %s29, %s944
      $region100: #{medklip_forward.1} parent=75 // pred_fallthru
        _
      // Predicated region
      $region101: #{medklip_forward.1} parent=75 // pred_check
        %p946 = pneg %p446
      $region102: #{medklip_forward.1} parent=75 // pred_check_branch
        %948 = sbr.rel (%p946) target = $region104
      $region103: #{medklip_forward.1} parent=75 // pred_region
        %p949 = scmp.lt.s32.totalorder %s77, 1
        %s950 = scalar_select %p949, %s77, 1
        %s951 = smul.addr %s950, 4
        %s952 = smul.addr %s951, 4
        %s953 = scalar_lea.vmem %s31, %s952
      $region104: #{medklip_forward.1} parent=75 // pred_fallthru
        _
      // Predicated region
      $region105: #{medklip_forward.1} parent=75 // pred_check
        %p954 = pneg %p472
      $region106: #{medklip_forward.1} parent=75 // pred_check_branch
        %956 = sbr.rel (%p954) target = $region108
      $region107: #{medklip_forward.1} parent=75 // pred_region
        %p957 = scmp.lt.s32.totalorder %s77, 1
        %s958 = scalar_select %p957, %s77, 1
        %s959 = scalar_lea.vmem %s33, %s958
      $region108: #{medklip_forward.1} parent=75 // pred_fallthru
        _
      // Predicated region
      $region109: #{medklip_forward.1} parent=75 // pred_check
        %p960 = pneg %p498
      $region110: #{medklip_forward.1} parent=75 // pred_check_branch
        %962 = sbr.rel (%p960) target = $region112
      $region111: #{medklip_forward.1} parent=75 // pred_region
        %p963 = scmp.lt.s32.totalorder %s77, 1
        %s964 = scalar_select %p963, %s77, 1
        %s965 = smul.addr %s964, 4
        %s966 = smul.addr %s965, 4
        %s967 = scalar_lea.vmem %s35, %s966
      $region112: #{medklip_forward.1} parent=75 // pred_fallthru
        _
      // Predicated region
      $region113: #{medklip_forward.1} parent=75 // pred_check
        %p968 = pneg %p524
      $region114: #{medklip_forward.1} parent=75 // pred_check_branch
        %970 = sbr.rel (%p968) target = $region116
      $region115: #{medklip_forward.1} parent=75 // pred_region
        %p971 = scmp.lt.s32.totalorder %s77, 1
        %s972 = scalar_select %p971, %s77, 1
        %s973 = scalar_lea.vmem %s37, %s972
      $region116: #{medklip_forward.1} parent=75 // pred_fallthru
        _
      // Predicated region
      $region117: #{medklip_forward.1} parent=75 // pred_check
        %p974 = pneg %p550
      $region118: #{medklip_forward.1} parent=75 // pred_check_branch
        %976 = sbr.rel (%p974) target = $region120
      $region119: #{medklip_forward.1} parent=75 // pred_region
        %p977 = scmp.lt.s32.totalorder %s77, 1
        %s978 = scalar_select %p977, %s77, 1
        %s979 = smul.addr %s978, 4
        %s980 = scalar_lea.vmem %s39, %s979
      $region120: #{medklip_forward.1} parent=75 // pred_fallthru
        _
      // Predicated region
      $region121: #{medklip_forward.1} parent=75 // pred_check
        %p981 = pneg %p576
      $region122: #{medklip_forward.1} parent=75 // pred_check_branch
        %983 = sbr.rel (%p981) target = $region124
      $region123: #{medklip_forward.1} parent=75 // pred_region
        %p984 = scmp.lt.s32.totalorder %s77, 1
        %s985 = scalar_select %p984, %s77, 1
        %s986 = smul.addr %s985, 4
        %s987 = scalar_lea.vmem %s41, %s986
      $region124: #{medklip_forward.1} parent=75 // pred_fallthru
        _
      // Predicated region
      $region125: #{medklip_forward.1} parent=75 // pred_check
        %p988 = pneg %p602
      $region126: #{medklip_forward.1} parent=75 // pred_check_branch
        %990 = sbr.rel (%p988) target = $region128
      $region127: #{medklip_forward.1} parent=75 // pred_region
        %p991 = scmp.lt.s32.totalorder %s77, 1
        %s992 = scalar_select %p991, %s77, 1
        %s993 = smul.addr %s992, 4
        %s994 = smul.addr %s993, 4
        %s995 = scalar_lea.vmem %s43, %s994
      $region128: #{medklip_forward.1} parent=75 // pred_fallthru
        _
      // Predicated region
      $region129: #{medklip_forward.1} parent=75 // pred_check
        %p996 = pneg %p628
      $region130: #{medklip_forward.1} parent=75 // pred_check_branch
        %998 = sbr.rel (%p996) target = $region132
      $region131: #{medklip_forward.1} parent=75 // pred_region
        %p999 = scmp.lt.s32.totalorder %s77, 1
        %s1000 = scalar_select %p999, %s77, 1
        %s1001 = scalar_lea.vmem %s45, %s1000
      $region132: #{medklip_forward.1} parent=75 // pred_fallthru
        _
      // Predicated region
      $region133: #{medklip_forward.1} parent=75 // pred_check
        %p1002 = pneg %p654
      $region134: #{medklip_forward.1} parent=75 // pred_check_branch
        %1004 = sbr.rel (%p1002) target = $region136
      $region135: #{medklip_forward.1} parent=75 // pred_region
        %p1005 = scmp.lt.s32.totalorder %s77, 1
        %s1006 = scalar_select %p1005, %s77, 1
        %s1007 = smul.addr %s1006, 8
        %s1008 = smul.addr %s1007, 4
        %s1009 = scalar_lea.vmem %s47, %s1008
      $region136: #{medklip_forward.1} parent=75 // pred_fallthru
        _
      // Predicated region
      $region137: #{medklip_forward.1} parent=75 // pred_check
        %p1010 = pneg %p680
      $region138: #{medklip_forward.1} parent=75 // pred_check_branch
        %1012 = sbr.rel (%p1010) target = $region140
      $region139: #{medklip_forward.1} parent=75 // pred_region
        %p1013 = scmp.lt.s32.totalorder %s77, 1
        %s1014 = scalar_select %p1013, %s77, 1
        %s1015 = scalar_lea.vmem %s49, %s1014
      $region140: #{medklip_forward.1} parent=75 // pred_fallthru
        _
    $region76: #{medklip_forward.1} parent=5 // pred_fallthru
      _
    %p1016 = scmp.le.s32.totalorder 1, %s69
    %p1017 = scmp.lt.s32.totalorder %s69, 5
    %p1018 = pnand %p1016, %p1017
    %p1019 = pneg %p1018
    // Predicated region
    $region141: #{medklip_forward.1} parent=5 // pred_check
      _
    $region142: #{medklip_forward.1} parent=5 // pred_check_branch
      %1021 = sbr.rel (%p1018) target = $region144
    $region143: #{medklip_forward.1} parent=5 // pred_region
      %s1022 = ssub.s32 %s69, 1
      %p1023 = scmp.lt.s32.totalorder %s78, 1
      %s1024 = scalar_select %p1023, %s78, 1
      %s1025 = smul.addr %s1024, 2
      %s1026 = smul.addr %s1025, 8
      %s1027 = scalar_lea.vmem %s1, %s1026
      %p1028 = pneg %p107
      %p1029 = pneg %p104
      %p1030 = scmp.lt.s32.totalorder %s78, 1
      %s1031 = scalar_select %p1030, %s78, 1
      %s1032 = smul.addr %s1031, 8
      %s1033 = smul.addr %s1032, 8
      %s1034 = scalar_lea.vmem %s3, %s1033
      %p1035 = pneg %p133
      %p1036 = pneg %p130
      %p1037 = pneg %p154
      %p1038 = pneg %p151
      %p1039 = pneg %p175
      %p1040 = pneg %p172
      %p1041 = pneg %p196
      %p1042 = pneg %p193
      %p1043 = pneg %p217
      %p1044 = pneg %p214
      %p1045 = pneg %p238
      %p1046 = pneg %p235
      %p1047 = pneg %p259
      %p1048 = pneg %p256
      %p1049 = pneg %p280
      %p1050 = pneg %p277
      %p1051 = pneg %p301
      %p1052 = pneg %p298
      %p1053 = pneg %p322
      %p1054 = pneg %p319
      %p1055 = scmp.lt.s32.totalorder %s79, 1
      %s1056 = scalar_select %p1055, %s79, 1
      %s1057 = smul.addr %s1056, 4
      %s1058 = smul.addr %s1057, 4
      %s1059 = scalar_lea.vmem %s23, %s1058
      %p1060 = pneg %p348
      %p1061 = pneg %p345
      %p1062 = scmp.lt.s32.totalorder %s79, 1
      %s1063 = scalar_select %p1062, %s79, 1
      %s1064 = scalar_lea.vmem %s25, %s1063
      %p1065 = pneg %p374
      %p1066 = pneg %p371
      %p1067 = scmp.lt.s32.totalorder %s79, 1
      %s1068 = scalar_select %p1067, %s79, 1
      %s1069 = smul.addr %s1068, 4
      %s1070 = smul.addr %s1069, 4
      %s1071 = scalar_lea.vmem %s27, %s1070
      %p1072 = pneg %p400
      %p1073 = pneg %p397
      %p1074 = scmp.lt.s32.totalorder %s79, 1
      %s1075 = scalar_select %p1074, %s79, 1
      %s1076 = scalar_lea.vmem %s29, %s1075
      %p1077 = pneg %p426
      %p1078 = pneg %p423
      %p1079 = scmp.lt.s32.totalorder %s79, 1
      %s1080 = scalar_select %p1079, %s79, 1
      %s1081 = smul.addr %s1080, 4
      %s1082 = smul.addr %s1081, 4
      %s1083 = scalar_lea.vmem %s31, %s1082
      %p1084 = pneg %p452
      %p1085 = pneg %p449
      %p1086 = scmp.lt.s32.totalorder %s79, 1
      %s1087 = scalar_select %p1086, %s79, 1
      %s1088 = scalar_lea.vmem %s33, %s1087
      %p1089 = pneg %p478
      %p1090 = pneg %p475
      %p1091 = scmp.lt.s32.totalorder %s79, 1
      %s1092 = scalar_select %p1091, %s79, 1
      %s1093 = smul.addr %s1092, 4
      %s1094 = smul.addr %s1093, 4
      %s1095 = scalar_lea.vmem %s35, %s1094
      %p1096 = pneg %p504
      %p1097 = pneg %p501
      %p1098 = scmp.lt.s32.totalorder %s79, 1
      %s1099 = scalar_select %p1098, %s79, 1
      %s1100 = scalar_lea.vmem %s37, %s1099
      %p1101 = pneg %p530
      %p1102 = pneg %p527
      %p1103 = scmp.lt.s32.totalorder %s79, 1
      %s1104 = scalar_select %p1103, %s79, 1
      %s1105 = smul.addr %s1104, 4
      %s1106 = scalar_lea.vmem %s39, %s1105
      %p1107 = pneg %p556
      %p1108 = pneg %p553
      %p1109 = scmp.lt.s32.totalorder %s79, 1
      %s1110 = scalar_select %p1109, %s79, 1
      %s1111 = smul.addr %s1110, 4
      %s1112 = scalar_lea.vmem %s41, %s1111
      %p1113 = pneg %p582
      %p1114 = pneg %p579
      %p1115 = scmp.lt.s32.totalorder %s79, 1
      %s1116 = scalar_select %p1115, %s79, 1
      %s1117 = smul.addr %s1116, 4
      %s1118 = smul.addr %s1117, 4
      %s1119 = scalar_lea.vmem %s43, %s1118
      %p1120 = pneg %p608
      %p1121 = pneg %p605
      %p1122 = scmp.lt.s32.totalorder %s79, 1
      %s1123 = scalar_select %p1122, %s79, 1
      %s1124 = scalar_lea.vmem %s45, %s1123
      %p1125 = pneg %p634
      %p1126 = pneg %p631
      %p1127 = scmp.lt.s32.totalorder %s79, 1
      %s1128 = scalar_select %p1127, %s79, 1
      %s1129 = smul.addr %s1128, 8
      %s1130 = smul.addr %s1129, 4
      %s1131 = scalar_lea.vmem %s47, %s1130
      %p1132 = pneg %p660
      %p1133 = pneg %p657
      %p1134 = scmp.lt.s32.totalorder %s79, 1
      %s1135 = scalar_select %p1134, %s79, 1
      %s1136 = scalar_lea.vmem %s49, %s1135
      %p1137 = pneg %p686
      %p1138 = pneg %p683
      %p1139 = pneg %p707
      %p1140 = pneg %p704
      %p1141 = pneg %p728
      %p1142 = pneg %p725
      %p1143 = pneg %p749
      %p1144 = pneg %p746
      %p1145 = pneg %p770
      %p1146 = pneg %p767
      %p1147 = pneg %p791
      %p1148 = pneg %p788
      %p1149 = pneg %p812
      %p1150 = pneg %p809
      %p1151 = pneg %p838
      %p1152 = pneg %p835
      %p1153 = scmp.lt.s32.totalorder %s78, 1
      %s1154 = scalar_select %p1153, %s78, 1
      %s1155 = smul.addr %s1154, 8
      %s1156 = scalar_lea.vmem %s63, %s1155
      %p1157 = scmp.lt.s32.totalorder %s78, 1
      %s1158 = scalar_select %p1157, %s78, 1
      %s1159 = smul.addr %s1158, 2
      %s1160 = smul.addr %s1159, 8
      %s1161 = scalar_lea.vmem %s1, %s1160
      %p1162 = scmp.lt.s32.totalorder %s78, 1
      %s1163 = scalar_select %p1162, %s78, 1
      %s1164 = smul.addr %s1163, 8
      %s1165 = smul.addr %s1164, 8
      %s1166 = scalar_lea.vmem %s3, %s1165
      %p1167 = scmp.lt.s32.totalorder %s79, 1
      %s1168 = scalar_select %p1167, %s79, 1
      %s1169 = smul.addr %s1168, 4
      %s1170 = smul.addr %s1169, 4
      %s1171 = scalar_lea.vmem %s23, %s1170
      %p1172 = scmp.lt.s32.totalorder %s79, 1
      %s1173 = scalar_select %p1172, %s79, 1
      %s1174 = scalar_lea.vmem %s25, %s1173
      %p1175 = scmp.lt.s32.totalorder %s79, 1
      %s1176 = scalar_select %p1175, %s79, 1
      %s1177 = smul.addr %s1176, 4
      %s1178 = smul.addr %s1177, 4
      %s1179 = scalar_lea.vmem %s27, %s1178
      %p1180 = scmp.lt.s32.totalorder %s79, 1
      %s1181 = scalar_select %p1180, %s79, 1
      %s1182 = scalar_lea.vmem %s29, %s1181
      %p1183 = scmp.lt.s32.totalorder %s79, 1
      %s1184 = scalar_select %p1183, %s79, 1
      %s1185 = smul.addr %s1184, 4
      %s1186 = smul.addr %s1185, 4
      %s1187 = scalar_lea.vmem %s31, %s1186
      %p1188 = scmp.lt.s32.totalorder %s79, 1
      %s1189 = scalar_select %p1188, %s79, 1
      %s1190 = scalar_lea.vmem %s33, %s1189
      %p1191 = scmp.lt.s32.totalorder %s79, 1
      %s1192 = scalar_select %p1191, %s79, 1
      %s1193 = smul.addr %s1192, 4
      %s1194 = smul.addr %s1193, 4
      %s1195 = scalar_lea.vmem %s35, %s1194
      %p1196 = scmp.lt.s32.totalorder %s79, 1
      %s1197 = scalar_select %p1196, %s79, 1
      %s1198 = scalar_lea.vmem %s37, %s1197
      %p1199 = scmp.lt.s32.totalorder %s79, 1
      %s1200 = scalar_select %p1199, %s79, 1
      %s1201 = smul.addr %s1200, 4
      %s1202 = scalar_lea.vmem %s39, %s1201
      %p1203 = scmp.lt.s32.totalorder %s79, 1
      %s1204 = scalar_select %p1203, %s79, 1
      %s1205 = smul.addr %s1204, 4
      %s1206 = scalar_lea.vmem %s41, %s1205
      %p1207 = scmp.lt.s32.totalorder %s79, 1
      %s1208 = scalar_select %p1207, %s79, 1
      %s1209 = smul.addr %s1208, 4
      %s1210 = smul.addr %s1209, 4
      %s1211 = scalar_lea.vmem %s43, %s1210
      %p1212 = scmp.lt.s32.totalorder %s79, 1
      %s1213 = scalar_select %p1212, %s79, 1
      %s1214 = scalar_lea.vmem %s45, %s1213
      %p1215 = scmp.lt.s32.totalorder %s79, 1
      %s1216 = scalar_select %p1215, %s79, 1
      %s1217 = smul.addr %s1216, 8
      %s1218 = smul.addr %s1217, 4
      %s1219 = scalar_lea.vmem %s47, %s1218
      %p1220 = scmp.lt.s32.totalorder %s79, 1
      %s1221 = scalar_select %p1220, %s79, 1
      %s1222 = scalar_lea.vmem %s49, %s1221
      %p1223 = scmp.lt.s32.totalorder %s78, 1
      %s1224 = scalar_select %p1223, %s78, 1
      %s1225 = smul.addr %s1224, 8
      %s1226 = scalar_lea.vmem %s63, %s1225
      %p1228 = scmp.eq.s32.totalorder %s79, 0
      // Predicated region
      $region145: #{medklip_forward.1} parent=143 // pred_check
        %p1229 = pneg %p1228
      $region146: #{medklip_forward.1} parent=143 // pred_check_branch
        %1231 = sbr.rel (%p1229) target = $region148
      $region147: #{medklip_forward.1} parent=143 // pred_region
        %v1232 = vld [vmem:[%s1161] sm:$0xff]
        %v1233 = vld [vmem:[%s1161 + $0x8] sm:$0xff]
        %v1234 = vld [vmem:[%s7] sm:$0xf]
        %v1235 = vld [vmem:[%s7 + $0x4] sm:$0xf]
        %v1236 = vld [vmem:[%s7 + $0x8] sm:$0xf]
        %v1237 = vld [vmem:[%s7 + $0xc] sm:$0xf]
        %v1238 = vld [vmem:[%s7 + $0x10] sm:$0xf]
        %v1239 = vld [vmem:[%s7 + $0x14] sm:$0xf]
        %v1240 = vpack.c.bf16 %v1233, %v1232
        %v1241 = vld [vmem:[%s9] sm:$0x1]
        %v1243 = vlaneseq
        %v1244 = vshrl.u32 %v1243, 7
        %v1245 = vsub.s32 0, %v1244
        %v1246 = vrot.slane %v1241, %v1245
        %v1254 = vunpack.c.l.b16 %v1234
        %v1255 = vunpack.c.l.b16 %v1235
        %v1256 = vunpack.c.l.b16 %v1236
        %v1257 = vunpack.c.l.b16 %v1237
        %v1258 = vunpack.c.l.b16 %v1238
        %v1259 = vunpack.c.l.b16 %v1239
        %v1260 = vpack.c.b16 %v1255, %v1254
        %v1261 = vpack.c.b16 %v1257, %v1256
        %v1262 = vpack.c.b16 %v1259, %v1258
        %vm1266 = vcmask 392192
        %v1268 = vsel %vm1266, %v1240, 0
        %1270 = vmatprep.subr.bf16.mxu0 0
        %1271 = vmatpush1.bf16.msra.mxu0 %v1260
        %1272 = vmatprep.subr.bf16.mxu0 0
        %1273 = vmatpush1.bf16.msra.mxu0 %v1261
        %1274 = vmatprep.subr.bf16.mxu0 0
        %1275 = vmatpush1.bf16.msra.mxu0 %v1262
        %1276 = vmatprep.subr.bf16.mxu0 0
        %1277 = vmatpush1.bf16.msra.mxu0 0
        %1278 = vmatprep.subr.bf16.mxu0 0
        %1279 = vmatpush1.bf16.msra.mxu0 0
        %1280 = vmatprep.subr.bf16.mxu0 0
        %1281 = vmatpush1.bf16.msra.mxu0 0
        %1282 = vmatprep.subr.bf16.mxu0 0
        %1283 = vmatpush1.bf16.msra.mxu0 0
        %1284 = vmatprep.subr.bf16.mxu0 0
        %1285 = vmatpush1.bf16.msra.mxu0 0
        %1286 = vmatprep.subr.bf16.mxu0 0
        %1287 = vmatpush1.bf16.msra.mxu0 0
        %1288 = vmatprep.subr.bf16.mxu0 0
        %1289 = vmatpush1.bf16.msra.mxu0 0
        %1290 = vmatprep.subr.bf16.mxu0 0
        %1291 = vmatpush1.bf16.msra.mxu0 0
        %1292 = vmatprep.subr.bf16.mxu0 0
        %1293 = vmatpush1.bf16.msra.mxu0 0
        %1294 = vmatprep.subr.bf16.mxu0 0
        %1295 = vmatpush1.bf16.msra.mxu0 0
        %1296 = vmatprep.subr.bf16.mxu0 0
        %1297 = vmatpush1.bf16.msra.mxu0 0
        %1298 = vmatprep.subr.bf16.mxu0 0
        %1299 = vmatpush1.bf16.msra.mxu0 0
        %1300 = vmatprep.subr.bf16.mxu0 0
        %1301 = vmatpush1.bf16.msra.mxu0 0
        %1302 = vmatprep.mubr.bf16.mxu0 0
        %1303 = vmatmul.mubr.bf16.gmra.mrb[0].mxu0 %v1268
        %v1304 = vpop.f32.mrb[0].mxu0
        %v1305 = vadd.f32 %v1246, %v1304
        %v1306 = vpop.f32.mrb[0].mxu0
        %v1307 = vpop.f32.mrb[0].mxu0
        %v1308 = vadd.f32 %v1246, %v1307
        %v1309 = vpop.f32.mrb[0].mxu0
        %1310 = vdwg.mxu0
        %v1311 = vld [vmem:[%s11] sm:$0xf]
        %v1312 = vld [vmem:[%s11 + $0x4] sm:$0xf]
        %v1313 = vld [vmem:[%s11 + $0x8] sm:$0xf]
        %v1314 = vld [vmem:[%s11 + $0xc] sm:$0xf]
        %v1315 = vpack.c.bf16 %v1308, %v1305
        %v1316 = vld [vmem:[%s13] sm:$0x1]
        %v1318 = vlaneseq
        %v1319 = vshrl.u32 %v1318, 7
        %v1320 = vsub.s32 0, %v1319
        %v1321 = vrot.slane %v1316, %v1320
        %v1327 = vunpack.c.l.b16 %v1311
        %v1328 = vunpack.c.l.b16 %v1312
        %v1329 = vunpack.c.l.b16 %v1313
        %v1330 = vunpack.c.l.b16 %v1314
        %v1331 = vpack.c.b16 %v1328, %v1327
        %v1332 = vpack.c.b16 %v1330, %v1329
        %vm1335 = vcmask 261120
        %v1337 = vsel %vm1335, %v1315, 0
        %1339 = vmatprep.subr.bf16.mxu0 0
        %1340 = vmatpush1.bf16.msra.mxu0 %v1331
        %1341 = vmatprep.subr.bf16.mxu0 0
        %1342 = vmatpush1.bf16.msra.mxu0 %v1332
        %1343 = vmatprep.subr.bf16.mxu0 0
        %1344 = vmatpush1.bf16.msra.mxu0 0
        %1345 = vmatprep.subr.bf16.mxu0 0
        %1346 = vmatpush1.bf16.msra.mxu0 0
        %1347 = vmatprep.subr.bf16.mxu0 0
        %1348 = vmatpush1.bf16.msra.mxu0 0
        %1349 = vmatprep.subr.bf16.mxu0 0
        %1350 = vmatpush1.bf16.msra.mxu0 0
        %1351 = vmatprep.subr.bf16.mxu0 0
        %1352 = vmatpush1.bf16.msra.mxu0 0
        %1353 = vmatprep.subr.bf16.mxu0 0
        %1354 = vmatpush1.bf16.msra.mxu0 0
        %1355 = vmatprep.subr.bf16.mxu0 0
        %1356 = vmatpush1.bf16.msra.mxu0 0
        %1357 = vmatprep.subr.bf16.mxu0 0
        %1358 = vmatpush1.bf16.msra.mxu0 0
        %1359 = vmatprep.subr.bf16.mxu0 0
        %1360 = vmatpush1.bf16.msra.mxu0 0
        %1361 = vmatprep.subr.bf16.mxu0 0
        %1362 = vmatpush1.bf16.msra.mxu0 0
        %1363 = vmatprep.subr.bf16.mxu0 0
        %1364 = vmatpush1.bf16.msra.mxu0 0
        %1365 = vmatprep.subr.bf16.mxu0 0
        %1366 = vmatpush1.bf16.msra.mxu0 0
        %1367 = vmatprep.subr.bf16.mxu0 0
        %1368 = vmatpush1.bf16.msra.mxu0 0
        %1369 = vmatprep.subr.bf16.mxu0 0
        %1370 = vmatpush1.bf16.msra.mxu0 0
        %1371 = vmatprep.mubr.bf16.mxu0 0
        %1372 = vmatmul.mubr.bf16.gmra.mrb[0].mxu0 %v1337
        %v1373 = vpop.f32.mrb[0].mxu0
        %v1374 = vadd.f32 %v1321, %v1373
        %v1375 = vpop.f32.mrb[0].mxu0
        %v1376 = vpop.f32.mrb[0].mxu0
        %v1377 = vadd.f32 %v1321, %v1376
        %v1378 = vpop.f32.mrb[0].mxu0
        %1379 = vdwg.mxu0
        %v1380 = vmax.f32 %v1374, 0.0
        %v1381 = vmax.f32 %v1377, 0.0
        %v1382 = vld [vmem:[%s15] sm:$0xf]
        %v1383 = vld [vmem:[%s15 + $0x4] sm:$0xf]
        %v1384 = vld [vmem:[%s15 + $0x8] sm:$0xf]
        %v1385 = vld [vmem:[%s15 + $0xc] sm:$0xf]
        %v1386 = vpack.c.bf16 %v1381, %v1380
        %v1387 = vld [vmem:[%s17] sm:$0x1]
        %v1389 = vlaneseq
        %v1390 = vshrl.u32 %v1389, 7
        %v1391 = vsub.s32 0, %v1390
        %v1392 = vrot.slane %v1387, %v1391
        %v1398 = vunpack.c.l.b16 %v1382
        %v1399 = vunpack.c.l.b16 %v1383
        %v1400 = vunpack.c.l.b16 %v1384
        %v1401 = vunpack.c.l.b16 %v1385
        %v1402 = vpack.c.b16 %v1399, %v1398
        %v1403 = vpack.c.b16 %v1401, %v1400
        %v1407 = vsel %vm1335, %v1386, 0
        %1409 = vmatprep.subr.bf16.mxu0 0
        %1410 = vmatpush1.bf16.msra.mxu0 %v1402
        %1411 = vmatprep.subr.bf16.mxu0 0
        %1412 = vmatpush1.bf16.msra.mxu0 %v1403
        %1413 = vmatprep.subr.bf16.mxu0 0
        %1414 = vmatpush1.bf16.msra.mxu0 0
        %1415 = vmatprep.subr.bf16.mxu0 0
        %1416 = vmatpush1.bf16.msra.mxu0 0
        %1417 = vmatprep.subr.bf16.mxu0 0
        %1418 = vmatpush1.bf16.msra.mxu0 0
        %1419 = vmatprep.subr.bf16.mxu0 0
        %1420 = vmatpush1.bf16.msra.mxu0 0
        %1421 = vmatprep.subr.bf16.mxu0 0
        %1422 = vmatpush1.bf16.msra.mxu0 0
        %1423 = vmatprep.subr.bf16.mxu0 0
        %1424 = vmatpush1.bf16.msra.mxu0 0
        %1425 = vmatprep.subr.bf16.mxu0 0
        %1426 = vmatpush1.bf16.msra.mxu0 0
        %1427 = vmatprep.subr.bf16.mxu0 0
        %1428 = vmatpush1.bf16.msra.mxu0 0
        %1429 = vmatprep.subr.bf16.mxu0 0
        %1430 = vmatpush1.bf16.msra.mxu0 0
        %1431 = vmatprep.subr.bf16.mxu0 0
        %1432 = vmatpush1.bf16.msra.mxu0 0
        %1433 = vmatprep.subr.bf16.mxu0 0
        %1434 = vmatpush1.bf16.msra.mxu0 0
        %1435 = vmatprep.subr.bf16.mxu0 0
        %1436 = vmatpush1.bf16.msra.mxu0 0
        %1437 = vmatprep.subr.bf16.mxu0 0
        %1438 = vmatpush1.bf16.msra.mxu0 0
        %1439 = vmatprep.subr.bf16.mxu0 0
        %1440 = vmatpush1.bf16.msra.mxu0 0
        %1441 = vmatprep.mubr.bf16.mxu0 0
        %1442 = vmatmul.mubr.bf16.gmra.mrb[0].mxu0 %v1407
        %v1443 = vpop.f32.mrb[0].mxu0
        %v1444 = vadd.f32 %v1392, %v1443
        %v1445 = vpop.f32.mrb[0].mxu0
        %v1446 = vpop.f32.mrb[0].mxu0
        %v1447 = vadd.f32 %v1392, %v1446
        %v1448 = vpop.f32.mrb[0].mxu0
        %1449 = vdwg.mxu0
        %1450 = vst.msk [vmem:[#allocation2] sm:$0xff] %vm1335, %v1444
        %1451 = vst.msk [vmem:[#allocation2 + $0x8] sm:$0xff] %vm1335, %v1447
        %v1452 = vld [vmem:[%s5] sm:$0xff]
        %v1453 = vld [vmem:[%s19] sm:$0xf]
        %v1454 = vld [vmem:[%s19 + $0x4] sm:$0xf]
        %v1455 = vld [vmem:[%s19 + $0x8] sm:$0xf]
        %v1456 = vld [vmem:[%s19 + $0xc] sm:$0xf]
        %v1457 = vld [vmem:[%s19 + $0x10] sm:$0xf]
        %v1458 = vld [vmem:[%s19 + $0x14] sm:$0xf]
        %v1459 = vld [vmem:[%s19 + $0x18] sm:$0xf]
        %v1460 = vld [vmem:[%s19 + $0x1c] sm:$0xf]
        %v1461 = vpack.c.bf16 %v1452, %v1452
        %v1462 = vld [vmem:[%s21] sm:$0x1]
        %v1464 = vlaneseq
        %v1465 = vshrl.u32 %v1464, 7
        %v1466 = vsub.s32 0, %v1465
        %v1467 = vrot.slane %v1462, %v1466
        %v1477 = vunpack.c.l.b16 %v1453
        %v1478 = vunpack.c.l.b16 %v1454
        %v1479 = vunpack.c.l.b16 %v1455
        %v1480 = vunpack.c.l.b16 %v1456
        %v1481 = vunpack.c.l.b16 %v1457
        %v1482 = vunpack.c.l.b16 %v1458
        %v1483 = vunpack.c.l.b16 %v1459
        %v1484 = vunpack.c.l.b16 %v1460
        %v1485 = vpack.c.b16 %v1478, %v1477
        %v1486 = vpack.c.b16 %v1480, %v1479
        %v1487 = vpack.c.b16 %v1482, %v1481
        %v1488 = vpack.c.b16 %v1484, %v1483
        %vm1493 = vcmask 523264
        %v1495 = vsel %vm1493, %v1461, 0
        %1497 = vmatprep.subr.bf16.mxu0 0
        %1498 = vmatpush1.bf16.msra.mxu0 %v1485
        %1499 = vmatprep.subr.bf16.mxu0 0
        %1500 = vmatpush1.bf16.msra.mxu0 %v1486
        %1501 = vmatprep.subr.bf16.mxu0 0
        %1502 = vmatpush1.bf16.msra.mxu0 %v1487
        %1503 = vmatprep.subr.bf16.mxu0 0
        %1504 = vmatpush1.bf16.msra.mxu0 %v1488
        %1505 = vmatprep.subr.bf16.mxu0 0
        %1506 = vmatpush1.bf16.msra.mxu0 0
        %1507 = vmatprep.subr.bf16.mxu0 0
        %1508 = vmatpush1.bf16.msra.mxu0 0
        %1509 = vmatprep.subr.bf16.mxu0 0
        %1510 = vmatpush1.bf16.msra.mxu0 0
        %1511 = vmatprep.subr.bf16.mxu0 0
        %1512 = vmatpush1.bf16.msra.mxu0 0
        %1513 = vmatprep.subr.bf16.mxu0 0
        %1514 = vmatpush1.bf16.msra.mxu0 0
        %1515 = vmatprep.subr.bf16.mxu0 0
        %1516 = vmatpush1.bf16.msra.mxu0 0
        %1517 = vmatprep.subr.bf16.mxu0 0
        %1518 = vmatpush1.bf16.msra.mxu0 0
        %1519 = vmatprep.subr.bf16.mxu0 0
        %1520 = vmatpush1.bf16.msra.mxu0 0
        %1521 = vmatprep.subr.bf16.mxu0 0
        %1522 = vmatpush1.bf16.msra.mxu0 0
        %1523 = vmatprep.subr.bf16.mxu0 0
        %1524 = vmatpush1.bf16.msra.mxu0 0
        %1525 = vmatprep.subr.bf16.mxu0 0
        %1526 = vmatpush1.bf16.msra.mxu0 0
        %1527 = vmatprep.subr.bf16.mxu0 0
        %1528 = vmatpush1.bf16.msra.mxu0 0
        %1529 = vmatprep.mubr.bf16.mxu0 0
        %1530 = vmatmul.mubr.bf16.gmra.mrb[0].mxu0 %v1495
        %v1531 = vpop.f32.mrb[0].mxu0
        %v1532 = vadd.f32 %v1467, %v1531
        %v1533 = vpop.f32.mrb[0].mxu0
        %v1534 = vpop.f32.mrb[0].mxu0
        %v1535 = vpop.f32.mrb[0].mxu0
        %1536 = vdwg.mxu0
        %1537 = vst.msk [vmem:[#allocation3] sm:$0xff] %vm1335, %v1532
      $region148: #{medklip_forward.1} parent=143 // pred_fallthru
        _
      %v1538 = vld [vmem:[#allocation2] sm:$0xff]
      %v1539 = vld [vmem:[#allocation2 + $0x8] sm:$0xff]
      %v1540 = vld [vmem:[#allocation3] sm:$0xff]
      %v1541 = vld [vmem:[%s1202] sm:$0x7]
      %v1542 = vld [vmem:[%s1206] sm:$0x7]
      %vm1543 = vcmask 261120
      %v1544 = vsel %vm1543, %v1540, 0.0
      %1545 = vadd.xlane.f32.xlu0 %v1544
      %v1546 = vpop.xlane.xlu0 %1545
      %v1547 = vrcp.pop 32.0
      %v1548 = vmul.f32 %v1546, %v1547
      %v1549 = vsub.f32 %v1540, %v1548
      %v1550 = vmul.f32 %v1549, %v1549
      %v1551 = vsel %vm1543, %v1550, 0.0
      %1552 = vadd.xlane.f32.xlu0 %v1551
      %v1553 = vpop.xlane.xlu0 %1552
      %v1554 = vmul.f32 %v1553, %v1547
      %v1555 = vadd.f32 %v1554, 1e-05
      %v1556 = vrsqrt.pop %v1555
      %v1557 = vmul.f32 %v1549, %v1556
      %v1558 = vlaneseq
      %v1559 = vshrl.u32 %v1558, 7
      %v1560 = vsub.s32 0, %v1559
      %v1561 = vrot.slane %v1541, %v1560
      %v1562 = vmul.f32 %v1557, %v1561
      %v1563 = vlaneseq
      %v1564 = vshrl.u32 %v1563, 7
      %v1565 = vsub.s32 0, %v1564
      %v1566 = vrot.slane %v1542, %v1565
      %v1567 = vadd.f32 %v1562, %v1566
      %v1568 = vld [vmem:[%s1171] sm:$0xf]
      %v1569 = vld [vmem:[%s1171 + $0x4] sm:$0xf]
      %v1570 = vld [vmem:[%s1171 + $0x8] sm:$0xf]
      %v1571 = vld [vmem:[%s1171 + $0xc] sm:$0xf]
      %v1572 = vld [vmem:[%s1174] sm:$0x1]
      %v1573 = vld [vmem:[%s1179] sm:$0xf]
      %v1574 = vld [vmem:[%s1179 + $0x4] sm:$0xf]
      %v1575 = vld [vmem:[%s1179 + $0x8] sm:$0xf]
      %v1576 = vld [vmem:[%s1179 + $0xc] sm:$0xf]
      %v1577 = vld [vmem:[%s1182] sm:$0x1]
      %v1578 = vpack.c.bf16 %v1567, %v1567
      %v1580 = vlaneseq
      %v1581 = vshrl.u32 %v1580, 7
      %v1582 = vsub.s32 0, %v1581
      %v1583 = vrot.slane %v1572, %v1582
      %v1589 = vunpack.c.l.b16 %v1568
      %v1590 = vunpack.c.l.b16 %v1569
      %v1591 = vunpack.c.l.b16 %v1570
      %v1592 = vunpack.c.l.b16 %v1571
      %v1593 = vpack.c.b16 %v1590, %v1589
      %v1594 = vpack.c.b16 %v1592, %v1591
      %v1598 = vsel %vm1543, %v1578, 0
      %1600 = vmatprep.subr.bf16.mxu0 0
      %1601 = vmatpush1.bf16.msra.mxu0 %v1593
      %1602 = vmatprep.subr.bf16.mxu0 0
      %1603 = vmatpush1.bf16.msra.mxu0 %v1594
      %1604 = vmatprep.subr.bf16.mxu0 0
      %1605 = vmatpush1.bf16.msra.mxu0 0
      %1606 = vmatprep.subr.bf16.mxu0 0
      %1607 = vmatpush1.bf16.msra.mxu0 0
      %1608 = vmatprep.subr.bf16.mxu0 0
      %1609 = vmatpush1.bf16.msra.mxu0 0
      %1610 = vmatprep.subr.bf16.mxu0 0
      %1611 = vmatpush1.bf16.msra.mxu0 0
      %1612 = vmatprep.subr.bf16.mxu0 0
      %1613 = vmatpush1.bf16.msra.mxu0 0
      %1614 = vmatprep.subr.bf16.mxu0 0
      %1615 = vmatpush1.bf16.msra.mxu0 0
      %1616 = vmatprep.subr.bf16.mxu0 0
      %1617 = vmatpush1.bf16.msra.mxu0 0
      %1618 = vmatprep.subr.bf16.mxu0 0
      %1619 = vmatpush1.bf16.msra.mxu0 0
      %1620 = vmatprep.subr.bf16.mxu0 0
      %1621 = vmatpush1.bf16.msra.mxu0 0
      %1622 = vmatprep.subr.bf16.mxu0 0
      %1623 = vmatpush1.bf16.msra.mxu0 0
      %1624 = vmatprep.subr.bf16.mxu0 0
      %1625 = vmatpush1.bf16.msra.mxu0 0
      %1626 = vmatprep.subr.bf16.mxu0 0
      %1627 = vmatpush1.bf16.msra.mxu0 0
      %1628 = vmatprep.subr.bf16.mxu0 0
      %1629 = vmatpush1.bf16.msra.mxu0 0
      %1630 = vmatprep.subr.bf16.mxu0 0
      %1631 = vmatpush1.bf16.msra.mxu0 0
      %1632 = vmatprep.mubr.bf16.mxu0 0
      %1633 = vmatmul.mubr.bf16.gmra.mrb[0].mxu0 %v1598
      %v1634 = vpop.f32.mrb[0].mxu0
      %v1635 = vadd.f32 %v1583, %v1634
      %v1636 = vpop.f32.mrb[0].mxu0
      %v1637 = vpop.f32.mrb[0].mxu0
      %v1638 = vpop.f32.mrb[0].mxu0
      %1639 = vdwg.mxu0
      %v1640 = vmul.f32 %v1635, 0.35355338
      %1642 = vrot.lane.b32.xlu0 %v1640, 120
      %v1643 = vpop.permute.xlu0 %1642
      %1645 = vrot.lane.b32.xlu0 %v1640, 112
      %v1646 = vpop.permute.xlu0 %1645
      %1648 = vrot.lane.b32.xlu0 %v1640, 104
      %v1649 = vpop.permute.xlu0 %1648
      %v1651 = vcombine.low %v1640, %v1646
      %v1652 = vcombine.high %v1640, %v1646
      %v1654 = vunpack.c.l.s4 1983009808
      %v1655 = vunpack.c.0.s8 %v1654
      %v1656 = vlaneseq
      %v1657 = vshrl.u32 %v1656, 7
      %v1658 = vsub.s32 %v1655, %v1657
      %v1659 = vrot.slane %v1651, %v1658
      %v1661 = vunpack.c.l.s4 1983009808
      %v1662 = vunpack.c.0.s8 %v1661
      %v1663 = vlaneseq
      %v1664 = vshrl.u32 %v1663, 7
      %v1665 = vsub.s32 %v1662, %v1664
      %v1666 = vrot.slane %v1652, %v1665
      %v1667 = vcombine.low %v1643, %v1649
      %v1668 = vcombine.high %v1643, %v1649
      %v1670 = vunpack.c.l.s4 1983009808
      %v1671 = vunpack.c.0.s8 %v1670
      %v1672 = vlaneseq
      %v1673 = vshrl.u32 %v1672, 7
      %v1674 = vsub.s32 %v1671, %v1673
      %v1675 = vrot.slane %v1667, %v1674
      %v1677 = vunpack.c.l.s4 1983009808
      %v1678 = vunpack.c.0.s8 %v1677
      %v1679 = vlaneseq
      %v1680 = vshrl.u32 %v1679, 7
      %v1681 = vsub.s32 %v1678, %v1680
      %v1682 = vrot.slane %v1668, %v1681
      %v1683 = vcombine.low %v1659, %v1675
      %v1684 = vcombine.high %v1659, %v1675
      %v1686 = vunpack.c.l.s4 1934713408
      %v1687 = vunpack.c.0.s8 %v1686
      %v1688 = vlaneseq
      %v1689 = vshrl.u32 %v1688, 7
      %v1690 = vsub.s32 %v1687, %v1689
      %v1691 = vrot.slane %v1683, %v1690
      %v1693 = vunpack.c.l.s4 1934713408
      %v1694 = vunpack.c.0.s8 %v1693
      %v1695 = vlaneseq
      %v1696 = vshrl.u32 %v1695, 7
      %v1697 = vsub.s32 %v1694, %v1696
      %v1698 = vrot.slane %v1684, %v1697
      %v1699 = vcombine.low %v1666, %v1682
      %v1700 = vcombine.high %v1666, %v1682
      %v1702 = vunpack.c.l.s4 1934713408
      %v1703 = vunpack.c.0.s8 %v1702
      %v1704 = vlaneseq
      %v1705 = vshrl.u32 %v1704, 7
      %v1706 = vsub.s32 %v1703, %v1705
      %v1707 = vrot.slane %v1699, %v1706
      %v1709 = vunpack.c.l.s4 1934713408
      %v1710 = vunpack.c.0.s8 %v1709
      %v1711 = vlaneseq
      %v1712 = vshrl.u32 %v1711, 7
      %v1713 = vsub.s32 %v1710, %v1712
      %v1714 = vrot.slane %v1700, %v1713
      %v1715 = vcombine.high %v1691, 0.0
      %v1716 = vcombine.high %v1698, 0.0
      %v1717 = vcombine.high %v1707, 0.0
      %v1718 = vcombine.high %v1714, 0.0
      %v1719 = vpack.c.bf16 %v1691, %v1691
      %v1720 = vpack.c.bf16 %v1715, %v1715
      %v1721 = vpack.c.bf16 %v1698, %v1698
      %v1722 = vpack.c.bf16 %v1716, %v1716
      %v1723 = vpack.c.bf16 %v1707, %v1707
      %v1724 = vpack.c.bf16 %v1717, %v1717
      %v1725 = vpack.c.bf16 %v1714, %v1714
      %v1726 = vpack.c.bf16 %v1718, %v1718
      %1728 = vrot.lane.b32.xlu0 %v1635, 120
      %v1729 = vpop.permute.xlu0 %1728
      %1730 = vrot.lane.b32.xlu0 %v1635, 112
      %v1731 = vpop.permute.xlu0 %1730
      %1732 = vrot.lane.b32.xlu0 %v1635, 104
      %v1733 = vpop.permute.xlu0 %1732
      %1734 = vrot.lane.b32.xlu0 %v1635, 96
      %v1735 = vpop.permute.xlu0 %1734
      %1736 = vrot.lane.b32.xlu0 %v1729, 96
      %v1737 = vpop.permute.xlu0 %1736
      %1738 = vrot.lane.b32.xlu0 %v1731, 96
      %v1739 = vpop.permute.xlu0 %1738
      %1740 = vrot.lane.b32.xlu0 %v1733, 96
      %v1741 = vpop.permute.xlu0 %1740
      %v1746 = vcombine.low %v1735, %v1739
      %v1747 = vcombine.high %v1735, %v1739
      %v1749 = vunpack.c.l.s4 1983009808
      %v1750 = vunpack.c.0.s8 %v1749
      %v1751 = vlaneseq
      %v1752 = vshrl.u32 %v1751, 7
      %v1753 = vsub.s32 %v1750, %v1752
      %v1754 = vrot.slane %v1746, %v1753
      %v1756 = vunpack.c.l.s4 1983009808
      %v1757 = vunpack.c.0.s8 %v1756
      %v1758 = vlaneseq
      %v1759 = vshrl.u32 %v1758, 7
      %v1760 = vsub.s32 %v1757, %v1759
      %v1761 = vrot.slane %v1747, %v1760
      %v1762 = vcombine.low %v1737, %v1741
      %v1763 = vcombine.high %v1737, %v1741
      %v1765 = vunpack.c.l.s4 1983009808
      %v1766 = vunpack.c.0.s8 %v1765
      %v1767 = vlaneseq
      %v1768 = vshrl.u32 %v1767, 7
      %v1769 = vsub.s32 %v1766, %v1768
      %v1770 = vrot.slane %v1762, %v1769
      %v1772 = vunpack.c.l.s4 1983009808
      %v1773 = vunpack.c.0.s8 %v1772
      %v1774 = vlaneseq
      %v1775 = vshrl.u32 %v1774, 7
      %v1776 = vsub.s32 %v1773, %v1775
      %v1777 = vrot.slane %v1763, %v1776
      %v1778 = vcombine.low %v1754, %v1770
      %v1779 = vcombine.high %v1754, %v1770
      %v1781 = vunpack.c.l.s4 1934713408
      %v1782 = vunpack.c.0.s8 %v1781
      %v1783 = vlaneseq
      %v1784 = vshrl.u32 %v1783, 7
      %v1785 = vsub.s32 %v1782, %v1784
      %v1786 = vrot.slane %v1778, %v1785
      %v1788 = vunpack.c.l.s4 1934713408
      %v1789 = vunpack.c.0.s8 %v1788
      %v1790 = vlaneseq
      %v1791 = vshrl.u32 %v1790, 7
      %v1792 = vsub.s32 %v1789, %v1791
      %v1793 = vrot.slane %v1779, %v1792
      %v1794 = vcombine.low %v1761, %v1777
      %v1795 = vcombine.high %v1761, %v1777
      %v1797 = vunpack.c.l.s4 1934713408
      %v1798 = vunpack.c.0.s8 %v1797
      %v1799 = vlaneseq
      %v1800 = vshrl.u32 %v1799, 7
      %v1801 = vsub.s32 %v1798, %v1800
      %v1802 = vrot.slane %v1794, %v1801
      %v1804 = vunpack.c.l.s4 1934713408
      %v1805 = vunpack.c.0.s8 %v1804
      %v1806 = vlaneseq
      %v1807 = vshrl.u32 %v1806, 7
      %v1808 = vsub.s32 %v1805, %v1807
      %v1809 = vrot.slane %v1795, %v1808
      %v1810 = vcombine.high %v1786, 0.0
      %v1811 = vcombine.high %v1793, 0.0
      %v1812 = vcombine.high %v1802, 0.0
      %v1813 = vcombine.high %v1809, 0.0
      %v1814 = vpack.c.bf16 %v1786, %v1786
      %v1815 = vpack.c.bf16 %v1810, %v1810
      %v1816 = vpack.c.bf16 %v1793, %v1793
      %v1817 = vpack.c.bf16 %v1811, %v1811
      %v1818 = vpack.c.bf16 %v1802, %v1802
      %v1819 = vpack.c.bf16 %v1812, %v1812
      %v1820 = vpack.c.bf16 %v1809, %v1809
      %v1821 = vpack.c.bf16 %v1813, %v1813
      %1822 = vrot.lane.b32.xlu0 %v1635, 64
      %v1823 = vpop.permute.xlu0 %1822
      %1824 = vrot.lane.b32.xlu0 %v1729, 64
      %v1825 = vpop.permute.xlu0 %1824
      %1826 = vrot.lane.b32.xlu0 %v1731, 64
      %v1827 = vpop.permute.xlu0 %1826
      %1828 = vrot.lane.b32.xlu0 %v1733, 64
      %v1829 = vpop.permute.xlu0 %1828
      %v1834 = vcombine.low %v1823, %v1827
      %v1835 = vcombine.high %v1823, %v1827
      %v1837 = vunpack.c.l.s4 1983009808
      %v1838 = vunpack.c.0.s8 %v1837
      %v1839 = vlaneseq
      %v1840 = vshrl.u32 %v1839, 7
      %v1841 = vsub.s32 %v1838, %v1840
      %v1842 = vrot.slane %v1834, %v1841
      %v1844 = vunpack.c.l.s4 1983009808
      %v1845 = vunpack.c.0.s8 %v1844
      %v1846 = vlaneseq
      %v1847 = vshrl.u32 %v1846, 7
      %v1848 = vsub.s32 %v1845, %v1847
      %v1849 = vrot.slane %v1835, %v1848
      %v1850 = vcombine.low %v1825, %v1829
      %v1851 = vcombine.high %v1825, %v1829
      %v1853 = vunpack.c.l.s4 1983009808
      %v1854 = vunpack.c.0.s8 %v1853
      %v1855 = vlaneseq
      %v1856 = vshrl.u32 %v1855, 7
      %v1857 = vsub.s32 %v1854, %v1856
      %v1858 = vrot.slane %v1850, %v1857
      %v1860 = vunpack.c.l.s4 1983009808
      %v1861 = vunpack.c.0.s8 %v1860
      %v1862 = vlaneseq
      %v1863 = vshrl.u32 %v1862, 7
      %v1864 = vsub.s32 %v1861, %v1863
      %v1865 = vrot.slane %v1851, %v1864
      %v1866 = vcombine.low %v1842, %v1858
      %v1867 = vcombine.high %v1842, %v1858
      %v1869 = vunpack.c.l.s4 1934713408
      %v1870 = vunpack.c.0.s8 %v1869
      %v1871 = vlaneseq
      %v1872 = vshrl.u32 %v1871, 7
      %v1873 = vsub.s32 %v1870, %v1872
      %v1874 = vrot.slane %v1866, %v1873
      %v1876 = vunpack.c.l.s4 1934713408
      %v1877 = vunpack.c.0.s8 %v1876
      %v1878 = vlaneseq
      %v1879 = vshrl.u32 %v1878, 7
      %v1880 = vsub.s32 %v1877, %v1879
      %v1881 = vrot.slane %v1867, %v1880
      %v1882 = vcombine.low %v1849, %v1865
      %v1883 = vcombine.high %v1849, %v1865
      %v1885 = vunpack.c.l.s4 1934713408
      %v1886 = vunpack.c.0.s8 %v1885
      %v1887 = vlaneseq
      %v1888 = vshrl.u32 %v1887, 7
      %v1889 = vsub.s32 %v1886, %v1888
      %v1890 = vrot.slane %v1882, %v1889
      %v1892 = vunpack.c.l.s4 1934713408
      %v1893 = vunpack.c.0.s8 %v1892
      %v1894 = vlaneseq
      %v1895 = vshrl.u32 %v1894, 7
      %v1896 = vsub.s32 %v1893, %v1895
      %v1897 = vrot.slane %v1883, %v1896
      %v1898 = vcombine.high %v1874, 0.0
      %v1899 = vcombine.high %v1881, 0.0
      %v1900 = vcombine.high %v1890, 0.0
      %v1901 = vcombine.high %v1897, 0.0
      %v1902 = vpack.c.bf16 %v1874, %v1874
      %v1903 = vpack.c.bf16 %v1898, %v1898
      %v1904 = vpack.c.bf16 %v1881, %v1881
      %v1905 = vpack.c.bf16 %v1899, %v1899
      %v1906 = vpack.c.bf16 %v1890, %v1890
      %v1907 = vpack.c.bf16 %v1900, %v1900
      %v1908 = vpack.c.bf16 %v1897, %v1897
      %v1909 = vpack.c.bf16 %v1901, %v1901
      %v1910 = vcombine.low %v1719, %v1723
      %v1912 = vunpack.c.l.s4 1983009808
      %v1913 = vunpack.c.0.s8 %v1912
      %v1914 = vlaneseq
      %v1915 = vshrl.u32 %v1914, 7
      %v1916 = vsub.s32 %v1913, %v1915
      %v1917 = vrot.slane %v1910, %v1916
      %v1918 = vcombine.low %v1721, %v1725
      %v1920 = vunpack.c.l.s4 1983009808
      %v1921 = vunpack.c.0.s8 %v1920
      %v1922 = vlaneseq
      %v1923 = vshrl.u32 %v1922, 7
      %v1924 = vsub.s32 %v1921, %v1923
      %v1925 = vrot.slane %v1918, %v1924
      %v1926 = vcombine.low %v1917, %v1925
      %v1928 = vunpack.c.l.s4 1934713408
      %v1929 = vunpack.c.0.s8 %v1928
      %v1930 = vlaneseq
      %v1931 = vshrl.u32 %v1930, 7
      %v1932 = vsub.s32 %v1929, %v1931
      %v1933 = vrot.slane %v1926, %v1932
      %v1934 = vcombine.high %v1933, 0
      %v1935 = vcombine.low %v1720, %v1724
      %v1937 = vunpack.c.l.s4 1983009808
      %v1938 = vunpack.c.0.s8 %v1937
      %v1939 = vlaneseq
      %v1940 = vshrl.u32 %v1939, 7
      %v1941 = vsub.s32 %v1938, %v1940
      %v1942 = vrot.slane %v1935, %v1941
      %v1943 = vcombine.low %v1722, %v1726
      %v1945 = vunpack.c.l.s4 1983009808
      %v1946 = vunpack.c.0.s8 %v1945
      %v1947 = vlaneseq
      %v1948 = vshrl.u32 %v1947, 7
      %v1949 = vsub.s32 %v1946, %v1948
      %v1950 = vrot.slane %v1943, %v1949
      %v1951 = vcombine.low %v1942, %v1950
      %v1953 = vunpack.c.l.s4 1934713408
      %v1954 = vunpack.c.0.s8 %v1953
      %v1955 = vlaneseq
      %v1956 = vshrl.u32 %v1955, 7
      %v1957 = vsub.s32 %v1954, %v1956
      %v1958 = vrot.slane %v1951, %v1957
      %v1959 = vcombine.high %v1958, 0
      %v1962 = vpack.i.b16 %v1958, %v1933
      %v1963 = vshrl.u32 %v1933, 16
      %v1964 = vshrl.u32 %v1958, 16
      %v1965 = vpack.i.b16 %v1964, %v1963
      %v1968 = vpack.i.b16 %v1959, %v1934
      %v1969 = vshrl.u32 %v1934, 16
      %v1970 = vshrl.u32 %v1959, 16
      %v1971 = vpack.i.b16 %v1970, %v1969
      %1972 = vxpose.xlu0.c.b16.start [1/8] %v1814, 128
      %1973 = vxpose.xlu0.c.b16.cont [2/8] 0, 128
      %1974 = vxpose.xlu0.c.b16.cont [3/8] 0, 128
      %1975 = vxpose.xlu0.c.b16.cont [4/8] 0, 128
      %1976 = vxpose.xlu0.c.b16.cont [5/8] 0, 128
      %1977 = vxpose.xlu0.c.b16.cont [6/8] 0, 128
      %1978 = vxpose.xlu0.c.b16.cont [7/8] 0, 128
      %1979 = vxpose.xlu0.c.b16.end [8/8] 0, 128
      %v1980 = vpop.trf.xlu0
      %v1981 = vpop.trf.xlu0
      %v1982 = vpop.trf.xlu0
      %v1983 = vpop.trf.xlu0
      %v1984 = vpop.trf.xlu0
      %v1985 = vpop.trf.xlu0
      %v1986 = vpop.trf.xlu0
      %v1987 = vpop.trf.xlu0
      %1988 = vxpose.xlu0.c.b16.start [1/8] %v1815, 128
      %1989 = vxpose.xlu0.c.b16.cont [2/8] 0, 128
      %1990 = vxpose.xlu0.c.b16.cont [3/8] 0, 128
      %1991 = vxpose.xlu0.c.b16.cont [4/8] 0, 128
      %1992 = vxpose.xlu0.c.b16.cont [5/8] 0, 128
      %1993 = vxpose.xlu0.c.b16.cont [6/8] 0, 128
      %1994 = vxpose.xlu0.c.b16.cont [7/8] 0, 128
      %1995 = vxpose.xlu0.c.b16.end [8/8] 0, 128
      %v1996 = vpop.trf.xlu0
      %v1997 = vpop.trf.xlu0
      %v1998 = vpop.trf.xlu0
      %v1999 = vpop.trf.xlu0
      %v2000 = vpop.trf.xlu0
      %v2001 = vpop.trf.xlu0
      %v2002 = vpop.trf.xlu0
      %v2003 = vpop.trf.xlu0
      %2004 = vxpose.xlu0.c.b16.start [1/8] %v1816, 128
      %2005 = vxpose.xlu0.c.b16.cont [2/8] 0, 128
      %2006 = vxpose.xlu0.c.b16.cont [3/8] 0, 128
      %2007 = vxpose.xlu0.c.b16.cont [4/8] 0, 128
      %2008 = vxpose.xlu0.c.b16.cont [5/8] 0, 128
      %2009 = vxpose.xlu0.c.b16.cont [6/8] 0, 128
      %2010 = vxpose.xlu0.c.b16.cont [7/8] 0, 128
      %2011 = vxpose.xlu0.c.b16.end [8/8] 0, 128
      %v2012 = vpop.trf.xlu0
      %v2013 = vpop.trf.xlu0
      %v2014 = vpop.trf.xlu0
      %v2015 = vpop.trf.xlu0
      %v2016 = vpop.trf.xlu0
      %v2017 = vpop.trf.xlu0
      %v2018 = vpop.trf.xlu0
      %v2019 = vpop.trf.xlu0
      %2020 = vxpose.xlu0.c.b16.start [1/8] %v1817, 128
      %2021 = vxpose.xlu0.c.b16.cont [2/8] 0, 128
      %2022 = vxpose.xlu0.c.b16.cont [3/8] 0, 128
      %2023 = vxpose.xlu0.c.b16.cont [4/8] 0, 128
      %2024 = vxpose.xlu0.c.b16.cont [5/8] 0, 128
      %2025 = vxpose.xlu0.c.b16.cont [6/8] 0, 128
      %2026 = vxpose.xlu0.c.b16.cont [7/8] 0, 128
      %2027 = vxpose.xlu0.c.b16.end [8/8] 0, 128
      %v2028 = vpop.trf.xlu0
      %v2029 = vpop.trf.xlu0
      %v2030 = vpop.trf.xlu0
      %v2031 = vpop.trf.xlu0
      %v2032 = vpop.trf.xlu0
      %v2033 = vpop.trf.xlu0
      %v2034 = vpop.trf.xlu0
      %v2035 = vpop.trf.xlu0
      %2036 = vxpose.xlu0.c.b16.start [1/8] %v1818, 128
      %2037 = vxpose.xlu0.c.b16.cont [2/8] 0, 128
      %2038 = vxpose.xlu0.c.b16.cont [3/8] 0, 128
      %2039 = vxpose.xlu0.c.b16.cont [4/8] 0, 128
      %2040 = vxpose.xlu0.c.b16.cont [5/8] 0, 128
      %2041 = vxpose.xlu0.c.b16.cont [6/8] 0, 128
      %2042 = vxpose.xlu0.c.b16.cont [7/8] 0, 128
      %2043 = vxpose.xlu0.c.b16.end [8/8] 0, 128
      %v2044 = vpop.trf.xlu0
      %v2045 = vpop.trf.xlu0
      %v2046 = vpop.trf.xlu0
      %v2047 = vpop.trf.xlu0
      %v2048 = vpop.trf.xlu0
      %v2049 = vpop.trf.xlu0
      %v2050 = vpop.trf.xlu0
      %v2051 = vpop.trf.xlu0
      %2052 = vxpose.xlu0.c.b16.start [1/8] %v1819, 128
      %2053 = vxpose.xlu0.c.b16.cont [2/8] 0, 128
      %2054 = vxpose.xlu0.c.b16.cont [3/8] 0, 128
      %2055 = vxpose.xlu0.c.b16.cont [4/8] 0, 128
      %2056 = vxpose.xlu0.c.b16.cont [5/8] 0, 128
      %2057 = vxpose.xlu0.c.b16.cont [6/8] 0, 128
      %2058 = vxpose.xlu0.c.b16.cont [7/8] 0, 128
      %2059 = vxpose.xlu0.c.b16.end [8/8] 0, 128
      %v2060 = vpop.trf.xlu0
      %v2061 = vpop.trf.xlu0
      %v2062 = vpop.trf.xlu0
      %v2063 = vpop.trf.xlu0
      %v2064 = vpop.trf.xlu0
      %v2065 = vpop.trf.xlu0
      %v2066 = vpop.trf.xlu0
      %v2067 = vpop.trf.xlu0
      %2068 = vxpose.xlu0.c.b16.start [1/8] %v1820, 128
      %2069 = vxpose.xlu0.c.b16.cont [2/8] 0, 128
      %2070 = vxpose.xlu0.c.b16.cont [3/8] 0, 128
      %2071 = vxpose.xlu0.c.b16.cont [4/8] 0, 128
      %2072 = vxpose.xlu0.c.b16.cont [5/8] 0, 128
      %2073 = vxpose.xlu0.c.b16.cont [6/8] 0, 128
      %2074 = vxpose.xlu0.c.b16.cont [7/8] 0, 128
      %2075 = vxpose.xlu0.c.b16.end [8/8] 0, 128
      %v2076 = vpop.trf.xlu0
      %v2077 = vpop.trf.xlu0
      %v2078 = vpop.trf.xlu0
      %v2079 = vpop.trf.xlu0
      %v2080 = vpop.trf.xlu0
      %v2081 = vpop.trf.xlu0
      %v2082 = vpop.trf.xlu0
      %v2083 = vpop.trf.xlu0
      %2084 = vxpose.xlu0.c.b16.start [1/8] %v1821, 128
      %2085 = vxpose.xlu0.c.b16.cont [2/8] 0, 128
      %2086 = vxpose.xlu0.c.b16.cont [3/8] 0, 128
      %2087 = vxpose.xlu0.c.b16.cont [4/8] 0, 128
      %2088 = vxpose.xlu0.c.b16.cont [5/8] 0, 128
      %2089 = vxpose.xlu0.c.b16.cont [6/8] 0, 128
      %2090 = vxpose.xlu0.c.b16.cont [7/8] 0, 128
      %2091 = vxpose.xlu0.c.b16.end [8/8] 0, 128
      %v2092 = vpop.trf.xlu0
      %v2093 = vpop.trf.xlu0
      %v2094 = vpop.trf.xlu0
      %v2095 = vpop.trf.xlu0
      %v2096 = vpop.trf.xlu0
      %v2097 = vpop.trf.xlu0
      %v2098 = vpop.trf.xlu0
      %v2099 = vpop.trf.xlu0
      %v2100 = vcombine.low %v1980, %v2044
      %v2102 = vunpack.c.l.s4 1983009808
      %v2103 = vunpack.c.0.s8 %v2102
      %v2104 = vlaneseq
      %v2105 = vshrl.u32 %v2104, 7
      %v2106 = vsub.s32 %v2103, %v2105
      %v2107 = vrot.slane %v2100, %v2106
      %v2108 = vcombine.low %v2012, %v2076
      %v2110 = vunpack.c.l.s4 1983009808
      %v2111 = vunpack.c.0.s8 %v2110
      %v2112 = vlaneseq
      %v2113 = vshrl.u32 %v2112, 7
      %v2114 = vsub.s32 %v2111, %v2113
      %v2115 = vrot.slane %v2108, %v2114
      %v2116 = vcombine.low %v2107, %v2115
      %v2117 = vcombine.high %v2107, %v2115
      %v2119 = vunpack.c.l.s4 1934713408
      %v2120 = vunpack.c.0.s8 %v2119
      %v2121 = vlaneseq
      %v2122 = vshrl.u32 %v2121, 7
      %v2123 = vsub.s32 %v2120, %v2122
      %v2124 = vrot.slane %v2116, %v2123
      %v2126 = vunpack.c.l.s4 1934713408
      %v2127 = vunpack.c.0.s8 %v2126
      %v2128 = vlaneseq
      %v2129 = vshrl.u32 %v2128, 7
      %v2130 = vsub.s32 %v2127, %v2129
      %v2131 = vrot.slane %v2117, %v2130
      %v2132 = vcombine.high %v2124, 0
      %v2133 = vcombine.high %v2131, 0
      %v2134 = vcombine.low %v1996, %v2060
      %v2136 = vunpack.c.l.s4 1983009808
      %v2137 = vunpack.c.0.s8 %v2136
      %v2138 = vlaneseq
      %v2139 = vshrl.u32 %v2138, 7
      %v2140 = vsub.s32 %v2137, %v2139
      %v2141 = vrot.slane %v2134, %v2140
      %v2142 = vcombine.low %v2028, %v2092
      %v2144 = vunpack.c.l.s4 1983009808
      %v2145 = vunpack.c.0.s8 %v2144
      %v2146 = vlaneseq
      %v2147 = vshrl.u32 %v2146, 7
      %v2148 = vsub.s32 %v2145, %v2147
      %v2149 = vrot.slane %v2142, %v2148
      %v2150 = vcombine.low %v2141, %v2149
      %v2151 = vcombine.high %v2141, %v2149
      %v2153 = vunpack.c.l.s4 1934713408
      %v2154 = vunpack.c.0.s8 %v2153
      %v2155 = vlaneseq
      %v2156 = vshrl.u32 %v2155, 7
      %v2157 = vsub.s32 %v2154, %v2156
      %v2158 = vrot.slane %v2150, %v2157
      %v2160 = vunpack.c.l.s4 1934713408
      %v2161 = vunpack.c.0.s8 %v2160
      %v2162 = vlaneseq
      %v2163 = vshrl.u32 %v2162, 7
      %v2164 = vsub.s32 %v2161, %v2163
      %v2165 = vrot.slane %v2151, %v2164
      %v2166 = vcombine.high %v2158, 0
      %v2167 = vcombine.high %v2165, 0
      %v2170 = vpack.i.b16 %v2158, %v2124
      %v2172 = vshrl.u32 %v2124, 16
      %v2173 = vshrl.u32 %v2158, 16
      %v2174 = vpack.i.b16 %v2173, %v2172
      %v2178 = vpack.i.b16 %v2166, %v2132
      %v2180 = vshrl.u32 %v2132, 16
      %v2181 = vshrl.u32 %v2166, 16
      %v2182 = vpack.i.b16 %v2181, %v2180
      %v2186 = vpack.i.b16 %v2165, %v2131
      %v2188 = vshrl.u32 %v2131, 16
      %v2189 = vshrl.u32 %v2165, 16
      %v2190 = vpack.i.b16 %v2189, %v2188
      %v2194 = vpack.i.b16 %v2167, %v2133
      %v2196 = vshrl.u32 %v2133, 16
      %v2197 = vshrl.u32 %v2167, 16
      %v2198 = vpack.i.b16 %v2197, %v2196
      %2200 = vxpose.xlu0.c.b16.start [1/8] %v2170, 128
      %2201 = vxpose.xlu0.c.b16.cont [2/8] 0, 128
      %2202 = vxpose.xlu0.c.b16.cont [3/8] 0, 128
      %2203 = vxpose.xlu0.c.b16.cont [4/8] 0, 128
      %2204 = vxpose.xlu0.c.b16.cont [5/8] 0, 128
      %2205 = vxpose.xlu0.c.b16.cont [6/8] 0, 128
      %2206 = vxpose.xlu0.c.b16.cont [7/8] 0, 128
      %2207 = vxpose.xlu0.c.b16.end [8/8] 0, 128
      %v2208 = vpop.trf.xlu0
      %v2209 = vpop.trf.xlu0
      %v2210 = vpop.trf.xlu0
      %v2211 = vpop.trf.xlu0
      %v2212 = vpop.trf.xlu0
      %v2213 = vpop.trf.xlu0
      %v2214 = vpop.trf.xlu0
      %v2215 = vpop.trf.xlu0
      %2216 = vxpose.xlu0.c.b16.start [1/8] %v2174, 128
      %2217 = vxpose.xlu0.c.b16.cont [2/8] 0, 128
      %2218 = vxpose.xlu0.c.b16.cont [3/8] 0, 128
      %2219 = vxpose.xlu0.c.b16.cont [4/8] 0, 128
      %2220 = vxpose.xlu0.c.b16.cont [5/8] 0, 128
      %2221 = vxpose.xlu0.c.b16.cont [6/8] 0, 128
      %2222 = vxpose.xlu0.c.b16.cont [7/8] 0, 128
      %2223 = vxpose.xlu0.c.b16.end [8/8] 0, 128
      %v2224 = vpop.trf.xlu0
      %v2225 = vpop.trf.xlu0
      %v2226 = vpop.trf.xlu0
      %v2227 = vpop.trf.xlu0
      %v2228 = vpop.trf.xlu0
      %v2229 = vpop.trf.xlu0
      %v2230 = vpop.trf.xlu0
      %v2231 = vpop.trf.xlu0
      %2232 = vxpose.xlu0.c.b16.start [1/8] %v2178, 128
      %2233 = vxpose.xlu0.c.b16.cont [2/8] 0, 128
      %2234 = vxpose.xlu0.c.b16.cont [3/8] 0, 128
      %2235 = vxpose.xlu0.c.b16.cont [4/8] 0, 128
      %2236 = vxpose.xlu0.c.b16.cont [5/8] 0, 128
      %2237 = vxpose.xlu0.c.b16.cont [6/8] 0, 128
      %2238 = vxpose.xlu0.c.b16.cont [7/8] 0, 128
      %2239 = vxpose.xlu0.c.b16.end [8/8] 0, 128
      %v2240 = vpop.trf.xlu0
      %v2241 = vpop.trf.xlu0
      %v2242 = vpop.trf.xlu0
      %v2243 = vpop.trf.xlu0
      %v2244 = vpop.trf.xlu0
      %v2245 = vpop.trf.xlu0
      %v2246 = vpop.trf.xlu0
      %v2247 = vpop.trf.xlu0
      %2248 = vxpose.xlu0.c.b16.start [1/8] %v2182, 128
      %2249 = vxpose.xlu0.c.b16.cont [2/8] 0, 128
      %2250 = vxpose.xlu0.c.b16.cont [3/8] 0, 128
      %2251 = vxpose.xlu0.c.b16.cont [4/8] 0, 128
      %2252 = vxpose.xlu0.c.b16.cont [5/8] 0, 128
      %2253 = vxpose.xlu0.c.b16.cont [6/8] 0, 128
      %2254 = vxpose.xlu0.c.b16.cont [7/8] 0, 128
      %2255 = vxpose.xlu0.c.b16.end [8/8] 0, 128
      %v2256 = vpop.trf.xlu0
      %v2257 = vpop.trf.xlu0
      %v2258 = vpop.trf.xlu0
      %v2259 = vpop.trf.xlu0
      %v2260 = vpop.trf.xlu0
      %v2261 = vpop.trf.xlu0
      %v2262 = vpop.trf.xlu0
      %v2263 = vpop.trf.xlu0
      %2264 = vxpose.xlu0.c.b16.start [1/8] %v2186, 128
      %2265 = vxpose.xlu0.c.b16.cont [2/8] 0, 128
      %2266 = vxpose.xlu0.c.b16.cont [3/8] 0, 128
      %2267 = vxpose.xlu0.c.b16.cont [4/8] 0, 128
      %2268 = vxpose.xlu0.c.b16.cont [5/8] 0, 128
      %2269 = vxpose.xlu0.c.b16.cont [6/8] 0, 128
      %2270 = vxpose.xlu0.c.b16.cont [7/8] 0, 128
      %2271 = vxpose.xlu0.c.b16.end [8/8] 0, 128
      %v2272 = vpop.trf.xlu0
      %v2273 = vpop.trf.xlu0
      %v2274 = vpop.trf.xlu0
      %v2275 = vpop.trf.xlu0
      %v2276 = vpop.trf.xlu0
      %v2277 = vpop.trf.xlu0
      %v2278 = vpop.trf.xlu0
      %v2279 = vpop.trf.xlu0
      %2280 = vxpose.xlu0.c.b16.start [1/8] %v2190, 128
      %2281 = vxpose.xlu0.c.b16.cont [2/8] 0, 128
      %2282 = vxpose.xlu0.c.b16.cont [3/8] 0, 128
      %2283 = vxpose.xlu0.c.b16.cont [4/8] 0, 128
      %2284 = vxpose.xlu0.c.b16.cont [5/8] 0, 128
      %2285 = vxpose.xlu0.c.b16.cont [6/8] 0, 128
      %2286 = vxpose.xlu0.c.b16.cont [7/8] 0, 128
      %2287 = vxpose.xlu0.c.b16.end [8/8] 0, 128
      %v2288 = vpop.trf.xlu0
      %v2289 = vpop.trf.xlu0
      %v2290 = vpop.trf.xlu0
      %v2291 = vpop.trf.xlu0
      %v2292 = vpop.trf.xlu0
      %v2293 = vpop.trf.xlu0
      %v2294 = vpop.trf.xlu0
      %v2295 = vpop.trf.xlu0
      %2296 = vxpose.xlu0.c.b16.start [1/8] %v2194, 128
      %2297 = vxpose.xlu0.c.b16.cont [2/8] 0, 128
      %2298 = vxpose.xlu0.c.b16.cont [3/8] 0, 128
      %2299 = vxpose.xlu0.c.b16.cont [4/8] 0, 128
      %2300 = vxpose.xlu0.c.b16.cont [5/8] 0, 128
      %2301 = vxpose.xlu0.c.b16.cont [6/8] 0, 128
      %2302 = vxpose.xlu0.c.b16.cont [7/8] 0, 128
      %2303 = vxpose.xlu0.c.b16.end [8/8] 0, 128
      %v2304 = vpop.trf.xlu0
      %v2305 = vpop.trf.xlu0
      %v2306 = vpop.trf.xlu0
      %v2307 = vpop.trf.xlu0
      %v2308 = vpop.trf.xlu0
      %v2309 = vpop.trf.xlu0
      %v2310 = vpop.trf.xlu0
      %v2311 = vpop.trf.xlu0
      %2312 = vxpose.xlu0.c.b16.start [1/8] %v2198, 128
      %2313 = vxpose.xlu0.c.b16.cont [2/8] 0, 128
      %2314 = vxpose.xlu0.c.b16.cont [3/8] 0, 128
      %2315 = vxpose.xlu0.c.b16.cont [4/8] 0, 128
      %2316 = vxpose.xlu0.c.b16.cont [5/8] 0, 128
      %2317 = vxpose.xlu0.c.b16.cont [6/8] 0, 128
      %2318 = vxpose.xlu0.c.b16.cont [7/8] 0, 128
      %2319 = vxpose.xlu0.c.b16.end [8/8] 0, 128
      %v2320 = vpop.trf.xlu0
      %v2321 = vpop.trf.xlu0
      %v2322 = vpop.trf.xlu0
      %v2323 = vpop.trf.xlu0
      %v2324 = vpop.trf.xlu0
      %v2325 = vpop.trf.xlu0
      %v2326 = vpop.trf.xlu0
      %v2327 = vpop.trf.xlu0
      %v2328 = vcombine.low %v2208, %v2272
      %v2330 = vunpack.c.l.s4 1983009808
      %v2331 = vunpack.c.0.s8 %v2330
      %v2332 = vlaneseq
      %v2333 = vshrl.u32 %v2332, 7
      %v2334 = vsub.s32 %v2331, %v2333
      %v2335 = vrot.slane %v2328, %v2334
      %v2336 = vcombine.low %v2240, %v2304
      %v2338 = vunpack.c.l.s4 1983009808
      %v2339 = vunpack.c.0.s8 %v2338
      %v2340 = vlaneseq
      %v2341 = vshrl.u32 %v2340, 7
      %v2342 = vsub.s32 %v2339, %v2341
      %v2343 = vrot.slane %v2336, %v2342
      %v2344 = vcombine.low %v2335, %v2343
      %v2346 = vunpack.c.l.s4 1934713408
      %v2347 = vunpack.c.0.s8 %v2346
      %v2348 = vlaneseq
      %v2349 = vshrl.u32 %v2348, 7
      %v2350 = vsub.s32 %v2347, %v2349
      %v2351 = vrot.slane %v2344, %v2350
      %v2352 = vcombine.high %v2351, 0
      %v2353 = vcombine.low %v2224, %v2288
      %v2355 = vunpack.c.l.s4 1983009808
      %v2356 = vunpack.c.0.s8 %v2355
      %v2357 = vlaneseq
      %v2358 = vshrl.u32 %v2357, 7
      %v2359 = vsub.s32 %v2356, %v2358
      %v2360 = vrot.slane %v2353, %v2359
      %v2361 = vcombine.low %v2256, %v2320
      %v2363 = vunpack.c.l.s4 1983009808
      %v2364 = vunpack.c.0.s8 %v2363
      %v2365 = vlaneseq
      %v2366 = vshrl.u32 %v2365, 7
      %v2367 = vsub.s32 %v2364, %v2366
      %v2368 = vrot.slane %v2361, %v2367
      %v2369 = vcombine.low %v2360, %v2368
      %v2371 = vunpack.c.l.s4 1934713408
      %v2372 = vunpack.c.0.s8 %v2371
      %v2373 = vlaneseq
      %v2374 = vshrl.u32 %v2373, 7
      %v2375 = vsub.s32 %v2372, %v2374
      %v2376 = vrot.slane %v2369, %v2375
      %v2377 = vcombine.high %v2376, 0
      %v2380 = vpack.i.b16 %v2376, %v2351
      %v2381 = vshrl.u32 %v2351, 16
      %v2382 = vshrl.u32 %v2376, 16
      %v2383 = vpack.i.b16 %v2382, %v2381
      %v2386 = vpack.i.b16 %v2377, %v2352
      %v2387 = vshrl.u32 %v2352, 16
      %v2388 = vshrl.u32 %v2377, 16
      %v2389 = vpack.i.b16 %v2388, %v2387
      %vm2390 = vcmask 64512
      %v2392 = vsel %vm2390, %v1962, 0
      %vm2394 = vcmask 1043456
      %v2396 = vsel %vm2394, %v2380, 0
      %2398 = vmatprep.subr.bf16.mxu0 0
      %2399 = vmatpush1.bf16.msra.mxu0 %v2396
      %2400 = vmatprep.subr.bf16.mxu0 0
      %2401 = vmatpush1.bf16.msra.mxu0 0
      %2402 = vmatprep.subr.bf16.mxu0 0
      %2403 = vmatpush1.bf16.msra.mxu0 0
      %2404 = vmatprep.subr.bf16.mxu0 0
      %2405 = vmatpush1.bf16.msra.mxu0 0
      %2406 = vmatprep.subr.bf16.mxu0 0
      %2407 = vmatpush1.bf16.msra.mxu0 0
      %2408 = vmatprep.subr.bf16.mxu0 0
      %2409 = vmatpush1.bf16.msra.mxu0 0
      %2410 = vmatprep.subr.bf16.mxu0 0
      %2411 = vmatpush1.bf16.msra.mxu0 0
      %2412 = vmatprep.subr.bf16.mxu0 0
      %2413 = vmatpush1.bf16.msra.mxu0 0
      %2414 = vmatprep.subr.bf16.mxu0 0
      %2415 = vmatpush1.bf16.msra.mxu0 0
      %2416 = vmatprep.subr.bf16.mxu0 0
      %2417 = vmatpush1.bf16.msra.mxu0 0
      %2418 = vmatprep.subr.bf16.mxu0 0
      %2419 = vmatpush1.bf16.msra.mxu0 0
      %2420 = vmatprep.subr.bf16.mxu0 0
      %2421 = vmatpush1.bf16.msra.mxu0 0
      %2422 = vmatprep.subr.bf16.mxu0 0
      %2423 = vmatpush1.bf16.msra.mxu0 0
      %2424 = vmatprep.subr.bf16.mxu0 0
      %2425 = vmatpush1.bf16.msra.mxu0 0
      %2426 = vmatprep.subr.bf16.mxu0 0
      %2427 = vmatpush1.bf16.msra.mxu0 0
      %2428 = vmatprep.subr.bf16.mxu0 0
      %2429 = vmatpush1.bf16.msra.mxu0 0
      %2430 = vmatprep.mubr.bf16.mxu0 0
      %2431 = vmatmul.mubr.bf16.gmra.mrb[0].mxu0 %v2392
      %v2432 = vpop.f32.mrb[0].mxu0
      %v2433 = vadd.f32 0.0, %v2432
      %v2434 = vpop.f32.mrb[0].mxu0
      %v2435 = vpop.f32.mrb[0].mxu0
      %v2436 = vpop.f32.mrb[0].mxu0
      %2437 = vdwg.mxu0
      %v2439 = vsel %vm2390, %v1965, 0
      %v2442 = vsel %vm2394, %v2383, 0
      %2444 = vmatprep.subr.bf16.mxu0 0
      %2445 = vmatpush1.bf16.msra.mxu0 %v2442
      %2446 = vmatprep.subr.bf16.mxu0 0
      %2447 = vmatpush1.bf16.msra.mxu0 0
      %2448 = vmatprep.subr.bf16.mxu0 0
      %2449 = vmatpush1.bf16.msra.mxu0 0
      %2450 = vmatprep.subr.bf16.mxu0 0
      %2451 = vmatpush1.bf16.msra.mxu0 0
      %2452 = vmatprep.subr.bf16.mxu0 0
      %2453 = vmatpush1.bf16.msra.mxu0 0
      %2454 = vmatprep.subr.bf16.mxu0 0
      %2455 = vmatpush1.bf16.msra.mxu0 0
      %2456 = vmatprep.subr.bf16.mxu0 0
      %2457 = vmatpush1.bf16.msra.mxu0 0
      %2458 = vmatprep.subr.bf16.mxu0 0
      %2459 = vmatpush1.bf16.msra.mxu0 0
      %2460 = vmatprep.subr.bf16.mxu0 0
      %2461 = vmatpush1.bf16.msra.mxu0 0
      %2462 = vmatprep.subr.bf16.mxu0 0
      %2463 = vmatpush1.bf16.msra.mxu0 0
      %2464 = vmatprep.subr.bf16.mxu0 0
      %2465 = vmatpush1.bf16.msra.mxu0 0
      %2466 = vmatprep.subr.bf16.mxu0 0
      %2467 = vmatpush1.bf16.msra.mxu0 0
      %2468 = vmatprep.subr.bf16.mxu0 0
      %2469 = vmatpush1.bf16.msra.mxu0 0
      %2470 = vmatprep.subr.bf16.mxu0 0
      %2471 = vmatpush1.bf16.msra.mxu0 0
      %2472 = vmatprep.subr.bf16.mxu0 0
      %2473 = vmatpush1.bf16.msra.mxu0 0
      %2474 = vmatprep.subr.bf16.mxu0 0
      %2475 = vmatpush1.bf16.msra.mxu0 0
      %2476 = vmatprep.mubr.bf16.mxu0 0
      %2477 = vmatmul.mubr.bf16.gmra.mrb[0].mxu0 %v2439
      %v2478 = vpop.f32.mrb[0].mxu0
      %v2479 = vadd.f32 0.0, %v2478
      %v2480 = vpop.f32.mrb[0].mxu0
      %v2481 = vpop.f32.mrb[0].mxu0
      %v2482 = vpop.f32.mrb[0].mxu0
      %2483 = vdwg.mxu0
      %v2485 = vsel %vm2390, %v1968, 0
      %v2488 = vsel %vm2394, %v2386, 0
      %2490 = vmatprep.subr.bf16.mxu0 0
      %2491 = vmatpush1.bf16.msra.mxu0 %v2488
      %2492 = vmatprep.subr.bf16.mxu0 0
      %2493 = vmatpush1.bf16.msra.mxu0 0
      %2494 = vmatprep.subr.bf16.mxu0 0
      %2495 = vmatpush1.bf16.msra.mxu0 0
      %2496 = vmatprep.subr.bf16.mxu0 0
      %2497 = vmatpush1.bf16.msra.mxu0 0
      %2498 = vmatprep.subr.bf16.mxu0 0
      %2499 = vmatpush1.bf16.msra.mxu0 0
      %2500 = vmatprep.subr.bf16.mxu0 0
      %2501 = vmatpush1.bf16.msra.mxu0 0
      %2502 = vmatprep.subr.bf16.mxu0 0
      %2503 = vmatpush1.bf16.msra.mxu0 0
      %2504 = vmatprep.subr.bf16.mxu0 0
      %2505 = vmatpush1.bf16.msra.mxu0 0
      %2506 = vmatprep.subr.bf16.mxu0 0
      %2507 = vmatpush1.bf16.msra.mxu0 0
      %2508 = vmatprep.subr.bf16.mxu0 0
      %2509 = vmatpush1.bf16.msra.mxu0 0
      %2510 = vmatprep.subr.bf16.mxu0 0
      %2511 = vmatpush1.bf16.msra.mxu0 0
      %2512 = vmatprep.subr.bf16.mxu0 0
      %2513 = vmatpush1.bf16.msra.mxu0 0
      %2514 = vmatprep.subr.bf16.mxu0 0
      %2515 = vmatpush1.bf16.msra.mxu0 0
      %2516 = vmatprep.subr.bf16.mxu0 0
      %2517 = vmatpush1.bf16.msra.mxu0 0
      %2518 = vmatprep.subr.bf16.mxu0 0
      %2519 = vmatpush1.bf16.msra.mxu0 0
      %2520 = vmatprep.subr.bf16.mxu0 0
      %2521 = vmatpush1.bf16.msra.mxu0 0
      %2522 = vmatprep.mubr.bf16.mxu0 0
      %2523 = vmatmul.mubr.bf16.gmra.mrb[0].mxu0 %v2485
      %v2524 = vpop.f32.mrb[0].mxu0
      %v2525 = vadd.f32 0.0, %v2524
      %v2526 = vpop.f32.mrb[0].mxu0
      %v2527 = vpop.f32.mrb[0].mxu0
      %v2528 = vpop.f32.mrb[0].mxu0
      %2529 = vdwg.mxu0
      %v2531 = vsel %vm2390, %v1971, 0
      %v2534 = vsel %vm2394, %v2389, 0
      %2536 = vmatprep.subr.bf16.mxu0 0
      %2537 = vmatpush1.bf16.msra.mxu0 %v2534
      %2538 = vmatprep.subr.bf16.mxu0 0
      %2539 = vmatpush1.bf16.msra.mxu0 0
      %2540 = vmatprep.subr.bf16.mxu0 0
      %2541 = vmatpush1.bf16.msra.mxu0 0
      %2542 = vmatprep.subr.bf16.mxu0 0
      %2543 = vmatpush1.bf16.msra.mxu0 0
      %2544 = vmatprep.subr.bf16.mxu0 0
      %2545 = vmatpush1.bf16.msra.mxu0 0
      %2546 = vmatprep.subr.bf16.mxu0 0
      %2547 = vmatpush1.bf16.msra.mxu0 0
      %2548 = vmatprep.subr.bf16.mxu0 0
      %2549 = vmatpush1.bf16.msra.mxu0 0
      %2550 = vmatprep.subr.bf16.mxu0 0
      %2551 = vmatpush1.bf16.msra.mxu0 0
      %2552 = vmatprep.subr.bf16.mxu0 0
      %2553 = vmatpush1.bf16.msra.mxu0 0
      %2554 = vmatprep.subr.bf16.mxu0 0
      %2555 = vmatpush1.bf16.msra.mxu0 0
      %2556 = vmatprep.subr.bf16.mxu0 0
      %2557 = vmatpush1.bf16.msra.mxu0 0
      %2558 = vmatprep.subr.bf16.mxu0 0
      %2559 = vmatpush1.bf16.msra.mxu0 0
      %2560 = vmatprep.subr.bf16.mxu0 0
      %2561 = vmatpush1.bf16.msra.mxu0 0
      %2562 = vmatprep.subr.bf16.mxu0 0
      %2563 = vmatpush1.bf16.msra.mxu0 0
      %2564 = vmatprep.subr.bf16.mxu0 0
      %2565 = vmatpush1.bf16.msra.mxu0 0
      %2566 = vmatprep.subr.bf16.mxu0 0
      %2567 = vmatpush1.bf16.msra.mxu0 0
      %2568 = vmatprep.mubr.bf16.mxu0 0
      %2569 = vmatmul.mubr.bf16.gmra.mrb[0].mxu0 %v2531
      %v2570 = vpop.f32.mrb[0].mxu0
      %v2571 = vadd.f32 0.0, %v2570
      %v2572 = vpop.f32.mrb[0].mxu0
      %v2573 = vpop.f32.mrb[0].mxu0
      %v2574 = vpop.f32.mrb[0].mxu0
      %2575 = vdwg.mxu0
      %v2576 = vsel %vm2390, %v2433, -inf
      %2577 = vmax.xlane.f32.xlu0 %v2576
      %v2578 = vpop.xlane.xlu0 %2577
      %v2579 = vsel %vm2390, %v2479, -inf
      %2580 = vmax.xlane.f32.xlu0 %v2579
      %v2581 = vpop.xlane.xlu0 %2580
      %v2582 = vsel %vm2390, %v2525, -inf
      %2583 = vmax.xlane.f32.xlu0 %v2582
      %v2584 = vpop.xlane.xlu0 %2583
      %v2585 = vsel %vm2390, %v2571, -inf
      %2586 = vmax.xlane.f32.xlu0 %v2585
      %v2587 = vpop.xlane.xlu0 %2586
      %v2588 = vsub.f32 %v2433, %v2578
      %v2589 = vsub.f32 %v2479, %v2581
      %v2590 = vsub.f32 %v2525, %v2584
      %v2591 = vsub.f32 %v2571, %v2587
      %v2592 = vmul.f32 %v2588, 1.442695
      %v2593 = vpow.pop %v2592
      %v2594 = vmul.f32 %v2589, 1.442695
      %v2595 = vpow.pop %v2594
      %v2596 = vmul.f32 %v2590, 1.442695
      %v2597 = vpow.pop %v2596
      %v2598 = vmul.f32 %v2591, 1.442695
      %v2599 = vpow.pop %v2598
      %v2600 = vsel %vm2390, %v2593, 0.0
      %2601 = vadd.xlane.f32.xlu0 %v2600
      %v2602 = vpop.xlane.xlu0 %2601
      %v2603 = vsel %vm2390, %v2595, 0.0
      %2604 = vadd.xlane.f32.xlu0 %v2603
      %v2605 = vpop.xlane.xlu0 %2604
      %v2606 = vsel %vm2390, %v2597, 0.0
      %2607 = vadd.xlane.f32.xlu0 %v2606
      %v2608 = vpop.xlane.xlu0 %2607
      %v2609 = vsel %vm2390, %v2599, 0.0
      %2610 = vadd.xlane.f32.xlu0 %v2609
      %v2611 = vpop.xlane.xlu0 %2610
      %v2612 = vrcp.pop %v2602
      %v2613 = vrcp.pop %v2605
      %v2614 = vrcp.pop %v2608
      %v2615 = vrcp.pop %v2611
      %v2616 = vmul.f32 %v2593, %v2612
      %v2617 = vmul.f32 %v2595, %v2613
      %v2618 = vmul.f32 %v2597, %v2614
      %v2619 = vmul.f32 %v2599, %v2615
      %v2620 = vpack.c.bf16 %v2616, %v2616
      %v2621 = vpack.c.bf16 %v2617, %v2617
      %v2622 = vpack.c.bf16 %v2618, %v2618
      %v2623 = vpack.c.bf16 %v2619, %v2619
      %2624 = vxpose.xlu0.c.b16.start [1/8] %v1902, 128
      %2625 = vxpose.xlu0.c.b16.cont [2/8] 0, 128
      %2626 = vxpose.xlu0.c.b16.cont [3/8] 0, 128
      %2627 = vxpose.xlu0.c.b16.cont [4/8] 0, 128
      %2628 = vxpose.xlu0.c.b16.cont [5/8] 0, 128
      %2629 = vxpose.xlu0.c.b16.cont [6/8] 0, 128
      %2630 = vxpose.xlu0.c.b16.cont [7/8] 0, 128
      %2631 = vxpose.xlu0.c.b16.end [8/8] 0, 128
      %v2632 = vpop.trf.xlu0
      %v2633 = vpop.trf.xlu0
      %v2634 = vpop.trf.xlu0
      %v2635 = vpop.trf.xlu0
      %v2636 = vpop.trf.xlu0
      %v2637 = vpop.trf.xlu0
      %v2638 = vpop.trf.xlu0
      %v2639 = vpop.trf.xlu0
      %2640 = vxpose.xlu0.c.b16.start [1/8] %v1903, 128
      %2641 = vxpose.xlu0.c.b16.cont [2/8] 0, 128
      %2642 = vxpose.xlu0.c.b16.cont [3/8] 0, 128
      %2643 = vxpose.xlu0.c.b16.cont [4/8] 0, 128
      %2644 = vxpose.xlu0.c.b16.cont [5/8] 0, 128
      %2645 = vxpose.xlu0.c.b16.cont [6/8] 0, 128
      %2646 = vxpose.xlu0.c.b16.cont [7/8] 0, 128
      %2647 = vxpose.xlu0.c.b16.end [8/8] 0, 128
      %v2648 = vpop.trf.xlu0
      %v2649 = vpop.trf.xlu0
      %v2650 = vpop.trf.xlu0
      %v2651 = vpop.trf.xlu0
      %v2652 = vpop.trf.xlu0
      %v2653 = vpop.trf.xlu0
      %v2654 = vpop.trf.xlu0
      %v2655 = vpop.trf.xlu0
      %2656 = vxpose.xlu0.c.b16.start [1/8] %v1904, 128
      %2657 = vxpose.xlu0.c.b16.cont [2/8] 0, 128
      %2658 = vxpose.xlu0.c.b16.cont [3/8] 0, 128
      %2659 = vxpose.xlu0.c.b16.cont [4/8] 0, 128
      %2660 = vxpose.xlu0.c.b16.cont [5/8] 0, 128
      %2661 = vxpose.xlu0.c.b16.cont [6/8] 0, 128
      %2662 = vxpose.xlu0.c.b16.cont [7/8] 0, 128
      %2663 = vxpose.xlu0.c.b16.end [8/8] 0, 128
      %v2664 = vpop.trf.xlu0
      %v2665 = vpop.trf.xlu0
      %v2666 = vpop.trf.xlu0
      %v2667 = vpop.trf.xlu0
      %v2668 = vpop.trf.xlu0
      %v2669 = vpop.trf.xlu0
      %v2670 = vpop.trf.xlu0
      %v2671 = vpop.trf.xlu0
      %2672 = vxpose.xlu0.c.b16.start [1/8] %v1905, 128
      %2673 = vxpose.xlu0.c.b16.cont [2/8] 0, 128
      %2674 = vxpose.xlu0.c.b16.cont [3/8] 0, 128
      %2675 = vxpose.xlu0.c.b16.cont [4/8] 0, 128
      %2676 = vxpose.xlu0.c.b16.cont [5/8] 0, 128
      %2677 = vxpose.xlu0.c.b16.cont [6/8] 0, 128
      %2678 = vxpose.xlu0.c.b16.cont [7/8] 0, 128
      %2679 = vxpose.xlu0.c.b16.end [8/8] 0, 128
      %v2680 = vpop.trf.xlu0
      %v2681 = vpop.trf.xlu0
      %v2682 = vpop.trf.xlu0
      %v2683 = vpop.trf.xlu0
      %v2684 = vpop.trf.xlu0
      %v2685 = vpop.trf.xlu0
      %v2686 = vpop.trf.xlu0
      %v2687 = vpop.trf.xlu0
      %2688 = vxpose.xlu0.c.b16.start [1/8] %v1906, 128
      %2689 = vxpose.xlu0.c.b16.cont [2/8] 0, 128
      %2690 = vxpose.xlu0.c.b16.cont [3/8] 0, 128
      %2691 = vxpose.xlu0.c.b16.cont [4/8] 0, 128
      %2692 = vxpose.xlu0.c.b16.cont [5/8] 0, 128
      %2693 = vxpose.xlu0.c.b16.cont [6/8] 0, 128
      %2694 = vxpose.xlu0.c.b16.cont [7/8] 0, 128
      %2695 = vxpose.xlu0.c.b16.end [8/8] 0, 128
      %v2696 = vpop.trf.xlu0
      %v2697 = vpop.trf.xlu0
      %v2698 = vpop.trf.xlu0
      %v2699 = vpop.trf.xlu0
      %v2700 = vpop.trf.xlu0
      %v2701 = vpop.trf.xlu0
      %v2702 = vpop.trf.xlu0
      %v2703 = vpop.trf.xlu0
      %2704 = vxpose.xlu0.c.b16.start [1/8] %v1907, 128
      %2705 = vxpose.xlu0.c.b16.cont [2/8] 0, 128
      %2706 = vxpose.xlu0.c.b16.cont [3/8] 0, 128
      %2707 = vxpose.xlu0.c.b16.cont [4/8] 0, 128
      %2708 = vxpose.xlu0.c.b16.cont [5/8] 0, 128
      %2709 = vxpose.xlu0.c.b16.cont [6/8] 0, 128
      %2710 = vxpose.xlu0.c.b16.cont [7/8] 0, 128
      %2711 = vxpose.xlu0.c.b16.end [8/8] 0, 128
      %v2712 = vpop.trf.xlu0
      %v2713 = vpop.trf.xlu0
      %v2714 = vpop.trf.xlu0
      %v2715 = vpop.trf.xlu0
      %v2716 = vpop.trf.xlu0
      %v2717 = vpop.trf.xlu0
      %v2718 = vpop.trf.xlu0
      %v2719 = vpop.trf.xlu0
      %2720 = vxpose.xlu0.c.b16.start [1/8] %v1908, 128
      %2721 = vxpose.xlu0.c.b16.cont [2/8] 0, 128
      %2722 = vxpose.xlu0.c.b16.cont [3/8] 0, 128
      %2723 = vxpose.xlu0.c.b16.cont [4/8] 0, 128
      %2724 = vxpose.xlu0.c.b16.cont [5/8] 0, 128
      %2725 = vxpose.xlu0.c.b16.cont [6/8] 0, 128
      %2726 = vxpose.xlu0.c.b16.cont [7/8] 0, 128
      %2727 = vxpose.xlu0.c.b16.end [8/8] 0, 128
      %v2728 = vpop.trf.xlu0
      %v2729 = vpop.trf.xlu0
      %v2730 = vpop.trf.xlu0
      %v2731 = vpop.trf.xlu0
      %v2732 = vpop.trf.xlu0
      %v2733 = vpop.trf.xlu0
      %v2734 = vpop.trf.xlu0
      %v2735 = vpop.trf.xlu0
      %2736 = vxpose.xlu0.c.b16.start [1/8] %v1909, 128
      %2737 = vxpose.xlu0.c.b16.cont [2/8] 0, 128
      %2738 = vxpose.xlu0.c.b16.cont [3/8] 0, 128
      %2739 = vxpose.xlu0.c.b16.cont [4/8] 0, 128
      %2740 = vxpose.xlu0.c.b16.cont [5/8] 0, 128
      %2741 = vxpose.xlu0.c.b16.cont [6/8] 0, 128
      %2742 = vxpose.xlu0.c.b16.cont [7/8] 0, 128
      %2743 = vxpose.xlu0.c.b16.end [8/8] 0, 128
      %v2744 = vpop.trf.xlu0
      %v2745 = vpop.trf.xlu0
      %v2746 = vpop.trf.xlu0
      %v2747 = vpop.trf.xlu0
      %v2748 = vpop.trf.xlu0
      %v2749 = vpop.trf.xlu0
      %v2750 = vpop.trf.xlu0
      %v2751 = vpop.trf.xlu0
      %v2752 = vcombine.low %v2632, %v2696
      %v2754 = vunpack.c.l.s4 1983009808
      %v2755 = vunpack.c.0.s8 %v2754
      %v2756 = vlaneseq
      %v2757 = vshrl.u32 %v2756, 7
      %v2758 = vsub.s32 %v2755, %v2757
      %v2759 = vrot.slane %v2752, %v2758
      %v2760 = vcombine.low %v2664, %v2728
      %v2762 = vunpack.c.l.s4 1983009808
      %v2763 = vunpack.c.0.s8 %v2762
      %v2764 = vlaneseq
      %v2765 = vshrl.u32 %v2764, 7
      %v2766 = vsub.s32 %v2763, %v2765
      %v2767 = vrot.slane %v2760, %v2766
      %v2768 = vcombine.low %v2759, %v2767
      %v2769 = vcombine.high %v2759, %v2767
      %v2771 = vunpack.c.l.s4 1934713408
      %v2772 = vunpack.c.0.s8 %v2771
      %v2773 = vlaneseq
      %v2774 = vshrl.u32 %v2773, 7
      %v2775 = vsub.s32 %v2772, %v2774
      %v2776 = vrot.slane %v2768, %v2775
      %v2778 = vunpack.c.l.s4 1934713408
      %v2779 = vunpack.c.0.s8 %v2778
      %v2780 = vlaneseq
      %v2781 = vshrl.u32 %v2780, 7
      %v2782 = vsub.s32 %v2779, %v2781
      %v2783 = vrot.slane %v2769, %v2782
      %v2784 = vcombine.high %v2776, 0
      %v2785 = vcombine.high %v2783, 0
      %v2786 = vcombine.low %v2648, %v2712
      %v2788 = vunpack.c.l.s4 1983009808
      %v2789 = vunpack.c.0.s8 %v2788
      %v2790 = vlaneseq
      %v2791 = vshrl.u32 %v2790, 7
      %v2792 = vsub.s32 %v2789, %v2791
      %v2793 = vrot.slane %v2786, %v2792
      %v2794 = vcombine.low %v2680, %v2744
      %v2796 = vunpack.c.l.s4 1983009808
      %v2797 = vunpack.c.0.s8 %v2796
      %v2798 = vlaneseq
      %v2799 = vshrl.u32 %v2798, 7
      %v2800 = vsub.s32 %v2797, %v2799
      %v2801 = vrot.slane %v2794, %v2800
      %v2802 = vcombine.low %v2793, %v2801
      %v2803 = vcombine.high %v2793, %v2801
      %v2805 = vunpack.c.l.s4 1934713408
      %v2806 = vunpack.c.0.s8 %v2805
      %v2807 = vlaneseq
      %v2808 = vshrl.u32 %v2807, 7
      %v2809 = vsub.s32 %v2806, %v2808
      %v2810 = vrot.slane %v2802, %v2809
      %v2812 = vunpack.c.l.s4 1934713408
      %v2813 = vunpack.c.0.s8 %v2812
      %v2814 = vlaneseq
      %v2815 = vshrl.u32 %v2814, 7
      %v2816 = vsub.s32 %v2813, %v2815
      %v2817 = vrot.slane %v2803, %v2816
      %v2818 = vcombine.high %v2810, 0
      %v2819 = vcombine.high %v2817, 0
      %v2822 = vpack.i.b16 %v2810, %v2776
      %v2824 = vshrl.u32 %v2776, 16
      %v2825 = vshrl.u32 %v2810, 16
      %v2826 = vpack.i.b16 %v2825, %v2824
      %v2830 = vpack.i.b16 %v2818, %v2784
      %v2832 = vshrl.u32 %v2784, 16
      %v2833 = vshrl.u32 %v2818, 16
      %v2834 = vpack.i.b16 %v2833, %v2832
      %v2838 = vpack.i.b16 %v2817, %v2783
      %v2840 = vshrl.u32 %v2783, 16
      %v2841 = vshrl.u32 %v2817, 16
      %v2842 = vpack.i.b16 %v2841, %v2840
      %v2846 = vpack.i.b16 %v2819, %v2785
      %v2848 = vshrl.u32 %v2785, 16
      %v2849 = vshrl.u32 %v2819, 16
      %v2850 = vpack.i.b16 %v2849, %v2848
      %2852 = vxpose.xlu0.c.b16.start [1/8] %v2822, 128
      %2853 = vxpose.xlu0.c.b16.cont [2/8] 0, 128
      %2854 = vxpose.xlu0.c.b16.cont [3/8] 0, 128
      %2855 = vxpose.xlu0.c.b16.cont [4/8] 0, 128
      %2856 = vxpose.xlu0.c.b16.cont [5/8] 0, 128
      %2857 = vxpose.xlu0.c.b16.cont [6/8] 0, 128
      %2858 = vxpose.xlu0.c.b16.cont [7/8] 0, 128
      %2859 = vxpose.xlu0.c.b16.end [8/8] 0, 128
      %v2860 = vpop.trf.xlu0
      %v2861 = vpop.trf.xlu0
      %v2862 = vpop.trf.xlu0
      %v2863 = vpop.trf.xlu0
      %v2864 = vpop.trf.xlu0
      %v2865 = vpop.trf.xlu0
      %v2866 = vpop.trf.xlu0
      %v2867 = vpop.trf.xlu0
      %2868 = vxpose.xlu0.c.b16.start [1/8] %v2826, 128
      %2869 = vxpose.xlu0.c.b16.cont [2/8] 0, 128
      %2870 = vxpose.xlu0.c.b16.cont [3/8] 0, 128
      %2871 = vxpose.xlu0.c.b16.cont [4/8] 0, 128
      %2872 = vxpose.xlu0.c.b16.cont [5/8] 0, 128
      %2873 = vxpose.xlu0.c.b16.cont [6/8] 0, 128
      %2874 = vxpose.xlu0.c.b16.cont [7/8] 0, 128
      %2875 = vxpose.xlu0.c.b16.end [8/8] 0, 128
      %v2876 = vpop.trf.xlu0
      %v2877 = vpop.trf.xlu0
      %v2878 = vpop.trf.xlu0
      %v2879 = vpop.trf.xlu0
      %v2880 = vpop.trf.xlu0
      %v2881 = vpop.trf.xlu0
      %v2882 = vpop.trf.xlu0
      %v2883 = vpop.trf.xlu0
      %2884 = vxpose.xlu0.c.b16.start [1/8] %v2830, 128
      %2885 = vxpose.xlu0.c.b16.cont [2/8] 0, 128
      %2886 = vxpose.xlu0.c.b16.cont [3/8] 0, 128
      %2887 = vxpose.xlu0.c.b16.cont [4/8] 0, 128
      %2888 = vxpose.xlu0.c.b16.cont [5/8] 0, 128
      %2889 = vxpose.xlu0.c.b16.cont [6/8] 0, 128
      %2890 = vxpose.xlu0.c.b16.cont [7/8] 0, 128
      %2891 = vxpose.xlu0.c.b16.end [8/8] 0, 128
      %v2892 = vpop.trf.xlu0
      %v2893 = vpop.trf.xlu0
      %v2894 = vpop.trf.xlu0
      %v2895 = vpop.trf.xlu0
      %v2896 = vpop.trf.xlu0
      %v2897 = vpop.trf.xlu0
      %v2898 = vpop.trf.xlu0
      %v2899 = vpop.trf.xlu0
      %2900 = vxpose.xlu0.c.b16.start [1/8] %v2834, 128
      %2901 = vxpose.xlu0.c.b16.cont [2/8] 0, 128
      %2902 = vxpose.xlu0.c.b16.cont [3/8] 0, 128
      %2903 = vxpose.xlu0.c.b16.cont [4/8] 0, 128
      %2904 = vxpose.xlu0.c.b16.cont [5/8] 0, 128
      %2905 = vxpose.xlu0.c.b16.cont [6/8] 0, 128
      %2906 = vxpose.xlu0.c.b16.cont [7/8] 0, 128
      %2907 = vxpose.xlu0.c.b16.end [8/8] 0, 128
      %v2908 = vpop.trf.xlu0
      %v2909 = vpop.trf.xlu0
      %v2910 = vpop.trf.xlu0
      %v2911 = vpop.trf.xlu0
      %v2912 = vpop.trf.xlu0
      %v2913 = vpop.trf.xlu0
      %v2914 = vpop.trf.xlu0
      %v2915 = vpop.trf.xlu0
      %2916 = vxpose.xlu0.c.b16.start [1/8] %v2838, 128
      %2917 = vxpose.xlu0.c.b16.cont [2/8] 0, 128
      %2918 = vxpose.xlu0.c.b16.cont [3/8] 0, 128
      %2919 = vxpose.xlu0.c.b16.cont [4/8] 0, 128
      %2920 = vxpose.xlu0.c.b16.cont [5/8] 0, 128
      %2921 = vxpose.xlu0.c.b16.cont [6/8] 0, 128
      %2922 = vxpose.xlu0.c.b16.cont [7/8] 0, 128
      %2923 = vxpose.xlu0.c.b16.end [8/8] 0, 128
      %v2924 = vpop.trf.xlu0
      %v2925 = vpop.trf.xlu0
      %v2926 = vpop.trf.xlu0
      %v2927 = vpop.trf.xlu0
      %v2928 = vpop.trf.xlu0
      %v2929 = vpop.trf.xlu0
      %v2930 = vpop.trf.xlu0
      %v2931 = vpop.trf.xlu0
      %2932 = vxpose.xlu0.c.b16.start [1/8] %v2842, 128
      %2933 = vxpose.xlu0.c.b16.cont [2/8] 0, 128
      %2934 = vxpose.xlu0.c.b16.cont [3/8] 0, 128
      %2935 = vxpose.xlu0.c.b16.cont [4/8] 0, 128
      %2936 = vxpose.xlu0.c.b16.cont [5/8] 0, 128
      %2937 = vxpose.xlu0.c.b16.cont [6/8] 0, 128
      %2938 = vxpose.xlu0.c.b16.cont [7/8] 0, 128
      %2939 = vxpose.xlu0.c.b16.end [8/8] 0, 128
      %v2940 = vpop.trf.xlu0
      %v2941 = vpop.trf.xlu0
      %v2942 = vpop.trf.xlu0
      %v2943 = vpop.trf.xlu0
      %v2944 = vpop.trf.xlu0
      %v2945 = vpop.trf.xlu0
      %v2946 = vpop.trf.xlu0
      %v2947 = vpop.trf.xlu0
      %2948 = vxpose.xlu0.c.b16.start [1/8] %v2846, 128
      %2949 = vxpose.xlu0.c.b16.cont [2/8] 0, 128
      %2950 = vxpose.xlu0.c.b16.cont [3/8] 0, 128
      %2951 = vxpose.xlu0.c.b16.cont [4/8] 0, 128
      %2952 = vxpose.xlu0.c.b16.cont [5/8] 0, 128
      %2953 = vxpose.xlu0.c.b16.cont [6/8] 0, 128
      %2954 = vxpose.xlu0.c.b16.cont [7/8] 0, 128
      %2955 = vxpose.xlu0.c.b16.end [8/8] 0, 128
      %v2956 = vpop.trf.xlu0
      %v2957 = vpop.trf.xlu0
      %v2958 = vpop.trf.xlu0
      %v2959 = vpop.trf.xlu0
      %v2960 = vpop.trf.xlu0
      %v2961 = vpop.trf.xlu0
      %v2962 = vpop.trf.xlu0
      %v2963 = vpop.trf.xlu0
      %2964 = vxpose.xlu0.c.b16.start [1/8] %v2850, 128
      %2965 = vxpose.xlu0.c.b16.cont [2/8] 0, 128
      %2966 = vxpose.xlu0.c.b16.cont [3/8] 0, 128
      %2967 = vxpose.xlu0.c.b16.cont [4/8] 0, 128
      %2968 = vxpose.xlu0.c.b16.cont [5/8] 0, 128
      %2969 = vxpose.xlu0.c.b16.cont [6/8] 0, 128
      %2970 = vxpose.xlu0.c.b16.cont [7/8] 0, 128
      %2971 = vxpose.xlu0.c.b16.end [8/8] 0, 128
      %v2972 = vpop.trf.xlu0
      %v2973 = vpop.trf.xlu0
      %v2974 = vpop.trf.xlu0
      %v2975 = vpop.trf.xlu0
      %v2976 = vpop.trf.xlu0
      %v2977 = vpop.trf.xlu0
      %v2978 = vpop.trf.xlu0
      %v2979 = vpop.trf.xlu0
      %v2980 = vcombine.low %v2860, %v2924
      %v2982 = vunpack.c.l.s4 1983009808
      %v2983 = vunpack.c.0.s8 %v2982
      %v2984 = vlaneseq
      %v2985 = vshrl.u32 %v2984, 7
      %v2986 = vsub.s32 %v2983, %v2985
      %v2987 = vrot.slane %v2980, %v2986
      %v2988 = vcombine.low %v2892, %v2956
      %v2990 = vunpack.c.l.s4 1983009808
      %v2991 = vunpack.c.0.s8 %v2990
      %v2992 = vlaneseq
      %v2993 = vshrl.u32 %v2992, 7
      %v2994 = vsub.s32 %v2991, %v2993
      %v2995 = vrot.slane %v2988, %v2994
      %v2996 = vcombine.low %v2987, %v2995
      %v2998 = vunpack.c.l.s4 1934713408
      %v2999 = vunpack.c.0.s8 %v2998
      %v3000 = vlaneseq
      %v3001 = vshrl.u32 %v3000, 7
      %v3002 = vsub.s32 %v2999, %v3001
      %v3003 = vrot.slane %v2996, %v3002
      %v3004 = vcombine.high %v3003, 0
      %v3005 = vcombine.low %v2876, %v2940
      %v3007 = vunpack.c.l.s4 1983009808
      %v3008 = vunpack.c.0.s8 %v3007
      %v3009 = vlaneseq
      %v3010 = vshrl.u32 %v3009, 7
      %v3011 = vsub.s32 %v3008, %v3010
      %v3012 = vrot.slane %v3005, %v3011
      %v3013 = vcombine.low %v2908, %v2972
      %v3015 = vunpack.c.l.s4 1983009808
      %v3016 = vunpack.c.0.s8 %v3015
      %v3017 = vlaneseq
      %v3018 = vshrl.u32 %v3017, 7
      %v3019 = vsub.s32 %v3016, %v3018
      %v3020 = vrot.slane %v3013, %v3019
      %v3021 = vcombine.low %v3012, %v3020
      %v3023 = vunpack.c.l.s4 1934713408
      %v3024 = vunpack.c.0.s8 %v3023
      %v3025 = vlaneseq
      %v3026 = vshrl.u32 %v3025, 7
      %v3027 = vsub.s32 %v3024, %v3026
      %v3028 = vrot.slane %v3021, %v3027
      %v3029 = vcombine.high %v3028, 0
      %v3032 = vpack.i.b16 %v3028, %v3003
      %v3033 = vshrl.u32 %v3003, 16
      %v3034 = vshrl.u32 %v3028, 16
      %v3035 = vpack.i.b16 %v3034, %v3033
      %v3038 = vpack.i.b16 %v3029, %v3004
      %v3039 = vshrl.u32 %v3004, 16
      %v3040 = vshrl.u32 %v3029, 16
      %v3041 = vpack.i.b16 %v3040, %v3039
      %v3043 = vsel %vm2390, %v3032, 0
      %v3046 = vsel %vm2390, %v2620, 0
      %3048 = vmatprep.subr.bf16.mxu0 0
      %3049 = vmatpush1.bf16.xpose.msra.mxu0 %v3046
      %3050 = vmatprep.subr.bf16.mxu0 0
      %3051 = vmatpush1.bf16.xpose.msra.mxu0 0
      %3052 = vmatprep.subr.bf16.mxu0 0
      %3053 = vmatpush1.bf16.xpose.msra.mxu0 0
      %3054 = vmatprep.subr.bf16.mxu0 0
      %3055 = vmatpush1.bf16.xpose.msra.mxu0 0
      %3056 = vmatprep.subr.bf16.mxu0 0
      %3057 = vmatpush1.bf16.xpose.msra.mxu0 0
      %3058 = vmatprep.subr.bf16.mxu0 0
      %3059 = vmatpush1.bf16.xpose.msra.mxu0 0
      %3060 = vmatprep.subr.bf16.mxu0 0
      %3061 = vmatpush1.bf16.xpose.msra.mxu0 0
      %3062 = vmatprep.subr.bf16.mxu0 0
      %3063 = vmatpush1.bf16.xpose.msra.mxu0 0
      %3064 = vmatprep.subr.bf16.mxu0 0
      %3065 = vmatpush1.bf16.xpose.msra.mxu0 0
      %3066 = vmatprep.subr.bf16.mxu0 0
      %3067 = vmatpush1.bf16.xpose.msra.mxu0 0
      %3068 = vmatprep.subr.bf16.mxu0 0
      %3069 = vmatpush1.bf16.xpose.msra.mxu0 0
      %3070 = vmatprep.subr.bf16.mxu0 0
      %3071 = vmatpush1.bf16.xpose.msra.mxu0 0
      %3072 = vmatprep.subr.bf16.mxu0 0
      %3073 = vmatpush1.bf16.xpose.msra.mxu0 0
      %3074 = vmatprep.subr.bf16.mxu0 0
      %3075 = vmatpush1.bf16.xpose.msra.mxu0 0
      %3076 = vmatprep.subr.bf16.mxu0 0
      %3077 = vmatpush1.bf16.xpose.msra.mxu0 0
      %3078 = vmatprep.subr.bf16.mxu0 0
      %3079 = vmatpush1.bf16.xpose.msra.mxu0 0
      %3080 = vmatprep.mubr.bf16.mxu0 0
      %3081 = vmatmul.mubr.bf16.gmra.mrb[0].mxu0 %v3043
      %v3082 = vpop.f32.mrb[0].mxu0
      %v3083 = vadd.f32 0.0, %v3082
      %v3084 = vpop.f32.mrb[0].mxu0
      %v3085 = vpop.f32.mrb[0].mxu0
      %v3086 = vpop.f32.mrb[0].mxu0
      %3087 = vdwg.mxu0
      %v3089 = vsel %vm2390, %v3035, 0
      %v3092 = vsel %vm2390, %v2621, 0
      %3094 = vmatprep.subr.bf16.mxu0 0
      %3095 = vmatpush1.bf16.xpose.msra.mxu0 %v3092
      %3096 = vmatprep.subr.bf16.mxu0 0
      %3097 = vmatpush1.bf16.xpose.msra.mxu0 0
      %3098 = vmatprep.subr.bf16.mxu0 0
      %3099 = vmatpush1.bf16.xpose.msra.mxu0 0
      %3100 = vmatprep.subr.bf16.mxu0 0
      %3101 = vmatpush1.bf16.xpose.msra.mxu0 0
      %3102 = vmatprep.subr.bf16.mxu0 0
      %3103 = vmatpush1.bf16.xpose.msra.mxu0 0
      %3104 = vmatprep.subr.bf16.mxu0 0
      %3105 = vmatpush1.bf16.xpose.msra.mxu0 0
      %3106 = vmatprep.subr.bf16.mxu0 0
      %3107 = vmatpush1.bf16.xpose.msra.mxu0 0
      %3108 = vmatprep.subr.bf16.mxu0 0
      %3109 = vmatpush1.bf16.xpose.msra.mxu0 0
      %3110 = vmatprep.subr.bf16.mxu0 0
      %3111 = vmatpush1.bf16.xpose.msra.mxu0 0
      %3112 = vmatprep.subr.bf16.mxu0 0
      %3113 = vmatpush1.bf16.xpose.msra.mxu0 0
      %3114 = vmatprep.subr.bf16.mxu0 0
      %3115 = vmatpush1.bf16.xpose.msra.mxu0 0
      %3116 = vmatprep.subr.bf16.mxu0 0
      %3117 = vmatpush1.bf16.xpose.msra.mxu0 0
      %3118 = vmatprep.subr.bf16.mxu0 0
      %3119 = vmatpush1.bf16.xpose.msra.mxu0 0
      %3120 = vmatprep.subr.bf16.mxu0 0
      %3121 = vmatpush1.bf16.xpose.msra.mxu0 0
      %3122 = vmatprep.subr.bf16.mxu0 0
      %3123 = vmatpush1.bf16.xpose.msra.mxu0 0
      %3124 = vmatprep.subr.bf16.mxu0 0
      %3125 = vmatpush1.bf16.xpose.msra.mxu0 0
      %3126 = vmatprep.mubr.bf16.mxu0 0
      %3127 = vmatmul.mubr.bf16.gmra.mrb[0].mxu0 %v3089
      %v3128 = vpop.f32.mrb[0].mxu0
      %v3129 = vadd.f32 0.0, %v3128
      %v3130 = vpop.f32.mrb[0].mxu0
      %v3131 = vpop.f32.mrb[0].mxu0
      %v3132 = vpop.f32.mrb[0].mxu0
      %3133 = vdwg.mxu0
      %v3135 = vsel %vm2390, %v3038, 0
      %v3138 = vsel %vm2390, %v2622, 0
      %3140 = vmatprep.subr.bf16.mxu0 0
      %3141 = vmatpush1.bf16.xpose.msra.mxu0 %v3138
      %3142 = vmatprep.subr.bf16.mxu0 0
      %3143 = vmatpush1.bf16.xpose.msra.mxu0 0
      %3144 = vmatprep.subr.bf16.mxu0 0
      %3145 = vmatpush1.bf16.xpose.msra.mxu0 0
      %3146 = vmatprep.subr.bf16.mxu0 0
      %3147 = vmatpush1.bf16.xpose.msra.mxu0 0
      %3148 = vmatprep.subr.bf16.mxu0 0
      %3149 = vmatpush1.bf16.xpose.msra.mxu0 0
      %3150 = vmatprep.subr.bf16.mxu0 0
      %3151 = vmatpush1.bf16.xpose.msra.mxu0 0
      %3152 = vmatprep.subr.bf16.mxu0 0
      %3153 = vmatpush1.bf16.xpose.msra.mxu0 0
      %3154 = vmatprep.subr.bf16.mxu0 0
      %3155 = vmatpush1.bf16.xpose.msra.mxu0 0
      %3156 = vmatprep.subr.bf16.mxu0 0
      %3157 = vmatpush1.bf16.xpose.msra.mxu0 0
      %3158 = vmatprep.subr.bf16.mxu0 0
      %3159 = vmatpush1.bf16.xpose.msra.mxu0 0
      %3160 = vmatprep.subr.bf16.mxu0 0
      %3161 = vmatpush1.bf16.xpose.msra.mxu0 0
      %3162 = vmatprep.subr.bf16.mxu0 0
      %3163 = vmatpush1.bf16.xpose.msra.mxu0 0
      %3164 = vmatprep.subr.bf16.mxu0 0
      %3165 = vmatpush1.bf16.xpose.msra.mxu0 0
      %3166 = vmatprep.subr.bf16.mxu0 0
      %3167 = vmatpush1.bf16.xpose.msra.mxu0 0
      %3168 = vmatprep.subr.bf16.mxu0 0
      %3169 = vmatpush1.bf16.xpose.msra.mxu0 0
      %3170 = vmatprep.subr.bf16.mxu0 0
      %3171 = vmatpush1.bf16.xpose.msra.mxu0 0
      %3172 = vmatprep.mubr.bf16.mxu0 0
      %3173 = vmatmul.mubr.bf16.gmra.mrb[0].mxu0 %v3135
      %v3174 = vpop.f32.mrb[0].mxu0
      %v3175 = vadd.f32 0.0, %v3174
      %v3176 = vpop.f32.mrb[0].mxu0
      %v3177 = vpop.f32.mrb[0].mxu0
      %v3178 = vpop.f32.mrb[0].mxu0
      %3179 = vdwg.mxu0
      %v3181 = vsel %vm2390, %v3041, 0
      %v3184 = vsel %vm2390, %v2623, 0
      %3186 = vmatprep.subr.bf16.mxu0 0
      %3187 = vmatpush1.bf16.xpose.msra.mxu0 %v3184
      %3188 = vmatprep.subr.bf16.mxu0 0
      %3189 = vmatpush1.bf16.xpose.msra.mxu0 0
      %3190 = vmatprep.subr.bf16.mxu0 0
      %3191 = vmatpush1.bf16.xpose.msra.mxu0 0
      %3192 = vmatprep.subr.bf16.mxu0 0
      %3193 = vmatpush1.bf16.xpose.msra.mxu0 0
      %3194 = vmatprep.subr.bf16.mxu0 0
      %3195 = vmatpush1.bf16.xpose.msra.mxu0 0
      %3196 = vmatprep.subr.bf16.mxu0 0
      %3197 = vmatpush1.bf16.xpose.msra.mxu0 0
      %3198 = vmatprep.subr.bf16.mxu0 0
      %3199 = vmatpush1.bf16.xpose.msra.mxu0 0
      %3200 = vmatprep.subr.bf16.mxu0 0
      %3201 = vmatpush1.bf16.xpose.msra.mxu0 0
      %3202 = vmatprep.subr.bf16.mxu0 0
      %3203 = vmatpush1.bf16.xpose.msra.mxu0 0
      %3204 = vmatprep.subr.bf16.mxu0 0
      %3205 = vmatpush1.bf16.xpose.msra.mxu0 0
      %3206 = vmatprep.subr.bf16.mxu0 0
      %3207 = vmatpush1.bf16.xpose.msra.mxu0 0
      %3208 = vmatprep.subr.bf16.mxu0 0
      %3209 = vmatpush1.bf16.xpose.msra.mxu0 0
      %3210 = vmatprep.subr.bf16.mxu0 0
      %3211 = vmatpush1.bf16.xpose.msra.mxu0 0
      %3212 = vmatprep.subr.bf16.mxu0 0
      %3213 = vmatpush1.bf16.xpose.msra.mxu0 0
      %3214 = vmatprep.subr.bf16.mxu0 0
      %3215 = vmatpush1.bf16.xpose.msra.mxu0 0
      %3216 = vmatprep.subr.bf16.mxu0 0
      %3217 = vmatpush1.bf16.xpose.msra.mxu0 0
      %3218 = vmatprep.mubr.bf16.mxu0 0
      %3219 = vmatmul.mubr.bf16.gmra.mrb[0].mxu0 %v3181
      %v3220 = vpop.f32.mrb[0].mxu0
      %v3221 = vadd.f32 0.0, %v3220
      %v3222 = vpop.f32.mrb[0].mxu0
      %v3223 = vpop.f32.mrb[0].mxu0
      %v3224 = vpop.f32.mrb[0].mxu0
      %3225 = vdwg.mxu0
      %3226 = vxpose.xlu0.b32.start [1/16] %v3083, 128
      %3227 = vxpose.xlu0.b32.cont [2/16] 0.0, 128
      %3228 = vxpose.xlu0.b32.cont [3/16] 0.0, 128
      %3229 = vxpose.xlu0.b32.cont [4/16] 0.0, 128
      %3230 = vxpose.xlu0.b32.cont [5/16] 0.0, 128
      %3231 = vxpose.xlu0.b32.cont [6/16] 0.0, 128
      %3232 = vxpose.xlu0.b32.cont [7/16] 0.0, 128
      %3233 = vxpose.xlu0.b32.cont [8/16] 0.0, 128
      %3234 = vxpose.xlu0.b32.cont [9/16] 0.0, 128
      %3235 = vxpose.xlu0.b32.cont [10/16] 0.0, 128
      %3236 = vxpose.xlu0.b32.cont [11/16] 0.0, 128
      %3237 = vxpose.xlu0.b32.cont [12/16] 0.0, 128
      %3238 = vxpose.xlu0.b32.cont [13/16] 0.0, 128
      %3239 = vxpose.xlu0.b32.cont [14/16] 0.0, 128
      %3240 = vxpose.xlu0.b32.cont [15/16] 0.0, 128
      %3241 = vxpose.xlu0.b32.end [16/16] 0.0, 128
      %v3242 = vpop.trf.xlu0
      %v3243 = vpop.trf.xlu0
      %v3244 = vpop.trf.xlu0
      %v3245 = vpop.trf.xlu0
      %v3246 = vpop.trf.xlu0
      %v3247 = vpop.trf.xlu0
      %v3248 = vpop.trf.xlu0
      %v3249 = vpop.trf.xlu0
      %v3250 = vpop.trf.xlu0
      %v3251 = vpop.trf.xlu0
      %v3252 = vpop.trf.xlu0
      %v3253 = vpop.trf.xlu0
      %v3254 = vpop.trf.xlu0
      %v3255 = vpop.trf.xlu0
      %v3256 = vpop.trf.xlu0
      %v3257 = vpop.trf.xlu0
      %3258 = vxpose.xlu0.b32.start [1/16] %v3129, 128
      %3259 = vxpose.xlu0.b32.cont [2/16] 0.0, 128
      %3260 = vxpose.xlu0.b32.cont [3/16] 0.0, 128
      %3261 = vxpose.xlu0.b32.cont [4/16] 0.0, 128
      %3262 = vxpose.xlu0.b32.cont [5/16] 0.0, 128
      %3263 = vxpose.xlu0.b32.cont [6/16] 0.0, 128
      %3264 = vxpose.xlu0.b32.cont [7/16] 0.0, 128
      %3265 = vxpose.xlu0.b32.cont [8/16] 0.0, 128
      %3266 = vxpose.xlu0.b32.cont [9/16] 0.0, 128
      %3267 = vxpose.xlu0.b32.cont [10/16] 0.0, 128
      %3268 = vxpose.xlu0.b32.cont [11/16] 0.0, 128
      %3269 = vxpose.xlu0.b32.cont [12/16] 0.0, 128
      %3270 = vxpose.xlu0.b32.cont [13/16] 0.0, 128
      %3271 = vxpose.xlu0.b32.cont [14/16] 0.0, 128
      %3272 = vxpose.xlu0.b32.cont [15/16] 0.0, 128
      %3273 = vxpose.xlu0.b32.end [16/16] 0.0, 128
      %v3274 = vpop.trf.xlu0
      %v3275 = vpop.trf.xlu0
      %v3276 = vpop.trf.xlu0
      %v3277 = vpop.trf.xlu0
      %v3278 = vpop.trf.xlu0
      %v3279 = vpop.trf.xlu0
      %v3280 = vpop.trf.xlu0
      %v3281 = vpop.trf.xlu0
      %v3282 = vpop.trf.xlu0
      %v3283 = vpop.trf.xlu0
      %v3284 = vpop.trf.xlu0
      %v3285 = vpop.trf.xlu0
      %v3286 = vpop.trf.xlu0
      %v3287 = vpop.trf.xlu0
      %v3288 = vpop.trf.xlu0
      %v3289 = vpop.trf.xlu0
      %3290 = vxpose.xlu0.b32.start [1/16] %v3175, 128
      %3291 = vxpose.xlu0.b32.cont [2/16] 0.0, 128
      %3292 = vxpose.xlu0.b32.cont [3/16] 0.0, 128
      %3293 = vxpose.xlu0.b32.cont [4/16] 0.0, 128
      %3294 = vxpose.xlu0.b32.cont [5/16] 0.0, 128
      %3295 = vxpose.xlu0.b32.cont [6/16] 0.0, 128
      %3296 = vxpose.xlu0.b32.cont [7/16] 0.0, 128
      %3297 = vxpose.xlu0.b32.cont [8/16] 0.0, 128
      %3298 = vxpose.xlu0.b32.cont [9/16] 0.0, 128
      %3299 = vxpose.xlu0.b32.cont [10/16] 0.0, 128
      %3300 = vxpose.xlu0.b32.cont [11/16] 0.0, 128
      %3301 = vxpose.xlu0.b32.cont [12/16] 0.0, 128
      %3302 = vxpose.xlu0.b32.cont [13/16] 0.0, 128
      %3303 = vxpose.xlu0.b32.cont [14/16] 0.0, 128
      %3304 = vxpose.xlu0.b32.cont [15/16] 0.0, 128
      %3305 = vxpose.xlu0.b32.end [16/16] 0.0, 128
      %v3306 = vpop.trf.xlu0
      %v3307 = vpop.trf.xlu0
      %v3308 = vpop.trf.xlu0
      %v3309 = vpop.trf.xlu0
      %v3310 = vpop.trf.xlu0
      %v3311 = vpop.trf.xlu0
      %v3312 = vpop.trf.xlu0
      %v3313 = vpop.trf.xlu0
      %v3314 = vpop.trf.xlu0
      %v3315 = vpop.trf.xlu0
      %v3316 = vpop.trf.xlu0
      %v3317 = vpop.trf.xlu0
      %v3318 = vpop.trf.xlu0
      %v3319 = vpop.trf.xlu0
      %v3320 = vpop.trf.xlu0
      %v3321 = vpop.trf.xlu0
      %3322 = vxpose.xlu0.b32.start [1/16] %v3221, 128
      %3323 = vxpose.xlu0.b32.cont [2/16] 0.0, 128
      %3324 = vxpose.xlu0.b32.cont [3/16] 0.0, 128
      %3325 = vxpose.xlu0.b32.cont [4/16] 0.0, 128
      %3326 = vxpose.xlu0.b32.cont [5/16] 0.0, 128
      %3327 = vxpose.xlu0.b32.cont [6/16] 0.0, 128
      %3328 = vxpose.xlu0.b32.cont [7/16] 0.0, 128
      %3329 = vxpose.xlu0.b32.cont [8/16] 0.0, 128
      %3330 = vxpose.xlu0.b32.cont [9/16] 0.0, 128
      %3331 = vxpose.xlu0.b32.cont [10/16] 0.0, 128
      %3332 = vxpose.xlu0.b32.cont [11/16] 0.0, 128
      %3333 = vxpose.xlu0.b32.cont [12/16] 0.0, 128
      %3334 = vxpose.xlu0.b32.cont [13/16] 0.0, 128
      %3335 = vxpose.xlu0.b32.cont [14/16] 0.0, 128
      %3336 = vxpose.xlu0.b32.cont [15/16] 0.0, 128
      %3337 = vxpose.xlu0.b32.end [16/16] 0.0, 128
      %v3338 = vpop.trf.xlu0
      %v3339 = vpop.trf.xlu0
      %v3340 = vpop.trf.xlu0
      %v3341 = vpop.trf.xlu0
      %v3342 = vpop.trf.xlu0
      %v3343 = vpop.trf.xlu0
      %v3344 = vpop.trf.xlu0
      %v3345 = vpop.trf.xlu0
      %v3346 = vpop.trf.xlu0
      %v3347 = vpop.trf.xlu0
      %v3348 = vpop.trf.xlu0
      %v3349 = vpop.trf.xlu0
      %v3350 = vpop.trf.xlu0
      %v3351 = vpop.trf.xlu0
      %v3352 = vpop.trf.xlu0
      %v3353 = vpop.trf.xlu0
      %v3354 = vcombine.low %v3242, %v3306
      %v3355 = vcombine.high %v3242, %v3306
      %v3357 = vunpack.c.l.s4 1983009808
      %v3358 = vunpack.c.0.s8 %v3357
      %v3359 = vlaneseq
      %v3360 = vshrl.u32 %v3359, 7
      %v3361 = vsub.s32 %v3358, %v3360
      %v3362 = vrot.slane %v3354, %v3361
      %v3364 = vunpack.c.l.s4 1983009808
      %v3365 = vunpack.c.0.s8 %v3364
      %v3366 = vlaneseq
      %v3367 = vshrl.u32 %v3366, 7
      %v3368 = vsub.s32 %v3365, %v3367
      %v3369 = vrot.slane %v3355, %v3368
      %v3370 = vcombine.low %v3274, %v3338
      %v3371 = vcombine.high %v3274, %v3338
      %v3373 = vunpack.c.l.s4 1983009808
      %v3374 = vunpack.c.0.s8 %v3373
      %v3375 = vlaneseq
      %v3376 = vshrl.u32 %v3375, 7
      %v3377 = vsub.s32 %v3374, %v3376
      %v3378 = vrot.slane %v3370, %v3377
      %v3380 = vunpack.c.l.s4 1983009808
      %v3381 = vunpack.c.0.s8 %v3380
      %v3382 = vlaneseq
      %v3383 = vshrl.u32 %v3382, 7
      %v3384 = vsub.s32 %v3381, %v3383
      %v3385 = vrot.slane %v3371, %v3384
      %v3386 = vcombine.low %v3362, %v3378
      %v3387 = vcombine.high %v3362, %v3378
      %v3389 = vunpack.c.l.s4 1934713408
      %v3390 = vunpack.c.0.s8 %v3389
      %v3391 = vlaneseq
      %v3392 = vshrl.u32 %v3391, 7
      %v3393 = vsub.s32 %v3390, %v3392
      %v3394 = vrot.slane %v3386, %v3393
      %v3396 = vunpack.c.l.s4 1934713408
      %v3397 = vunpack.c.0.s8 %v3396
      %v3398 = vlaneseq
      %v3399 = vshrl.u32 %v3398, 7
      %v3400 = vsub.s32 %v3397, %v3399
      %v3401 = vrot.slane %v3387, %v3400
      %v3402 = vcombine.low %v3369, %v3385
      %v3403 = vcombine.high %v3369, %v3385
      %v3405 = vunpack.c.l.s4 1934713408
      %v3406 = vunpack.c.0.s8 %v3405
      %v3407 = vlaneseq
      %v3408 = vshrl.u32 %v3407, 7
      %v3409 = vsub.s32 %v3406, %v3408
      %v3410 = vrot.slane %v3402, %v3409
      %v3412 = vunpack.c.l.s4 1934713408
      %v3413 = vunpack.c.0.s8 %v3412
      %v3414 = vlaneseq
      %v3415 = vshrl.u32 %v3414, 7
      %v3416 = vsub.s32 %v3413, %v3415
      %v3417 = vrot.slane %v3403, %v3416
      %v3418 = vcombine.high %v3394, 0.0
      %v3419 = vcombine.high %v3401, 0.0
      %v3420 = vcombine.high %v3410, 0.0
      %v3421 = vcombine.high %v3417, 0.0
      %v3422 = vcombine.low %v3394, %v3401
      %v3424 = vunpack.c.l.s4 1983009808
      %v3425 = vunpack.c.0.s8 %v3424
      %v3426 = vlaneseq
      %v3427 = vshrl.u32 %v3426, 7
      %v3428 = vsub.s32 %v3425, %v3427
      %v3429 = vrot.slane %v3422, %v3428
      %v3430 = vcombine.low %v3418, %v3419
      %v3432 = vunpack.c.l.s4 1983009808
      %v3433 = vunpack.c.0.s8 %v3432
      %v3434 = vlaneseq
      %v3435 = vshrl.u32 %v3434, 7
      %v3436 = vsub.s32 %v3433, %v3435
      %v3437 = vrot.slane %v3430, %v3436
      %v3438 = vcombine.low %v3410, %v3417
      %v3440 = vunpack.c.l.s4 1983009808
      %v3441 = vunpack.c.0.s8 %v3440
      %v3442 = vlaneseq
      %v3443 = vshrl.u32 %v3442, 7
      %v3444 = vsub.s32 %v3441, %v3443
      %v3445 = vrot.slane %v3438, %v3444
      %v3446 = vcombine.low %v3420, %v3421
      %v3448 = vunpack.c.l.s4 1983009808
      %v3449 = vunpack.c.0.s8 %v3448
      %v3450 = vlaneseq
      %v3451 = vshrl.u32 %v3450, 7
      %v3452 = vsub.s32 %v3449, %v3451
      %v3453 = vrot.slane %v3446, %v3452
      %v3454 = vcombine.low %v3429, %v3437
      %v3455 = vcombine.high %v3429, %v3437
      %v3457 = vunpack.c.l.s4 1934713408
      %v3458 = vunpack.c.0.s8 %v3457
      %v3459 = vlaneseq
      %v3460 = vshrl.u32 %v3459, 7
      %v3461 = vsub.s32 %v3458, %v3460
      %v3462 = vrot.slane %v3454, %v3461
      %v3464 = vunpack.c.l.s4 1934713408
      %v3465 = vunpack.c.0.s8 %v3464
      %v3466 = vlaneseq
      %v3467 = vshrl.u32 %v3466, 7
      %v3468 = vsub.s32 %v3465, %v3467
      %v3469 = vrot.slane %v3455, %v3468
      %v3470 = vcombine.low %v3445, %v3453
      %v3471 = vcombine.high %v3445, %v3453
      %v3473 = vunpack.c.l.s4 1934713408
      %v3474 = vunpack.c.0.s8 %v3473
      %v3475 = vlaneseq
      %v3476 = vshrl.u32 %v3475, 7
      %v3477 = vsub.s32 %v3474, %v3476
      %v3478 = vrot.slane %v3470, %v3477
      %v3480 = vunpack.c.l.s4 1934713408
      %v3481 = vunpack.c.0.s8 %v3480
      %v3482 = vlaneseq
      %v3483 = vshrl.u32 %v3482, 7
      %v3484 = vsub.s32 %v3481, %v3483
      %v3485 = vrot.slane %v3471, %v3484
      %v3486 = vcombine.low %v3462, %v3478
      %v3487 = vcombine.high %v3462, %v3478
      %v3488 = vcombine.low %v3469, %v3485
      %v3489 = vcombine.high %v3469, %v3485
      %3491 = vrot.lane.b32.xlu0 %v3487, 8
      %v3492 = vpop.permute.xlu0 %3491
      %3495 = vrot.lane.b32.xlu0 %v3488, 16
      %v3496 = vpop.permute.xlu0 %3495
      %3499 = vrot.lane.b32.xlu0 %v3489, 24
      %v3500 = vpop.permute.xlu0 %3499
      %v3502 = vsel %vm2390, %v3486, %v3492
      %vm3503 = vcmask 130048
      %v3504 = vsel %vm3503, %v3502, %v3496
      %vm3505 = vcmask 195584
      %v3506 = vsel %vm3505, %v3504, %v3500
      %v3507 = vpack.c.bf16 %v3506, %v3506
      %v3509 = vlaneseq
      %v3510 = vshrl.u32 %v3509, 7
      %v3511 = vsub.s32 0, %v3510
      %v3512 = vrot.slane %v1577, %v3511
      %v3518 = vunpack.c.l.b16 %v1573
      %v3519 = vunpack.c.l.b16 %v1574
      %v3520 = vunpack.c.l.b16 %v1575
      %v3521 = vunpack.c.l.b16 %v1576
      %v3522 = vpack.c.b16 %v3519, %v3518
      %v3523 = vpack.c.b16 %v3521, %v3520
      %v3527 = vsel %vm1543, %v3507, 0
      %3529 = vmatprep.subr.bf16.mxu0 0
      %3530 = vmatpush1.bf16.msra.mxu0 %v3522
      %3531 = vmatprep.subr.bf16.mxu0 0
      %3532 = vmatpush1.bf16.msra.mxu0 %v3523
      %3533 = vmatprep.subr.bf16.mxu0 0
      %3534 = vmatpush1.bf16.msra.mxu0 0
      %3535 = vmatprep.subr.bf16.mxu0 0
      %3536 = vmatpush1.bf16.msra.mxu0 0
      %3537 = vmatprep.subr.bf16.mxu0 0
      %3538 = vmatpush1.bf16.msra.mxu0 0
      %3539 = vmatprep.subr.bf16.mxu0 0
      %3540 = vmatpush1.bf16.msra.mxu0 0
      %3541 = vmatprep.subr.bf16.mxu0 0
      %3542 = vmatpush1.bf16.msra.mxu0 0
      %3543 = vmatprep.subr.bf16.mxu0 0
      %3544 = vmatpush1.bf16.msra.mxu0 0
      %3545 = vmatprep.subr.bf16.mxu0 0
      %3546 = vmatpush1.bf16.msra.mxu0 0
      %3547 = vmatprep.subr.bf16.mxu0 0
      %3548 = vmatpush1.bf16.msra.mxu0 0
      %3549 = vmatprep.subr.bf16.mxu0 0
      %3550 = vmatpush1.bf16.msra.mxu0 0
      %3551 = vmatprep.subr.bf16.mxu0 0
      %3552 = vmatpush1.bf16.msra.mxu0 0
      %3553 = vmatprep.subr.bf16.mxu0 0
      %3554 = vmatpush1.bf16.msra.mxu0 0
      %3555 = vmatprep.subr.bf16.mxu0 0
      %3556 = vmatpush1.bf16.msra.mxu0 0
      %3557 = vmatprep.subr.bf16.mxu0 0
      %3558 = vmatpush1.bf16.msra.mxu0 0
      %3559 = vmatprep.subr.bf16.mxu0 0
      %3560 = vmatpush1.bf16.msra.mxu0 0
      %3561 = vmatprep.mubr.bf16.mxu0 0
      %3562 = vmatmul.mubr.bf16.gmra.mrb[0].mxu0 %v3527
      %v3563 = vpop.f32.mrb[0].mxu0
      %v3564 = vadd.f32 %v3512, %v3563
      %v3565 = vpop.f32.mrb[0].mxu0
      %v3566 = vpop.f32.mrb[0].mxu0
      %v3567 = vpop.f32.mrb[0].mxu0
      %3568 = vdwg.mxu0
      %v3569 = vadd.f32 %v1540, %v3564
      %v3570 = vsel %vm1543, %v3569, 0.0
      %3571 = vadd.xlane.f32.xlu0 %v3570
      %v3572 = vpop.xlane.xlu0 %3571
      %v3573 = vmul.f32 %v3572, %v1547
      %v3574 = vsub.f32 %v3569, %v3573
      %v3575 = vmul.f32 %v3574, %v3574
      %v3576 = vsel %vm1543, %v3575, 0.0
      %3577 = vadd.xlane.f32.xlu0 %v3576
      %v3578 = vpop.xlane.xlu0 %3577
      %v3579 = vmul.f32 %v3578, %v1547
      %v3580 = vadd.f32 %v3579, 1e-05
      %v3581 = vrsqrt.pop %v3580
      %v3582 = vmul.f32 %v3574, %v3581
      %v3583 = vlaneseq
      %v3584 = vshrl.u32 %v3583, 7
      %v3585 = vsub.s32 1, %v3584
      %v3586 = vrot.slane %v1541, %v3585
      %v3587 = vmul.f32 %v3582, %v3586
      %v3588 = vlaneseq
      %v3589 = vshrl.u32 %v3588, 7
      %v3590 = vsub.s32 1, %v3589
      %v3591 = vrot.slane %v1542, %v3590
      %v3592 = vadd.f32 %v3587, %v3591
      %v3593 = vld [vmem:[%s1187] sm:$0xf]
      %v3594 = vld [vmem:[%s1187 + $0x4] sm:$0xf]
      %v3595 = vld [vmem:[%s1187 + $0x8] sm:$0xf]
      %v3596 = vld [vmem:[%s1187 + $0xc] sm:$0xf]
      %v3597 = vld [vmem:[%s1190] sm:$0x1]
      %v3598 = vld [vmem:[%s1195] sm:$0xf]
      %v3599 = vld [vmem:[%s1195 + $0x4] sm:$0xf]
      %v3600 = vld [vmem:[%s1195 + $0x8] sm:$0xf]
      %v3601 = vld [vmem:[%s1195 + $0xc] sm:$0xf]
      %v3602 = vld [vmem:[%s1198] sm:$0x1]
      %v3603 = vpack.c.bf16 %v3592, %v3592
      %v3605 = vlaneseq
      %v3606 = vshrl.u32 %v3605, 7
      %v3607 = vsub.s32 0, %v3606
      %v3608 = vrot.slane %v3597, %v3607
      %v3614 = vunpack.c.l.b16 %v3593
      %v3615 = vunpack.c.l.b16 %v3594
      %v3616 = vunpack.c.l.b16 %v3595
      %v3617 = vunpack.c.l.b16 %v3596
      %v3618 = vpack.c.b16 %v3615, %v3614
      %v3619 = vpack.c.b16 %v3617, %v3616
      %v3623 = vsel %vm1543, %v3603, 0
      %3625 = vmatprep.subr.bf16.mxu0 0
      %3626 = vmatpush1.bf16.msra.mxu0 %v3618
      %3627 = vmatprep.subr.bf16.mxu0 0
      %3628 = vmatpush1.bf16.msra.mxu0 %v3619
      %3629 = vmatprep.subr.bf16.mxu0 0
      %3630 = vmatpush1.bf16.msra.mxu0 0
      %3631 = vmatprep.subr.bf16.mxu0 0
      %3632 = vmatpush1.bf16.msra.mxu0 0
      %3633 = vmatprep.subr.bf16.mxu0 0
      %3634 = vmatpush1.bf16.msra.mxu0 0
      %3635 = vmatprep.subr.bf16.mxu0 0
      %3636 = vmatpush1.bf16.msra.mxu0 0
      %3637 = vmatprep.subr.bf16.mxu0 0
      %3638 = vmatpush1.bf16.msra.mxu0 0
      %3639 = vmatprep.subr.bf16.mxu0 0
      %3640 = vmatpush1.bf16.msra.mxu0 0
      %3641 = vmatprep.subr.bf16.mxu0 0
      %3642 = vmatpush1.bf16.msra.mxu0 0
      %3643 = vmatprep.subr.bf16.mxu0 0
      %3644 = vmatpush1.bf16.msra.mxu0 0
      %3645 = vmatprep.subr.bf16.mxu0 0
      %3646 = vmatpush1.bf16.msra.mxu0 0
      %3647 = vmatprep.subr.bf16.mxu0 0
      %3648 = vmatpush1.bf16.msra.mxu0 0
      %3649 = vmatprep.subr.bf16.mxu0 0
      %3650 = vmatpush1.bf16.msra.mxu0 0
      %3651 = vmatprep.subr.bf16.mxu0 0
      %3652 = vmatpush1.bf16.msra.mxu0 0
      %3653 = vmatprep.subr.bf16.mxu0 0
      %3654 = vmatpush1.bf16.msra.mxu0 0
      %3655 = vmatprep.subr.bf16.mxu0 0
      %3656 = vmatpush1.bf16.msra.mxu0 0
      %3657 = vmatprep.mubr.bf16.mxu0 0
      %3658 = vmatmul.mubr.bf16.gmra.mrb[0].mxu0 %v3623
      %v3659 = vpop.f32.mrb[0].mxu0
      %v3660 = vadd.f32 %v3608, %v3659
      %v3661 = vpop.f32.mrb[0].mxu0
      %v3662 = vpop.f32.mrb[0].mxu0
      %v3663 = vpop.f32.mrb[0].mxu0
      %3664 = vdwg.mxu0
      %v3665 = vpack.c.bf16 %v1539, %v1538
      %3666 = vrot.lane.b32.xlu0 %v3618, 96
      %v3667 = vpop.permute.xlu0 %3666
      %3668 = vrot.lane.b32.xlu0 %v3619, 96
      %v3669 = vpop.permute.xlu0 %3668
      %3672 = vrot.lane.b32.xlu0 %v3608, 96
      %v3673 = vpop.permute.xlu0 %3672
      %v3676 = vsel %vm1543, %v3665, 0
      %3678 = vmatprep.subr.bf16.mxu0 0
      %3679 = vmatpush1.bf16.msra.mxu0 %v3667
      %3680 = vmatprep.subr.bf16.mxu0 0
      %3681 = vmatpush1.bf16.msra.mxu0 %v3669
      %3682 = vmatprep.subr.bf16.mxu0 0
      %3683 = vmatpush1.bf16.msra.mxu0 0
      %3684 = vmatprep.subr.bf16.mxu0 0
      %3685 = vmatpush1.bf16.msra.mxu0 0
      %3686 = vmatprep.subr.bf16.mxu0 0
      %3687 = vmatpush1.bf16.msra.mxu0 0
      %3688 = vmatprep.subr.bf16.mxu0 0
      %3689 = vmatpush1.bf16.msra.mxu0 0
      %3690 = vmatprep.subr.bf16.mxu0 0
      %3691 = vmatpush1.bf16.msra.mxu0 0
      %3692 = vmatprep.subr.bf16.mxu0 0
      %3693 = vmatpush1.bf16.msra.mxu0 0
      %3694 = vmatprep.subr.bf16.mxu0 0
      %3695 = vmatpush1.bf16.msra.mxu0 0
      %3696 = vmatprep.subr.bf16.mxu0 0
      %3697 = vmatpush1.bf16.msra.mxu0 0
      %3698 = vmatprep.subr.bf16.mxu0 0
      %3699 = vmatpush1.bf16.msra.mxu0 0
      %3700 = vmatprep.subr.bf16.mxu0 0
      %3701 = vmatpush1.bf16.msra.mxu0 0
      %3702 = vmatprep.subr.bf16.mxu0 0
      %3703 = vmatpush1.bf16.msra.mxu0 0
      %3704 = vmatprep.subr.bf16.mxu0 0
      %3705 = vmatpush1.bf16.msra.mxu0 0
      %3706 = vmatprep.subr.bf16.mxu0 0
      %3707 = vmatpush1.bf16.msra.mxu0 0
      %3708 = vmatprep.subr.bf16.mxu0 0
      %3709 = vmatpush1.bf16.msra.mxu0 0
      %3710 = vmatprep.mubr.bf16.mxu0 0
      %3711 = vmatmul.mubr.bf16.gmra.mrb[0].mxu0 %v3676
      %v3712 = vpop.f32.mrb[0].mxu0
      %v3713 = vadd.f32 %v3673, %v3712
      %v3714 = vpop.f32.mrb[0].mxu0
      %v3715 = vpop.f32.mrb[0].mxu0
      %v3716 = vadd.f32 %v3673, %v3715
      %v3717 = vpop.f32.mrb[0].mxu0
      %3718 = vdwg.mxu0
      %v3719 = vmul.f32 %v3660, 0.35355338
      %3721 = vrot.lane.b32.xlu0 %v3719, 120
      %v3722 = vpop.permute.xlu0 %3721
      %3724 = vrot.lane.b32.xlu0 %v3719, 112
      %v3725 = vpop.permute.xlu0 %3724
      %3727 = vrot.lane.b32.xlu0 %v3719, 104
      %v3728 = vpop.permute.xlu0 %3727
      %v3730 = vcombine.low %v3719, %v3725
      %v3731 = vcombine.high %v3719, %v3725
      %v3733 = vunpack.c.l.s4 1983009808
      %v3734 = vunpack.c.0.s8 %v3733
      %v3735 = vlaneseq
      %v3736 = vshrl.u32 %v3735, 7
      %v3737 = vsub.s32 %v3734, %v3736
      %v3738 = vrot.slane %v3730, %v3737
      %v3740 = vunpack.c.l.s4 1983009808
      %v3741 = vunpack.c.0.s8 %v3740
      %v3742 = vlaneseq
      %v3743 = vshrl.u32 %v3742, 7
      %v3744 = vsub.s32 %v3741, %v3743
      %v3745 = vrot.slane %v3731, %v3744
      %v3746 = vcombine.low %v3722, %v3728
      %v3747 = vcombine.high %v3722, %v3728
      %v3749 = vunpack.c.l.s4 1983009808
      %v3750 = vunpack.c.0.s8 %v3749
      %v3751 = vlaneseq
      %v3752 = vshrl.u32 %v3751, 7
      %v3753 = vsub.s32 %v3750, %v3752
      %v3754 = vrot.slane %v3746, %v3753
      %v3756 = vunpack.c.l.s4 1983009808
      %v3757 = vunpack.c.0.s8 %v3756
      %v3758 = vlaneseq
      %v3759 = vshrl.u32 %v3758, 7
      %v3760 = vsub.s32 %v3757, %v3759
      %v3761 = vrot.slane %v3747, %v3760
      %v3762 = vcombine.low %v3738, %v3754
      %v3763 = vcombine.high %v3738, %v3754
      %v3765 = vunpack.c.l.s4 1934713408
      %v3766 = vunpack.c.0.s8 %v3765
      %v3767 = vlaneseq
      %v3768 = vshrl.u32 %v3767, 7
      %v3769 = vsub.s32 %v3766, %v3768
      %v3770 = vrot.slane %v3762, %v3769
      %v3772 = vunpack.c.l.s4 1934713408
      %v3773 = vunpack.c.0.s8 %v3772
      %v3774 = vlaneseq
      %v3775 = vshrl.u32 %v3774, 7
      %v3776 = vsub.s32 %v3773, %v3775
      %v3777 = vrot.slane %v3763, %v3776
      %v3778 = vcombine.low %v3745, %v3761
      %v3779 = vcombine.high %v3745, %v3761
      %v3781 = vunpack.c.l.s4 1934713408
      %v3782 = vunpack.c.0.s8 %v3781
      %v3783 = vlaneseq
      %v3784 = vshrl.u32 %v3783, 7
      %v3785 = vsub.s32 %v3782, %v3784
      %v3786 = vrot.slane %v3778, %v3785
      %v3788 = vunpack.c.l.s4 1934713408
      %v3789 = vunpack.c.0.s8 %v3788
      %v3790 = vlaneseq
      %v3791 = vshrl.u32 %v3790, 7
      %v3792 = vsub.s32 %v3789, %v3791
      %v3793 = vrot.slane %v3779, %v3792
      %v3794 = vcombine.high %v3770, 0.0
      %v3795 = vcombine.high %v3777, 0.0
      %v3796 = vcombine.high %v3786, 0.0
      %v3797 = vcombine.high %v3793, 0.0
      %v3798 = vpack.c.bf16 %v3770, %v3770
      %v3799 = vpack.c.bf16 %v3794, %v3794
      %v3800 = vpack.c.bf16 %v3777, %v3777
      %v3801 = vpack.c.bf16 %v3795, %v3795
      %v3802 = vpack.c.bf16 %v3786, %v3786
      %v3803 = vpack.c.bf16 %v3796, %v3796
      %v3804 = vpack.c.bf16 %v3793, %v3793
      %v3805 = vpack.c.bf16 %v3797, %v3797
      %3808 = vrot.lane.b32.xlu0 %v3713, 120
      %v3809 = vpop.permute.xlu0 %3808
      %3810 = vrot.lane.b32.xlu0 %v3716, 120
      %v3811 = vpop.permute.xlu0 %3810
      %3814 = vrot.lane.b32.xlu0 %v3713, 112
      %v3815 = vpop.permute.xlu0 %3814
      %3816 = vrot.lane.b32.xlu0 %v3716, 112
      %v3817 = vpop.permute.xlu0 %3816
      %3820 = vrot.lane.b32.xlu0 %v3713, 104
      %v3821 = vpop.permute.xlu0 %3820
      %3822 = vrot.lane.b32.xlu0 %v3716, 104
      %v3823 = vpop.permute.xlu0 %3822
      %v3826 = vcombine.low %v3713, %v3815
      %v3827 = vcombine.high %v3713, %v3815
      %v3829 = vunpack.c.l.s4 1983009808
      %v3830 = vunpack.c.0.s8 %v3829
      %v3831 = vlaneseq
      %v3832 = vshrl.u32 %v3831, 7
      %v3833 = vsub.s32 %v3830, %v3832
      %v3834 = vrot.slane %v3826, %v3833
      %v3836 = vunpack.c.l.s4 1983009808
      %v3837 = vunpack.c.0.s8 %v3836
      %v3838 = vlaneseq
      %v3839 = vshrl.u32 %v3838, 7
      %v3840 = vsub.s32 %v3837, %v3839
      %v3841 = vrot.slane %v3827, %v3840
      %v3842 = vcombine.low %v3809, %v3821
      %v3843 = vcombine.high %v3809, %v3821
      %v3845 = vunpack.c.l.s4 1983009808
      %v3846 = vunpack.c.0.s8 %v3845
      %v3847 = vlaneseq
      %v3848 = vshrl.u32 %v3847, 7
      %v3849 = vsub.s32 %v3846, %v3848
      %v3850 = vrot.slane %v3842, %v3849
      %v3852 = vunpack.c.l.s4 1983009808
      %v3853 = vunpack.c.0.s8 %v3852
      %v3854 = vlaneseq
      %v3855 = vshrl.u32 %v3854, 7
      %v3856 = vsub.s32 %v3853, %v3855
      %v3857 = vrot.slane %v3843, %v3856
      %v3858 = vcombine.low %v3834, %v3850
      %v3859 = vcombine.high %v3834, %v3850
      %v3861 = vunpack.c.l.s4 1934713408
      %v3862 = vunpack.c.0.s8 %v3861
      %v3863 = vlaneseq
      %v3864 = vshrl.u32 %v3863, 7
      %v3865 = vsub.s32 %v3862, %v3864
      %v3866 = vrot.slane %v3858, %v3865
      %v3868 = vunpack.c.l.s4 1934713408
      %v3869 = vunpack.c.0.s8 %v3868
      %v3870 = vlaneseq
      %v3871 = vshrl.u32 %v3870, 7
      %v3872 = vsub.s32 %v3869, %v3871
      %v3873 = vrot.slane %v3859, %v3872
      %v3874 = vcombine.low %v3841, %v3857
      %v3875 = vcombine.high %v3841, %v3857
      %v3877 = vunpack.c.l.s4 1934713408
      %v3878 = vunpack.c.0.s8 %v3877
      %v3879 = vlaneseq
      %v3880 = vshrl.u32 %v3879, 7
      %v3881 = vsub.s32 %v3878, %v3880
      %v3882 = vrot.slane %v3874, %v3881
      %v3884 = vunpack.c.l.s4 1934713408
      %v3885 = vunpack.c.0.s8 %v3884
      %v3886 = vlaneseq
      %v3887 = vshrl.u32 %v3886, 7
      %v3888 = vsub.s32 %v3885, %v3887
      %v3889 = vrot.slane %v3875, %v3888
      %v3890 = vcombine.high %v3866, 0.0
      %v3891 = vcombine.high %v3873, 0.0
      %v3892 = vcombine.high %v3882, 0.0
      %v3893 = vcombine.high %v3889, 0.0
      %v3894 = vcombine.low %v3716, %v3817
      %v3895 = vcombine.high %v3716, %v3817
      %v3897 = vunpack.c.l.s4 1983009808
      %v3898 = vunpack.c.0.s8 %v3897
      %v3899 = vlaneseq
      %v3900 = vshrl.u32 %v3899, 7
      %v3901 = vsub.s32 %v3898, %v3900
      %v3902 = vrot.slane %v3894, %v3901
      %v3904 = vunpack.c.l.s4 1983009808
      %v3905 = vunpack.c.0.s8 %v3904
      %v3906 = vlaneseq
      %v3907 = vshrl.u32 %v3906, 7
      %v3908 = vsub.s32 %v3905, %v3907
      %v3909 = vrot.slane %v3895, %v3908
      %v3910 = vcombine.low %v3811, %v3823
      %v3911 = vcombine.high %v3811, %v3823
      %v3913 = vunpack.c.l.s4 1983009808
      %v3914 = vunpack.c.0.s8 %v3913
      %v3915 = vlaneseq
      %v3916 = vshrl.u32 %v3915, 7
      %v3917 = vsub.s32 %v3914, %v3916
      %v3918 = vrot.slane %v3910, %v3917
      %v3920 = vunpack.c.l.s4 1983009808
      %v3921 = vunpack.c.0.s8 %v3920
      %v3922 = vlaneseq
      %v3923 = vshrl.u32 %v3922, 7
      %v3924 = vsub.s32 %v3921, %v3923
      %v3925 = vrot.slane %v3911, %v3924
      %v3926 = vcombine.low %v3902, %v3918
      %v3927 = vcombine.high %v3902, %v3918
      %v3929 = vunpack.c.l.s4 1934713408
      %v3930 = vunpack.c.0.s8 %v3929
      %v3931 = vlaneseq
      %v3932 = vshrl.u32 %v3931, 7
      %v3933 = vsub.s32 %v3930, %v3932
      %v3934 = vrot.slane %v3926, %v3933
      %v3936 = vunpack.c.l.s4 1934713408
      %v3937 = vunpack.c.0.s8 %v3936
      %v3938 = vlaneseq
      %v3939 = vshrl.u32 %v3938, 7
      %v3940 = vsub.s32 %v3937, %v3939
      %v3941 = vrot.slane %v3927, %v3940
      %v3942 = vcombine.low %v3909, %v3925
      %v3943 = vcombine.high %v3909, %v3925
      %v3945 = vunpack.c.l.s4 1934713408
      %v3946 = vunpack.c.0.s8 %v3945
      %v3947 = vlaneseq
      %v3948 = vshrl.u32 %v3947, 7
      %v3949 = vsub.s32 %v3946, %v3948
      %v3950 = vrot.slane %v3942, %v3949
      %v3952 = vunpack.c.l.s4 1934713408
      %v3953 = vunpack.c.0.s8 %v3952
      %v3954 = vlaneseq
      %v3955 = vshrl.u32 %v3954, 7
      %v3956 = vsub.s32 %v3953, %v3955
      %v3957 = vrot.slane %v3943, %v3956
      %v3958 = vcombine.high %v3934, 0.0
      %v3959 = vcombine.high %v3941, 0.0
      %v3960 = vcombine.high %v3950, 0.0
      %v3961 = vcombine.high %v3957, 0.0
      %v3962 = vpack.c.bf16 %v3866, %v3866
      %v3963 = vpack.c.bf16 %v3890, %v3890
      %v3964 = vpack.c.bf16 %v3873, %v3873
      %v3965 = vpack.c.bf16 %v3891, %v3891
      %v3966 = vpack.c.bf16 %v3882, %v3882
      %v3967 = vpack.c.bf16 %v3892, %v3892
      %v3968 = vpack.c.bf16 %v3889, %v3889
      %v3969 = vpack.c.bf16 %v3893, %v3893
      %v3970 = vpack.c.bf16 %v3934, %v3934
      %v3971 = vpack.c.bf16 %v3958, %v3958
      %v3972 = vpack.c.bf16 %v3941, %v3941
      %v3973 = vpack.c.bf16 %v3959, %v3959
      %v3974 = vpack.c.bf16 %v3950, %v3950
      %v3975 = vpack.c.bf16 %v3960, %v3960
      %v3976 = vpack.c.bf16 %v3957, %v3957
      %v3977 = vpack.c.bf16 %v3961, %v3961
      %3978 = vrot.lane.b32.xlu0 %v3713, 96
      %v3979 = vpop.permute.xlu0 %3978
      %3980 = vrot.lane.b32.xlu0 %v3716, 96
      %v3981 = vpop.permute.xlu0 %3980
      %3982 = vrot.lane.b32.xlu0 %v3809, 96
      %v3983 = vpop.permute.xlu0 %3982
      %3984 = vrot.lane.b32.xlu0 %v3811, 96
      %v3985 = vpop.permute.xlu0 %3984
      %3986 = vrot.lane.b32.xlu0 %v3815, 96
      %v3987 = vpop.permute.xlu0 %3986
      %3988 = vrot.lane.b32.xlu0 %v3817, 96
      %v3989 = vpop.permute.xlu0 %3988
      %3990 = vrot.lane.b32.xlu0 %v3821, 96
      %v3991 = vpop.permute.xlu0 %3990
      %3992 = vrot.lane.b32.xlu0 %v3823, 96
      %v3993 = vpop.permute.xlu0 %3992
      %v4002 = vcombine.low %v3979, %v3987
      %v4003 = vcombine.high %v3979, %v3987
      %v4005 = vunpack.c.l.s4 1983009808
      %v4006 = vunpack.c.0.s8 %v4005
      %v4007 = vlaneseq
      %v4008 = vshrl.u32 %v4007, 7
      %v4009 = vsub.s32 %v4006, %v4008
      %v4010 = vrot.slane %v4002, %v4009
      %v4012 = vunpack.c.l.s4 1983009808
      %v4013 = vunpack.c.0.s8 %v4012
      %v4014 = vlaneseq
      %v4015 = vshrl.u32 %v4014, 7
      %v4016 = vsub.s32 %v4013, %v4015
      %v4017 = vrot.slane %v4003, %v4016
      %v4018 = vcombine.low %v3983, %v3991
      %v4019 = vcombine.high %v3983, %v3991
      %v4021 = vunpack.c.l.s4 1983009808
      %v4022 = vunpack.c.0.s8 %v4021
      %v4023 = vlaneseq
      %v4024 = vshrl.u32 %v4023, 7
      %v4025 = vsub.s32 %v4022, %v4024
      %v4026 = vrot.slane %v4018, %v4025
      %v4028 = vunpack.c.l.s4 1983009808
      %v4029 = vunpack.c.0.s8 %v4028
      %v4030 = vlaneseq
      %v4031 = vshrl.u32 %v4030, 7
      %v4032 = vsub.s32 %v4029, %v4031
      %v4033 = vrot.slane %v4019, %v4032
      %v4034 = vcombine.low %v4010, %v4026
      %v4035 = vcombine.high %v4010, %v4026
      %v4037 = vunpack.c.l.s4 1934713408
      %v4038 = vunpack.c.0.s8 %v4037
      %v4039 = vlaneseq
      %v4040 = vshrl.u32 %v4039, 7
      %v4041 = vsub.s32 %v4038, %v4040
      %v4042 = vrot.slane %v4034, %v4041
      %v4044 = vunpack.c.l.s4 1934713408
      %v4045 = vunpack.c.0.s8 %v4044
      %v4046 = vlaneseq
      %v4047 = vshrl.u32 %v4046, 7
      %v4048 = vsub.s32 %v4045, %v4047
      %v4049 = vrot.slane %v4035, %v4048
      %v4050 = vcombine.low %v4017, %v4033
      %v4051 = vcombine.high %v4017, %v4033
      %v4053 = vunpack.c.l.s4 1934713408
      %v4054 = vunpack.c.0.s8 %v4053
      %v4055 = vlaneseq
      %v4056 = vshrl.u32 %v4055, 7
      %v4057 = vsub.s32 %v4054, %v4056
      %v4058 = vrot.slane %v4050, %v4057
      %v4060 = vunpack.c.l.s4 1934713408
      %v4061 = vunpack.c.0.s8 %v4060
      %v4062 = vlaneseq
      %v4063 = vshrl.u32 %v4062, 7
      %v4064 = vsub.s32 %v4061, %v4063
      %v4065 = vrot.slane %v4051, %v4064
      %v4066 = vcombine.high %v4042, 0.0
      %v4067 = vcombine.high %v4049, 0.0
      %v4068 = vcombine.high %v4058, 0.0
      %v4069 = vcombine.high %v4065, 0.0
      %v4070 = vcombine.low %v3981, %v3989
      %v4071 = vcombine.high %v3981, %v3989
      %v4073 = vunpack.c.l.s4 1983009808
      %v4074 = vunpack.c.0.s8 %v4073
      %v4075 = vlaneseq
      %v4076 = vshrl.u32 %v4075, 7
      %v4077 = vsub.s32 %v4074, %v4076
      %v4078 = vrot.slane %v4070, %v4077
      %v4080 = vunpack.c.l.s4 1983009808
      %v4081 = vunpack.c.0.s8 %v4080
      %v4082 = vlaneseq
      %v4083 = vshrl.u32 %v4082, 7
      %v4084 = vsub.s32 %v4081, %v4083
      %v4085 = vrot.slane %v4071, %v4084
      %v4086 = vcombine.low %v3985, %v3993
      %v4087 = vcombine.high %v3985, %v3993
      %v4089 = vunpack.c.l.s4 1983009808
      %v4090 = vunpack.c.0.s8 %v4089
      %v4091 = vlaneseq
      %v4092 = vshrl.u32 %v4091, 7
      %v4093 = vsub.s32 %v4090, %v4092
      %v4094 = vrot.slane %v4086, %v4093
      %v4096 = vunpack.c.l.s4 1983009808
      %v4097 = vunpack.c.0.s8 %v4096
      %v4098 = vlaneseq
      %v4099 = vshrl.u32 %v4098, 7
      %v4100 = vsub.s32 %v4097, %v4099
      %v4101 = vrot.slane %v4087, %v4100
      %v4102 = vcombine.low %v4078, %v4094
      %v4103 = vcombine.high %v4078, %v4094
      %v4105 = vunpack.c.l.s4 1934713408
      %v4106 = vunpack.c.0.s8 %v4105
      %v4107 = vlaneseq
      %v4108 = vshrl.u32 %v4107, 7
      %v4109 = vsub.s32 %v4106, %v4108
      %v4110 = vrot.slane %v4102, %v4109
      %v4112 = vunpack.c.l.s4 1934713408
      %v4113 = vunpack.c.0.s8 %v4112
      %v4114 = vlaneseq
      %v4115 = vshrl.u32 %v4114, 7
      %v4116 = vsub.s32 %v4113, %v4115
      %v4117 = vrot.slane %v4103, %v4116
      %v4118 = vcombine.low %v4085, %v4101
      %v4119 = vcombine.high %v4085, %v4101
      %v4121 = vunpack.c.l.s4 1934713408
      %v4122 = vunpack.c.0.s8 %v4121
      %v4123 = vlaneseq
      %v4124 = vshrl.u32 %v4123, 7
      %v4125 = vsub.s32 %v4122, %v4124
      %v4126 = vrot.slane %v4118, %v4125
      %v4128 = vunpack.c.l.s4 1934713408
      %v4129 = vunpack.c.0.s8 %v4128
      %v4130 = vlaneseq
      %v4131 = vshrl.u32 %v4130, 7
      %v4132 = vsub.s32 %v4129, %v4131
      %v4133 = vrot.slane %v4119, %v4132
      %v4134 = vcombine.high %v4110, 0.0
      %v4135 = vcombine.high %v4117, 0.0
      %v4136 = vcombine.high %v4126, 0.0
      %v4137 = vcombine.high %v4133, 0.0
      %v4138 = vpack.c.bf16 %v4042, %v4042
      %v4139 = vpack.c.bf16 %v4066, %v4066
      %v4140 = vpack.c.bf16 %v4049, %v4049
      %v4141 = vpack.c.bf16 %v4067, %v4067
      %v4142 = vpack.c.bf16 %v4058, %v4058
      %v4143 = vpack.c.bf16 %v4068, %v4068
      %v4144 = vpack.c.bf16 %v4065, %v4065
      %v4145 = vpack.c.bf16 %v4069, %v4069
      %v4146 = vpack.c.bf16 %v4110, %v4110
      %v4147 = vpack.c.bf16 %v4134, %v4134
      %v4148 = vpack.c.bf16 %v4117, %v4117
      %v4149 = vpack.c.bf16 %v4135, %v4135
      %v4150 = vpack.c.bf16 %v4126, %v4126
      %v4151 = vpack.c.bf16 %v4136, %v4136
      %v4152 = vpack.c.bf16 %v4133, %v4133
      %v4153 = vpack.c.bf16 %v4137, %v4137
      %v4154 = vcombine.low %v3798, %v3802
      %v4156 = vunpack.c.l.s4 1983009808
      %v4157 = vunpack.c.0.s8 %v4156
      %v4158 = vlaneseq
      %v4159 = vshrl.u32 %v4158, 7
      %v4160 = vsub.s32 %v4157, %v4159
      %v4161 = vrot.slane %v4154, %v4160
      %v4162 = vcombine.low %v3800, %v3804
      %v4164 = vunpack.c.l.s4 1983009808
      %v4165 = vunpack.c.0.s8 %v4164
      %v4166 = vlaneseq
      %v4167 = vshrl.u32 %v4166, 7
      %v4168 = vsub.s32 %v4165, %v4167
      %v4169 = vrot.slane %v4162, %v4168
      %v4170 = vcombine.low %v4161, %v4169
      %v4172 = vunpack.c.l.s4 1934713408
      %v4173 = vunpack.c.0.s8 %v4172
      %v4174 = vlaneseq
      %v4175 = vshrl.u32 %v4174, 7
      %v4176 = vsub.s32 %v4173, %v4175
      %v4177 = vrot.slane %v4170, %v4176
      %v4178 = vcombine.high %v4177, 0
      %v4179 = vcombine.low %v3799, %v3803
      %v4181 = vunpack.c.l.s4 1983009808
      %v4182 = vunpack.c.0.s8 %v4181
      %v4183 = vlaneseq
      %v4184 = vshrl.u32 %v4183, 7
      %v4185 = vsub.s32 %v4182, %v4184
      %v4186 = vrot.slane %v4179, %v4185
      %v4187 = vcombine.low %v3801, %v3805
      %v4189 = vunpack.c.l.s4 1983009808
      %v4190 = vunpack.c.0.s8 %v4189
      %v4191 = vlaneseq
      %v4192 = vshrl.u32 %v4191, 7
      %v4193 = vsub.s32 %v4190, %v4192
      %v4194 = vrot.slane %v4187, %v4193
      %v4195 = vcombine.low %v4186, %v4194
      %v4197 = vunpack.c.l.s4 1934713408
      %v4198 = vunpack.c.0.s8 %v4197
      %v4199 = vlaneseq
      %v4200 = vshrl.u32 %v4199, 7
      %v4201 = vsub.s32 %v4198, %v4200
      %v4202 = vrot.slane %v4195, %v4201
      %v4203 = vcombine.high %v4202, 0
      %v4206 = vpack.i.b16 %v4202, %v4177
      %v4207 = vshrl.u32 %v4177, 16
      %v4208 = vshrl.u32 %v4202, 16
      %v4209 = vpack.i.b16 %v4208, %v4207
      %v4212 = vpack.i.b16 %v4203, %v4178
      %v4213 = vshrl.u32 %v4178, 16
      %v4214 = vshrl.u32 %v4203, 16
      %v4215 = vpack.i.b16 %v4214, %v4213
      %4216 = vxpose.xlu0.c.b16.start [1/8] %v3962, 128
      %4217 = vxpose.xlu0.c.b16.cont [2/8] 0, 128
      %4218 = vxpose.xlu0.c.b16.cont [3/8] 0, 128
      %4219 = vxpose.xlu0.c.b16.cont [4/8] 0, 128
      %4220 = vxpose.xlu0.c.b16.cont [5/8] 0, 128
      %4221 = vxpose.xlu0.c.b16.cont [6/8] 0, 128
      %4222 = vxpose.xlu0.c.b16.cont [7/8] 0, 128
      %4223 = vxpose.xlu0.c.b16.end [8/8] 0, 128
      %v4224 = vpop.trf.xlu0
      %v4225 = vpop.trf.xlu0
      %v4226 = vpop.trf.xlu0
      %v4227 = vpop.trf.xlu0
      %v4228 = vpop.trf.xlu0
      %v4229 = vpop.trf.xlu0
      %v4230 = vpop.trf.xlu0
      %v4231 = vpop.trf.xlu0
      %4232 = vxpose.xlu0.c.b16.start [1/8] %v3963, 128
      %4233 = vxpose.xlu0.c.b16.cont [2/8] 0, 128
      %4234 = vxpose.xlu0.c.b16.cont [3/8] 0, 128
      %4235 = vxpose.xlu0.c.b16.cont [4/8] 0, 128
      %4236 = vxpose.xlu0.c.b16.cont [5/8] 0, 128
      %4237 = vxpose.xlu0.c.b16.cont [6/8] 0, 128
      %4238 = vxpose.xlu0.c.b16.cont [7/8] 0, 128
      %4239 = vxpose.xlu0.c.b16.end [8/8] 0, 128
      %v4240 = vpop.trf.xlu0
      %v4241 = vpop.trf.xlu0
      %v4242 = vpop.trf.xlu0
      %v4243 = vpop.trf.xlu0
      %v4244 = vpop.trf.xlu0
      %v4245 = vpop.trf.xlu0
      %v4246 = vpop.trf.xlu0
      %v4247 = vpop.trf.xlu0
      %4248 = vxpose.xlu0.c.b16.start [1/8] %v3964, 128
      %4249 = vxpose.xlu0.c.b16.cont [2/8] 0, 128
      %4250 = vxpose.xlu0.c.b16.cont [3/8] 0, 128
      %4251 = vxpose.xlu0.c.b16.cont [4/8] 0, 128
      %4252 = vxpose.xlu0.c.b16.cont [5/8] 0, 128
      %4253 = vxpose.xlu0.c.b16.cont [6/8] 0, 128
      %4254 = vxpose.xlu0.c.b16.cont [7/8] 0, 128
      %4255 = vxpose.xlu0.c.b16.end [8/8] 0, 128
      %v4256 = vpop.trf.xlu0
      %v4257 = vpop.trf.xlu0
      %v4258 = vpop.trf.xlu0
      %v4259 = vpop.trf.xlu0
      %v4260 = vpop.trf.xlu0
      %v4261 = vpop.trf.xlu0
      %v4262 = vpop.trf.xlu0
      %v4263 = vpop.trf.xlu0
      %4264 = vxpose.xlu0.c.b16.start [1/8] %v3965, 128
      %4265 = vxpose.xlu0.c.b16.cont [2/8] 0, 128
      %4266 = vxpose.xlu0.c.b16.cont [3/8] 0, 128
      %4267 = vxpose.xlu0.c.b16.cont [4/8] 0, 128
      %4268 = vxpose.xlu0.c.b16.cont [5/8] 0, 128
      %4269 = vxpose.xlu0.c.b16.cont [6/8] 0, 128
      %4270 = vxpose.xlu0.c.b16.cont [7/8] 0, 128
      %4271 = vxpose.xlu0.c.b16.end [8/8] 0, 128
      %v4272 = vpop.trf.xlu0
      %v4273 = vpop.trf.xlu0
      %v4274 = vpop.trf.xlu0
      %v4275 = vpop.trf.xlu0
      %v4276 = vpop.trf.xlu0
      %v4277 = vpop.trf.xlu0
      %v4278 = vpop.trf.xlu0
      %v4279 = vpop.trf.xlu0
      %4280 = vxpose.xlu0.c.b16.start [1/8] %v3966, 128
      %4281 = vxpose.xlu0.c.b16.cont [2/8] 0, 128
      %4282 = vxpose.xlu0.c.b16.cont [3/8] 0, 128
      %4283 = vxpose.xlu0.c.b16.cont [4/8] 0, 128
      %4284 = vxpose.xlu0.c.b16.cont [5/8] 0, 128
      %4285 = vxpose.xlu0.c.b16.cont [6/8] 0, 128
      %4286 = vxpose.xlu0.c.b16.cont [7/8] 0, 128
      %4287 = vxpose.xlu0.c.b16.end [8/8] 0, 128
      %v4288 = vpop.trf.xlu0
      %v4289 = vpop.trf.xlu0
      %v4290 = vpop.trf.xlu0
      %v4291 = vpop.trf.xlu0
      %v4292 = vpop.trf.xlu0
      %v4293 = vpop.trf.xlu0
      %v4294 = vpop.trf.xlu0
      %v4295 = vpop.trf.xlu0
      %4296 = vxpose.xlu0.c.b16.start [1/8] %v3967, 128
      %4297 = vxpose.xlu0.c.b16.cont [2/8] 0, 128
      %4298 = vxpose.xlu0.c.b16.cont [3/8] 0, 128
      %4299 = vxpose.xlu0.c.b16.cont [4/8] 0, 128
      %4300 = vxpose.xlu0.c.b16.cont [5/8] 0, 128
      %4301 = vxpose.xlu0.c.b16.cont [6/8] 0, 128
      %4302 = vxpose.xlu0.c.b16.cont [7/8] 0, 128
      %4303 = vxpose.xlu0.c.b16.end [8/8] 0, 128
      %v4304 = vpop.trf.xlu0
      %v4305 = vpop.trf.xlu0
      %v4306 = vpop.trf.xlu0
      %v4307 = vpop.trf.xlu0
      %v4308 = vpop.trf.xlu0
      %v4309 = vpop.trf.xlu0
      %v4310 = vpop.trf.xlu0
      %v4311 = vpop.trf.xlu0
      %4312 = vxpose.xlu0.c.b16.start [1/8] %v3968, 128
      %4313 = vxpose.xlu0.c.b16.cont [2/8] 0, 128
      %4314 = vxpose.xlu0.c.b16.cont [3/8] 0, 128
      %4315 = vxpose.xlu0.c.b16.cont [4/8] 0, 128
      %4316 = vxpose.xlu0.c.b16.cont [5/8] 0, 128
      %4317 = vxpose.xlu0.c.b16.cont [6/8] 0, 128
      %4318 = vxpose.xlu0.c.b16.cont [7/8] 0, 128
      %4319 = vxpose.xlu0.c.b16.end [8/8] 0, 128
      %v4320 = vpop.trf.xlu0
      %v4321 = vpop.trf.xlu0
      %v4322 = vpop.trf.xlu0
      %v4323 = vpop.trf.xlu0
      %v4324 = vpop.trf.xlu0
      %v4325 = vpop.trf.xlu0
      %v4326 = vpop.trf.xlu0
      %v4327 = vpop.trf.xlu0
      %4328 = vxpose.xlu0.c.b16.start [1/8] %v3969, 128
      %4329 = vxpose.xlu0.c.b16.cont [2/8] 0, 128
      %4330 = vxpose.xlu0.c.b16.cont [3/8] 0, 128
      %4331 = vxpose.xlu0.c.b16.cont [4/8] 0, 128
      %4332 = vxpose.xlu0.c.b16.cont [5/8] 0, 128
      %4333 = vxpose.xlu0.c.b16.cont [6/8] 0, 128
      %4334 = vxpose.xlu0.c.b16.cont [7/8] 0, 128
      %4335 = vxpose.xlu0.c.b16.end [8/8] 0, 128
      %v4336 = vpop.trf.xlu0
      %v4337 = vpop.trf.xlu0
      %v4338 = vpop.trf.xlu0
      %v4339 = vpop.trf.xlu0
      %v4340 = vpop.trf.xlu0
      %v4341 = vpop.trf.xlu0
      %v4342 = vpop.trf.xlu0
      %v4343 = vpop.trf.xlu0
      %4344 = vxpose.xlu0.c.b16.start [1/8] %v3970, 128
      %4345 = vxpose.xlu0.c.b16.cont [2/8] 0, 128
      %4346 = vxpose.xlu0.c.b16.cont [3/8] 0, 128
      %4347 = vxpose.xlu0.c.b16.cont [4/8] 0, 128
      %4348 = vxpose.xlu0.c.b16.cont [5/8] 0, 128
      %4349 = vxpose.xlu0.c.b16.cont [6/8] 0, 128
      %4350 = vxpose.xlu0.c.b16.cont [7/8] 0, 128
      %4351 = vxpose.xlu0.c.b16.end [8/8] 0, 128
      %v4352 = vpop.trf.xlu0
      %v4353 = vpop.trf.xlu0
      %v4354 = vpop.trf.xlu0
      %v4355 = vpop.trf.xlu0
      %v4356 = vpop.trf.xlu0
      %v4357 = vpop.trf.xlu0
      %v4358 = vpop.trf.xlu0
      %v4359 = vpop.trf.xlu0
      %4360 = vxpose.xlu0.c.b16.start [1/8] %v3971, 128
      %4361 = vxpose.xlu0.c.b16.cont [2/8] 0, 128
      %4362 = vxpose.xlu0.c.b16.cont [3/8] 0, 128
      %4363 = vxpose.xlu0.c.b16.cont [4/8] 0, 128
      %4364 = vxpose.xlu0.c.b16.cont [5/8] 0, 128
      %4365 = vxpose.xlu0.c.b16.cont [6/8] 0, 128
      %4366 = vxpose.xlu0.c.b16.cont [7/8] 0, 128
      %4367 = vxpose.xlu0.c.b16.end [8/8] 0, 128
      %v4368 = vpop.trf.xlu0
      %v4369 = vpop.trf.xlu0
      %v4370 = vpop.trf.xlu0
      %v4371 = vpop.trf.xlu0
      %v4372 = vpop.trf.xlu0
      %v4373 = vpop.trf.xlu0
      %v4374 = vpop.trf.xlu0
      %v4375 = vpop.trf.xlu0
      %4376 = vxpose.xlu0.c.b16.start [1/8] %v3972, 128
      %4377 = vxpose.xlu0.c.b16.cont [2/8] 0, 128
      %4378 = vxpose.xlu0.c.b16.cont [3/8] 0, 128
      %4379 = vxpose.xlu0.c.b16.cont [4/8] 0, 128
      %4380 = vxpose.xlu0.c.b16.cont [5/8] 0, 128
      %4381 = vxpose.xlu0.c.b16.cont [6/8] 0, 128
      %4382 = vxpose.xlu0.c.b16.cont [7/8] 0, 128
      %4383 = vxpose.xlu0.c.b16.end [8/8] 0, 128
      %v4384 = vpop.trf.xlu0
      %v4385 = vpop.trf.xlu0
      %v4386 = vpop.trf.xlu0
      %v4387 = vpop.trf.xlu0
      %v4388 = vpop.trf.xlu0
      %v4389 = vpop.trf.xlu0
      %v4390 = vpop.trf.xlu0
      %v4391 = vpop.trf.xlu0
      %4392 = vxpose.xlu0.c.b16.start [1/8] %v3973, 128
      %4393 = vxpose.xlu0.c.b16.cont [2/8] 0, 128
      %4394 = vxpose.xlu0.c.b16.cont [3/8] 0, 128
      %4395 = vxpose.xlu0.c.b16.cont [4/8] 0, 128
      %4396 = vxpose.xlu0.c.b16.cont [5/8] 0, 128
      %4397 = vxpose.xlu0.c.b16.cont [6/8] 0, 128
      %4398 = vxpose.xlu0.c.b16.cont [7/8] 0, 128
      %4399 = vxpose.xlu0.c.b16.end [8/8] 0, 128
      %v4400 = vpop.trf.xlu0
      %v4401 = vpop.trf.xlu0
      %v4402 = vpop.trf.xlu0
      %v4403 = vpop.trf.xlu0
      %v4404 = vpop.trf.xlu0
      %v4405 = vpop.trf.xlu0
      %v4406 = vpop.trf.xlu0
      %v4407 = vpop.trf.xlu0
      %4408 = vxpose.xlu0.c.b16.start [1/8] %v3974, 128
      %4409 = vxpose.xlu0.c.b16.cont [2/8] 0, 128
      %4410 = vxpose.xlu0.c.b16.cont [3/8] 0, 128
      %4411 = vxpose.xlu0.c.b16.cont [4/8] 0, 128
      %4412 = vxpose.xlu0.c.b16.cont [5/8] 0, 128
      %4413 = vxpose.xlu0.c.b16.cont [6/8] 0, 128
      %4414 = vxpose.xlu0.c.b16.cont [7/8] 0, 128
      %4415 = vxpose.xlu0.c.b16.end [8/8] 0, 128
      %v4416 = vpop.trf.xlu0
      %v4417 = vpop.trf.xlu0
      %v4418 = vpop.trf.xlu0
      %v4419 = vpop.trf.xlu0
      %v4420 = vpop.trf.xlu0
      %v4421 = vpop.trf.xlu0
      %v4422 = vpop.trf.xlu0
      %v4423 = vpop.trf.xlu0
      %4424 = vxpose.xlu0.c.b16.start [1/8] %v3975, 128
      %4425 = vxpose.xlu0.c.b16.cont [2/8] 0, 128
      %4426 = vxpose.xlu0.c.b16.cont [3/8] 0, 128
      %4427 = vxpose.xlu0.c.b16.cont [4/8] 0, 128
      %4428 = vxpose.xlu0.c.b16.cont [5/8] 0, 128
      %4429 = vxpose.xlu0.c.b16.cont [6/8] 0, 128
      %4430 = vxpose.xlu0.c.b16.cont [7/8] 0, 128
      %4431 = vxpose.xlu0.c.b16.end [8/8] 0, 128
      %v4432 = vpop.trf.xlu0
      %v4433 = vpop.trf.xlu0
      %v4434 = vpop.trf.xlu0
      %v4435 = vpop.trf.xlu0
      %v4436 = vpop.trf.xlu0
      %v4437 = vpop.trf.xlu0
      %v4438 = vpop.trf.xlu0
      %v4439 = vpop.trf.xlu0
      %4440 = vxpose.xlu0.c.b16.start [1/8] %v3976, 128
      %4441 = vxpose.xlu0.c.b16.cont [2/8] 0, 128
      %4442 = vxpose.xlu0.c.b16.cont [3/8] 0, 128
      %4443 = vxpose.xlu0.c.b16.cont [4/8] 0, 128
      %4444 = vxpose.xlu0.c.b16.cont [5/8] 0, 128
      %4445 = vxpose.xlu0.c.b16.cont [6/8] 0, 128
      %4446 = vxpose.xlu0.c.b16.cont [7/8] 0, 128
      %4447 = vxpose.xlu0.c.b16.end [8/8] 0, 128
      %v4448 = vpop.trf.xlu0
      %v4449 = vpop.trf.xlu0
      %v4450 = vpop.trf.xlu0
      %v4451 = vpop.trf.xlu0
      %v4452 = vpop.trf.xlu0
      %v4453 = vpop.trf.xlu0
      %v4454 = vpop.trf.xlu0
      %v4455 = vpop.trf.xlu0
      %4456 = vxpose.xlu0.c.b16.start [1/8] %v3977, 128
      %4457 = vxpose.xlu0.c.b16.cont [2/8] 0, 128
      %4458 = vxpose.xlu0.c.b16.cont [3/8] 0, 128
      %4459 = vxpose.xlu0.c.b16.cont [4/8] 0, 128
      %4460 = vxpose.xlu0.c.b16.cont [5/8] 0, 128
      %4461 = vxpose.xlu0.c.b16.cont [6/8] 0, 128
      %4462 = vxpose.xlu0.c.b16.cont [7/8] 0, 128
      %4463 = vxpose.xlu0.c.b16.end [8/8] 0, 128
      %v4464 = vpop.trf.xlu0
      %v4465 = vpop.trf.xlu0
      %v4466 = vpop.trf.xlu0
      %v4467 = vpop.trf.xlu0
      %v4468 = vpop.trf.xlu0
      %v4469 = vpop.trf.xlu0
      %v4470 = vpop.trf.xlu0
      %v4471 = vpop.trf.xlu0
      %v4472 = vcombine.low %v4224, %v4288
      %v4474 = vunpack.c.l.s4 1983009808
      %v4475 = vunpack.c.0.s8 %v4474
      %v4476 = vlaneseq
      %v4477 = vshrl.u32 %v4476, 7
      %v4478 = vsub.s32 %v4475, %v4477
      %v4479 = vrot.slane %v4472, %v4478
      %v4480 = vcombine.low %v4256, %v4320
      %v4482 = vunpack.c.l.s4 1983009808
      %v4483 = vunpack.c.0.s8 %v4482
      %v4484 = vlaneseq
      %v4485 = vshrl.u32 %v4484, 7
      %v4486 = vsub.s32 %v4483, %v4485
      %v4487 = vrot.slane %v4480, %v4486
      %v4488 = vcombine.low %v4352, %v4416
      %v4490 = vunpack.c.l.s4 1983009808
      %v4491 = vunpack.c.0.s8 %v4490
      %v4492 = vlaneseq
      %v4493 = vshrl.u32 %v4492, 7
      %v4494 = vsub.s32 %v4491, %v4493
      %v4495 = vrot.slane %v4488, %v4494
      %v4496 = vcombine.low %v4384, %v4448
      %v4498 = vunpack.c.l.s4 1983009808
      %v4499 = vunpack.c.0.s8 %v4498
      %v4500 = vlaneseq
      %v4501 = vshrl.u32 %v4500, 7
      %v4502 = vsub.s32 %v4499, %v4501
      %v4503 = vrot.slane %v4496, %v4502
      %v4504 = vcombine.low %v4479, %v4487
      %v4505 = vcombine.high %v4479, %v4487
      %v4507 = vunpack.c.l.s4 1934713408
      %v4508 = vunpack.c.0.s8 %v4507
      %v4509 = vlaneseq
      %v4510 = vshrl.u32 %v4509, 7
      %v4511 = vsub.s32 %v4508, %v4510
      %v4512 = vrot.slane %v4504, %v4511
      %v4514 = vunpack.c.l.s4 1934713408
      %v4515 = vunpack.c.0.s8 %v4514
      %v4516 = vlaneseq
      %v4517 = vshrl.u32 %v4516, 7
      %v4518 = vsub.s32 %v4515, %v4517
      %v4519 = vrot.slane %v4505, %v4518
      %v4520 = vcombine.low %v4495, %v4503
      %v4521 = vcombine.high %v4495, %v4503
      %v4523 = vunpack.c.l.s4 1934713408
      %v4524 = vunpack.c.0.s8 %v4523
      %v4525 = vlaneseq
      %v4526 = vshrl.u32 %v4525, 7
      %v4527 = vsub.s32 %v4524, %v4526
      %v4528 = vrot.slane %v4520, %v4527
      %v4530 = vunpack.c.l.s4 1934713408
      %v4531 = vunpack.c.0.s8 %v4530
      %v4532 = vlaneseq
      %v4533 = vshrl.u32 %v4532, 7
      %v4534 = vsub.s32 %v4531, %v4533
      %v4535 = vrot.slane %v4521, %v4534
      %v4536 = vcombine.low %v4512, %v4528
      %v4537 = vcombine.high %v4512, %v4528
      %v4538 = vcombine.low %v4519, %v4535
      %v4539 = vcombine.high %v4519, %v4535
      %v4540 = vcombine.low %v4240, %v4304
      %v4542 = vunpack.c.l.s4 1983009808
      %v4543 = vunpack.c.0.s8 %v4542
      %v4544 = vlaneseq
      %v4545 = vshrl.u32 %v4544, 7
      %v4546 = vsub.s32 %v4543, %v4545
      %v4547 = vrot.slane %v4540, %v4546
      %v4548 = vcombine.low %v4272, %v4336
      %v4550 = vunpack.c.l.s4 1983009808
      %v4551 = vunpack.c.0.s8 %v4550
      %v4552 = vlaneseq
      %v4553 = vshrl.u32 %v4552, 7
      %v4554 = vsub.s32 %v4551, %v4553
      %v4555 = vrot.slane %v4548, %v4554
      %v4556 = vcombine.low %v4368, %v4432
      %v4558 = vunpack.c.l.s4 1983009808
      %v4559 = vunpack.c.0.s8 %v4558
      %v4560 = vlaneseq
      %v4561 = vshrl.u32 %v4560, 7
      %v4562 = vsub.s32 %v4559, %v4561
      %v4563 = vrot.slane %v4556, %v4562
      %v4564 = vcombine.low %v4400, %v4464
      %v4566 = vunpack.c.l.s4 1983009808
      %v4567 = vunpack.c.0.s8 %v4566
      %v4568 = vlaneseq
      %v4569 = vshrl.u32 %v4568, 7
      %v4570 = vsub.s32 %v4567, %v4569
      %v4571 = vrot.slane %v4564, %v4570
      %v4572 = vcombine.low %v4547, %v4555
      %v4573 = vcombine.high %v4547, %v4555
      %v4575 = vunpack.c.l.s4 1934713408
      %v4576 = vunpack.c.0.s8 %v4575
      %v4577 = vlaneseq
      %v4578 = vshrl.u32 %v4577, 7
      %v4579 = vsub.s32 %v4576, %v4578
      %v4580 = vrot.slane %v4572, %v4579
      %v4582 = vunpack.c.l.s4 1934713408
      %v4583 = vunpack.c.0.s8 %v4582
      %v4584 = vlaneseq
      %v4585 = vshrl.u32 %v4584, 7
      %v4586 = vsub.s32 %v4583, %v4585
      %v4587 = vrot.slane %v4573, %v4586
      %v4588 = vcombine.low %v4563, %v4571
      %v4589 = vcombine.high %v4563, %v4571
      %v4591 = vunpack.c.l.s4 1934713408
      %v4592 = vunpack.c.0.s8 %v4591
      %v4593 = vlaneseq
      %v4594 = vshrl.u32 %v4593, 7
      %v4595 = vsub.s32 %v4592, %v4594
      %v4596 = vrot.slane %v4588, %v4595
      %v4598 = vunpack.c.l.s4 1934713408
      %v4599 = vunpack.c.0.s8 %v4598
      %v4600 = vlaneseq
      %v4601 = vshrl.u32 %v4600, 7
      %v4602 = vsub.s32 %v4599, %v4601
      %v4603 = vrot.slane %v4589, %v4602
      %v4604 = vcombine.low %v4580, %v4596
      %v4605 = vcombine.high %v4580, %v4596
      %v4606 = vcombine.low %v4587, %v4603
      %v4607 = vcombine.high %v4587, %v4603
      %v4610 = vpack.i.b16 %v4604, %v4536
      %v4612 = vshrl.u32 %v4536, 16
      %v4613 = vshrl.u32 %v4604, 16
      %v4614 = vpack.i.b16 %v4613, %v4612
      %v4618 = vpack.i.b16 %v4605, %v4537
      %v4620 = vshrl.u32 %v4537, 16
      %v4621 = vshrl.u32 %v4605, 16
      %v4622 = vpack.i.b16 %v4621, %v4620
      %v4626 = vpack.i.b16 %v4606, %v4538
      %v4628 = vshrl.u32 %v4538, 16
      %v4629 = vshrl.u32 %v4606, 16
      %v4630 = vpack.i.b16 %v4629, %v4628
      %v4634 = vpack.i.b16 %v4607, %v4539
      %v4636 = vshrl.u32 %v4539, 16
      %v4637 = vshrl.u32 %v4607, 16
      %v4638 = vpack.i.b16 %v4637, %v4636
      %4640 = vxpose.xlu0.c.b16.start [1/8] %v4610, 128
      %4641 = vxpose.xlu0.c.b16.cont [2/8] 0, 128
      %4642 = vxpose.xlu0.c.b16.cont [3/8] 0, 128
      %4643 = vxpose.xlu0.c.b16.cont [4/8] 0, 128
      %4644 = vxpose.xlu0.c.b16.cont [5/8] 0, 128
      %4645 = vxpose.xlu0.c.b16.cont [6/8] 0, 128
      %4646 = vxpose.xlu0.c.b16.cont [7/8] 0, 128
      %4647 = vxpose.xlu0.c.b16.end [8/8] 0, 128
      %v4648 = vpop.trf.xlu0
      %v4649 = vpop.trf.xlu0
      %v4650 = vpop.trf.xlu0
      %v4651 = vpop.trf.xlu0
      %v4652 = vpop.trf.xlu0
      %v4653 = vpop.trf.xlu0
      %v4654 = vpop.trf.xlu0
      %v4655 = vpop.trf.xlu0
      %4656 = vxpose.xlu0.c.b16.start [1/8] %v4614, 128
      %4657 = vxpose.xlu0.c.b16.cont [2/8] 0, 128
      %4658 = vxpose.xlu0.c.b16.cont [3/8] 0, 128
      %4659 = vxpose.xlu0.c.b16.cont [4/8] 0, 128
      %4660 = vxpose.xlu0.c.b16.cont [5/8] 0, 128
      %4661 = vxpose.xlu0.c.b16.cont [6/8] 0, 128
      %4662 = vxpose.xlu0.c.b16.cont [7/8] 0, 128
      %4663 = vxpose.xlu0.c.b16.end [8/8] 0, 128
      %v4664 = vpop.trf.xlu0
      %v4665 = vpop.trf.xlu0
      %v4666 = vpop.trf.xlu0
      %v4667 = vpop.trf.xlu0
      %v4668 = vpop.trf.xlu0
      %v4669 = vpop.trf.xlu0
      %v4670 = vpop.trf.xlu0
      %v4671 = vpop.trf.xlu0
      %4672 = vxpose.xlu0.c.b16.start [1/8] %v4618, 128
      %4673 = vxpose.xlu0.c.b16.cont [2/8] 0, 128
      %4674 = vxpose.xlu0.c.b16.cont [3/8] 0, 128
      %4675 = vxpose.xlu0.c.b16.cont [4/8] 0, 128
      %4676 = vxpose.xlu0.c.b16.cont [5/8] 0, 128
      %4677 = vxpose.xlu0.c.b16.cont [6/8] 0, 128
      %4678 = vxpose.xlu0.c.b16.cont [7/8] 0, 128
      %4679 = vxpose.xlu0.c.b16.end [8/8] 0, 128
      %v4680 = vpop.trf.xlu0
      %v4681 = vpop.trf.xlu0
      %v4682 = vpop.trf.xlu0
      %v4683 = vpop.trf.xlu0
      %v4684 = vpop.trf.xlu0
      %v4685 = vpop.trf.xlu0
      %v4686 = vpop.trf.xlu0
      %v4687 = vpop.trf.xlu0
      %4688 = vxpose.xlu0.c.b16.start [1/8] %v4622, 128
      %4689 = vxpose.xlu0.c.b16.cont [2/8] 0, 128
      %4690 = vxpose.xlu0.c.b16.cont [3/8] 0, 128
      %4691 = vxpose.xlu0.c.b16.cont [4/8] 0, 128
      %4692 = vxpose.xlu0.c.b16.cont [5/8] 0, 128
      %4693 = vxpose.xlu0.c.b16.cont [6/8] 0, 128
      %4694 = vxpose.xlu0.c.b16.cont [7/8] 0, 128
      %4695 = vxpose.xlu0.c.b16.end [8/8] 0, 128
      %v4696 = vpop.trf.xlu0
      %v4697 = vpop.trf.xlu0
      %v4698 = vpop.trf.xlu0
      %v4699 = vpop.trf.xlu0
      %v4700 = vpop.trf.xlu0
      %v4701 = vpop.trf.xlu0
      %v4702 = vpop.trf.xlu0
      %v4703 = vpop.trf.xlu0
      %4704 = vxpose.xlu0.c.b16.start [1/8] %v4626, 128
      %4705 = vxpose.xlu0.c.b16.cont [2/8] 0, 128
      %4706 = vxpose.xlu0.c.b16.cont [3/8] 0, 128
      %4707 = vxpose.xlu0.c.b16.cont [4/8] 0, 128
      %4708 = vxpose.xlu0.c.b16.cont [5/8] 0, 128
      %4709 = vxpose.xlu0.c.b16.cont [6/8] 0, 128
      %4710 = vxpose.xlu0.c.b16.cont [7/8] 0, 128
      %4711 = vxpose.xlu0.c.b16.end [8/8] 0, 128
      %v4712 = vpop.trf.xlu0
      %v4713 = vpop.trf.xlu0
      %v4714 = vpop.trf.xlu0
      %v4715 = vpop.trf.xlu0
      %v4716 = vpop.trf.xlu0
      %v4717 = vpop.trf.xlu0
      %v4718 = vpop.trf.xlu0
      %v4719 = vpop.trf.xlu0
      %4720 = vxpose.xlu0.c.b16.start [1/8] %v4630, 128
      %4721 = vxpose.xlu0.c.b16.cont [2/8] 0, 128
      %4722 = vxpose.xlu0.c.b16.cont [3/8] 0, 128
      %4723 = vxpose.xlu0.c.b16.cont [4/8] 0, 128
      %4724 = vxpose.xlu0.c.b16.cont [5/8] 0, 128
      %4725 = vxpose.xlu0.c.b16.cont [6/8] 0, 128
      %4726 = vxpose.xlu0.c.b16.cont [7/8] 0, 128
      %4727 = vxpose.xlu0.c.b16.end [8/8] 0, 128
      %v4728 = vpop.trf.xlu0
      %v4729 = vpop.trf.xlu0
      %v4730 = vpop.trf.xlu0
      %v4731 = vpop.trf.xlu0
      %v4732 = vpop.trf.xlu0
      %v4733 = vpop.trf.xlu0
      %v4734 = vpop.trf.xlu0
      %v4735 = vpop.trf.xlu0
      %4736 = vxpose.xlu0.c.b16.start [1/8] %v4634, 128
      %4737 = vxpose.xlu0.c.b16.cont [2/8] 0, 128
      %4738 = vxpose.xlu0.c.b16.cont [3/8] 0, 128
      %4739 = vxpose.xlu0.c.b16.cont [4/8] 0, 128
      %4740 = vxpose.xlu0.c.b16.cont [5/8] 0, 128
      %4741 = vxpose.xlu0.c.b16.cont [6/8] 0, 128
      %4742 = vxpose.xlu0.c.b16.cont [7/8] 0, 128
      %4743 = vxpose.xlu0.c.b16.end [8/8] 0, 128
      %v4744 = vpop.trf.xlu0
      %v4745 = vpop.trf.xlu0
      %v4746 = vpop.trf.xlu0
      %v4747 = vpop.trf.xlu0
      %v4748 = vpop.trf.xlu0
      %v4749 = vpop.trf.xlu0
      %v4750 = vpop.trf.xlu0
      %v4751 = vpop.trf.xlu0
      %4752 = vxpose.xlu0.c.b16.start [1/8] %v4638, 128
      %4753 = vxpose.xlu0.c.b16.cont [2/8] 0, 128
      %4754 = vxpose.xlu0.c.b16.cont [3/8] 0, 128
      %4755 = vxpose.xlu0.c.b16.cont [4/8] 0, 128
      %4756 = vxpose.xlu0.c.b16.cont [5/8] 0, 128
      %4757 = vxpose.xlu0.c.b16.cont [6/8] 0, 128
      %4758 = vxpose.xlu0.c.b16.cont [7/8] 0, 128
      %4759 = vxpose.xlu0.c.b16.end [8/8] 0, 128
      %v4760 = vpop.trf.xlu0
      %v4761 = vpop.trf.xlu0
      %v4762 = vpop.trf.xlu0
      %v4763 = vpop.trf.xlu0
      %v4764 = vpop.trf.xlu0
      %v4765 = vpop.trf.xlu0
      %v4766 = vpop.trf.xlu0
      %v4767 = vpop.trf.xlu0
      %v4768 = vcombine.low %v4648, %v4712
      %v4770 = vunpack.c.l.s4 1983009808
      %v4771 = vunpack.c.0.s8 %v4770
      %v4772 = vlaneseq
      %v4773 = vshrl.u32 %v4772, 7
      %v4774 = vsub.s32 %v4771, %v4773
      %v4775 = vrot.slane %v4768, %v4774
      %v4776 = vcombine.low %v4680, %v4744
      %v4778 = vunpack.c.l.s4 1983009808
      %v4779 = vunpack.c.0.s8 %v4778
      %v4780 = vlaneseq
      %v4781 = vshrl.u32 %v4780, 7
      %v4782 = vsub.s32 %v4779, %v4781
      %v4783 = vrot.slane %v4776, %v4782
      %v4784 = vcombine.low %v4775, %v4783
      %v4786 = vunpack.c.l.s4 1934713408
      %v4787 = vunpack.c.0.s8 %v4786
      %v4788 = vlaneseq
      %v4789 = vshrl.u32 %v4788, 7
      %v4790 = vsub.s32 %v4787, %v4789
      %v4791 = vrot.slane %v4784, %v4790
      %v4792 = vcombine.high %v4791, 0
      %v4793 = vcombine.low %v4664, %v4728
      %v4795 = vunpack.c.l.s4 1983009808
      %v4796 = vunpack.c.0.s8 %v4795
      %v4797 = vlaneseq
      %v4798 = vshrl.u32 %v4797, 7
      %v4799 = vsub.s32 %v4796, %v4798
      %v4800 = vrot.slane %v4793, %v4799
      %v4801 = vcombine.low %v4696, %v4760
      %v4803 = vunpack.c.l.s4 1983009808
      %v4804 = vunpack.c.0.s8 %v4803
      %v4805 = vlaneseq
      %v4806 = vshrl.u32 %v4805, 7
      %v4807 = vsub.s32 %v4804, %v4806
      %v4808 = vrot.slane %v4801, %v4807
      %v4809 = vcombine.low %v4800, %v4808
      %v4811 = vunpack.c.l.s4 1934713408
      %v4812 = vunpack.c.0.s8 %v4811
      %v4813 = vlaneseq
      %v4814 = vshrl.u32 %v4813, 7
      %v4815 = vsub.s32 %v4812, %v4814
      %v4816 = vrot.slane %v4809, %v4815
      %v4817 = vcombine.high %v4816, 0
      %v4820 = vpack.i.b16 %v4816, %v4791
      %v4821 = vshrl.u32 %v4791, 16
      %v4822 = vshrl.u32 %v4816, 16
      %v4823 = vpack.i.b16 %v4822, %v4821
      %v4826 = vpack.i.b16 %v4817, %v4792
      %v4827 = vshrl.u32 %v4792, 16
      %v4828 = vshrl.u32 %v4817, 16
      %v4829 = vpack.i.b16 %v4828, %v4827
      %v4831 = vsel %vm2390, %v4206, 0
      %v4834 = vsel %vm2394, %v4820, 0
      %4836 = vmatprep.subr.bf16.mxu0 0
      %4837 = vmatpush1.bf16.msra.mxu0 %v4834
      %4838 = vmatprep.subr.bf16.mxu0 0
      %4839 = vmatpush1.bf16.msra.mxu0 0
      %4840 = vmatprep.subr.bf16.mxu0 0
      %4841 = vmatpush1.bf16.msra.mxu0 0
      %4842 = vmatprep.subr.bf16.mxu0 0
      %4843 = vmatpush1.bf16.msra.mxu0 0
      %4844 = vmatprep.subr.bf16.mxu0 0
      %4845 = vmatpush1.bf16.msra.mxu0 0
      %4846 = vmatprep.subr.bf16.mxu0 0
      %4847 = vmatpush1.bf16.msra.mxu0 0
      %4848 = vmatprep.subr.bf16.mxu0 0
      %4849 = vmatpush1.bf16.msra.mxu0 0
      %4850 = vmatprep.subr.bf16.mxu0 0
      %4851 = vmatpush1.bf16.msra.mxu0 0
      %4852 = vmatprep.subr.bf16.mxu0 0
      %4853 = vmatpush1.bf16.msra.mxu0 0
      %4854 = vmatprep.subr.bf16.mxu0 0
      %4855 = vmatpush1.bf16.msra.mxu0 0
      %4856 = vmatprep.subr.bf16.mxu0 0
      %4857 = vmatpush1.bf16.msra.mxu0 0
      %4858 = vmatprep.subr.bf16.mxu0 0
      %4859 = vmatpush1.bf16.msra.mxu0 0
      %4860 = vmatprep.subr.bf16.mxu0 0
      %4861 = vmatpush1.bf16.msra.mxu0 0
      %4862 = vmatprep.subr.bf16.mxu0 0
      %4863 = vmatpush1.bf16.msra.mxu0 0
      %4864 = vmatprep.subr.bf16.mxu0 0
      %4865 = vmatpush1.bf16.msra.mxu0 0
      %4866 = vmatprep.subr.bf16.mxu0 0
      %4867 = vmatpush1.bf16.msra.mxu0 0
      %4868 = vmatprep.mubr.bf16.mxu0 0
      %4869 = vmatmul.mubr.bf16.gmra.mrb[0].mxu0 %v4831
      %v4870 = vpop.f32.mrb[0].mxu0
      %v4871 = vadd.f32 0.0, %v4870
      %v4872 = vpop.f32.mrb[0].mxu0
      %v4873 = vpop.f32.mrb[0].mxu0
      %v4874 = vpop.f32.mrb[0].mxu0
      %4875 = vdwg.mxu0
      %v4877 = vsel %vm2390, %v4209, 0
      %v4880 = vsel %vm2394, %v4823, 0
      %4882 = vmatprep.subr.bf16.mxu0 0
      %4883 = vmatpush1.bf16.msra.mxu0 %v4880
      %4884 = vmatprep.subr.bf16.mxu0 0
      %4885 = vmatpush1.bf16.msra.mxu0 0
      %4886 = vmatprep.subr.bf16.mxu0 0
      %4887 = vmatpush1.bf16.msra.mxu0 0
      %4888 = vmatprep.subr.bf16.mxu0 0
      %4889 = vmatpush1.bf16.msra.mxu0 0
      %4890 = vmatprep.subr.bf16.mxu0 0
      %4891 = vmatpush1.bf16.msra.mxu0 0
      %4892 = vmatprep.subr.bf16.mxu0 0
      %4893 = vmatpush1.bf16.msra.mxu0 0
      %4894 = vmatprep.subr.bf16.mxu0 0
      %4895 = vmatpush1.bf16.msra.mxu0 0
      %4896 = vmatprep.subr.bf16.mxu0 0
      %4897 = vmatpush1.bf16.msra.mxu0 0
      %4898 = vmatprep.subr.bf16.mxu0 0
      %4899 = vmatpush1.bf16.msra.mxu0 0
      %4900 = vmatprep.subr.bf16.mxu0 0
      %4901 = vmatpush1.bf16.msra.mxu0 0
      %4902 = vmatprep.subr.bf16.mxu0 0
      %4903 = vmatpush1.bf16.msra.mxu0 0
      %4904 = vmatprep.subr.bf16.mxu0 0
      %4905 = vmatpush1.bf16.msra.mxu0 0
      %4906 = vmatprep.subr.bf16.mxu0 0
      %4907 = vmatpush1.bf16.msra.mxu0 0
      %4908 = vmatprep.subr.bf16.mxu0 0
      %4909 = vmatpush1.bf16.msra.mxu0 0
      %4910 = vmatprep.subr.bf16.mxu0 0
      %4911 = vmatpush1.bf16.msra.mxu0 0
      %4912 = vmatprep.subr.bf16.mxu0 0
      %4913 = vmatpush1.bf16.msra.mxu0 0
      %4914 = vmatprep.mubr.bf16.mxu0 0
      %4915 = vmatmul.mubr.bf16.gmra.mrb[0].mxu0 %v4877
      %v4916 = vpop.f32.mrb[0].mxu0
      %v4917 = vadd.f32 0.0, %v4916
      %v4918 = vpop.f32.mrb[0].mxu0
      %v4919 = vpop.f32.mrb[0].mxu0
      %v4920 = vpop.f32.mrb[0].mxu0
      %4921 = vdwg.mxu0
      %v4923 = vsel %vm2390, %v4212, 0
      %v4926 = vsel %vm2394, %v4826, 0
      %4928 = vmatprep.subr.bf16.mxu0 0
      %4929 = vmatpush1.bf16.msra.mxu0 %v4926
      %4930 = vmatprep.subr.bf16.mxu0 0
      %4931 = vmatpush1.bf16.msra.mxu0 0
      %4932 = vmatprep.subr.bf16.mxu0 0
      %4933 = vmatpush1.bf16.msra.mxu0 0
      %4934 = vmatprep.subr.bf16.mxu0 0
      %4935 = vmatpush1.bf16.msra.mxu0 0
      %4936 = vmatprep.subr.bf16.mxu0 0
      %4937 = vmatpush1.bf16.msra.mxu0 0
      %4938 = vmatprep.subr.bf16.mxu0 0
      %4939 = vmatpush1.bf16.msra.mxu0 0
      %4940 = vmatprep.subr.bf16.mxu0 0
      %4941 = vmatpush1.bf16.msra.mxu0 0
      %4942 = vmatprep.subr.bf16.mxu0 0
      %4943 = vmatpush1.bf16.msra.mxu0 0
      %4944 = vmatprep.subr.bf16.mxu0 0
      %4945 = vmatpush1.bf16.msra.mxu0 0
      %4946 = vmatprep.subr.bf16.mxu0 0
      %4947 = vmatpush1.bf16.msra.mxu0 0
      %4948 = vmatprep.subr.bf16.mxu0 0
      %4949 = vmatpush1.bf16.msra.mxu0 0
      %4950 = vmatprep.subr.bf16.mxu0 0
      %4951 = vmatpush1.bf16.msra.mxu0 0
      %4952 = vmatprep.subr.bf16.mxu0 0
      %4953 = vmatpush1.bf16.msra.mxu0 0
      %4954 = vmatprep.subr.bf16.mxu0 0
      %4955 = vmatpush1.bf16.msra.mxu0 0
      %4956 = vmatprep.subr.bf16.mxu0 0
      %4957 = vmatpush1.bf16.msra.mxu0 0
      %4958 = vmatprep.subr.bf16.mxu0 0
      %4959 = vmatpush1.bf16.msra.mxu0 0
      %4960 = vmatprep.mubr.bf16.mxu0 0
      %4961 = vmatmul.mubr.bf16.gmra.mrb[0].mxu0 %v4923
      %v4962 = vpop.f32.mrb[0].mxu0
      %v4963 = vadd.f32 0.0, %v4962
      %v4964 = vpop.f32.mrb[0].mxu0
      %v4965 = vpop.f32.mrb[0].mxu0
      %v4966 = vpop.f32.mrb[0].mxu0
      %4967 = vdwg.mxu0
      %v4969 = vsel %vm2390, %v4215, 0
      %v4972 = vsel %vm2394, %v4829, 0
      %4974 = vmatprep.subr.bf16.mxu0 0
      %4975 = vmatpush1.bf16.msra.mxu0 %v4972
      %4976 = vmatprep.subr.bf16.mxu0 0
      %4977 = vmatpush1.bf16.msra.mxu0 0
      %4978 = vmatprep.subr.bf16.mxu0 0
      %4979 = vmatpush1.bf16.msra.mxu0 0
      %4980 = vmatprep.subr.bf16.mxu0 0
      %4981 = vmatpush1.bf16.msra.mxu0 0
      %4982 = vmatprep.subr.bf16.mxu0 0
      %4983 = vmatpush1.bf16.msra.mxu0 0
      %4984 = vmatprep.subr.bf16.mxu0 0
      %4985 = vmatpush1.bf16.msra.mxu0 0
      %4986 = vmatprep.subr.bf16.mxu0 0
      %4987 = vmatpush1.bf16.msra.mxu0 0
      %4988 = vmatprep.subr.bf16.mxu0 0
      %4989 = vmatpush1.bf16.msra.mxu0 0
      %4990 = vmatprep.subr.bf16.mxu0 0
      %4991 = vmatpush1.bf16.msra.mxu0 0
      %4992 = vmatprep.subr.bf16.mxu0 0
      %4993 = vmatpush1.bf16.msra.mxu0 0
      %4994 = vmatprep.subr.bf16.mxu0 0
      %4995 = vmatpush1.bf16.msra.mxu0 0
      %4996 = vmatprep.subr.bf16.mxu0 0
      %4997 = vmatpush1.bf16.msra.mxu0 0
      %4998 = vmatprep.subr.bf16.mxu0 0
      %4999 = vmatpush1.bf16.msra.mxu0 0
      %5000 = vmatprep.subr.bf16.mxu0 0
      %5001 = vmatpush1.bf16.msra.mxu0 0
      %5002 = vmatprep.subr.bf16.mxu0 0
      %5003 = vmatpush1.bf16.msra.mxu0 0
      %5004 = vmatprep.subr.bf16.mxu0 0
      %5005 = vmatpush1.bf16.msra.mxu0 0
      %5006 = vmatprep.mubr.bf16.mxu0 0
      %5007 = vmatmul.mubr.bf16.gmra.mrb[0].mxu0 %v4969
      %v5008 = vpop.f32.mrb[0].mxu0
      %v5009 = vadd.f32 0.0, %v5008
      %v5010 = vpop.f32.mrb[0].mxu0
      %v5011 = vpop.f32.mrb[0].mxu0
      %v5012 = vpop.f32.mrb[0].mxu0
      %5013 = vdwg.mxu0
      %v5014 = vsel %vm3503, %v4871, -inf
      %5015 = vmax.xlane.f32.xlu0 %v5014
      %v5016 = vpop.xlane.xlu0 %5015
      %v5017 = vsel %vm3503, %v4917, -inf
      %5018 = vmax.xlane.f32.xlu0 %v5017
      %v5019 = vpop.xlane.xlu0 %5018
      %v5020 = vsel %vm3503, %v4963, -inf
      %5021 = vmax.xlane.f32.xlu0 %v5020
      %v5022 = vpop.xlane.xlu0 %5021
      %v5023 = vsel %vm3503, %v5009, -inf
      %5024 = vmax.xlane.f32.xlu0 %v5023
      %v5025 = vpop.xlane.xlu0 %5024
      %v5026 = vsub.f32 %v4871, %v5016
      %v5027 = vsub.f32 %v4917, %v5019
      %v5028 = vsub.f32 %v4963, %v5022
      %v5029 = vsub.f32 %v5009, %v5025
      %v5030 = vmul.f32 %v5026, 1.442695
      %v5031 = vpow.pop %v5030
      %v5032 = vmul.f32 %v5027, 1.442695
      %v5033 = vpow.pop %v5032
      %v5034 = vmul.f32 %v5028, 1.442695
      %v5035 = vpow.pop %v5034
      %v5036 = vmul.f32 %v5029, 1.442695
      %v5037 = vpow.pop %v5036
      %v5038 = vsel %vm3503, %v5031, 0.0
      %5039 = vadd.xlane.f32.xlu0 %v5038
      %v5040 = vpop.xlane.xlu0 %5039
      %v5041 = vsel %vm3503, %v5033, 0.0
      %5042 = vadd.xlane.f32.xlu0 %v5041
      %v5043 = vpop.xlane.xlu0 %5042
      %v5044 = vsel %vm3503, %v5035, 0.0
      %5045 = vadd.xlane.f32.xlu0 %v5044
      %v5046 = vpop.xlane.xlu0 %5045
      %v5047 = vsel %vm3503, %v5037, 0.0
      %5048 = vadd.xlane.f32.xlu0 %v5047
      %v5049 = vpop.xlane.xlu0 %5048
      %v5050 = vrcp.pop %v5040
      %v5051 = vrcp.pop %v5043
      %v5052 = vrcp.pop %v5046
      %v5053 = vrcp.pop %v5049
      %v5054 = vmul.f32 %v5031, %v5050
      %v5055 = vmul.f32 %v5033, %v5051
      %v5056 = vmul.f32 %v5035, %v5052
      %v5057 = vmul.f32 %v5037, %v5053
      %v5058 = vpack.c.bf16 %v5054, %v5054
      %v5059 = vpack.c.bf16 %v5055, %v5055
      %v5060 = vpack.c.bf16 %v5056, %v5056
      %v5061 = vpack.c.bf16 %v5057, %v5057
      %5062 = vxpose.xlu0.c.b16.start [1/8] %v4138, 128
      %5063 = vxpose.xlu0.c.b16.cont [2/8] 0, 128
      %5064 = vxpose.xlu0.c.b16.cont [3/8] 0, 128
      %5065 = vxpose.xlu0.c.b16.cont [4/8] 0, 128
      %5066 = vxpose.xlu0.c.b16.cont [5/8] 0, 128
      %5067 = vxpose.xlu0.c.b16.cont [6/8] 0, 128
      %5068 = vxpose.xlu0.c.b16.cont [7/8] 0, 128
      %5069 = vxpose.xlu0.c.b16.end [8/8] 0, 128
      %v5070 = vpop.trf.xlu0
      %v5071 = vpop.trf.xlu0
      %v5072 = vpop.trf.xlu0
      %v5073 = vpop.trf.xlu0
      %v5074 = vpop.trf.xlu0
      %v5075 = vpop.trf.xlu0
      %v5076 = vpop.trf.xlu0
      %v5077 = vpop.trf.xlu0
      %5078 = vxpose.xlu0.c.b16.start [1/8] %v4139, 128
      %5079 = vxpose.xlu0.c.b16.cont [2/8] 0, 128
      %5080 = vxpose.xlu0.c.b16.cont [3/8] 0, 128
      %5081 = vxpose.xlu0.c.b16.cont [4/8] 0, 128
      %5082 = vxpose.xlu0.c.b16.cont [5/8] 0, 128
      %5083 = vxpose.xlu0.c.b16.cont [6/8] 0, 128
      %5084 = vxpose.xlu0.c.b16.cont [7/8] 0, 128
      %5085 = vxpose.xlu0.c.b16.end [8/8] 0, 128
      %v5086 = vpop.trf.xlu0
      %v5087 = vpop.trf.xlu0
      %v5088 = vpop.trf.xlu0
      %v5089 = vpop.trf.xlu0
      %v5090 = vpop.trf.xlu0
      %v5091 = vpop.trf.xlu0
      %v5092 = vpop.trf.xlu0
      %v5093 = vpop.trf.xlu0
      %5094 = vxpose.xlu0.c.b16.start [1/8] %v4140, 128
      %5095 = vxpose.xlu0.c.b16.cont [2/8] 0, 128
      %5096 = vxpose.xlu0.c.b16.cont [3/8] 0, 128
      %5097 = vxpose.xlu0.c.b16.cont [4/8] 0, 128
      %5098 = vxpose.xlu0.c.b16.cont [5/8] 0, 128
      %5099 = vxpose.xlu0.c.b16.cont [6/8] 0, 128
      %5100 = vxpose.xlu0.c.b16.cont [7/8] 0, 128
      %5101 = vxpose.xlu0.c.b16.end [8/8] 0, 128
      %v5102 = vpop.trf.xlu0
      %v5103 = vpop.trf.xlu0
      %v5104 = vpop.trf.xlu0
      %v5105 = vpop.trf.xlu0
      %v5106 = vpop.trf.xlu0
      %v5107 = vpop.trf.xlu0
      %v5108 = vpop.trf.xlu0
      %v5109 = vpop.trf.xlu0
      %5110 = vxpose.xlu0.c.b16.start [1/8] %v4141, 128
      %5111 = vxpose.xlu0.c.b16.cont [2/8] 0, 128
      %5112 = vxpose.xlu0.c.b16.cont [3/8] 0, 128
      %5113 = vxpose.xlu0.c.b16.cont [4/8] 0, 128
      %5114 = vxpose.xlu0.c.b16.cont [5/8] 0, 128
      %5115 = vxpose.xlu0.c.b16.cont [6/8] 0, 128
      %5116 = vxpose.xlu0.c.b16.cont [7/8] 0, 128
      %5117 = vxpose.xlu0.c.b16.end [8/8] 0, 128
      %v5118 = vpop.trf.xlu0
      %v5119 = vpop.trf.xlu0
      %v5120 = vpop.trf.xlu0
      %v5121 = vpop.trf.xlu0
      %v5122 = vpop.trf.xlu0
      %v5123 = vpop.trf.xlu0
      %v5124 = vpop.trf.xlu0
      %v5125 = vpop.trf.xlu0
      %5126 = vxpose.xlu0.c.b16.start [1/8] %v4142, 128
      %5127 = vxpose.xlu0.c.b16.cont [2/8] 0, 128
      %5128 = vxpose.xlu0.c.b16.cont [3/8] 0, 128
      %5129 = vxpose.xlu0.c.b16.cont [4/8] 0, 128
      %5130 = vxpose.xlu0.c.b16.cont [5/8] 0, 128
      %5131 = vxpose.xlu0.c.b16.cont [6/8] 0, 128
      %5132 = vxpose.xlu0.c.b16.cont [7/8] 0, 128
      %5133 = vxpose.xlu0.c.b16.end [8/8] 0, 128
      %v5134 = vpop.trf.xlu0
      %v5135 = vpop.trf.xlu0
      %v5136 = vpop.trf.xlu0
      %v5137 = vpop.trf.xlu0
      %v5138 = vpop.trf.xlu0
      %v5139 = vpop.trf.xlu0
      %v5140 = vpop.trf.xlu0
      %v5141 = vpop.trf.xlu0
      %5142 = vxpose.xlu0.c.b16.start [1/8] %v4143, 128
      %5143 = vxpose.xlu0.c.b16.cont [2/8] 0, 128
      %5144 = vxpose.xlu0.c.b16.cont [3/8] 0, 128
      %5145 = vxpose.xlu0.c.b16.cont [4/8] 0, 128
      %5146 = vxpose.xlu0.c.b16.cont [5/8] 0, 128
      %5147 = vxpose.xlu0.c.b16.cont [6/8] 0, 128
      %5148 = vxpose.xlu0.c.b16.cont [7/8] 0, 128
      %5149 = vxpose.xlu0.c.b16.end [8/8] 0, 128
      %v5150 = vpop.trf.xlu0
      %v5151 = vpop.trf.xlu0
      %v5152 = vpop.trf.xlu0
      %v5153 = vpop.trf.xlu0
      %v5154 = vpop.trf.xlu0
      %v5155 = vpop.trf.xlu0
      %v5156 = vpop.trf.xlu0
      %v5157 = vpop.trf.xlu0
      %5158 = vxpose.xlu0.c.b16.start [1/8] %v4144, 128
      %5159 = vxpose.xlu0.c.b16.cont [2/8] 0, 128
      %5160 = vxpose.xlu0.c.b16.cont [3/8] 0, 128
      %5161 = vxpose.xlu0.c.b16.cont [4/8] 0, 128
      %5162 = vxpose.xlu0.c.b16.cont [5/8] 0, 128
      %5163 = vxpose.xlu0.c.b16.cont [6/8] 0, 128
      %5164 = vxpose.xlu0.c.b16.cont [7/8] 0, 128
      %5165 = vxpose.xlu0.c.b16.end [8/8] 0, 128
      %v5166 = vpop.trf.xlu0
      %v5167 = vpop.trf.xlu0
      %v5168 = vpop.trf.xlu0
      %v5169 = vpop.trf.xlu0
      %v5170 = vpop.trf.xlu0
      %v5171 = vpop.trf.xlu0
      %v5172 = vpop.trf.xlu0
      %v5173 = vpop.trf.xlu0
      %5174 = vxpose.xlu0.c.b16.start [1/8] %v4145, 128
      %5175 = vxpose.xlu0.c.b16.cont [2/8] 0, 128
      %5176 = vxpose.xlu0.c.b16.cont [3/8] 0, 128
      %5177 = vxpose.xlu0.c.b16.cont [4/8] 0, 128
      %5178 = vxpose.xlu0.c.b16.cont [5/8] 0, 128
      %5179 = vxpose.xlu0.c.b16.cont [6/8] 0, 128
      %5180 = vxpose.xlu0.c.b16.cont [7/8] 0, 128
      %5181 = vxpose.xlu0.c.b16.end [8/8] 0, 128
      %v5182 = vpop.trf.xlu0
      %v5183 = vpop.trf.xlu0
      %v5184 = vpop.trf.xlu0
      %v5185 = vpop.trf.xlu0
      %v5186 = vpop.trf.xlu0
      %v5187 = vpop.trf.xlu0
      %v5188 = vpop.trf.xlu0
      %v5189 = vpop.trf.xlu0
      %5190 = vxpose.xlu0.c.b16.start [1/8] %v4146, 128
      %5191 = vxpose.xlu0.c.b16.cont [2/8] 0, 128
      %5192 = vxpose.xlu0.c.b16.cont [3/8] 0, 128
      %5193 = vxpose.xlu0.c.b16.cont [4/8] 0, 128
      %5194 = vxpose.xlu0.c.b16.cont [5/8] 0, 128
      %5195 = vxpose.xlu0.c.b16.cont [6/8] 0, 128
      %5196 = vxpose.xlu0.c.b16.cont [7/8] 0, 128
      %5197 = vxpose.xlu0.c.b16.end [8/8] 0, 128
      %v5198 = vpop.trf.xlu0
      %v5199 = vpop.trf.xlu0
      %v5200 = vpop.trf.xlu0
      %v5201 = vpop.trf.xlu0
      %v5202 = vpop.trf.xlu0
      %v5203 = vpop.trf.xlu0
      %v5204 = vpop.trf.xlu0
      %v5205 = vpop.trf.xlu0
      %5206 = vxpose.xlu0.c.b16.start [1/8] %v4147, 128
      %5207 = vxpose.xlu0.c.b16.cont [2/8] 0, 128
      %5208 = vxpose.xlu0.c.b16.cont [3/8] 0, 128
      %5209 = vxpose.xlu0.c.b16.cont [4/8] 0, 128
      %5210 = vxpose.xlu0.c.b16.cont [5/8] 0, 128
      %5211 = vxpose.xlu0.c.b16.cont [6/8] 0, 128
      %5212 = vxpose.xlu0.c.b16.cont [7/8] 0, 128
      %5213 = vxpose.xlu0.c.b16.end [8/8] 0, 128
      %v5214 = vpop.trf.xlu0
      %v5215 = vpop.trf.xlu0
      %v5216 = vpop.trf.xlu0
      %v5217 = vpop.trf.xlu0
      %v5218 = vpop.trf.xlu0
      %v5219 = vpop.trf.xlu0
      %v5220 = vpop.trf.xlu0
      %v5221 = vpop.trf.xlu0
      %5222 = vxpose.xlu0.c.b16.start [1/8] %v4148, 128
      %5223 = vxpose.xlu0.c.b16.cont [2/8] 0, 128
      %5224 = vxpose.xlu0.c.b16.cont [3/8] 0, 128
      %5225 = vxpose.xlu0.c.b16.cont [4/8] 0, 128
      %5226 = vxpose.xlu0.c.b16.cont [5/8] 0, 128
      %5227 = vxpose.xlu0.c.b16.cont [6/8] 0, 128
      %5228 = vxpose.xlu0.c.b16.cont [7/8] 0, 128
      %5229 = vxpose.xlu0.c.b16.end [8/8] 0, 128
      %v5230 = vpop.trf.xlu0
      %v5231 = vpop.trf.xlu0
      %v5232 = vpop.trf.xlu0
      %v5233 = vpop.trf.xlu0
      %v5234 = vpop.trf.xlu0
      %v5235 = vpop.trf.xlu0
      %v5236 = vpop.trf.xlu0
      %v5237 = vpop.trf.xlu0
      %5238 = vxpose.xlu0.c.b16.start [1/8] %v4149, 128
      %5239 = vxpose.xlu0.c.b16.cont [2/8] 0, 128
      %5240 = vxpose.xlu0.c.b16.cont [3/8] 0, 128
      %5241 = vxpose.xlu0.c.b16.cont [4/8] 0, 128
      %5242 = vxpose.xlu0.c.b16.cont [5/8] 0, 128
      %5243 = vxpose.xlu0.c.b16.cont [6/8] 0, 128
      %5244 = vxpose.xlu0.c.b16.cont [7/8] 0, 128
      %5245 = vxpose.xlu0.c.b16.end [8/8] 0, 128
      %v5246 = vpop.trf.xlu0
      %v5247 = vpop.trf.xlu0
      %v5248 = vpop.trf.xlu0
      %v5249 = vpop.trf.xlu0
      %v5250 = vpop.trf.xlu0
      %v5251 = vpop.trf.xlu0
      %v5252 = vpop.trf.xlu0
      %v5253 = vpop.trf.xlu0
      %5254 = vxpose.xlu0.c.b16.start [1/8] %v4150, 128
      %5255 = vxpose.xlu0.c.b16.cont [2/8] 0, 128
      %5256 = vxpose.xlu0.c.b16.cont [3/8] 0, 128
      %5257 = vxpose.xlu0.c.b16.cont [4/8] 0, 128
      %5258 = vxpose.xlu0.c.b16.cont [5/8] 0, 128
      %5259 = vxpose.xlu0.c.b16.cont [6/8] 0, 128
      %5260 = vxpose.xlu0.c.b16.cont [7/8] 0, 128
      %5261 = vxpose.xlu0.c.b16.end [8/8] 0, 128
      %v5262 = vpop.trf.xlu0
      %v5263 = vpop.trf.xlu0
      %v5264 = vpop.trf.xlu0
      %v5265 = vpop.trf.xlu0
      %v5266 = vpop.trf.xlu0
      %v5267 = vpop.trf.xlu0
      %v5268 = vpop.trf.xlu0
      %v5269 = vpop.trf.xlu0
      %5270 = vxpose.xlu0.c.b16.start [1/8] %v4151, 128
      %5271 = vxpose.xlu0.c.b16.cont [2/8] 0, 128
      %5272 = vxpose.xlu0.c.b16.cont [3/8] 0, 128
      %5273 = vxpose.xlu0.c.b16.cont [4/8] 0, 128
      %5274 = vxpose.xlu0.c.b16.cont [5/8] 0, 128
      %5275 = vxpose.xlu0.c.b16.cont [6/8] 0, 128
      %5276 = vxpose.xlu0.c.b16.cont [7/8] 0, 128
      %5277 = vxpose.xlu0.c.b16.end [8/8] 0, 128
      %v5278 = vpop.trf.xlu0
      %v5279 = vpop.trf.xlu0
      %v5280 = vpop.trf.xlu0
      %v5281 = vpop.trf.xlu0
      %v5282 = vpop.trf.xlu0
      %v5283 = vpop.trf.xlu0
      %v5284 = vpop.trf.xlu0
      %v5285 = vpop.trf.xlu0
      %5286 = vxpose.xlu0.c.b16.start [1/8] %v4152, 128
      %5287 = vxpose.xlu0.c.b16.cont [2/8] 0, 128
      %5288 = vxpose.xlu0.c.b16.cont [3/8] 0, 128
      %5289 = vxpose.xlu0.c.b16.cont [4/8] 0, 128
      %5290 = vxpose.xlu0.c.b16.cont [5/8] 0, 128
      %5291 = vxpose.xlu0.c.b16.cont [6/8] 0, 128
      %5292 = vxpose.xlu0.c.b16.cont [7/8] 0, 128
      %5293 = vxpose.xlu0.c.b16.end [8/8] 0, 128
      %v5294 = vpop.trf.xlu0
      %v5295 = vpop.trf.xlu0
      %v5296 = vpop.trf.xlu0
      %v5297 = vpop.trf.xlu0
      %v5298 = vpop.trf.xlu0
      %v5299 = vpop.trf.xlu0
      %v5300 = vpop.trf.xlu0
      %v5301 = vpop.trf.xlu0
      %5302 = vxpose.xlu0.c.b16.start [1/8] %v4153, 128
      %5303 = vxpose.xlu0.c.b16.cont [2/8] 0, 128
      %5304 = vxpose.xlu0.c.b16.cont [3/8] 0, 128
      %5305 = vxpose.xlu0.c.b16.cont [4/8] 0, 128
      %5306 = vxpose.xlu0.c.b16.cont [5/8] 0, 128
      %5307 = vxpose.xlu0.c.b16.cont [6/8] 0, 128
      %5308 = vxpose.xlu0.c.b16.cont [7/8] 0, 128
      %5309 = vxpose.xlu0.c.b16.end [8/8] 0, 128
      %v5310 = vpop.trf.xlu0
      %v5311 = vpop.trf.xlu0
      %v5312 = vpop.trf.xlu0
      %v5313 = vpop.trf.xlu0
      %v5314 = vpop.trf.xlu0
      %v5315 = vpop.trf.xlu0
      %v5316 = vpop.trf.xlu0
      %v5317 = vpop.trf.xlu0
      %v5318 = vcombine.low %v5070, %v5134
      %v5320 = vunpack.c.l.s4 1983009808
      %v5321 = vunpack.c.0.s8 %v5320
      %v5322 = vlaneseq
      %v5323 = vshrl.u32 %v5322, 7
      %v5324 = vsub.s32 %v5321, %v5323
      %v5325 = vrot.slane %v5318, %v5324
      %v5326 = vcombine.low %v5102, %v5166
      %v5328 = vunpack.c.l.s4 1983009808
      %v5329 = vunpack.c.0.s8 %v5328
      %v5330 = vlaneseq
      %v5331 = vshrl.u32 %v5330, 7
      %v5332 = vsub.s32 %v5329, %v5331
      %v5333 = vrot.slane %v5326, %v5332
      %v5334 = vcombine.low %v5198, %v5262
      %v5336 = vunpack.c.l.s4 1983009808
      %v5337 = vunpack.c.0.s8 %v5336
      %v5338 = vlaneseq
      %v5339 = vshrl.u32 %v5338, 7
      %v5340 = vsub.s32 %v5337, %v5339
      %v5341 = vrot.slane %v5334, %v5340
      %v5342 = vcombine.low %v5230, %v5294
      %v5344 = vunpack.c.l.s4 1983009808
      %v5345 = vunpack.c.0.s8 %v5344
      %v5346 = vlaneseq
      %v5347 = vshrl.u32 %v5346, 7
      %v5348 = vsub.s32 %v5345, %v5347
      %v5349 = vrot.slane %v5342, %v5348
      %v5350 = vcombine.low %v5325, %v5333
      %v5351 = vcombine.high %v5325, %v5333
      %v5353 = vunpack.c.l.s4 1934713408
      %v5354 = vunpack.c.0.s8 %v5353
      %v5355 = vlaneseq
      %v5356 = vshrl.u32 %v5355, 7
      %v5357 = vsub.s32 %v5354, %v5356
      %v5358 = vrot.slane %v5350, %v5357
      %v5360 = vunpack.c.l.s4 1934713408
      %v5361 = vunpack.c.0.s8 %v5360
      %v5362 = vlaneseq
      %v5363 = vshrl.u32 %v5362, 7
      %v5364 = vsub.s32 %v5361, %v5363
      %v5365 = vrot.slane %v5351, %v5364
      %v5366 = vcombine.low %v5341, %v5349
      %v5367 = vcombine.high %v5341, %v5349
      %v5369 = vunpack.c.l.s4 1934713408
      %v5370 = vunpack.c.0.s8 %v5369
      %v5371 = vlaneseq
      %v5372 = vshrl.u32 %v5371, 7
      %v5373 = vsub.s32 %v5370, %v5372
      %v5374 = vrot.slane %v5366, %v5373
      %v5376 = vunpack.c.l.s4 1934713408
      %v5377 = vunpack.c.0.s8 %v5376
      %v5378 = vlaneseq
      %v5379 = vshrl.u32 %v5378, 7
      %v5380 = vsub.s32 %v5377, %v5379
      %v5381 = vrot.slane %v5367, %v5380
      %v5382 = vcombine.low %v5358, %v5374
      %v5383 = vcombine.high %v5358, %v5374
      %v5384 = vcombine.low %v5365, %v5381
      %v5385 = vcombine.high %v5365, %v5381
      %v5386 = vcombine.low %v5086, %v5150
      %v5388 = vunpack.c.l.s4 1983009808
      %v5389 = vunpack.c.0.s8 %v5388
      %v5390 = vlaneseq
      %v5391 = vshrl.u32 %v5390, 7
      %v5392 = vsub.s32 %v5389, %v5391
      %v5393 = vrot.slane %v5386, %v5392
      %v5394 = vcombine.low %v5118, %v5182
      %v5396 = vunpack.c.l.s4 1983009808
      %v5397 = vunpack.c.0.s8 %v5396
      %v5398 = vlaneseq
      %v5399 = vshrl.u32 %v5398, 7
      %v5400 = vsub.s32 %v5397, %v5399
      %v5401 = vrot.slane %v5394, %v5400
      %v5402 = vcombine.low %v5214, %v5278
      %v5404 = vunpack.c.l.s4 1983009808
      %v5405 = vunpack.c.0.s8 %v5404
      %v5406 = vlaneseq
      %v5407 = vshrl.u32 %v5406, 7
      %v5408 = vsub.s32 %v5405, %v5407
      %v5409 = vrot.slane %v5402, %v5408
      %v5410 = vcombine.low %v5246, %v5310
      %v5412 = vunpack.c.l.s4 1983009808
      %v5413 = vunpack.c.0.s8 %v5412
      %v5414 = vlaneseq
      %v5415 = vshrl.u32 %v5414, 7
      %v5416 = vsub.s32 %v5413, %v5415
      %v5417 = vrot.slane %v5410, %v5416
      %v5418 = vcombine.low %v5393, %v5401
      %v5419 = vcombine.high %v5393, %v5401
      %v5421 = vunpack.c.l.s4 1934713408
      %v5422 = vunpack.c.0.s8 %v5421
      %v5423 = vlaneseq
      %v5424 = vshrl.u32 %v5423, 7
      %v5425 = vsub.s32 %v5422, %v5424
      %v5426 = vrot.slane %v5418, %v5425
      %v5428 = vunpack.c.l.s4 1934713408
      %v5429 = vunpack.c.0.s8 %v5428
      %v5430 = vlaneseq
      %v5431 = vshrl.u32 %v5430, 7
      %v5432 = vsub.s32 %v5429, %v5431
      %v5433 = vrot.slane %v5419, %v5432
      %v5434 = vcombine.low %v5409, %v5417
      %v5435 = vcombine.high %v5409, %v5417
      %v5437 = vunpack.c.l.s4 1934713408
      %v5438 = vunpack.c.0.s8 %v5437
      %v5439 = vlaneseq
      %v5440 = vshrl.u32 %v5439, 7
      %v5441 = vsub.s32 %v5438, %v5440
      %v5442 = vrot.slane %v5434, %v5441
      %v5444 = vunpack.c.l.s4 1934713408
      %v5445 = vunpack.c.0.s8 %v5444
      %v5446 = vlaneseq
      %v5447 = vshrl.u32 %v5446, 7
      %v5448 = vsub.s32 %v5445, %v5447
      %v5449 = vrot.slane %v5435, %v5448
      %v5450 = vcombine.low %v5426, %v5442
      %v5451 = vcombine.high %v5426, %v5442
      %v5452 = vcombine.low %v5433, %v5449
      %v5453 = vcombine.high %v5433, %v5449
      %v5456 = vpack.i.b16 %v5450, %v5382
      %v5458 = vshrl.u32 %v5382, 16
      %v5459 = vshrl.u32 %v5450, 16
      %v5460 = vpack.i.b16 %v5459, %v5458
      %v5464 = vpack.i.b16 %v5451, %v5383
      %v5466 = vshrl.u32 %v5383, 16
      %v5467 = vshrl.u32 %v5451, 16
      %v5468 = vpack.i.b16 %v5467, %v5466
      %v5472 = vpack.i.b16 %v5452, %v5384
      %v5474 = vshrl.u32 %v5384, 16
      %v5475 = vshrl.u32 %v5452, 16
      %v5476 = vpack.i.b16 %v5475, %v5474
      %v5480 = vpack.i.b16 %v5453, %v5385
      %v5482 = vshrl.u32 %v5385, 16
      %v5483 = vshrl.u32 %v5453, 16
      %v5484 = vpack.i.b16 %v5483, %v5482
      %5486 = vxpose.xlu0.c.b16.start [1/8] %v5456, 128
      %5487 = vxpose.xlu0.c.b16.cont [2/8] 0, 128
      %5488 = vxpose.xlu0.c.b16.cont [3/8] 0, 128
      %5489 = vxpose.xlu0.c.b16.cont [4/8] 0, 128
      %5490 = vxpose.xlu0.c.b16.cont [5/8] 0, 128
      %5491 = vxpose.xlu0.c.b16.cont [6/8] 0, 128
      %5492 = vxpose.xlu0.c.b16.cont [7/8] 0, 128
      %5493 = vxpose.xlu0.c.b16.end [8/8] 0, 128
      %v5494 = vpop.trf.xlu0
      %v5495 = vpop.trf.xlu0
      %v5496 = vpop.trf.xlu0
      %v5497 = vpop.trf.xlu0
      %v5498 = vpop.trf.xlu0
      %v5499 = vpop.trf.xlu0
      %v5500 = vpop.trf.xlu0
      %v5501 = vpop.trf.xlu0
      %5502 = vxpose.xlu0.c.b16.start [1/8] %v5460, 128
      %5503 = vxpose.xlu0.c.b16.cont [2/8] 0, 128
      %5504 = vxpose.xlu0.c.b16.cont [3/8] 0, 128
      %5505 = vxpose.xlu0.c.b16.cont [4/8] 0, 128
      %5506 = vxpose.xlu0.c.b16.cont [5/8] 0, 128
      %5507 = vxpose.xlu0.c.b16.cont [6/8] 0, 128
      %5508 = vxpose.xlu0.c.b16.cont [7/8] 0, 128
      %5509 = vxpose.xlu0.c.b16.end [8/8] 0, 128
      %v5510 = vpop.trf.xlu0
      %v5511 = vpop.trf.xlu0
      %v5512 = vpop.trf.xlu0
      %v5513 = vpop.trf.xlu0
      %v5514 = vpop.trf.xlu0
      %v5515 = vpop.trf.xlu0
      %v5516 = vpop.trf.xlu0
      %v5517 = vpop.trf.xlu0
      %5518 = vxpose.xlu0.c.b16.start [1/8] %v5464, 128
      %5519 = vxpose.xlu0.c.b16.cont [2/8] 0, 128
      %5520 = vxpose.xlu0.c.b16.cont [3/8] 0, 128
      %5521 = vxpose.xlu0.c.b16.cont [4/8] 0, 128
      %5522 = vxpose.xlu0.c.b16.cont [5/8] 0, 128
      %5523 = vxpose.xlu0.c.b16.cont [6/8] 0, 128
      %5524 = vxpose.xlu0.c.b16.cont [7/8] 0, 128
      %5525 = vxpose.xlu0.c.b16.end [8/8] 0, 128
      %v5526 = vpop.trf.xlu0
      %v5527 = vpop.trf.xlu0
      %v5528 = vpop.trf.xlu0
      %v5529 = vpop.trf.xlu0
      %v5530 = vpop.trf.xlu0
      %v5531 = vpop.trf.xlu0
      %v5532 = vpop.trf.xlu0
      %v5533 = vpop.trf.xlu0
      %5534 = vxpose.xlu0.c.b16.start [1/8] %v5468, 128
      %5535 = vxpose.xlu0.c.b16.cont [2/8] 0, 128
      %5536 = vxpose.xlu0.c.b16.cont [3/8] 0, 128
      %5537 = vxpose.xlu0.c.b16.cont [4/8] 0, 128
      %5538 = vxpose.xlu0.c.b16.cont [5/8] 0, 128
      %5539 = vxpose.xlu0.c.b16.cont [6/8] 0, 128
      %5540 = vxpose.xlu0.c.b16.cont [7/8] 0, 128
      %5541 = vxpose.xlu0.c.b16.end [8/8] 0, 128
      %v5542 = vpop.trf.xlu0
      %v5543 = vpop.trf.xlu0
      %v5544 = vpop.trf.xlu0
      %v5545 = vpop.trf.xlu0
      %v5546 = vpop.trf.xlu0
      %v5547 = vpop.trf.xlu0
      %v5548 = vpop.trf.xlu0
      %v5549 = vpop.trf.xlu0
      %5550 = vxpose.xlu0.c.b16.start [1/8] %v5472, 128
      %5551 = vxpose.xlu0.c.b16.cont [2/8] 0, 128
      %5552 = vxpose.xlu0.c.b16.cont [3/8] 0, 128
      %5553 = vxpose.xlu0.c.b16.cont [4/8] 0, 128
      %5554 = vxpose.xlu0.c.b16.cont [5/8] 0, 128
      %5555 = vxpose.xlu0.c.b16.cont [6/8] 0, 128
      %5556 = vxpose.xlu0.c.b16.cont [7/8] 0, 128
      %5557 = vxpose.xlu0.c.b16.end [8/8] 0, 128
      %v5558 = vpop.trf.xlu0
      %v5559 = vpop.trf.xlu0
      %v5560 = vpop.trf.xlu0
      %v5561 = vpop.trf.xlu0
      %v5562 = vpop.trf.xlu0
      %v5563 = vpop.trf.xlu0
      %v5564 = vpop.trf.xlu0
      %v5565 = vpop.trf.xlu0
      %5566 = vxpose.xlu0.c.b16.start [1/8] %v5476, 128
      %5567 = vxpose.xlu0.c.b16.cont [2/8] 0, 128
      %5568 = vxpose.xlu0.c.b16.cont [3/8] 0, 128
      %5569 = vxpose.xlu0.c.b16.cont [4/8] 0, 128
      %5570 = vxpose.xlu0.c.b16.cont [5/8] 0, 128
      %5571 = vxpose.xlu0.c.b16.cont [6/8] 0, 128
      %5572 = vxpose.xlu0.c.b16.cont [7/8] 0, 128
      %5573 = vxpose.xlu0.c.b16.end [8/8] 0, 128
      %v5574 = vpop.trf.xlu0
      %v5575 = vpop.trf.xlu0
      %v5576 = vpop.trf.xlu0
      %v5577 = vpop.trf.xlu0
      %v5578 = vpop.trf.xlu0
      %v5579 = vpop.trf.xlu0
      %v5580 = vpop.trf.xlu0
      %v5581 = vpop.trf.xlu0
      %5582 = vxpose.xlu0.c.b16.start [1/8] %v5480, 128
      %5583 = vxpose.xlu0.c.b16.cont [2/8] 0, 128
      %5584 = vxpose.xlu0.c.b16.cont [3/8] 0, 128
      %5585 = vxpose.xlu0.c.b16.cont [4/8] 0, 128
      %5586 = vxpose.xlu0.c.b16.cont [5/8] 0, 128
      %5587 = vxpose.xlu0.c.b16.cont [6/8] 0, 128
      %5588 = vxpose.xlu0.c.b16.cont [7/8] 0, 128
      %5589 = vxpose.xlu0.c.b16.end [8/8] 0, 128
      %v5590 = vpop.trf.xlu0
      %v5591 = vpop.trf.xlu0
      %v5592 = vpop.trf.xlu0
      %v5593 = vpop.trf.xlu0
      %v5594 = vpop.trf.xlu0
      %v5595 = vpop.trf.xlu0
      %v5596 = vpop.trf.xlu0
      %v5597 = vpop.trf.xlu0
      %5598 = vxpose.xlu0.c.b16.start [1/8] %v5484, 128
      %5599 = vxpose.xlu0.c.b16.cont [2/8] 0, 128
      %5600 = vxpose.xlu0.c.b16.cont [3/8] 0, 128
      %5601 = vxpose.xlu0.c.b16.cont [4/8] 0, 128
      %5602 = vxpose.xlu0.c.b16.cont [5/8] 0, 128
      %5603 = vxpose.xlu0.c.b16.cont [6/8] 0, 128
      %5604 = vxpose.xlu0.c.b16.cont [7/8] 0, 128
      %5605 = vxpose.xlu0.c.b16.end [8/8] 0, 128
      %v5606 = vpop.trf.xlu0
      %v5607 = vpop.trf.xlu0
      %v5608 = vpop.trf.xlu0
      %v5609 = vpop.trf.xlu0
      %v5610 = vpop.trf.xlu0
      %v5611 = vpop.trf.xlu0
      %v5612 = vpop.trf.xlu0
      %v5613 = vpop.trf.xlu0
      %v5614 = vcombine.low %v5494, %v5558
      %v5616 = vunpack.c.l.s4 1983009808
      %v5617 = vunpack.c.0.s8 %v5616
      %v5618 = vlaneseq
      %v5619 = vshrl.u32 %v5618, 7
      %v5620 = vsub.s32 %v5617, %v5619
      %v5621 = vrot.slane %v5614, %v5620
      %v5622 = vcombine.low %v5526, %v5590
      %v5624 = vunpack.c.l.s4 1983009808
      %v5625 = vunpack.c.0.s8 %v5624
      %v5626 = vlaneseq
      %v5627 = vshrl.u32 %v5626, 7
      %v5628 = vsub.s32 %v5625, %v5627
      %v5629 = vrot.slane %v5622, %v5628
      %v5630 = vcombine.low %v5621, %v5629
      %v5632 = vunpack.c.l.s4 1934713408
      %v5633 = vunpack.c.0.s8 %v5632
      %v5634 = vlaneseq
      %v5635 = vshrl.u32 %v5634, 7
      %v5636 = vsub.s32 %v5633, %v5635
      %v5637 = vrot.slane %v5630, %v5636
      %v5638 = vcombine.high %v5637, 0
      %v5639 = vcombine.low %v5510, %v5574
      %v5641 = vunpack.c.l.s4 1983009808
      %v5642 = vunpack.c.0.s8 %v5641
      %v5643 = vlaneseq
      %v5644 = vshrl.u32 %v5643, 7
      %v5645 = vsub.s32 %v5642, %v5644
      %v5646 = vrot.slane %v5639, %v5645
      %v5647 = vcombine.low %v5542, %v5606
      %v5649 = vunpack.c.l.s4 1983009808
      %v5650 = vunpack.c.0.s8 %v5649
      %v5651 = vlaneseq
      %v5652 = vshrl.u32 %v5651, 7
      %v5653 = vsub.s32 %v5650, %v5652
      %v5654 = vrot.slane %v5647, %v5653
      %v5655 = vcombine.low %v5646, %v5654
      %v5657 = vunpack.c.l.s4 1934713408
      %v5658 = vunpack.c.0.s8 %v5657
      %v5659 = vlaneseq
      %v5660 = vshrl.u32 %v5659, 7
      %v5661 = vsub.s32 %v5658, %v5660
      %v5662 = vrot.slane %v5655, %v5661
      %v5663 = vcombine.high %v5662, 0
      %v5666 = vpack.i.b16 %v5662, %v5637
      %v5667 = vshrl.u32 %v5637, 16
      %v5668 = vshrl.u32 %v5662, 16
      %v5669 = vpack.i.b16 %v5668, %v5667
      %v5672 = vpack.i.b16 %v5663, %v5638
      %v5673 = vshrl.u32 %v5638, 16
      %v5674 = vshrl.u32 %v5663, 16
      %v5675 = vpack.i.b16 %v5674, %v5673
      %v5677 = vsel %vm3503, %v5666, 0
      %v5680 = vsel %vm3503, %v5058, 0
      %5682 = vmatprep.subr.bf16.mxu0 0
      %5683 = vmatpush1.bf16.xpose.msra.mxu0 %v5680
      %5684 = vmatprep.subr.bf16.mxu0 0
      %5685 = vmatpush1.bf16.xpose.msra.mxu0 0
      %5686 = vmatprep.subr.bf16.mxu0 0
      %5687 = vmatpush1.bf16.xpose.msra.mxu0 0
      %5688 = vmatprep.subr.bf16.mxu0 0
      %5689 = vmatpush1.bf16.xpose.msra.mxu0 0
      %5690 = vmatprep.subr.bf16.mxu0 0
      %5691 = vmatpush1.bf16.xpose.msra.mxu0 0
      %5692 = vmatprep.subr.bf16.mxu0 0
      %5693 = vmatpush1.bf16.xpose.msra.mxu0 0
      %5694 = vmatprep.subr.bf16.mxu0 0
      %5695 = vmatpush1.bf16.xpose.msra.mxu0 0
      %5696 = vmatprep.subr.bf16.mxu0 0
      %5697 = vmatpush1.bf16.xpose.msra.mxu0 0
      %5698 = vmatprep.subr.bf16.mxu0 0
      %5699 = vmatpush1.bf16.xpose.msra.mxu0 0
      %5700 = vmatprep.subr.bf16.mxu0 0
      %5701 = vmatpush1.bf16.xpose.msra.mxu0 0
      %5702 = vmatprep.subr.bf16.mxu0 0
      %5703 = vmatpush1.bf16.xpose.msra.mxu0 0
      %5704 = vmatprep.subr.bf16.mxu0 0
      %5705 = vmatpush1.bf16.xpose.msra.mxu0 0
      %5706 = vmatprep.subr.bf16.mxu0 0
      %5707 = vmatpush1.bf16.xpose.msra.mxu0 0
      %5708 = vmatprep.subr.bf16.mxu0 0
      %5709 = vmatpush1.bf16.xpose.msra.mxu0 0
      %5710 = vmatprep.subr.bf16.mxu0 0
      %5711 = vmatpush1.bf16.xpose.msra.mxu0 0
      %5712 = vmatprep.subr.bf16.mxu0 0
      %5713 = vmatpush1.bf16.xpose.msra.mxu0 0
      %5714 = vmatprep.mubr.bf16.mxu0 0
      %5715 = vmatmul.mubr.bf16.gmra.mrb[0].mxu0 %v5677
      %v5716 = vpop.f32.mrb[0].mxu0
      %v5717 = vadd.f32 0.0, %v5716
      %v5718 = vpop.f32.mrb[0].mxu0
      %v5719 = vpop.f32.mrb[0].mxu0
      %v5720 = vpop.f32.mrb[0].mxu0
      %5721 = vdwg.mxu0
      %v5723 = vsel %vm3503, %v5669, 0
      %v5726 = vsel %vm3503, %v5059, 0
      %5728 = vmatprep.subr.bf16.mxu0 0
      %5729 = vmatpush1.bf16.xpose.msra.mxu0 %v5726
      %5730 = vmatprep.subr.bf16.mxu0 0
      %5731 = vmatpush1.bf16.xpose.msra.mxu0 0
      %5732 = vmatprep.subr.bf16.mxu0 0
      %5733 = vmatpush1.bf16.xpose.msra.mxu0 0
      %5734 = vmatprep.subr.bf16.mxu0 0
      %5735 = vmatpush1.bf16.xpose.msra.mxu0 0
      %5736 = vmatprep.subr.bf16.mxu0 0
      %5737 = vmatpush1.bf16.xpose.msra.mxu0 0
      %5738 = vmatprep.subr.bf16.mxu0 0
      %5739 = vmatpush1.bf16.xpose.msra.mxu0 0
      %5740 = vmatprep.subr.bf16.mxu0 0
      %5741 = vmatpush1.bf16.xpose.msra.mxu0 0
      %5742 = vmatprep.subr.bf16.mxu0 0
      %5743 = vmatpush1.bf16.xpose.msra.mxu0 0
      %5744 = vmatprep.subr.bf16.mxu0 0
      %5745 = vmatpush1.bf16.xpose.msra.mxu0 0
      %5746 = vmatprep.subr.bf16.mxu0 0
      %5747 = vmatpush1.bf16.xpose.msra.mxu0 0
      %5748 = vmatprep.subr.bf16.mxu0 0
      %5749 = vmatpush1.bf16.xpose.msra.mxu0 0
      %5750 = vmatprep.subr.bf16.mxu0 0
      %5751 = vmatpush1.bf16.xpose.msra.mxu0 0
      %5752 = vmatprep.subr.bf16.mxu0 0
      %5753 = vmatpush1.bf16.xpose.msra.mxu0 0
      %5754 = vmatprep.subr.bf16.mxu0 0
      %5755 = vmatpush1.bf16.xpose.msra.mxu0 0
      %5756 = vmatprep.subr.bf16.mxu0 0
      %5757 = vmatpush1.bf16.xpose.msra.mxu0 0
      %5758 = vmatprep.subr.bf16.mxu0 0
      %5759 = vmatpush1.bf16.xpose.msra.mxu0 0
      %5760 = vmatprep.mubr.bf16.mxu0 0
      %5761 = vmatmul.mubr.bf16.gmra.mrb[0].mxu0 %v5723
      %v5762 = vpop.f32.mrb[0].mxu0
      %v5763 = vadd.f32 0.0, %v5762
      %v5764 = vpop.f32.mrb[0].mxu0
      %v5765 = vpop.f32.mrb[0].mxu0
      %v5766 = vpop.f32.mrb[0].mxu0
      %5767 = vdwg.mxu0
      %v5769 = vsel %vm3503, %v5672, 0
      %v5772 = vsel %vm3503, %v5060, 0
      %5774 = vmatprep.subr.bf16.mxu0 0
      %5775 = vmatpush1.bf16.xpose.msra.mxu0 %v5772
      %5776 = vmatprep.subr.bf16.mxu0 0
      %5777 = vmatpush1.bf16.xpose.msra.mxu0 0
      %5778 = vmatprep.subr.bf16.mxu0 0
      %5779 = vmatpush1.bf16.xpose.msra.mxu0 0
      %5780 = vmatprep.subr.bf16.mxu0 0
      %5781 = vmatpush1.bf16.xpose.msra.mxu0 0
      %5782 = vmatprep.subr.bf16.mxu0 0
      %5783 = vmatpush1.bf16.xpose.msra.mxu0 0
      %5784 = vmatprep.subr.bf16.mxu0 0
      %5785 = vmatpush1.bf16.xpose.msra.mxu0 0
      %5786 = vmatprep.subr.bf16.mxu0 0
      %5787 = vmatpush1.bf16.xpose.msra.mxu0 0
      %5788 = vmatprep.subr.bf16.mxu0 0
      %5789 = vmatpush1.bf16.xpose.msra.mxu0 0
      %5790 = vmatprep.subr.bf16.mxu0 0
      %5791 = vmatpush1.bf16.xpose.msra.mxu0 0
      %5792 = vmatprep.subr.bf16.mxu0 0
      %5793 = vmatpush1.bf16.xpose.msra.mxu0 0
      %5794 = vmatprep.subr.bf16.mxu0 0
      %5795 = vmatpush1.bf16.xpose.msra.mxu0 0
      %5796 = vmatprep.subr.bf16.mxu0 0
      %5797 = vmatpush1.bf16.xpose.msra.mxu0 0
      %5798 = vmatprep.subr.bf16.mxu0 0
      %5799 = vmatpush1.bf16.xpose.msra.mxu0 0
      %5800 = vmatprep.subr.bf16.mxu0 0
      %5801 = vmatpush1.bf16.xpose.msra.mxu0 0
      %5802 = vmatprep.subr.bf16.mxu0 0
      %5803 = vmatpush1.bf16.xpose.msra.mxu0 0
      %5804 = vmatprep.subr.bf16.mxu0 0
      %5805 = vmatpush1.bf16.xpose.msra.mxu0 0
      %5806 = vmatprep.mubr.bf16.mxu0 0
      %5807 = vmatmul.mubr.bf16.gmra.mrb[0].mxu0 %v5769
      %v5808 = vpop.f32.mrb[0].mxu0
      %v5809 = vadd.f32 0.0, %v5808
      %v5810 = vpop.f32.mrb[0].mxu0
      %v5811 = vpop.f32.mrb[0].mxu0
      %v5812 = vpop.f32.mrb[0].mxu0
      %5813 = vdwg.mxu0
      %v5815 = vsel %vm3503, %v5675, 0
      %v5818 = vsel %vm3503, %v5061, 0
      %5820 = vmatprep.subr.bf16.mxu0 0
      %5821 = vmatpush1.bf16.xpose.msra.mxu0 %v5818
      %5822 = vmatprep.subr.bf16.mxu0 0
      %5823 = vmatpush1.bf16.xpose.msra.mxu0 0
      %5824 = vmatprep.subr.bf16.mxu0 0
      %5825 = vmatpush1.bf16.xpose.msra.mxu0 0
      %5826 = vmatprep.subr.bf16.mxu0 0
      %5827 = vmatpush1.bf16.xpose.msra.mxu0 0
      %5828 = vmatprep.subr.bf16.mxu0 0
      %5829 = vmatpush1.bf16.xpose.msra.mxu0 0
      %5830 = vmatprep.subr.bf16.mxu0 0
      %5831 = vmatpush1.bf16.xpose.msra.mxu0 0
      %5832 = vmatprep.subr.bf16.mxu0 0
      %5833 = vmatpush1.bf16.xpose.msra.mxu0 0
      %5834 = vmatprep.subr.bf16.mxu0 0
      %5835 = vmatpush1.bf16.xpose.msra.mxu0 0
      %5836 = vmatprep.subr.bf16.mxu0 0
      %5837 = vmatpush1.bf16.xpose.msra.mxu0 0
      %5838 = vmatprep.subr.bf16.mxu0 0
      %5839 = vmatpush1.bf16.xpose.msra.mxu0 0
      %5840 = vmatprep.subr.bf16.mxu0 0
      %5841 = vmatpush1.bf16.xpose.msra.mxu0 0
      %5842 = vmatprep.subr.bf16.mxu0 0
      %5843 = vmatpush1.bf16.xpose.msra.mxu0 0
      %5844 = vmatprep.subr.bf16.mxu0 0
      %5845 = vmatpush1.bf16.xpose.msra.mxu0 0
      %5846 = vmatprep.subr.bf16.mxu0 0
      %5847 = vmatpush1.bf16.xpose.msra.mxu0 0
      %5848 = vmatprep.subr.bf16.mxu0 0
      %5849 = vmatpush1.bf16.xpose.msra.mxu0 0
      %5850 = vmatprep.subr.bf16.mxu0 0
      %5851 = vmatpush1.bf16.xpose.msra.mxu0 0
      %5852 = vmatprep.mubr.bf16.mxu0 0
      %5853 = vmatmul.mubr.bf16.gmra.mrb[0].mxu0 %v5815
      %v5854 = vpop.f32.mrb[0].mxu0
      %v5855 = vadd.f32 0.0, %v5854
      %v5856 = vpop.f32.mrb[0].mxu0
      %v5857 = vpop.f32.mrb[0].mxu0
      %v5858 = vpop.f32.mrb[0].mxu0
      %5859 = vdwg.mxu0
      %5860 = vxpose.xlu0.b32.start [1/16] %v5717, 128
      %5861 = vxpose.xlu0.b32.cont [2/16] 0.0, 128
      %5862 = vxpose.xlu0.b32.cont [3/16] 0.0, 128
      %5863 = vxpose.xlu0.b32.cont [4/16] 0.0, 128
      %5864 = vxpose.xlu0.b32.cont [5/16] 0.0, 128
      %5865 = vxpose.xlu0.b32.cont [6/16] 0.0, 128
      %5866 = vxpose.xlu0.b32.cont [7/16] 0.0, 128
      %5867 = vxpose.xlu0.b32.cont [8/16] 0.0, 128
      %5868 = vxpose.xlu0.b32.cont [9/16] 0.0, 128
      %5869 = vxpose.xlu0.b32.cont [10/16] 0.0, 128
      %5870 = vxpose.xlu0.b32.cont [11/16] 0.0, 128
      %5871 = vxpose.xlu0.b32.cont [12/16] 0.0, 128
      %5872 = vxpose.xlu0.b32.cont [13/16] 0.0, 128
      %5873 = vxpose.xlu0.b32.cont [14/16] 0.0, 128
      %5874 = vxpose.xlu0.b32.cont [15/16] 0.0, 128
      %5875 = vxpose.xlu0.b32.end [16/16] 0.0, 128
      %v5876 = vpop.trf.xlu0
      %v5877 = vpop.trf.xlu0
      %v5878 = vpop.trf.xlu0
      %v5879 = vpop.trf.xlu0
      %v5880 = vpop.trf.xlu0
      %v5881 = vpop.trf.xlu0
      %v5882 = vpop.trf.xlu0
      %v5883 = vpop.trf.xlu0
      %v5884 = vpop.trf.xlu0
      %v5885 = vpop.trf.xlu0
      %v5886 = vpop.trf.xlu0
      %v5887 = vpop.trf.xlu0
      %v5888 = vpop.trf.xlu0
      %v5889 = vpop.trf.xlu0
      %v5890 = vpop.trf.xlu0
      %v5891 = vpop.trf.xlu0
      %5892 = vxpose.xlu0.b32.start [1/16] %v5763, 128
      %5893 = vxpose.xlu0.b32.cont [2/16] 0.0, 128
      %5894 = vxpose.xlu0.b32.cont [3/16] 0.0, 128
      %5895 = vxpose.xlu0.b32.cont [4/16] 0.0, 128
      %5896 = vxpose.xlu0.b32.cont [5/16] 0.0, 128
      %5897 = vxpose.xlu0.b32.cont [6/16] 0.0, 128
      %5898 = vxpose.xlu0.b32.cont [7/16] 0.0, 128
      %5899 = vxpose.xlu0.b32.cont [8/16] 0.0, 128
      %5900 = vxpose.xlu0.b32.cont [9/16] 0.0, 128
      %5901 = vxpose.xlu0.b32.cont [10/16] 0.0, 128
      %5902 = vxpose.xlu0.b32.cont [11/16] 0.0, 128
      %5903 = vxpose.xlu0.b32.cont [12/16] 0.0, 128
      %5904 = vxpose.xlu0.b32.cont [13/16] 0.0, 128
      %5905 = vxpose.xlu0.b32.cont [14/16] 0.0, 128
      %5906 = vxpose.xlu0.b32.cont [15/16] 0.0, 128
      %5907 = vxpose.xlu0.b32.end [16/16] 0.0, 128
      %v5908 = vpop.trf.xlu0
      %v5909 = vpop.trf.xlu0
      %v5910 = vpop.trf.xlu0
      %v5911 = vpop.trf.xlu0
      %v5912 = vpop.trf.xlu0
      %v5913 = vpop.trf.xlu0
      %v5914 = vpop.trf.xlu0
      %v5915 = vpop.trf.xlu0
      %v5916 = vpop.trf.xlu0
      %v5917 = vpop.trf.xlu0
      %v5918 = vpop.trf.xlu0
      %v5919 = vpop.trf.xlu0
      %v5920 = vpop.trf.xlu0
      %v5921 = vpop.trf.xlu0
      %v5922 = vpop.trf.xlu0
      %v5923 = vpop.trf.xlu0
      %5924 = vxpose.xlu0.b32.start [1/16] %v5809, 128
      %5925 = vxpose.xlu0.b32.cont [2/16] 0.0, 128
      %5926 = vxpose.xlu0.b32.cont [3/16] 0.0, 128
      %5927 = vxpose.xlu0.b32.cont [4/16] 0.0, 128
      %5928 = vxpose.xlu0.b32.cont [5/16] 0.0, 128
      %5929 = vxpose.xlu0.b32.cont [6/16] 0.0, 128
      %5930 = vxpose.xlu0.b32.cont [7/16] 0.0, 128
      %5931 = vxpose.xlu0.b32.cont [8/16] 0.0, 128
      %5932 = vxpose.xlu0.b32.cont [9/16] 0.0, 128
      %5933 = vxpose.xlu0.b32.cont [10/16] 0.0, 128
      %5934 = vxpose.xlu0.b32.cont [11/16] 0.0, 128
      %5935 = vxpose.xlu0.b32.cont [12/16] 0.0, 128
      %5936 = vxpose.xlu0.b32.cont [13/16] 0.0, 128
      %5937 = vxpose.xlu0.b32.cont [14/16] 0.0, 128
      %5938 = vxpose.xlu0.b32.cont [15/16] 0.0, 128
      %5939 = vxpose.xlu0.b32.end [16/16] 0.0, 128
      %v5940 = vpop.trf.xlu0
      %v5941 = vpop.trf.xlu0
      %v5942 = vpop.trf.xlu0
      %v5943 = vpop.trf.xlu0
      %v5944 = vpop.trf.xlu0
      %v5945 = vpop.trf.xlu0
      %v5946 = vpop.trf.xlu0
      %v5947 = vpop.trf.xlu0
      %v5948 = vpop.trf.xlu0
      %v5949 = vpop.trf.xlu0
      %v5950 = vpop.trf.xlu0
      %v5951 = vpop.trf.xlu0
      %v5952 = vpop.trf.xlu0
      %v5953 = vpop.trf.xlu0
      %v5954 = vpop.trf.xlu0
      %v5955 = vpop.trf.xlu0
      %5956 = vxpose.xlu0.b32.start [1/16] %v5855, 128
      %5957 = vxpose.xlu0.b32.cont [2/16] 0.0, 128
      %5958 = vxpose.xlu0.b32.cont [3/16] 0.0, 128
      %5959 = vxpose.xlu0.b32.cont [4/16] 0.0, 128
      %5960 = vxpose.xlu0.b32.cont [5/16] 0.0, 128
      %5961 = vxpose.xlu0.b32.cont [6/16] 0.0, 128
      %5962 = vxpose.xlu0.b32.cont [7/16] 0.0, 128
      %5963 = vxpose.xlu0.b32.cont [8/16] 0.0, 128
      %5964 = vxpose.xlu0.b32.cont [9/16] 0.0, 128
      %5965 = vxpose.xlu0.b32.cont [10/16] 0.0, 128
      %5966 = vxpose.xlu0.b32.cont [11/16] 0.0, 128
      %5967 = vxpose.xlu0.b32.cont [12/16] 0.0, 128
      %5968 = vxpose.xlu0.b32.cont [13/16] 0.0, 128
      %5969 = vxpose.xlu0.b32.cont [14/16] 0.0, 128
      %5970 = vxpose.xlu0.b32.cont [15/16] 0.0, 128
      %5971 = vxpose.xlu0.b32.end [16/16] 0.0, 128
      %v5972 = vpop.trf.xlu0
      %v5973 = vpop.trf.xlu0
      %v5974 = vpop.trf.xlu0
      %v5975 = vpop.trf.xlu0
      %v5976 = vpop.trf.xlu0
      %v5977 = vpop.trf.xlu0
      %v5978 = vpop.trf.xlu0
      %v5979 = vpop.trf.xlu0
      %v5980 = vpop.trf.xlu0
      %v5981 = vpop.trf.xlu0
      %v5982 = vpop.trf.xlu0
      %v5983 = vpop.trf.xlu0
      %v5984 = vpop.trf.xlu0
      %v5985 = vpop.trf.xlu0
      %v5986 = vpop.trf.xlu0
      %v5987 = vpop.trf.xlu0
      %v5988 = vcombine.low %v5876, %v5940
      %v5989 = vcombine.high %v5876, %v5940
      %v5991 = vunpack.c.l.s4 1983009808
      %v5992 = vunpack.c.0.s8 %v5991
      %v5993 = vlaneseq
      %v5994 = vshrl.u32 %v5993, 7
      %v5995 = vsub.s32 %v5992, %v5994
      %v5996 = vrot.slane %v5988, %v5995
      %v5998 = vunpack.c.l.s4 1983009808
      %v5999 = vunpack.c.0.s8 %v5998
      %v6000 = vlaneseq
      %v6001 = vshrl.u32 %v6000, 7
      %v6002 = vsub.s32 %v5999, %v6001
      %v6003 = vrot.slane %v5989, %v6002
      %v6004 = vcombine.low %v5908, %v5972
      %v6005 = vcombine.high %v5908, %v5972
      %v6007 = vunpack.c.l.s4 1983009808
      %v6008 = vunpack.c.0.s8 %v6007
      %v6009 = vlaneseq
      %v6010 = vshrl.u32 %v6009, 7
      %v6011 = vsub.s32 %v6008, %v6010
      %v6012 = vrot.slane %v6004, %v6011
      %v6014 = vunpack.c.l.s4 1983009808
      %v6015 = vunpack.c.0.s8 %v6014
      %v6016 = vlaneseq
      %v6017 = vshrl.u32 %v6016, 7
      %v6018 = vsub.s32 %v6015, %v6017
      %v6019 = vrot.slane %v6005, %v6018
      %v6020 = vcombine.low %v5996, %v6012
      %v6021 = vcombine.high %v5996, %v6012
      %v6023 = vunpack.c.l.s4 1934713408
      %v6024 = vunpack.c.0.s8 %v6023
      %v6025 = vlaneseq
      %v6026 = vshrl.u32 %v6025, 7
      %v6027 = vsub.s32 %v6024, %v6026
      %v6028 = vrot.slane %v6020, %v6027
      %v6030 = vunpack.c.l.s4 1934713408
      %v6031 = vunpack.c.0.s8 %v6030
      %v6032 = vlaneseq
      %v6033 = vshrl.u32 %v6032, 7
      %v6034 = vsub.s32 %v6031, %v6033
      %v6035 = vrot.slane %v6021, %v6034
      %v6036 = vcombine.low %v6003, %v6019
      %v6037 = vcombine.high %v6003, %v6019
      %v6039 = vunpack.c.l.s4 1934713408
      %v6040 = vunpack.c.0.s8 %v6039
      %v6041 = vlaneseq
      %v6042 = vshrl.u32 %v6041, 7
      %v6043 = vsub.s32 %v6040, %v6042
      %v6044 = vrot.slane %v6036, %v6043
      %v6046 = vunpack.c.l.s4 1934713408
      %v6047 = vunpack.c.0.s8 %v6046
      %v6048 = vlaneseq
      %v6049 = vshrl.u32 %v6048, 7
      %v6050 = vsub.s32 %v6047, %v6049
      %v6051 = vrot.slane %v6037, %v6050
      %v6052 = vcombine.high %v6028, 0.0
      %v6053 = vcombine.high %v6035, 0.0
      %v6054 = vcombine.high %v6044, 0.0
      %v6055 = vcombine.high %v6051, 0.0
      %v6056 = vcombine.low %v6028, %v6035
      %v6058 = vunpack.c.l.s4 1983009808
      %v6059 = vunpack.c.0.s8 %v6058
      %v6060 = vlaneseq
      %v6061 = vshrl.u32 %v6060, 7
      %v6062 = vsub.s32 %v6059, %v6061
      %v6063 = vrot.slane %v6056, %v6062
      %v6064 = vcombine.low %v6052, %v6053
      %v6066 = vunpack.c.l.s4 1983009808
      %v6067 = vunpack.c.0.s8 %v6066
      %v6068 = vlaneseq
      %v6069 = vshrl.u32 %v6068, 7
      %v6070 = vsub.s32 %v6067, %v6069
      %v6071 = vrot.slane %v6064, %v6070
      %v6072 = vcombine.low %v6044, %v6051
      %v6074 = vunpack.c.l.s4 1983009808
      %v6075 = vunpack.c.0.s8 %v6074
      %v6076 = vlaneseq
      %v6077 = vshrl.u32 %v6076, 7
      %v6078 = vsub.s32 %v6075, %v6077
      %v6079 = vrot.slane %v6072, %v6078
      %v6080 = vcombine.low %v6054, %v6055
      %v6082 = vunpack.c.l.s4 1983009808
      %v6083 = vunpack.c.0.s8 %v6082
      %v6084 = vlaneseq
      %v6085 = vshrl.u32 %v6084, 7
      %v6086 = vsub.s32 %v6083, %v6085
      %v6087 = vrot.slane %v6080, %v6086
      %v6088 = vcombine.low %v6063, %v6071
      %v6089 = vcombine.high %v6063, %v6071
      %v6091 = vunpack.c.l.s4 1934713408
      %v6092 = vunpack.c.0.s8 %v6091
      %v6093 = vlaneseq
      %v6094 = vshrl.u32 %v6093, 7
      %v6095 = vsub.s32 %v6092, %v6094
      %v6096 = vrot.slane %v6088, %v6095
      %v6098 = vunpack.c.l.s4 1934713408
      %v6099 = vunpack.c.0.s8 %v6098
      %v6100 = vlaneseq
      %v6101 = vshrl.u32 %v6100, 7
      %v6102 = vsub.s32 %v6099, %v6101
      %v6103 = vrot.slane %v6089, %v6102
      %v6104 = vcombine.low %v6079, %v6087
      %v6105 = vcombine.high %v6079, %v6087
      %v6107 = vunpack.c.l.s4 1934713408
      %v6108 = vunpack.c.0.s8 %v6107
      %v6109 = vlaneseq
      %v6110 = vshrl.u32 %v6109, 7
      %v6111 = vsub.s32 %v6108, %v6110
      %v6112 = vrot.slane %v6104, %v6111
      %v6114 = vunpack.c.l.s4 1934713408
      %v6115 = vunpack.c.0.s8 %v6114
      %v6116 = vlaneseq
      %v6117 = vshrl.u32 %v6116, 7
      %v6118 = vsub.s32 %v6115, %v6117
      %v6119 = vrot.slane %v6105, %v6118
      %v6120 = vcombine.low %v6096, %v6112
      %v6121 = vcombine.high %v6096, %v6112
      %v6122 = vcombine.low %v6103, %v6119
      %v6123 = vcombine.high %v6103, %v6119
      %6125 = vrot.lane.b32.xlu0 %v6121, 8
      %v6126 = vpop.permute.xlu0 %6125
      %6129 = vrot.lane.b32.xlu0 %v6122, 16
      %v6130 = vpop.permute.xlu0 %6129
      %6133 = vrot.lane.b32.xlu0 %v6123, 24
      %v6134 = vpop.permute.xlu0 %6133
      %v6136 = vsel %vm2390, %v6120, %v6126
      %v6137 = vsel %vm3503, %v6136, %v6130
      %v6138 = vsel %vm3505, %v6137, %v6134
      %v6139 = vpack.c.bf16 %v6138, %v6138
      %v6141 = vlaneseq
      %v6142 = vshrl.u32 %v6141, 7
      %v6143 = vsub.s32 0, %v6142
      %v6144 = vrot.slane %v3602, %v6143
      %v6150 = vunpack.c.l.b16 %v3598
      %v6151 = vunpack.c.l.b16 %v3599
      %v6152 = vunpack.c.l.b16 %v3600
      %v6153 = vunpack.c.l.b16 %v3601
      %v6154 = vpack.c.b16 %v6151, %v6150
      %v6155 = vpack.c.b16 %v6153, %v6152
      %v6159 = vsel %vm1543, %v6139, 0
      %6161 = vmatprep.subr.bf16.mxu0 0
      %6162 = vmatpush1.bf16.msra.mxu0 %v6154
      %6163 = vmatprep.subr.bf16.mxu0 0
      %6164 = vmatpush1.bf16.msra.mxu0 %v6155
      %6165 = vmatprep.subr.bf16.mxu0 0
      %6166 = vmatpush1.bf16.msra.mxu0 0
      %6167 = vmatprep.subr.bf16.mxu0 0
      %6168 = vmatpush1.bf16.msra.mxu0 0
      %6169 = vmatprep.subr.bf16.mxu0 0
      %6170 = vmatpush1.bf16.msra.mxu0 0
      %6171 = vmatprep.subr.bf16.mxu0 0
      %6172 = vmatpush1.bf16.msra.mxu0 0
      %6173 = vmatprep.subr.bf16.mxu0 0
      %6174 = vmatpush1.bf16.msra.mxu0 0
      %6175 = vmatprep.subr.bf16.mxu0 0
      %6176 = vmatpush1.bf16.msra.mxu0 0
      %6177 = vmatprep.subr.bf16.mxu0 0
      %6178 = vmatpush1.bf16.msra.mxu0 0
      %6179 = vmatprep.subr.bf16.mxu0 0
      %6180 = vmatpush1.bf16.msra.mxu0 0
      %6181 = vmatprep.subr.bf16.mxu0 0
      %6182 = vmatpush1.bf16.msra.mxu0 0
      %6183 = vmatprep.subr.bf16.mxu0 0
      %6184 = vmatpush1.bf16.msra.mxu0 0
      %6185 = vmatprep.subr.bf16.mxu0 0
      %6186 = vmatpush1.bf16.msra.mxu0 0
      %6187 = vmatprep.subr.bf16.mxu0 0
      %6188 = vmatpush1.bf16.msra.mxu0 0
      %6189 = vmatprep.subr.bf16.mxu0 0
      %6190 = vmatpush1.bf16.msra.mxu0 0
      %6191 = vmatprep.subr.bf16.mxu0 0
      %6192 = vmatpush1.bf16.msra.mxu0 0
      %6193 = vmatprep.mubr.bf16.mxu0 0
      %6194 = vmatmul.mubr.bf16.gmra.mrb[0].mxu0 %v6159
      %v6195 = vpop.f32.mrb[0].mxu0
      %v6196 = vadd.f32 %v6144, %v6195
      %v6197 = vpop.f32.mrb[0].mxu0
      %v6198 = vpop.f32.mrb[0].mxu0
      %v6199 = vpop.f32.mrb[0].mxu0
      %6200 = vdwg.mxu0
      %v6201 = vadd.f32 %v3569, %v6196
      %v6202 = vsel %vm1543, %v6201, 0.0
      %6203 = vadd.xlane.f32.xlu0 %v6202
      %v6204 = vpop.xlane.xlu0 %6203
      %v6205 = vmul.f32 %v6204, %v1547
      %v6206 = vsub.f32 %v6201, %v6205
      %v6207 = vmul.f32 %v6206, %v6206
      %v6208 = vsel %vm1543, %v6207, 0.0
      %6209 = vadd.xlane.f32.xlu0 %v6208
      %v6210 = vpop.xlane.xlu0 %6209
      %v6211 = vmul.f32 %v6210, %v1547
      %v6212 = vadd.f32 %v6211, 1e-05
      %v6213 = vrsqrt.pop %v6212
      %v6214 = vmul.f32 %v6206, %v6213
      %v6215 = vlaneseq
      %v6216 = vshrl.u32 %v6215, 7
      %v6217 = vsub.s32 2, %v6216
      %v6218 = vrot.slane %v1541, %v6217
      %v6219 = vmul.f32 %v6214, %v6218
      %v6220 = vlaneseq
      %v6221 = vshrl.u32 %v6220, 7
      %v6222 = vsub.s32 2, %v6221
      %v6223 = vrot.slane %v1542, %v6222
      %v6224 = vadd.f32 %v6219, %v6223
      %v6225 = vld [vmem:[%s1211] sm:$0xf]
      %v6226 = vld [vmem:[%s1211 + $0x4] sm:$0xf]
      %v6227 = vld [vmem:[%s1211 + $0x8] sm:$0xf]
      %v6228 = vld [vmem:[%s1211 + $0xc] sm:$0xf]
      %v6229 = vpack.c.bf16 %v6224, %v6224
      %v6230 = vld [vmem:[%s1214] sm:$0x1]
      %v6232 = vlaneseq
      %v6233 = vshrl.u32 %v6232, 7
      %v6234 = vsub.s32 0, %v6233
      %v6235 = vrot.slane %v6230, %v6234
      %v6241 = vunpack.c.l.b16 %v6225
      %v6242 = vunpack.c.l.b16 %v6226
      %v6243 = vunpack.c.l.b16 %v6227
      %v6244 = vunpack.c.l.b16 %v6228
      %v6245 = vpack.c.b16 %v6242, %v6241
      %v6246 = vpack.c.b16 %v6244, %v6243
      %v6250 = vsel %vm1543, %v6229, 0
      %6252 = vmatprep.subr.bf16.mxu0 0
      %6253 = vmatpush1.bf16.msra.mxu0 %v6245
      %6254 = vmatprep.subr.bf16.mxu0 0
      %6255 = vmatpush1.bf16.msra.mxu0 %v6246
      %6256 = vmatprep.subr.bf16.mxu0 0
      %6257 = vmatpush1.bf16.msra.mxu0 0
      %6258 = vmatprep.subr.bf16.mxu0 0
      %6259 = vmatpush1.bf16.msra.mxu0 0
      %6260 = vmatprep.subr.bf16.mxu0 0
      %6261 = vmatpush1.bf16.msra.mxu0 0
      %6262 = vmatprep.subr.bf16.mxu0 0
      %6263 = vmatpush1.bf16.msra.mxu0 0
      %6264 = vmatprep.subr.bf16.mxu0 0
      %6265 = vmatpush1.bf16.msra.mxu0 0
      %6266 = vmatprep.subr.bf16.mxu0 0
      %6267 = vmatpush1.bf16.msra.mxu0 0
      %6268 = vmatprep.subr.bf16.mxu0 0
      %6269 = vmatpush1.bf16.msra.mxu0 0
      %6270 = vmatprep.subr.bf16.mxu0 0
      %6271 = vmatpush1.bf16.msra.mxu0 0
      %6272 = vmatprep.subr.bf16.mxu0 0
      %6273 = vmatpush1.bf16.msra.mxu0 0
      %6274 = vmatprep.subr.bf16.mxu0 0
      %6275 = vmatpush1.bf16.msra.mxu0 0
      %6276 = vmatprep.subr.bf16.mxu0 0
      %6277 = vmatpush1.bf16.msra.mxu0 0
      %6278 = vmatprep.subr.bf16.mxu0 0
      %6279 = vmatpush1.bf16.msra.mxu0 0
      %6280 = vmatprep.subr.bf16.mxu0 0
      %6281 = vmatpush1.bf16.msra.mxu0 0
      %6282 = vmatprep.subr.bf16.mxu0 0
      %6283 = vmatpush1.bf16.msra.mxu0 0
      %6284 = vmatprep.mubr.bf16.mxu0 0
      %6285 = vmatmul.mubr.bf16.gmra.mrb[0].mxu0 %v6250
      %v6286 = vpop.f32.mrb[0].mxu0
      %v6287 = vadd.f32 %v6235, %v6286
      %v6288 = vpop.f32.mrb[0].mxu0
      %v6289 = vpop.f32.mrb[0].mxu0
      %v6290 = vpop.f32.mrb[0].mxu0
      %6291 = vdwg.mxu0
      %v6292 = vmax.f32 %v6287, 0.0
      %v6293 = vld [vmem:[%s1219] sm:$0xf]
      %v6294 = vld [vmem:[%s1219 + $0x4] sm:$0xf]
      %v6295 = vld [vmem:[%s1219 + $0x8] sm:$0xf]
      %v6296 = vld [vmem:[%s1219 + $0xc] sm:$0xf]
      %v6297 = vld [vmem:[%s1219 + $0x10] sm:$0xf]
      %v6298 = vld [vmem:[%s1219 + $0x14] sm:$0xf]
      %v6299 = vld [vmem:[%s1219 + $0x18] sm:$0xf]
      %v6300 = vld [vmem:[%s1219 + $0x1c] sm:$0xf]
      %v6301 = vpack.c.bf16 %v6292, %v6292
      %v6310 = vunpack.c.l.b16 %v6293
      %v6311 = vunpack.c.l.b16 %v6294
      %v6312 = vunpack.c.l.b16 %v6295
      %v6313 = vunpack.c.l.b16 %v6296
      %v6314 = vunpack.c.l.b16 %v6297
      %v6315 = vunpack.c.l.b16 %v6298
      %v6316 = vunpack.c.l.b16 %v6299
      %v6317 = vunpack.c.l.b16 %v6300
      %v6318 = vpack.c.b16 %v6311, %v6310
      %v6319 = vpack.c.b16 %v6313, %v6312
      %v6320 = vpack.c.b16 %v6315, %v6314
      %v6321 = vpack.c.b16 %v6317, %v6316
      %vm6326 = vcmask 523264
      %v6328 = vsel %vm6326, %v6301, 0
      %6330 = vmatprep.subr.bf16.mxu0 0
      %6331 = vmatpush1.bf16.msra.mxu0 %v6318
      %6332 = vmatprep.subr.bf16.mxu0 0
      %6333 = vmatpush1.bf16.msra.mxu0 %v6319
      %6334 = vmatprep.subr.bf16.mxu0 0
      %6335 = vmatpush1.bf16.msra.mxu0 %v6320
      %6336 = vmatprep.subr.bf16.mxu0 0
      %6337 = vmatpush1.bf16.msra.mxu0 %v6321
      %6338 = vmatprep.subr.bf16.mxu0 0
      %6339 = vmatpush1.bf16.msra.mxu0 0
      %6340 = vmatprep.subr.bf16.mxu0 0
      %6341 = vmatpush1.bf16.msra.mxu0 0
      %6342 = vmatprep.subr.bf16.mxu0 0
      %6343 = vmatpush1.bf16.msra.mxu0 0
      %6344 = vmatprep.subr.bf16.mxu0 0
      %6345 = vmatpush1.bf16.msra.mxu0 0
      %6346 = vmatprep.subr.bf16.mxu0 0
      %6347 = vmatpush1.bf16.msra.mxu0 0
      %6348 = vmatprep.subr.bf16.mxu0 0
      %6349 = vmatpush1.bf16.msra.mxu0 0
      %6350 = vmatprep.subr.bf16.mxu0 0
      %6351 = vmatpush1.bf16.msra.mxu0 0
      %6352 = vmatprep.subr.bf16.mxu0 0
      %6353 = vmatpush1.bf16.msra.mxu0 0
      %6354 = vmatprep.subr.bf16.mxu0 0
      %6355 = vmatpush1.bf16.msra.mxu0 0
      %6356 = vmatprep.subr.bf16.mxu0 0
      %6357 = vmatpush1.bf16.msra.mxu0 0
      %6358 = vmatprep.subr.bf16.mxu0 0
      %6359 = vmatpush1.bf16.msra.mxu0 0
      %6360 = vmatprep.subr.bf16.mxu0 0
      %6361 = vmatpush1.bf16.msra.mxu0 0
      %6362 = vmatprep.mubr.bf16.mxu0 0
      %6363 = vmatmul.mubr.bf16.gmra.mrb[0].mxu0 %v6328
      %v6364 = vpop.f32.mrb[0].mxu0
      %v6365 = vadd.f32 0.0, %v6364
      %v6366 = vpop.f32.mrb[0].mxu0
      %v6367 = vpop.f32.mrb[0].mxu0
      %v6368 = vpop.f32.mrb[0].mxu0
      %6369 = vdwg.mxu0
      %v6370 = vadd.f32 %v6201, %v6365
      %v6371 = vld [vmem:[%s1222] sm:$0x1]
      %v6373 = vlaneseq
      %v6374 = vshrl.u32 %v6373, 7
      %v6375 = vsub.s32 0, %v6374
      %v6376 = vrot.slane %v6371, %v6375
      %v6378 = vadd.f32 %v6370, %v6376
      %6379 = vst.msk [vmem:[#allocation3] sm:$0xff] %vm1543, %v6378
      %p6380 = scmp.eq.s32.totalorder %s79, 1
      // Predicated region
      $region149: #{medklip_forward.1} parent=143 // pred_check
        %p6381 = pneg %p6380
      $region150: #{medklip_forward.1} parent=143 // pred_check_branch
        %6383 = sbr.rel (%p6381) target = $region152
      $region151: #{medklip_forward.1} parent=143 // pred_region
        %v6384 = vld [vmem:[%s51] sm:$0x1]
        %v6385 = vld [vmem:[%s53] sm:$0x1]
        %v6386 = vsel %vm1543, %v6378, 0.0
        %6387 = vadd.xlane.f32.xlu0 %v6386
        %v6388 = vpop.xlane.xlu0 %6387
        %v6389 = vmul.f32 %v6388, %v1547
        %v6390 = vsub.f32 %v6378, %v6389
        %v6391 = vmul.f32 %v6390, %v6390
        %v6392 = vsel %vm1543, %v6391, 0.0
        %6393 = vadd.xlane.f32.xlu0 %v6392
        %v6394 = vpop.xlane.xlu0 %6393
        %v6395 = vmul.f32 %v6394, %v1547
        %v6396 = vadd.f32 %v6395, 1e-05
        %v6397 = vrsqrt.pop %v6396
        %v6398 = vmul.f32 %v6390, %v6397
        %v6400 = vlaneseq
        %v6401 = vshrl.u32 %v6400, 7
        %v6402 = vsub.s32 0, %v6401
        %v6403 = vrot.slane %v6384, %v6402
        %v6405 = vmul.f32 %v6398, %v6403
        %v6407 = vlaneseq
        %v6408 = vshrl.u32 %v6407, 7
        %v6409 = vsub.s32 0, %v6408
        %v6410 = vrot.slane %v6385, %v6409
        %v6412 = vadd.f32 %v6405, %v6410
        %v6413 = vld [vmem:[%s55] sm:$0xf]
        %v6414 = vld [vmem:[%s55 + $0x4] sm:$0xf]
        %v6415 = vld [vmem:[%s55 + $0x8] sm:$0xf]
        %v6416 = vld [vmem:[%s55 + $0xc] sm:$0xf]
        %v6417 = vpack.c.bf16 %v6412, %v6412
        %v6418 = vld [vmem:[%s57] sm:$0x1]
        %v6420 = vlaneseq
        %v6421 = vshrl.u32 %v6420, 7
        %v6422 = vsub.s32 0, %v6421
        %v6423 = vrot.slane %v6418, %v6422
        %v6429 = vunpack.c.l.b16 %v6413
        %v6430 = vunpack.c.l.b16 %v6414
        %v6431 = vunpack.c.l.b16 %v6415
        %v6432 = vunpack.c.l.b16 %v6416
        %v6433 = vpack.c.b16 %v6430, %v6429
        %v6434 = vpack.c.b16 %v6432, %v6431
        %v6438 = vsel %vm1543, %v6417, 0
        %6440 = vmatprep.subr.bf16.mxu0 0
        %6441 = vmatpush1.bf16.msra.mxu0 %v6433
        %6442 = vmatprep.subr.bf16.mxu0 0
        %6443 = vmatpush1.bf16.msra.mxu0 %v6434
        %6444 = vmatprep.subr.bf16.mxu0 0
        %6445 = vmatpush1.bf16.msra.mxu0 0
        %6446 = vmatprep.subr.bf16.mxu0 0
        %6447 = vmatpush1.bf16.msra.mxu0 0
        %6448 = vmatprep.subr.bf16.mxu0 0
        %6449 = vmatpush1.bf16.msra.mxu0 0
        %6450 = vmatprep.subr.bf16.mxu0 0
        %6451 = vmatpush1.bf16.msra.mxu0 0
        %6452 = vmatprep.subr.bf16.mxu0 0
        %6453 = vmatpush1.bf16.msra.mxu0 0
        %6454 = vmatprep.subr.bf16.mxu0 0
        %6455 = vmatpush1.bf16.msra.mxu0 0
        %6456 = vmatprep.subr.bf16.mxu0 0
        %6457 = vmatpush1.bf16.msra.mxu0 0
        %6458 = vmatprep.subr.bf16.mxu0 0
        %6459 = vmatpush1.bf16.msra.mxu0 0
        %6460 = vmatprep.subr.bf16.mxu0 0
        %6461 = vmatpush1.bf16.msra.mxu0 0
        %6462 = vmatprep.subr.bf16.mxu0 0
        %6463 = vmatpush1.bf16.msra.mxu0 0
        %6464 = vmatprep.subr.bf16.mxu0 0
        %6465 = vmatpush1.bf16.msra.mxu0 0
        %6466 = vmatprep.subr.bf16.mxu0 0
        %6467 = vmatpush1.bf16.msra.mxu0 0
        %6468 = vmatprep.subr.bf16.mxu0 0
        %6469 = vmatpush1.bf16.msra.mxu0 0
        %6470 = vmatprep.subr.bf16.mxu0 0
        %6471 = vmatpush1.bf16.msra.mxu0 0
        %6472 = vmatprep.mubr.bf16.mxu0 0
        %6473 = vmatmul.mubr.bf16.gmra.mrb[0].mxu0 %v6438
        %v6474 = vpop.f32.mrb[0].mxu0
        %v6475 = vadd.f32 %v6423, %v6474
        %v6476 = vpop.f32.mrb[0].mxu0
        %v6477 = vpop.f32.mrb[0].mxu0
        %v6478 = vpop.f32.mrb[0].mxu0
        %6479 = vdwg.mxu0
        %v6480 = vld [vmem:[%s59] sm:$0xf]
        %v6481 = vld [vmem:[%s59 + $0x4] sm:$0xf]
        %v6482 = vld [vmem:[%s59 + $0x8] sm:$0xf]
        %v6483 = vld [vmem:[%s59 + $0xc] sm:$0xf]
        %v6484 = vld [vmem:[%s61] sm:$0x1]
        %v6486 = vlaneseq
        %v6487 = vshrl.u32 %v6486, 7
        %v6488 = vsub.s32 0, %v6487
        %v6489 = vrot.slane %v6484, %v6488
        %v6495 = vunpack.c.l.b16 %v6480
        %v6496 = vunpack.c.l.b16 %v6481
        %v6497 = vunpack.c.l.b16 %v6482
        %v6498 = vunpack.c.l.b16 %v6483
        %v6499 = vpack.c.b16 %v6496, %v6495
        %v6500 = vpack.c.b16 %v6498, %v6497
        %6503 = vmatprep.subr.bf16.mxu0 0
        %6504 = vmatpush1.bf16.msra.mxu0 %v6499
        %6505 = vmatprep.subr.bf16.mxu0 0
        %6506 = vmatpush1.bf16.msra.mxu0 %v6500
        %6507 = vmatprep.subr.bf16.mxu0 0
        %6508 = vmatpush1.bf16.msra.mxu0 0
        %6509 = vmatprep.subr.bf16.mxu0 0
        %6510 = vmatpush1.bf16.msra.mxu0 0
        %6511 = vmatprep.subr.bf16.mxu0 0
        %6512 = vmatpush1.bf16.msra.mxu0 0
        %6513 = vmatprep.subr.bf16.mxu0 0
        %6514 = vmatpush1.bf16.msra.mxu0 0
        %6515 = vmatprep.subr.bf16.mxu0 0
        %6516 = vmatpush1.bf16.msra.mxu0 0
        %6517 = vmatprep.subr.bf16.mxu0 0
        %6518 = vmatpush1.bf16.msra.mxu0 0
        %6519 = vmatprep.subr.bf16.mxu0 0
        %6520 = vmatpush1.bf16.msra.mxu0 0
        %6521 = vmatprep.subr.bf16.mxu0 0
        %6522 = vmatpush1.bf16.msra.mxu0 0
        %6523 = vmatprep.subr.bf16.mxu0 0
        %6524 = vmatpush1.bf16.msra.mxu0 0
        %6525 = vmatprep.subr.bf16.mxu0 0
        %6526 = vmatpush1.bf16.msra.mxu0 0
        %6527 = vmatprep.subr.bf16.mxu0 0
        %6528 = vmatpush1.bf16.msra.mxu0 0
        %6529 = vmatprep.subr.bf16.mxu0 0
        %6530 = vmatpush1.bf16.msra.mxu0 0
        %6531 = vmatprep.subr.bf16.mxu0 0
        %6532 = vmatpush1.bf16.msra.mxu0 0
        %6533 = vmatprep.subr.bf16.mxu0 0
        %6534 = vmatpush1.bf16.msra.mxu0 0
        %6535 = vmatprep.mubr.bf16.mxu0 0
        %6536 = vmatmul.mubr.bf16.gmra.mrb[0].mxu0 %v6438
        %v6537 = vpop.f32.mrb[0].mxu0
        %v6538 = vadd.f32 %v6489, %v6537
        %v6539 = vpop.f32.mrb[0].mxu0
        %v6540 = vpop.f32.mrb[0].mxu0
        %v6541 = vpop.f32.mrb[0].mxu0
        %6542 = vdwg.mxu0
        %v6543 = vld [vmem:[%s1166] sm:$0xff]
        %v6544 = vld [vmem:[%s1166 + $0x8] sm:$0xff]
        %v6545 = vld [vmem:[%s1166 + $0x10] sm:$0xff]
        %v6546 = vld [vmem:[%s1166 + $0x18] sm:$0xff]
        %v6547 = vld [vmem:[%s1166 + $0x20] sm:$0xff]
        %v6548 = vld [vmem:[%s1166 + $0x28] sm:$0xff]
        %v6549 = vld [vmem:[%s1166 + $0x30] sm:$0xff]
        %v6550 = vld [vmem:[%s1166 + $0x38] sm:$0xff]
        %v6552 = vcombine.high %v6538, %v6538
        %v6554 = vunpack.c.l.s4 1966171168
        %v6555 = vunpack.c.0.s8 %v6554
        %v6556 = vlaneseq
        %v6557 = vshrl.u32 %v6556, 7
        %v6558 = vsub.s32 %v6555, %v6557
        %v6559 = vrot.slane %v6538, %v6558
        %v6561 = vunpack.c.l.s4 1966171168
        %v6562 = vunpack.c.0.s8 %v6561
        %v6563 = vlaneseq
        %v6564 = vshrl.u32 %v6563, 7
        %v6565 = vsub.s32 %v6562, %v6564
        %v6566 = vrot.slane %v6552, %v6565
        %v6567 = vcombine.high %v6559, %v6559
        %v6568 = vcombine.high %v6566, %v6566
        %v6570 = vunpack.c.l.s4 1966171168
        %v6571 = vunpack.c.0.s8 %v6570
        %v6572 = vlaneseq
        %v6573 = vshrl.u32 %v6572, 7
        %v6574 = vsub.s32 %v6571, %v6573
        %v6575 = vrot.slane %v6559, %v6574
        %v6577 = vunpack.c.l.s4 1966171168
        %v6578 = vunpack.c.0.s8 %v6577
        %v6579 = vlaneseq
        %v6580 = vshrl.u32 %v6579, 7
        %v6581 = vsub.s32 %v6578, %v6580
        %v6582 = vrot.slane %v6566, %v6581
        %v6584 = vunpack.c.l.s4 1966171168
        %v6585 = vunpack.c.0.s8 %v6584
        %v6586 = vlaneseq
        %v6587 = vshrl.u32 %v6586, 7
        %v6588 = vsub.s32 %v6585, %v6587
        %v6589 = vrot.slane %v6567, %v6588
        %v6591 = vunpack.c.l.s4 1966171168
        %v6592 = vunpack.c.0.s8 %v6591
        %v6593 = vlaneseq
        %v6594 = vshrl.u32 %v6593, 7
        %v6595 = vsub.s32 %v6592, %v6594
        %v6596 = vrot.slane %v6568, %v6595
        %v6597 = vcombine.high %v6575, %v6575
        %v6598 = vcombine.high %v6582, %v6582
        %v6599 = vcombine.high %v6589, %v6589
        %v6600 = vcombine.high %v6596, %v6596
        %v6601 = vlaneseq
        %v6602 = vshrl.u32 %v6601, 7
        %v6603 = vsub.s32 0, %v6602
        %v6604 = vrot.slane %v6575, %v6603
        %v6605 = vlaneseq
        %v6606 = vshrl.u32 %v6605, 7
        %v6607 = vsub.s32 0, %v6606
        %v6608 = vrot.slane %v6589, %v6607
        %v6609 = vlaneseq
        %v6610 = vshrl.u32 %v6609, 7
        %v6611 = vsub.s32 0, %v6610
        %v6612 = vrot.slane %v6597, %v6611
        %v6613 = vlaneseq
        %v6614 = vshrl.u32 %v6613, 7
        %v6615 = vsub.s32 0, %v6614
        %v6616 = vrot.slane %v6599, %v6615
        %v6617 = vlaneseq
        %v6618 = vshrl.u32 %v6617, 7
        %v6619 = vsub.s32 0, %v6618
        %v6620 = vrot.slane %v6582, %v6619
        %v6621 = vlaneseq
        %v6622 = vshrl.u32 %v6621, 7
        %v6623 = vsub.s32 0, %v6622
        %v6624 = vrot.slane %v6596, %v6623
        %v6625 = vlaneseq
        %v6626 = vshrl.u32 %v6625, 7
        %v6627 = vsub.s32 0, %v6626
        %v6628 = vrot.slane %v6598, %v6627
        %v6629 = vlaneseq
        %v6630 = vshrl.u32 %v6629, 7
        %v6631 = vsub.s32 0, %v6630
        %v6632 = vrot.slane %v6600, %v6631
        %v6641 = vmul.f32 %v6543, %v6604
        %v6642 = vmul.f32 %v6544, %v6608
        %v6643 = vmul.f32 %v6545, %v6612
        %v6644 = vmul.f32 %v6546, %v6616
        %v6645 = vmul.f32 %v6547, %v6620
        %v6646 = vmul.f32 %v6548, %v6624
        %v6647 = vmul.f32 %v6549, %v6628
        %v6648 = vmul.f32 %v6550, %v6632
        %v6649 = vsel %vm6326, %v6641, 0.0
        %6650 = vadd.xlane.f32.xlu0 %v6649
        %v6651 = vpop.xlane.xlu0 %6650
        %v6652 = vsel %vm6326, %v6642, 0.0
        %6653 = vadd.xlane.f32.xlu0 %v6652
        %v6654 = vpop.xlane.xlu0 %6653
        %v6655 = vsel %vm6326, %v6643, 0.0
        %6656 = vadd.xlane.f32.xlu0 %v6655
        %v6657 = vpop.xlane.xlu0 %6656
        %v6658 = vsel %vm6326, %v6644, 0.0
        %6659 = vadd.xlane.f32.xlu0 %v6658
        %v6660 = vpop.xlane.xlu0 %6659
        %v6661 = vsel %vm6326, %v6645, 0.0
        %6662 = vadd.xlane.f32.xlu0 %v6661
        %v6663 = vpop.xlane.xlu0 %6662
        %v6664 = vsel %vm6326, %v6646, 0.0
        %6665 = vadd.xlane.f32.xlu0 %v6664
        %v6666 = vpop.xlane.xlu0 %6665
        %v6667 = vsel %vm6326, %v6647, 0.0
        %6668 = vadd.xlane.f32.xlu0 %v6667
        %v6669 = vpop.xlane.xlu0 %6668
        %v6670 = vsel %vm6326, %v6648, 0.0
        %6671 = vadd.xlane.f32.xlu0 %v6670
        %v6672 = vpop.xlane.xlu0 %6671
        %v6681 = vlaneseq
        %v6682 = vand.u32 %v6681, 127
        %v6683 = vadd.s32 %v6682, 4294967294
        %v6684 = vlaneseq
        %v6685 = vshrl.u32 %v6684, 7
        %v6686 = vsub.s32 %v6683, %v6685
        %v6687 = vrot.slane %v6651, %v6686
        %v6688 = vlaneseq
        %v6689 = vshrl.u32 %v6688, 7
        %v6690 = vsub.s32 %v6683, %v6689
        %v6691 = vrot.slane %v6654, %v6690
        %v6692 = vlaneseq
        %v6693 = vshrl.u32 %v6692, 7
        %v6694 = vsub.s32 %v6683, %v6693
        %v6695 = vrot.slane %v6657, %v6694
        %v6696 = vlaneseq
        %v6697 = vshrl.u32 %v6696, 7
        %v6698 = vsub.s32 %v6683, %v6697
        %v6699 = vrot.slane %v6660, %v6698
        %v6700 = vlaneseq
        %v6701 = vshrl.u32 %v6700, 7
        %v6702 = vsub.s32 %v6683, %v6701
        %v6703 = vrot.slane %v6663, %v6702
        %v6704 = vlaneseq
        %v6705 = vshrl.u32 %v6704, 7
        %v6706 = vsub.s32 %v6683, %v6705
        %v6707 = vrot.slane %v6666, %v6706
        %v6708 = vlaneseq
        %v6709 = vshrl.u32 %v6708, 7
        %v6710 = vsub.s32 %v6683, %v6709
        %v6711 = vrot.slane %v6669, %v6710
        %v6712 = vlaneseq
        %v6713 = vshrl.u32 %v6712, 7
        %v6714 = vsub.s32 %v6683, %v6713
        %v6715 = vrot.slane %v6672, %v6714
        %vm6716 = vcmask 1041409
        %v6717 = vsel %vm6716, %v6691, %v6687
        %vm6718 = vcmask 1042434
        %v6719 = vsel %vm6718, %v6695, %v6717
        %vm6720 = vcmask 1043459
        %v6721 = vsel %vm6720, %v6699, %v6719
        %vm6722 = vcmask 1044484
        %v6723 = vsel %vm6722, %v6703, %v6721
        %vm6724 = vcmask 1045509
        %v6725 = vsel %vm6724, %v6707, %v6723
        %vm6726 = vcmask 1046534
        %v6727 = vsel %vm6726, %v6711, %v6725
        %vm6728 = vcmask 1047559
        %v6729 = vsel %vm6728, %v6715, %v6727
        %vm6731 = vcmask 15360
        %v6732 = vsel %vm6731, %v6475, %v6729
        %vm6733 = vcmask 80896
        %v6734 = vsel %vm6733, %v6732, 0.0
        %6735 = vst [vmem:[%s1226] sm:$0xff] %v6734
      $region152: #{medklip_forward.1} parent=143 // pred_fallthru
        _
      %p6736 = scmp.lt.s32.totalorder %s78, 1
      %s6737 = scalar_select %p6736, %s78, 1
      %s6738 = smul.addr %s6737, 8
      %s6739 = scalar_lea.vmem %s63, %s6738
      // Predicated region
      $region153: #{medklip_forward.1} parent=143 // pred_check
        %p6740 = pneg %p835
      $region154: #{medklip_forward.1} parent=143 // pred_check_branch
        %6742 = sbr.rel (%p6740) target = $region156
      $region155: #{medklip_forward.1} parent=143 // pred_region
        _
      $region156: #{medklip_forward.1} parent=143 // pred_fallthru
        _
    $region144: #{medklip_forward.1} parent=5 // pred_fallthru
      _
    %p6743 = scmp.le.s32.totalorder 2, %s69
    // Predicated region
    $region157: #{medklip_forward.1} parent=5 // pred_check
      %p6744 = pneg %p6743
    $region158: #{medklip_forward.1} parent=5 // pred_check_branch
      %6746 = sbr.rel (%p6744) target = $region160
    $region159: #{medklip_forward.1} parent=5 // pred_region
      %s6747 = ssub.s32 %s69, 2
      // Predicated region
      $region161: #{medklip_forward.1} parent=159 // pred_check
        %p6748 = pneg %p841
      $region162: #{medklip_forward.1} parent=159 // pred_check_branch
        %6750 = sbr.rel (%p6748) target = $region164
      $region163: #{medklip_forward.1} parent=159 // pred_region
        %p6751 = scmp.lt.s32.totalorder %s80, 1
        %s6752 = scalar_select %p6751, %s80, 1
        %s6753 = smul.addr %s6752, 8
        %s6754 = scalar_lea.vmem %s63, %s6753
      $region164: #{medklip_forward.1} parent=159 // pred_fallthru
        _
    $region160: #{medklip_forward.1} parent=5 // pred_fallthru
      _
  $region6: #{medklip_forward.1} parent=0 // loop_footer
    %s73 = sadd.s32 1, %s69
  $region7: #{medklip_forward.1} parent=0 // loop_footer_branch
    %68 = sbr.rel target = $region3
  $region8: #{medklip_forward.1} parent=0 // loop_exit
    _

</llo_original>
